<compile_context>
chip_gen: v7x
topology: tpu7x:2x2x1
jax: 0.10.0
libtpu: 0.0.40
codegen_flags: <defaults>
</compile_context>

<pallas_src>
import jax
import jax.numpy as jnp
from jax.experimental import pallas as pl
from jax.experimental.pallas import tpu as pltpu

_LANES = 128
_OFF8 = tuple((ky, kx) for ky in range(3) for kx in range(3) if (ky, kx) != (1, 1))
_OFF9 = tuple((ky, kx) for ky in range(3) for kx in range(3))


def _round_up(v, m):
    return ((v + m - 1) // m) * m


# ---------------------------------------------------------------------------
# Fused ASPP forward kernel (pool + dilated branches + concat + bottleneck)
# ---------------------------------------------------------------------------

def _make_aspp_kernel(dilations, cin, cin_p, cout, ccat, H, Ws, r0x):
    dil3 = tuple(d for d in dilations if d != 1)
    n_br = len(dilations)
    Hc = H + 4                       # concat rows: guard, halo, H valid, halo, guard
    Lc = Hc * Ws                     # concat-slab length
    Lo = H * Ws                      # output slab length
    center_off = (r0x - 2) * Ws      # offset of the (ky=1,kx=1) / 1x1 tap
    Kbr = (1 + 8 * len(dil3)) * cin_p
    x0 = r0x * Ws                    # where the column-padded image rows sit in the slab
    wb0 = (1 + n_br) * cout          # first bottleneck row inside w_all / b_all

    def kernel(x_ref, w_ref, b_ref, m_ref, o_ref, slab_ref, cat_ref):
        # ---- build the zero-padded input slab in VMEM (rows + channels padded here,
        #      so HBM only carries the column-padded image).  All offsets are
        #      multiples of Ws (a multiple of 128) -> dense, unmasked stores.
        slab_ref[...] = jnp.zeros_like(slab_ref)
        slab_ref[0:cin, x0:x0 + Lo] = x_ref[0]

        mask = m_ref[...]                                       # (1, Lc)
        center = slab_ref[:, center_off:center_off + Lc]        # (cin_p, Lc), lane-aligned

        # ---- image-pool branch: GAP -> 1x1 conv -> BN -> ReLU -> broadcast.
        # Reduce FIRST (XLU lane-sum; zeros outside the valid window make the slab sum
        # equal the global sum), then one tiny MXU dot.  1/(H*W) and the BN scale are
        # folded into the weight.
        s = jnp.sum(center, axis=1, keepdims=True)              # (cin_p, 1)
        s_bc = jnp.broadcast_to(s, (cin_p, _LANES))              # keep dot N = one lane tile
        y = jnp.dot(w_ref[0:cout, 0:cin_p], s_bc,
                    preferred_element_type=jnp.float32)[:, 0:1]  # (cout, 1)
        cat_ref[0:cout, :] = jnp.maximum(y + b_ref[0:cout], 0.0) * mask

        # ---- ALL ASPP branches fused into ONE matmul.  Tap block 0 is the shared
        # center tap (used by the 1x1 branch and as every 3x3 branch's (1,1) tap);
        # each dilated branch owns 8 further tap blocks.  The weight is
        # block-structured so the result rows map 1:1 onto cat_ref[cout:ccat].
        pieces = [center]
        for d in dil3:
            for (ky, kx) in _OFF8:
                off = center_off + (ky - 1) * d * Ws + (kx - 1) * d
                pieces.append(slab_ref[:, off:off + Lc])
        taps = jnp.concatenate(pieces, axis=0)                   # (Kbr, Lc)
        br = jnp.dot(w_ref[cout:cout + n_br * cout, 0:Kbr], taps,
                     preferred_element_type=jnp.float32)         # (n_br*cout, Lc)
        cat_ref[cout:ccat, :] = (
            jnp.maximum(br + b_ref[cout:cout + n_br * cout], 0.0) * mask)

        # ---- bottleneck: 3x3 conv (pad=1) over the zero-haloed concat slab.
        # Nine accumulating dots straight off cat_ref views - no (9*Ccat, Lo) im2col.
        acc = jnp.zeros((cout, Lo), jnp.float32)
        for t, (ky, kx) in enumerate(_OFF9):
            off = (ky + 1) * Ws + (kx - 1)
            acc = acc + jnp.dot(w_ref[wb0:wb0 + cout, t * ccat:(t + 1) * ccat],
                                cat_ref[:, off:off + Lo],
                                preferred_element_type=jnp.float32)
        o_ref[0] = jnp.maximum(acc + b_ref[wb0:wb0 + cout], 0.0)  # (cout, Lo), dense store

    return kernel


def aspp_wrapper_forward(x_nchw, kparams, dilations):
    """Fused Pallas implementation of ASPPWrapper.forward.  Input/output NCHW."""
    N, Cin, H, W = x_nchw.shape
    cout = kparams["cout"]
    cin_p = kparams["cin_p"]
    n_br = len(dilations)
    ccat = (n_br + 1) * cout
    dil3 = tuple(d for d in dilations if d != 1)
    Kbr = (1 + 8 * len(dil3)) * cin_p

    dmax = max(dilations)
    pp = dmax + 1                          # left column pad (>= dmax, +1 guard)
    Ws = _round_up(W + 2 * pp, _LANES)     # lane-aligned shared row stride of all slabs
    r0x = dmax + 3                         # row pad of the input slab
    Hpx = H + 2 * r0x
    Hc = H + 4
    Lc = Hc * Ws
    Lo = H * Ws

    x = x_nchw.astype(jnp.float32)
    # Only the column pad is materialized in HBM; row/channel padding happens in VMEM.
    x_cols = jnp.pad(x, ((0, 0), (0, 0), (0, 0), (pp, Ws - W - pp)))
    x_cols = x_cols.reshape(N, Cin, H * Ws)

    # 0/1 mask of the valid HxW region inside the concat slab.
    mask = jnp.zeros((Hc, Ws), jnp.float32).at[2:H + 2, pp:pp + W].set(1.0)
    mask = mask.reshape(1, Lc)

    w_all, b_all = kparams["w_all"], kparams["b_all"]

    flops = 2 * N * (cout * cin_p * _LANES
                     + n_br * cout * Kbr * Lc
                     + 9 * cout * ccat * Lo)
    hbm_bytes = 4 * (N * (Cin * H * Ws + cout * Lo) + w_all.size + b_all.size + mask.size)
    # Advisory: include the in-kernel tap-staging / cat_ref traffic so XLA does not
    # under-schedule this kernel relative to its real VMEM copy cost.
    vmem_bytes = 4 * N * (2 * Kbr * Lc + 2 * ccat * Lc + 9 * ccat * Lo)

    kernel = _make_aspp_kernel(dilations, Cin, cin_p, cout, ccat, H, Ws, r0x)

    out_slab = pl.pallas_call(
        kernel,
        out_shape=jax.ShapeDtypeStruct((N, cout, Lo), jnp.float32),
        grid=(N,),
        in_specs=[
            pl.BlockSpec((1, Cin, H * Ws), lambda n: (n, 0, 0)),
            pl.BlockSpec(w_all.shape, lambda n: (0, 0)),
            pl.BlockSpec(b_all.shape, lambda n: (0, 0)),
            pl.BlockSpec(mask.shape, lambda n: (0, 0)),
        ],
        out_specs=pl.BlockSpec((1, cout, Lo), lambda n: (n, 0, 0)),
        scratch_shapes=[
            pltpu.VMEM((cin_p, Hpx * Ws), jnp.float32),   # zero-padded input slab
            pltpu.VMEM((ccat, Lc), jnp.float32),          # concat slab
        ],
        compiler_params=pltpu.CompilerParams(
            dimension_semantics=("parallel",),
            vmem_limit_bytes=32 * 1024 * 1024),
        cost_estimate=pl.CostEstimate(flops=int(flops), transcendentals=0,
                                      bytes_accessed=int(hbm_bytes + vmem_bytes)),
    )(x_cols, w_all, b_all, mask)

    # Slice out the W valid columns of each row -> NCHW output.
    out = out_slab.reshape(N, cout, H, Ws)[:, :, :, pp:pp + W]
    return out


# ---------------------------------------------------------------------------
# Parameter construction (synthetic weights) + host-side packing/folding
# ---------------------------------------------------------------------------

def fold_bn(gamma, beta, mean, var, eps=1e-5):
    scale = gamma / jnp.sqrt(var + eps)
    bias = beta - mean * scale
    return scale, bias


def make_conv_bn_params(key, kh, kw, cin, cout):
    k1, k2, k3, k4, k5 = jax.random.split(key, 5)
    w = 0.1 * jax.random.normal(k1, (kh, kw, cin, cout), jnp.float32)     # HWIO
    gamma = 1.0 + 0.1 * jax.random.normal(k2, (cout,), jnp.float32)
    beta = 0.1 * jax.random.normal(k3, (cout,), jnp.float32)
    mean = 0.1 * jax.random.normal(k4, (cout,), jnp.float32)
    var = 0.5 + 0.5 * jnp.abs(jax.random.normal(k5, (cout,), jnp.float32))
    scale, bias = fold_bn(gamma, beta, mean, var)
    return w, scale, bias


def make_aspp_params(key, in_channels, channels, dilations):
    keys = jax.random.split(key, len(dilations) + 2)
    params = {"pool": make_conv_bn_params(keys[0], 1, 1, in_channels, channels)}
    branches = []
    for i, d in enumerate(dilations):
        k = 1 if d == 1 else 3
        branches.append(make_conv_bn_params(keys[1 + i], k, k, in_channels, channels))
    params["aspp"] = branches
    cat_ch = (len(dilations) + 1) * channels
    params["bottleneck"] = make_conv_bn_params(keys[-1], 3, 3, cat_ch, channels)
    return params


def pack_params_for_kernel(params, dilations, H, W, in_channels, channels):
    """Fold BN scales into the conv weights and pack everything into ONE weight slab
    (rows = [pool | branch block | bottleneck]) and ONE bias column."""
    cin = in_channels
    cin_p = _round_up(max(cin, 8), 8)        # pad Cin to a full sublane group
    cout = channels
    n_br = len(dilations)
    dil3 = tuple(d for d in dilations if d != 1)
    ccat = (n_br + 1) * cout
    Kbr = (1 + 8 * len(dil3)) * cin_p
    Kbot = 9 * ccat
    wmax = max(cin_p, Kbr, Kbot)
    rows = (2 + n_br) * cout

    w_all = jnp.zeros((rows, wmax), jnp.float32)
    b_all = jnp.zeros((rows, 1), jnp.float32)

    def fold(w_hwio, scale, extra=1.0):
        return w_hwio * (scale[None, None, None, :] * extra)

    # -- pool: fold BN scale AND the 1/(H*W) of the global average pool into the weight.
    pw, ps, pb = params["pool"]
    wp = fold(pw, ps, 1.0 / (H * W))[0, 0]                       # (cin, cout)
    w_all = w_all.at[0:cout, 0:cin].set(wp.T)
    b_all = b_all.at[0:cout, 0].set(pb)

    # -- ASPP branches -> one block-structured (n_br*cout, Kbr) weight.
    #    Tap block 0 = shared center tap; dilated branch di owns blocks 1+8*di .. 8+8*di.
    di = 0
    for bi, d in enumerate(dilations):
        w, s, b = params["aspp"][bi]
        wf = fold(w, s)
        r0 = (1 + bi) * cout
        b_all = b_all.at[r0:r0 + cout, 0].set(b)
        if d == 1:
            w_all = w_all.at[r0:r0 + cout, 0:cin].set(wf[0, 0].T)
        else:
            w_all = w_all.at[r0:r0 + cout, 0:cin].set(wf[1, 1].T)
            for ti, (ky, kx) in enumerate(_OFF8):
                c0 = (1 + 8 * di + ti) * cin_p
                w_all = w_all.at[r0:r0 + cout, c0:c0 + cin].set(wf[ky, kx].T)
            di += 1

    # -- bottleneck 3x3: (cout, 9*ccat), tap-major / concat-channel-minor.
    bw, bs, bb = params["bottleneck"]
    wbf = fold(bw, bs)
    rb = (1 + n_br) * cout
    w_all = w_all.at[rb:rb + cout, 0:Kbot].set(
        jnp.transpose(wbf, (3, 0, 1, 2)).reshape(cout, Kbot))
    b_all = b_all.at[rb:rb + cout, 0].set(bb)

    return {"w_all": w_all, "b_all": b_all, "cin_p": cin_p, "cout": cout}


# ---------------------------------------------------------------------------
# Pure-JAX reference (lax.conv_general_dilated) for the correctness check
# ---------------------------------------------------------------------------

def _ref_conv_bn_relu(x_nhwc, w_hwio, scale, bias, dilation):
    kh = w_hwio.shape[0]
    pad = dilation * (kh // 2)
    y = jax.lax.conv_general_dilated(
        x_nhwc, w_hwio, window_strides=(1, 1),
        padding=[(pad, pad), (pad, pad)],
        rhs_dilation=(dilation, dilation),
        dimension_numbers=("NHWC", "HWIO", "NHWC"))
    return jnp.maximum(y * scale + bias, 0.0)


def aspp_wrapper_forward_ref(x_nchw, params, dilations):
    x = jnp.transpose(x_nchw, (0, 2, 3, 1)).astype(jnp.float32)
    N, H, W, Cin = x.shape
    outs = []
    pw, ps, pb = params["pool"]
    m = jnp.mean(x, axis=(1, 2), keepdims=True)                   # (N,1,1,Cin)
    y = jnp.einsum("nhwc,co->nhwo", m, pw[0, 0])
    y = jnp.maximum(y * ps + pb, 0.0)
    outs.append(jnp.broadcast_to(y, (N, H, W, pw.shape[-1])))
    for d, (w, s, b) in zip(dilations, params["aspp"]):
        outs.append(_ref_conv_bn_relu(x, w, s, b, d))
    cat = jnp.concatenate(outs, axis=-1)
    bw, bs, bb = params["bottleneck"]
    out = _ref_conv_bn_relu(cat, bw, bs, bb, 1)
    return jnp.transpose(out, (0, 3, 1, 2))


# ---------------------------------------------------------------------------

if __name__ == "__main__":
    in_channels, channels = 4, 8
    dilations = (1, 6, 12, 18)
    N, H, W = 2, 16, 16

    root = jax.random.PRNGKey(0)
    kx, kp = jax.random.split(root)
    x = jax.random.normal(kx, (N, in_channels, H, W), jnp.float32)   # NCHW, like PyTorch
    params = make_aspp_params(kp, in_channels, channels, dilations)
    kparams = pack_params_for_kernel(params, dilations, H, W, in_channels, channels)

    fwd = jax.jit(lambda xx: aspp_wrapper_forward(xx, kparams, dilations))
    out = fwd(x)
    jax.block_until_ready(out)

    ref = aspp_wrapper_forward_ref(x, params, dilations)
    assert out.shape == (N, channels, H, W), out.shape
    max_err = float(jnp.max(jnp.abs(out - ref)))
    assert jnp.allclose(out, ref, atol=2e-4, rtol=2e-4), max_err

    print("KERNEL_OK")
</pallas_src>

<mosaic_0001>
module attributes {stable_mosaic.version = 11 : i64} {
  func.func @kernel(%arg0: i32, %arg1: memref<1x4x2048xf32, #tpu.memory_space<vmem>>, %arg2: memref<48x360xf32, #tpu.memory_space<vmem>>, %arg3: memref<48x1xf32, #tpu.memory_space<vmem>>, %arg4: memref<1x2560xf32, #tpu.memory_space<vmem>>, %arg5: memref<1x8x2048xf32, #tpu.memory_space<vmem>>, %arg6: memref<8x7424xf32, #tpu.memory_space<vmem>>, %arg7: memref<40x2560xf32, #tpu.memory_space<vmem>>) attributes {dimension_semantics = [#tpu.dimension_semantics<parallel>], iteration_bounds = array<i64: 2>, scalar_prefetch = 0 : i64, scratch_operands = 2 : i64, tpu.core_type = #tpu.core_type<tc>, window_params = [{transform_indices = @transform_0, window_bounds = array<i64: 1, 4, 2048>}, {pipeline_mode = #tpu.pipeline_mode<synchronous>, transform_indices = @transform_1, window_bounds = array<i64: 48, 360>}, {pipeline_mode = #tpu.pipeline_mode<synchronous>, transform_indices = @transform_2, window_bounds = array<i64: 48, 1>}, {pipeline_mode = #tpu.pipeline_mode<synchronous>, transform_indices = @transform_3, window_bounds = array<i64: 1, 2560>}, {transform_indices = @transform_4, window_bounds = array<i64: 1, 8, 2048>}]} {
    %cst = arith.constant 0.000000e+00 : f32
    %0 = vector.broadcast %cst : f32 to vector<8x7424xf32>
    %c0 = arith.constant 0 : index
    %c0_0 = arith.constant 0 : index
    %1 = vector.load %arg6[%c0, %c0_0] : memref<8x7424xf32, #tpu.memory_space<vmem>>, vector<8x7424xf32>
    tpu.vector_store %arg6[%c0, %c0_0], %0 {strides = array<i32>} : memref<8x7424xf32, #tpu.memory_space<vmem>>, vector<8x7424xf32>,
    %c0_1 = arith.constant 0 : index
    %c0_2 = arith.constant 0 : index
    %c0_3 = arith.constant 0 : index
    %2 = vector.load %arg1[%c0_1, %c0_2, %c0_3] : memref<1x4x2048xf32, #tpu.memory_space<vmem>>, vector<1x4x2048xf32>
    %3 = vector.shape_cast %2 : vector<1x4x2048xf32> to vector<4x2048xf32>
    %c0_4 = arith.constant 0 : index
    %c2688 = arith.constant 2688 : index
    %4 = vector.load %arg6[%c0_4, %c2688] : memref<8x7424xf32, #tpu.memory_space<vmem>>, vector<4x2048xf32>
    tpu.vector_store %arg6[%c0_4, %c2688], %3 {strides = array<i32>} : memref<8x7424xf32, #tpu.memory_space<vmem>>, vector<4x2048xf32>,
    %c0_5 = arith.constant 0 : index
    %c0_6 = arith.constant 0 : index
    %5 = vector.load %arg4[%c0_5, %c0_6] : memref<1x2560xf32, #tpu.memory_space<vmem>>, vector<1x2560xf32>
    %c0_7 = arith.constant 0 : index
    %c2432 = arith.constant 2432 : index
    %6 = vector.load %arg6[%c0_7, %c2432] : memref<8x7424xf32, #tpu.memory_space<vmem>>, vector<8x2560xf32>
    %cst_8 = arith.constant dense<0.000000e+00> : vector<8xf32>
    %7 = vector.multi_reduction <add>, %6, %cst_8 [1] : vector<8x2560xf32> to vector<8xf32>
    %8 = vector.shape_cast %7 : vector<8xf32> to vector<8x1xf32>
    %9 = vector.shape_cast %8 : vector<8x1xf32> to vector<8x1xf32>
    %10 = vector.broadcast %9 : vector<8x1xf32> to vector<8x128xf32>
    %c0_9 = arith.constant 0 : index
    %c0_10 = arith.constant 0 : index
    %11 = vector.load %arg2[%c0_9, %c0_10] : memref<48x360xf32, #tpu.memory_space<vmem>>, vector<8x8xf32>
    %cst_11 = arith.constant dense<0.000000e+00> : vector<8x128xf32>
    %12 = tpu.matmul %11, %10, %cst_11 {dimension_numbers = #tpu.dot_dimension_numbers<[1], [0], [0], [1], [0, 0, 1, 1], [], []>} : vector<8x8xf32>, vector<8x128xf32>, vector<8x128xf32> -> vector<8x128xf32>
    %13 = vector.extract_strided_slice %12 {offsets = [0, 0], sizes = [8, 1], strides = [1, 1]} : vector<8x128xf32> to vector<8x1xf32>
    %c0_12 = arith.constant 0 : index
    %c0_13 = arith.constant 0 : index
    %14 = vector.load %arg3[%c0_12, %c0_13] : memref<48x1xf32, #tpu.memory_space<vmem>>, vector<8x1xf32>
    %15 = arith.addf %13, %14 : vector<8x1xf32>
    %cst_14 = arith.constant 0.000000e+00 : f32
    %16 = vector.broadcast %cst_14 : f32 to vector<8x1xf32>
    %17 = arith.maximumf %15, %16 : vector<8x1xf32>
    %18 = vector.broadcast %17 : vector<8x1xf32> to vector<8x2560xf32>
    %19 = vector.broadcast %5 : vector<1x2560xf32> to vector<8x2560xf32>
    %20 = arith.mulf %18, %19 : vector<8x2560xf32>
    %c0_15 = arith.constant 0 : index
    %c0_16 = arith.constant 0 : index
    %21 = vector.load %arg7[%c0_15, %c0_16] : memref<40x2560xf32, #tpu.memory_space<vmem>>, vector<8x2560xf32>
    tpu.vector_store %arg7[%c0_15, %c0_16], %20 {strides = array<i32>} : memref<40x2560xf32, #tpu.memory_space<vmem>>, vector<8x2560xf32>,
    %c0_17 = arith.constant 0 : index
    %c1658 = arith.constant 1658 : index
    %22 = vector.load %arg6[%c0_17, %c1658] : memref<8x7424xf32, #tpu.memory_space<vmem>>, vector<8x2560xf32>
    %c0_18 = arith.constant 0 : index
    %c1664 = arith.constant 1664 : index
    %23 = vector.load %arg6[%c0_18, %c1664] : memref<8x7424xf32, #tpu.memory_space<vmem>>, vector<8x2560xf32>
    %c0_19 = arith.constant 0 : index
    %c1670 = arith.constant 1670 : index
    %24 = vector.load %arg6[%c0_19, %c1670] : memref<8x7424xf32, #tpu.memory_space<vmem>>, vector<8x2560xf32>
    %c0_20 = arith.constant 0 : index
    %c2426 = arith.constant 2426 : index
    %25 = vector.load %arg6[%c0_20, %c2426] : memref<8x7424xf32, #tpu.memory_space<vmem>>, vector<8x2560xf32>
    %c0_21 = arith.constant 0 : index
    %c2438 = arith.constant 2438 : index
    %26 = vector.load %arg6[%c0_21, %c2438] : memref<8x7424xf32, #tpu.memory_space<vmem>>, vector<8x2560xf32>
    %c0_22 = arith.constant 0 : index
    %c3194 = arith.constant 3194 : index
    %27 = vector.load %arg6[%c0_22, %c3194] : memref<8x7424xf32, #tpu.memory_space<vmem>>, vector<8x2560xf32>
    %c0_23 = arith.constant 0 : index
    %c3200 = arith.constant 3200 : index
    %28 = vector.load %arg6[%c0_23, %c3200] : memref<8x7424xf32, #tpu.memory_space<vmem>>, vector<8x2560xf32>
    %c0_24 = arith.constant 0 : index
    %c3206 = arith.constant 3206 : index
    %29 = vector.load %arg6[%c0_24, %c3206] : memref<8x7424xf32, #tpu.memory_space<vmem>>, vector<8x2560xf32>
    %c0_25 = arith.constant 0 : index
    %c884 = arith.constant 884 : index
    %30 = vector.load %arg6[%c0_25, %c884] : memref<8x7424xf32, #tpu.memory_space<vmem>>, vector<8x2560xf32>
    %c0_26 = arith.constant 0 : index
    %c896 = arith.constant 896 : index
    %31 = vector.load %arg6[%c0_26, %c896] : memref<8x7424xf32, #tpu.memory_space<vmem>>, vector<8x2560xf32>
    %c0_27 = arith.constant 0 : index
    %c908 = arith.constant 908 : index
    %32 = vector.load %arg6[%c0_27, %c908] : memref<8x7424xf32, #tpu.memory_space<vmem>>, vector<8x2560xf32>
    %c0_28 = arith.constant 0 : index
    %c2420 = arith.constant 2420 : index
    %33 = vector.load %arg6[%c0_28, %c2420] : memref<8x7424xf32, #tpu.memory_space<vmem>>, vector<8x2560xf32>
    %c0_29 = arith.constant 0 : index
    %c2444 = arith.constant 2444 : index
    %34 = vector.load %arg6[%c0_29, %c2444] : memref<8x7424xf32, #tpu.memory_space<vmem>>, vector<8x2560xf32>
    %c0_30 = arith.constant 0 : index
    %c3956 = arith.constant 3956 : index
    %35 = vector.load %arg6[%c0_30, %c3956] : memref<8x7424xf32, #tpu.memory_space<vmem>>, vector<8x2560xf32>
    %c0_31 = arith.constant 0 : index
    %c3968 = arith.constant 3968 : index
    %36 = vector.load %arg6[%c0_31, %c3968] : memref<8x7424xf32, #tpu.memory_space<vmem>>, vector<8x2560xf32>
    %c0_32 = arith.constant 0 : index
    %c3980 = arith.constant 3980 : index
    %37 = vector.load %arg6[%c0_32, %c3980] : memref<8x7424xf32, #tpu.memory_space<vmem>>, vector<8x2560xf32>
    %c0_33 = arith.constant 0 : index
    %c110 = arith.constant 110 : index
    %38 = vector.load %arg6[%c0_33, %c110] : memref<8x7424xf32, #tpu.memory_space<vmem>>, vector<8x2560xf32>
    %c0_34 = arith.constant 0 : index
    %c128 = arith.constant 128 : index
    %39 = vector.load %arg6[%c0_34, %c128] : memref<8x7424xf32, #tpu.memory_space<vmem>>, vector<8x2560xf32>
    %c0_35 = arith.constant 0 : index
    %c146 = arith.constant 146 : index
    %40 = vector.load %arg6[%c0_35, %c146] : memref<8x7424xf32, #tpu.memory_space<vmem>>, vector<8x2560xf32>
    %c0_36 = arith.constant 0 : index
    %c2414 = arith.constant 2414 : index
    %41 = vector.load %arg6[%c0_36, %c2414] : memref<8x7424xf32, #tpu.memory_space<vmem>>, vector<8x2560xf32>
    %c0_37 = arith.constant 0 : index
    %c2450 = arith.constant 2450 : index
    %42 = vector.load %arg6[%c0_37, %c2450] : memref<8x7424xf32, #tpu.memory_space<vmem>>, vector<8x2560xf32>
    %c0_38 = arith.constant 0 : index
    %c4718 = arith.constant 4718 : index
    %43 = vector.load %arg6[%c0_38, %c4718] : memref<8x7424xf32, #tpu.memory_space<vmem>>, vector<8x2560xf32>
    %c0_39 = arith.constant 0 : index
    %c4736 = arith.constant 4736 : index
    %44 = vector.load %arg6[%c0_39, %c4736] : memref<8x7424xf32, #tpu.memory_space<vmem>>, vector<8x2560xf32>
    %c0_40 = arith.constant 0 : index
    %c4754 = arith.constant 4754 : index
    %45 = vector.load %arg6[%c0_40, %c4754] : memref<8x7424xf32, #tpu.memory_space<vmem>>, vector<8x2560xf32>
    %46 = tpu.concatenate %6, %22, %23, %24, %25, %26, %27, %28, %29, %30, %31, %32, %33, %34, %35, %36 in 0 : vector<8x2560xf32>, vector<8x2560xf32>, vector<8x2560xf32>, vector<8x2560xf32>, vector<8x2560xf32>, vector<8x2560xf32>, vector<8x2560xf32>, vector<8x2560xf32>, vector<8x2560xf32>, vector<8x2560xf32>, vector<8x2560xf32>, vector<8x2560xf32>, vector<8x2560xf32>, vector<8x2560xf32>, vector<8x2560xf32>, vector<8x2560xf32> -> vector<128x2560xf32>
    %47 = tpu.concatenate %37, %38, %39, %40, %41, %42, %43, %44, %45 in 0 : vector<8x2560xf32>, vector<8x2560xf32>, vector<8x2560xf32>, vector<8x2560xf32>, vector<8x2560xf32>, vector<8x2560xf32>, vector<8x2560xf32>, vector<8x2560xf32>, vector<8x2560xf32> -> vector<72x2560xf32>
    %48 = tpu.concatenate %46, %47 in 0 : vector<128x2560xf32>, vector<72x2560xf32> -> vector<200x2560xf32>
    %c8 = arith.constant 8 : index
    %c0_41 = arith.constant 0 : index
    %49 = vector.load %arg2[%c8, %c0_41] : memref<48x360xf32, #tpu.memory_space<vmem>>, vector<32x200xf32>
    %cst_42 = arith.constant dense<0.000000e+00> : vector<32x2560xf32>
    %50 = tpu.matmul %49, %48, %cst_42 {dimension_numbers = #tpu.dot_dimension_numbers<[1], [0], [0], [1], [0, 0, 1, 1], [], []>} : vector<32x200xf32>, vector<200x2560xf32>, vector<32x2560xf32> -> vector<32x2560xf32>
    %c8_43 = arith.constant 8 : index
    %c0_44 = arith.constant 0 : index
    %51 = vector.load %arg3[%c8_43, %c0_44] : memref<48x1xf32, #tpu.memory_space<vmem>>, vector<32x1xf32>
    %52 = vector.broadcast %51 : vector<32x1xf32> to vector<32x2560xf32>
    %53 = arith.addf %50, %52 : vector<32x2560xf32>
    %cst_45 = arith.constant 0.000000e+00 : f32
    %54 = vector.broadcast %cst_45 : f32 to vector<32x2560xf32>
    %55 = arith.maximumf %53, %54 : vector<32x2560xf32>
    %56 = vector.broadcast %5 : vector<1x2560xf32> to vector<32x2560xf32>
    %57 = arith.mulf %55, %56 : vector<32x2560xf32>
    %c8_46 = arith.constant 8 : index
    %c0_47 = arith.constant 0 : index
    %58 = vector.load %arg7[%c8_46, %c0_47] : memref<40x2560xf32, #tpu.memory_space<vmem>>, vector<32x2560xf32>
    tpu.vector_store %arg7[%c8_46, %c0_47], %57 {strides = array<i32>} : memref<40x2560xf32, #tpu.memory_space<vmem>>, vector<32x2560xf32>,
    %cst_48 = arith.constant 0.000000e+00 : f32
    %59 = vector.broadcast %cst_48 : f32 to vector<8x2048xf32>
    %c40 = arith.constant 40 : index
    %c0_49 = arith.constant 0 : index
    %60 = vector.load %arg2[%c40, %c0_49] : memref<48x360xf32, #tpu.memory_space<vmem>>, vector<8x40xf32>
    %c0_50 = arith.constant 0 : index
    %c127 = arith.constant 127 : index
    %61 = vector.load %arg7[%c0_50, %c127] : memref<40x2560xf32, #tpu.memory_space<vmem>>, vector<40x2048xf32>
    %cst_51 = arith.constant dense<0.000000e+00> : vector<8x2048xf32>
    %62 = tpu.matmul %60, %61, %cst_51 {dimension_numbers = #tpu.dot_dimension_numbers<[1], [0], [0], [1], [0, 0, 1, 1], [], []>} : vector<8x40xf32>, vector<40x2048xf32>, vector<8x2048xf32> -> vector<8x2048xf32>
    %63 = arith.addf %59, %62 : vector<8x2048xf32>
    %c40_52 = arith.constant 40 : index
    %c40_53 = arith.constant 40 : index
    %64 = vector.load %arg2[%c40_52, %c40_53] : memref<48x360xf32, #tpu.memory_space<vmem>>, vector<8x40xf32>
    %c0_54 = arith.constant 0 : index
    %c128_55 = arith.constant 128 : index
    %65 = vector.load %arg7[%c0_54, %c128_55] : memref<40x2560xf32, #tpu.memory_space<vmem>>, vector<40x2048xf32>
    %cst_56 = arith.constant dense<0.000000e+00> : vector<8x2048xf32>
    %66 = tpu.matmul %64, %65, %cst_56 {dimension_numbers = #tpu.dot_dimension_numbers<[1], [0], [0], [1], [0, 0, 1, 1], [], []>} : vector<8x40xf32>, vector<40x2048xf32>, vector<8x2048xf32> -> vector<8x2048xf32>
    %67 = arith.addf %63, %66 : vector<8x2048xf32>
    %c40_57 = arith.constant 40 : index
    %c80 = arith.constant 80 : index
    %68 = vector.load %arg2[%c40_57, %c80] : memref<48x360xf32, #tpu.memory_space<vmem>>, vector<8x40xf32>
    %c0_58 = arith.constant 0 : index
    %c129 = arith.constant 129 : index
    %69 = vector.load %arg7[%c0_58, %c129] : memref<40x2560xf32, #tpu.memory_space<vmem>>, vector<40x2048xf32>
    %cst_59 = arith.constant dense<0.000000e+00> : vector<8x2048xf32>
    %70 = tpu.matmul %68, %69, %cst_59 {dimension_numbers = #tpu.dot_dimension_numbers<[1], [0], [0], [1], [0, 0, 1, 1], [], []>} : vector<8x40xf32>, vector<40x2048xf32>, vector<8x2048xf32> -> vector<8x2048xf32>
    %71 = arith.addf %67, %70 : vector<8x2048xf32>
    %c40_60 = arith.constant 40 : index
    %c120 = arith.constant 120 : index
    %72 = vector.load %arg2[%c40_60, %c120] : memref<48x360xf32, #tpu.memory_space<vmem>>, vector<8x40xf32>
    %c0_61 = arith.constant 0 : index
    %c255 = arith.constant 255 : index
    %73 = vector.load %arg7[%c0_61, %c255] : memref<40x2560xf32, #tpu.memory_space<vmem>>, vector<40x2048xf32>
    %cst_62 = arith.constant dense<0.000000e+00> : vector<8x2048xf32>
    %74 = tpu.matmul %72, %73, %cst_62 {dimension_numbers = #tpu.dot_dimension_numbers<[1], [0], [0], [1], [0, 0, 1, 1], [], []>} : vector<8x40xf32>, vector<40x2048xf32>, vector<8x2048xf32> -> vector<8x2048xf32>
    %75 = arith.addf %71, %74 : vector<8x2048xf32>
    %c40_63 = arith.constant 40 : index
    %c160 = arith.constant 160 : index
    %76 = vector.load %arg2[%c40_63, %c160] : memref<48x360xf32, #tpu.memory_space<vmem>>, vector<8x40xf32>
    %c0_64 = arith.constant 0 : index
    %c256 = arith.constant 256 : index
    %77 = vector.load %arg7[%c0_64, %c256] : memref<40x2560xf32, #tpu.memory_space<vmem>>, vector<40x2048xf32>
    %cst_65 = arith.constant dense<0.000000e+00> : vector<8x2048xf32>
    %78 = tpu.matmul %76, %77, %cst_65 {dimension_numbers = #tpu.dot_dimension_numbers<[1], [0], [0], [1], [0, 0, 1, 1], [], []>} : vector<8x40xf32>, vector<40x2048xf32>, vector<8x2048xf32> -> vector<8x2048xf32>
    %79 = arith.addf %75, %78 : vector<8x2048xf32>
    %c40_66 = arith.constant 40 : index
    %c200 = arith.constant 200 : index
    %80 = vector.load %arg2[%c40_66, %c200] : memref<48x360xf32, #tpu.memory_space<vmem>>, vector<8x40xf32>
    %c0_67 = arith.constant 0 : index
    %c257 = arith.constant 257 : index
    %81 = vector.load %arg7[%c0_67, %c257] : memref<40x2560xf32, #tpu.memory_space<vmem>>, vector<40x2048xf32>
    %cst_68 = arith.constant dense<0.000000e+00> : vector<8x2048xf32>
    %82 = tpu.matmul %80, %81, %cst_68 {dimension_numbers = #tpu.dot_dimension_numbers<[1], [0], [0], [1], [0, 0, 1, 1], [], []>} : vector<8x40xf32>, vector<40x2048xf32>, vector<8x2048xf32> -> vector<8x2048xf32>
    %83 = arith.addf %79, %82 : vector<8x2048xf32>
    %c40_69 = arith.constant 40 : index
    %c240 = arith.constant 240 : index
    %84 = vector.load %arg2[%c40_69, %c240] : memref<48x360xf32, #tpu.memory_space<vmem>>, vector<8x40xf32>
    %c0_70 = arith.constant 0 : index
    %c383 = arith.constant 383 : index
    %85 = vector.load %arg7[%c0_70, %c383] : memref<40x2560xf32, #tpu.memory_space<vmem>>, vector<40x2048xf32>
    %cst_71 = arith.constant dense<0.000000e+00> : vector<8x2048xf32>
    %86 = tpu.matmul %84, %85, %cst_71 {dimension_numbers = #tpu.dot_dimension_numbers<[1], [0], [0], [1], [0, 0, 1, 1], [], []>} : vector<8x40xf32>, vector<40x2048xf32>, vector<8x2048xf32> -> vector<8x2048xf32>
    %87 = arith.addf %83, %86 : vector<8x2048xf32>
    %c40_72 = arith.constant 40 : index
    %c280 = arith.constant 280 : index
    %88 = vector.load %arg2[%c40_72, %c280] : memref<48x360xf32, #tpu.memory_space<vmem>>, vector<8x40xf32>
    %c0_73 = arith.constant 0 : index
    %c384 = arith.constant 384 : index
    %89 = vector.load %arg7[%c0_73, %c384] : memref<40x2560xf32, #tpu.memory_space<vmem>>, vector<40x2048xf32>
    %cst_74 = arith.constant dense<0.000000e+00> : vector<8x2048xf32>
    %90 = tpu.matmul %88, %89, %cst_74 {dimension_numbers = #tpu.dot_dimension_numbers<[1], [0], [0], [1], [0, 0, 1, 1], [], []>} : vector<8x40xf32>, vector<40x2048xf32>, vector<8x2048xf32> -> vector<8x2048xf32>
    %91 = arith.addf %87, %90 : vector<8x2048xf32>
    %c40_75 = arith.constant 40 : index
    %c320 = arith.constant 320 : index
    %92 = vector.load %arg2[%c40_75, %c320] : memref<48x360xf32, #tpu.memory_space<vmem>>, vector<8x40xf32>
    %c0_76 = arith.constant 0 : index
    %c385 = arith.constant 385 : index
    %93 = vector.load %arg7[%c0_76, %c385] : memref<40x2560xf32, #tpu.memory_space<vmem>>, vector<40x2048xf32>
    %cst_77 = arith.constant dense<0.000000e+00> : vector<8x2048xf32>
    %94 = tpu.matmul %92, %93, %cst_77 {dimension_numbers = #tpu.dot_dimension_numbers<[1], [0], [0], [1], [0, 0, 1, 1], [], []>} : vector<8x40xf32>, vector<40x2048xf32>, vector<8x2048xf32> -> vector<8x2048xf32>
    %95 = arith.addf %91, %94 : vector<8x2048xf32>
    %c40_78 = arith.constant 40 : index
    %c0_79 = arith.constant 0 : index
    %96 = vector.load %arg3[%c40_78, %c0_79] : memref<48x1xf32, #tpu.memory_space<vmem>>, vector<8x1xf32>
    %97 = vector.broadcast %96 : vector<8x1xf32> to vector<8x2048xf32>
    %98 = arith.addf %95, %97 : vector<8x2048xf32>
    %cst_80 = arith.constant 0.000000e+00 : f32
    %99 = vector.broadcast %cst_80 : f32 to vector<8x2048xf32>
    %100 = arith.maximumf %98, %99 : vector<8x2048xf32>
    %c0_81 = arith.constant 0 : index
    %c0_82 = arith.constant 0 : index
    %c0_83 = arith.constant 0 : index
    %101 = vector.load %arg5[%c0_81, %c0_82, %c0_83] : memref<1x8x2048xf32, #tpu.memory_space<vmem>>, vector<1x8x2048xf32>
    %102 = vector.shape_cast %101 : vector<1x8x2048xf32> to vector<8x2048xf32>
    %103 = vector.shape_cast %100 : vector<8x2048xf32> to vector<1x8x2048xf32>
    tpu.vector_store %arg5[%c0_81, %c0_82, %c0_83], %103 {strides = array<i32>} : memref<1x8x2048xf32, #tpu.memory_space<vmem>>, vector<1x8x2048xf32>,
    return
  }
  func.func @transform_0(%arg0: i32) -> (i32, i32, i32) {
    %c0_i32 = arith.constant 0 : i32
    %c0_i32_0 = arith.constant 0 : i32
    %c0_i32_1 = arith.constant 0 : i32
    return %arg0, %c0_i32, %c0_i32_0 : i32, i32, i32
  }
  func.func @transform_1(%arg0: i32) -> (i32, i32) {
    %c0_i32 = arith.constant 0 : i32
    %c0_i32_0 = arith.constant 0 : i32
    %c0_i32_1 = arith.constant 0 : i32
    return %c0_i32, %c0_i32_0 : i32, i32
  }
  func.func @transform_2(%arg0: i32) -> (i32, i32) {
    %c0_i32 = arith.constant 0 : i32
    %c0_i32_0 = arith.constant 0 : i32
    %c0_i32_1 = arith.constant 0 : i32
    return %c0_i32, %c0_i32_0 : i32, i32
  }
  func.func @transform_3(%arg0: i32) -> (i32, i32) {
    %c0_i32 = arith.constant 0 : i32
    %c0_i32_0 = arith.constant 0 : i32
    %c0_i32_1 = arith.constant 0 : i32
    return %c0_i32, %c0_i32_0 : i32, i32
  }
  func.func @transform_4(%arg0: i32) -> (i32, i32, i32) {
    %c0_i32 = arith.constant 0 : i32
    %c0_i32_0 = arith.constant 0 : i32
    %c0_i32_1 = arith.constant 0 : i32
    return %arg0, %c0_i32, %c0_i32_0 : i32, i32, i32
  }
}

</mosaic_0001>

<llo_original>
// kernel: _lambda_.1
$region0: #{_lambda_.1}
  #allocation0 [shape = 'u32[]', space=smem, size = 0x4, offset = 0x4, fixed_abs, tag = 'smem constant byte address 0x4 - core index']
  #allocation1 [shape = 'u32[144,128]{1,0:T(1,128)}', space=vmem, size = 0x12000, scoped, tag = 'internal scratch']
  #allocation2 [shape = 'f32[8,7424]{1,0:T(8,128)}', space=vmem, size = 0x3a000, scoped, tag = 'scratch operand']
  #allocation3 [shape = 'f32[40,2560]{1,0:T(8,128)}', space=vmem, size = 0x64000, scoped, tag = 'scratch operand']
  %s0 = inlined_call_operand.vmem [shape: f32[2,4,2048], index: 0, kind: input, shape index: {}]
  %s1 = inlined_call_operand.vmem [shape: f32[48,360], index: 1, kind: input, shape index: {}]
  %s2 = inlined_call_operand.vmem [shape: f32[48,1], index: 2, kind: input, shape index: {}]
  %s3 = inlined_call_operand.vmem [shape: f32[1,2560], index: 3, kind: input, shape index: {}]
  %s4 = inlined_call_operand.vmem [shape: f32[2,8,2048], index: 4, kind: output, shape index: {}]
  %s5 = sld [smem:[#allocation0]]
  $region49: #{_lambda_.1} parent=0
    _
  %s7 = ssub.s32 1, %s5
  %s8 = scalar_select 0, %s7, %s5
  loop: start=0, step=1, limit=4
  $region2: #{_lambda_.1} parent=0 // loop_pre_header
    _
  $region3: #{_lambda_.1} parent=0 // loop_header
    %s10 = sphi 0, %s14
    %p11 = scmp.ge.s32.totalorder %s10, 4
    %s20 = sphi 0, %s22
    %s23 = sphi 0, %s20
    %s24 = sphi 0, %s23
    %s40 = sphi 0, %s24
    %s44 = sphi 0, %s44
    %s46 = sphi 0, %s44
    %s47 = sphi 0, %s46
    %s61 = sphi 0, %s47
    %s65 = sphi 0, %s65
    %s67 = sphi 0, %s65
    %s68 = sphi 0, %s67
    %s82 = sphi 0, %s68
    %s86 = sphi 0, %s86
    %s88 = sphi 0, %s86
    %s89 = sphi 0, %s88
    %s103 = sphi 0, %s89
    %s109 = sphi 0, %s111
    %s112 = sphi 0, %s109
    %s113 = sphi 0, %s112
    %s129 = sphi 0, %s113
  $region4: #{_lambda_.1} parent=0 // loop_header_branch
    %13 = sbr.rel (%p11) target = $region8
  $region5: #{_lambda_.1} parent=0 // loop_body
    %s15 = ssub.s32 %s10, 1
    %s16 = ssub.s32 %s10, 2
    %s17 = sadd.s32 %s10, 1
    %s18 = ssub.s32 %s10, %s17
    %p19 = scmp.eq.s32.totalorder %s18, 0
    %s21 = sadd.s32 %s20, 1
    %s22 = scalar_select %p19, %s20, %s21
    %p25 = pneg %p19
    %p26 = scmp.eq.s32.totalorder %s10, 1
    %p27 = por %p25, %p26
    %p28 = scmp.ne.s32.totalorder %s20, %s23
    %p29 = scmp.eq.s32.totalorder %s10, 0
    %p30 = por %p28, %p29
    %p31 = scmp.ne.s32.totalorder %s20, %s23
    %p32 = scmp.eq.s32.totalorder %s15, 1
    %p33 = por %p31, %p32
    %p34 = scmp.ne.s32.totalorder %s23, %s24
    %p35 = scmp.eq.s32.totalorder %s15, 0
    %p36 = por %p34, %p35
    %p37 = scmp.ne.s32.totalorder %s23, %s24
    %p38 = scmp.eq.s32.totalorder %s16, 1
    %p39 = por %p37, %p38
    %p41 = scmp.ne.s32.totalorder %s24, %s40
    %p42 = scmp.eq.s32.totalorder %s16, 0
    %p43 = por %p41, %p42
    %s45 = sadd.s32 %s44, 1
    %p48 = scmp.eq.s32.totalorder %s10, 1
    %p49 = scmp.ne.s32.totalorder %s44, %s46
    %p50 = scmp.eq.s32.totalorder %s10, 0
    %p51 = por %p49, %p50
    %p52 = scmp.ne.s32.totalorder %s44, %s46
    %p53 = scmp.eq.s32.totalorder %s15, 1
    %p54 = por %p52, %p53
    %p55 = scmp.ne.s32.totalorder %s46, %s47
    %p56 = scmp.eq.s32.totalorder %s15, 0
    %p57 = por %p55, %p56
    %p58 = scmp.ne.s32.totalorder %s46, %s47
    %p59 = scmp.eq.s32.totalorder %s16, 1
    %p60 = por %p58, %p59
    %p62 = scmp.ne.s32.totalorder %s47, %s61
    %p63 = scmp.eq.s32.totalorder %s16, 0
    %p64 = por %p62, %p63
    %s66 = sadd.s32 %s65, 1
    %p69 = scmp.eq.s32.totalorder %s10, 1
    %p70 = scmp.ne.s32.totalorder %s65, %s67
    %p71 = scmp.eq.s32.totalorder %s10, 0
    %p72 = por %p70, %p71
    %p73 = scmp.ne.s32.totalorder %s65, %s67
    %p74 = scmp.eq.s32.totalorder %s15, 1
    %p75 = por %p73, %p74
    %p76 = scmp.ne.s32.totalorder %s67, %s68
    %p77 = scmp.eq.s32.totalorder %s15, 0
    %p78 = por %p76, %p77
    %p79 = scmp.ne.s32.totalorder %s67, %s68
    %p80 = scmp.eq.s32.totalorder %s16, 1
    %p81 = por %p79, %p80
    %p83 = scmp.ne.s32.totalorder %s68, %s82
    %p84 = scmp.eq.s32.totalorder %s16, 0
    %p85 = por %p83, %p84
    %s87 = sadd.s32 %s86, 1
    %p90 = scmp.eq.s32.totalorder %s10, 1
    %p91 = scmp.ne.s32.totalorder %s86, %s88
    %p92 = scmp.eq.s32.totalorder %s10, 0
    %p93 = por %p91, %p92
    %p94 = scmp.ne.s32.totalorder %s86, %s88
    %p95 = scmp.eq.s32.totalorder %s15, 1
    %p96 = por %p94, %p95
    %p97 = scmp.ne.s32.totalorder %s88, %s89
    %p98 = scmp.eq.s32.totalorder %s15, 0
    %p99 = por %p97, %p98
    %p100 = scmp.ne.s32.totalorder %s88, %s89
    %p101 = scmp.eq.s32.totalorder %s16, 1
    %p102 = por %p100, %p101
    %p104 = scmp.ne.s32.totalorder %s89, %s103
    %p105 = scmp.eq.s32.totalorder %s16, 0
    %p106 = por %p104, %p105
    %s107 = ssub.s32 %s10, %s17
    %p108 = scmp.eq.s32.totalorder %s107, 0
    %s110 = sadd.s32 %s109, 1
    %s111 = scalar_select %p108, %s109, %s110
    %p114 = pneg %p108
    %p115 = scmp.eq.s32.totalorder %s10, 1
    %p116 = por %p114, %p115
    %p117 = scmp.ne.s32.totalorder %s109, %s112
    %p118 = scmp.eq.s32.totalorder %s10, 0
    %p119 = por %p117, %p118
    %p120 = scmp.ne.s32.totalorder %s109, %s112
    %p121 = scmp.eq.s32.totalorder %s15, 1
    %p122 = por %p120, %p121
    %p123 = scmp.ne.s32.totalorder %s112, %s113
    %p124 = scmp.eq.s32.totalorder %s15, 0
    %p125 = por %p123, %p124
    %p126 = scmp.ne.s32.totalorder %s112, %s113
    %p127 = scmp.eq.s32.totalorder %s16, 1
    %p128 = por %p126, %p127
    %p130 = scmp.ne.s32.totalorder %s113, %s129
    %p131 = scmp.eq.s32.totalorder %s16, 0
    %p132 = por %p130, %p131
    %p133 = scmp.le.s32.totalorder 1, %s10
    %p134 = scmp.lt.s32.totalorder %s10, 3
    %p135 = pnand %p133, %p134
    %p136 = pneg %p135
    // Predicated region
    $region9: #{_lambda_.1} parent=5 // pred_check
      _
    $region10: #{_lambda_.1} parent=5 // pred_check_branch
      %138 = sbr.rel (%p135) target = $region12
    $region11: #{_lambda_.1} parent=5 // pred_region
      %s139 = ssub.s32 %s10, 1
      // Predicated region
      $region13: #{_lambda_.1} parent=11 // pred_check
        %p140 = pneg %p57
      $region14: #{_lambda_.1} parent=11 // pred_check_branch
        %142 = sbr.rel (%p140) target = $region16
      $region15: #{_lambda_.1} parent=11 // pred_region
        _
      $region16: #{_lambda_.1} parent=11 // pred_fallthru
        _
      // Predicated region
      $region17: #{_lambda_.1} parent=11 // pred_check
        %p143 = pneg %p78
      $region18: #{_lambda_.1} parent=11 // pred_check_branch
        %145 = sbr.rel (%p143) target = $region20
      $region19: #{_lambda_.1} parent=11 // pred_region
        _
      $region20: #{_lambda_.1} parent=11 // pred_fallthru
        _
      // Predicated region
      $region21: #{_lambda_.1} parent=11 // pred_check
        %p146 = pneg %p99
      $region22: #{_lambda_.1} parent=11 // pred_check_branch
        %148 = sbr.rel (%p146) target = $region24
      $region23: #{_lambda_.1} parent=11 // pred_region
        _
      $region24: #{_lambda_.1} parent=11 // pred_fallthru
        _
    $region12: #{_lambda_.1} parent=5 // pred_fallthru
      _
    %p149 = scmp.lt.s32.totalorder %s10, 2
    // Predicated region
    $region25: #{_lambda_.1} parent=5 // pred_check
      %p150 = pneg %p149
    $region26: #{_lambda_.1} parent=5 // pred_check_branch
      %152 = sbr.rel (%p150) target = $region28
    $region27: #{_lambda_.1} parent=5 // pred_region
      // Predicated region
      $region29: #{_lambda_.1} parent=27 // pred_check
        %p153 = pneg %p30
      $region30: #{_lambda_.1} parent=27 // pred_check_branch
        %155 = sbr.rel (%p153) target = $region32
      $region31: #{_lambda_.1} parent=27 // pred_region
        %p156 = scmp.lt.s32.totalorder %s10, 1
        %s157 = scalar_select %p156, %s10, 1
        %s158 = smul.addr %s157, 16
        %s159 = smul.addr %s158, 4
        %s160 = scalar_lea.vmem %s0, %s159
      $region32: #{_lambda_.1} parent=27 // pred_fallthru
        _
    $region28: #{_lambda_.1} parent=5 // pred_fallthru
      _
    %p161 = scmp.le.s32.totalorder 1, %s10
    %p162 = scmp.lt.s32.totalorder %s10, 3
    %p163 = pnand %p161, %p162
    %p164 = pneg %p163
    // Predicated region
    $region33: #{_lambda_.1} parent=5 // pred_check
      _
    $region34: #{_lambda_.1} parent=5 // pred_check_branch
      %166 = sbr.rel (%p163) target = $region36
    $region35: #{_lambda_.1} parent=5 // pred_region
      %s167 = ssub.s32 %s10, 1
      %p168 = scmp.lt.s32.totalorder %s15, 1
      %s169 = scalar_select %p168, %s15, 1
      %s170 = smul.addr %s169, 16
      %s171 = smul.addr %s170, 4
      %s172 = scalar_lea.vmem %s0, %s171
      %p173 = pneg %p36
      %p174 = pneg %p33
      %p175 = pneg %p57
      %p176 = pneg %p54
      %p177 = pneg %p78
      %p178 = pneg %p75
      %p179 = pneg %p99
      %p180 = pneg %p96
      %p181 = pneg %p125
      %p182 = pneg %p122
      %p183 = scmp.lt.s32.totalorder %s15, 1
      %s184 = scalar_select %p183, %s15, 1
      %s185 = smul.addr %s184, 16
      %s186 = smul.addr %s185, 8
      %s187 = scalar_lea.vmem %s4, %s186
      %p188 = scmp.lt.s32.totalorder %s15, 1
      %s189 = scalar_select %p188, %s15, 1
      %s190 = smul.addr %s189, 16
      %s191 = smul.addr %s190, 4
      %s192 = scalar_lea.vmem %s0, %s191
      %p193 = scmp.lt.s32.totalorder %s15, 1
      %s194 = scalar_select %p193, %s15, 1
      %s195 = smul.addr %s194, 16
      %s196 = smul.addr %s195, 8
      %s197 = scalar_lea.vmem %s4, %s196
      %198 = vst [vmem:[#allocation2] sm:$0xff] 0.0
      %199 = vst [vmem:[#allocation2 + $0x8] sm:$0xff] 0.0
      %200 = vst [vmem:[#allocation2 + $0x10] sm:$0xff] 0.0
      %201 = vst [vmem:[#allocation2 + $0x18] sm:$0xff] 0.0
      %202 = vst [vmem:[#allocation2 + $0x20] sm:$0xff] 0.0
      %203 = vst [vmem:[#allocation2 + $0x28] sm:$0xff] 0.0
      %204 = vst [vmem:[#allocation2 + $0x30] sm:$0xff] 0.0
      %205 = vst [vmem:[#allocation2 + $0x38] sm:$0xff] 0.0
      %206 = vst [vmem:[#allocation2 + $0x40] sm:$0xff] 0.0
      %207 = vst [vmem:[#allocation2 + $0x48] sm:$0xff] 0.0
      %208 = vst [vmem:[#allocation2 + $0x50] sm:$0xff] 0.0
      %209 = vst [vmem:[#allocation2 + $0x58] sm:$0xff] 0.0
      %210 = vst [vmem:[#allocation2 + $0x60] sm:$0xff] 0.0
      %211 = vst [vmem:[#allocation2 + $0x68] sm:$0xff] 0.0
      %212 = vst [vmem:[#allocation2 + $0x70] sm:$0xff] 0.0
      %213 = vst [vmem:[#allocation2 + $0x78] sm:$0xff] 0.0
      %214 = vst [vmem:[#allocation2 + $0x80] sm:$0xff] 0.0
      %215 = vst [vmem:[#allocation2 + $0x88] sm:$0xff] 0.0
      %216 = vst [vmem:[#allocation2 + $0x90] sm:$0xff] 0.0
      %217 = vst [vmem:[#allocation2 + $0x98] sm:$0xff] 0.0
      %218 = vst [vmem:[#allocation2 + $0xa0] sm:$0xff] 0.0
      %219 = vst [vmem:[#allocation2 + $0xa8] sm:$0xff] 0.0
      %220 = vst [vmem:[#allocation2 + $0xb0] sm:$0xff] 0.0
      %221 = vst [vmem:[#allocation2 + $0xb8] sm:$0xff] 0.0
      %222 = vst [vmem:[#allocation2 + $0xc0] sm:$0xff] 0.0
      %223 = vst [vmem:[#allocation2 + $0xc8] sm:$0xff] 0.0
      %224 = vst [vmem:[#allocation2 + $0xd0] sm:$0xff] 0.0
      %225 = vst [vmem:[#allocation2 + $0xd8] sm:$0xff] 0.0
      %226 = vst [vmem:[#allocation2 + $0xe0] sm:$0xff] 0.0
      %227 = vst [vmem:[#allocation2 + $0xe8] sm:$0xff] 0.0
      %228 = vst [vmem:[#allocation2 + $0xf0] sm:$0xff] 0.0
      %229 = vst [vmem:[#allocation2 + $0xf8] sm:$0xff] 0.0
      %230 = vst [vmem:[#allocation2 + $0x100] sm:$0xff] 0.0
      %231 = vst [vmem:[#allocation2 + $0x108] sm:$0xff] 0.0
      %232 = vst [vmem:[#allocation2 + $0x110] sm:$0xff] 0.0
      %233 = vst [vmem:[#allocation2 + $0x118] sm:$0xff] 0.0
      %234 = vst [vmem:[#allocation2 + $0x120] sm:$0xff] 0.0
      %235 = vst [vmem:[#allocation2 + $0x128] sm:$0xff] 0.0
      %236 = vst [vmem:[#allocation2 + $0x130] sm:$0xff] 0.0
      %237 = vst [vmem:[#allocation2 + $0x138] sm:$0xff] 0.0
      %238 = vst [vmem:[#allocation2 + $0x140] sm:$0xff] 0.0
      %239 = vst [vmem:[#allocation2 + $0x148] sm:$0xff] 0.0
      %240 = vst [vmem:[#allocation2 + $0x150] sm:$0xff] 0.0
      %241 = vst [vmem:[#allocation2 + $0x158] sm:$0xff] 0.0
      %242 = vst [vmem:[#allocation2 + $0x160] sm:$0xff] 0.0
      %243 = vst [vmem:[#allocation2 + $0x168] sm:$0xff] 0.0
      %244 = vst [vmem:[#allocation2 + $0x170] sm:$0xff] 0.0
      %245 = vst [vmem:[#allocation2 + $0x178] sm:$0xff] 0.0
      %246 = vst [vmem:[#allocation2 + $0x180] sm:$0xff] 0.0
      %247 = vst [vmem:[#allocation2 + $0x188] sm:$0xff] 0.0
      %248 = vst [vmem:[#allocation2 + $0x190] sm:$0xff] 0.0
      %249 = vst [vmem:[#allocation2 + $0x198] sm:$0xff] 0.0
      %250 = vst [vmem:[#allocation2 + $0x1a0] sm:$0xff] 0.0
      %251 = vst [vmem:[#allocation2 + $0x1a8] sm:$0xff] 0.0
      %252 = vst [vmem:[#allocation2 + $0x1b0] sm:$0xff] 0.0
      %253 = vst [vmem:[#allocation2 + $0x1b8] sm:$0xff] 0.0
      %254 = vst [vmem:[#allocation2 + $0x1c0] sm:$0xff] 0.0
      %255 = vst [vmem:[#allocation2 + $0x1c8] sm:$0xff] 0.0
      %v256 = vld [vmem:[%s192] sm:$0xff]
      %v257 = vld [vmem:[%s192 + $0x8] sm:$0xff]
      %v258 = vld [vmem:[%s192 + $0x10] sm:$0xff]
      %v259 = vld [vmem:[%s192 + $0x18] sm:$0xff]
      %v260 = vld [vmem:[%s192 + $0x20] sm:$0xff]
      %v261 = vld [vmem:[%s192 + $0x28] sm:$0xff]
      %v262 = vld [vmem:[%s192 + $0x30] sm:$0xff]
      %v263 = vld [vmem:[%s192 + $0x38] sm:$0xff]
      %v272 = vcombine.high %v256, %v256
      %v273 = vcombine.high %v257, %v257
      %v274 = vcombine.high %v258, %v258
      %v275 = vcombine.high %v259, %v259
      %v276 = vcombine.high %v260, %v260
      %v277 = vcombine.high %v261, %v261
      %v278 = vcombine.high %v262, %v262
      %v279 = vcombine.high %v263, %v263
      %288 = vst [vmem:[#allocation2 + $0xa8] sm:$0xf] %v256
      %289 = vst [vmem:[#allocation2 + $0xb0] sm:$0xf] %v272
      %290 = vst [vmem:[#allocation2 + $0xb8] sm:$0xf] %v257
      %291 = vst [vmem:[#allocation2 + $0xc0] sm:$0xf] %v273
      %292 = vst [vmem:[#allocation2 + $0xc8] sm:$0xf] %v258
      %293 = vst [vmem:[#allocation2 + $0xd0] sm:$0xf] %v274
      %294 = vst [vmem:[#allocation2 + $0xd8] sm:$0xf] %v259
      %295 = vst [vmem:[#allocation2 + $0xe0] sm:$0xf] %v275
      %296 = vst [vmem:[#allocation2 + $0xe8] sm:$0xf] %v260
      %297 = vst [vmem:[#allocation2 + $0xf0] sm:$0xf] %v276
      %298 = vst [vmem:[#allocation2 + $0xf8] sm:$0xf] %v261
      %299 = vst [vmem:[#allocation2 + $0x100] sm:$0xf] %v277
      %300 = vst [vmem:[#allocation2 + $0x108] sm:$0xf] %v262
      %301 = vst [vmem:[#allocation2 + $0x110] sm:$0xf] %v278
      %302 = vst [vmem:[#allocation2 + $0x118] sm:$0xf] %v263
      %303 = vst [vmem:[#allocation2 + $0x120] sm:$0xf] %v279
      %v304 = vld [vmem:[%s3] sm:$0xff]
      %v305 = vld [vmem:[%s3 + $0x8] sm:$0xff]
      %v306 = vld [vmem:[%s3 + $0x10] sm:$0xf]
      %v307 = vld [vmem:[#allocation2 + $0x98] sm:$0xff]
      %v308 = vld [vmem:[#allocation2 + $0xa0] sm:$0xff]
      %v309 = vld [vmem:[#allocation2 + $0xa8] sm:$0xff]
      %v310 = vld [vmem:[#allocation2 + $0xb0] sm:$0xff]
      %v311 = vld [vmem:[#allocation2 + $0xb8] sm:$0xff]
      %v312 = vld [vmem:[#allocation2 + $0xc0] sm:$0xff]
      %v313 = vld [vmem:[#allocation2 + $0xc8] sm:$0xff]
      %v314 = vld [vmem:[#allocation2 + $0xd0] sm:$0xff]
      %v315 = vld [vmem:[#allocation2 + $0xd8] sm:$0xff]
      %v316 = vld [vmem:[#allocation2 + $0xe0] sm:$0xff]
      %v317 = vld [vmem:[#allocation2 + $0xe8] sm:$0xff]
      %v318 = vld [vmem:[#allocation2 + $0xf0] sm:$0xff]
      %v319 = vld [vmem:[#allocation2 + $0xf8] sm:$0xff]
      %v320 = vld [vmem:[#allocation2 + $0x100] sm:$0xff]
      %v321 = vld [vmem:[#allocation2 + $0x108] sm:$0xff]
      %v322 = vld [vmem:[#allocation2 + $0x110] sm:$0xff]
      %v323 = vld [vmem:[#allocation2 + $0x118] sm:$0xff]
      %v324 = vld [vmem:[#allocation2 + $0x120] sm:$0xff]
      %v325 = vld [vmem:[#allocation2 + $0x128] sm:$0xff]
      %v326 = vld [vmem:[#allocation2 + $0x130] sm:$0xff]
      %v327 = vadd.f32 %v307, %v308
      %v328 = vadd.f32 %v327, %v309
      %v329 = vadd.f32 %v328, %v310
      %v330 = vadd.f32 %v329, %v311
      %v331 = vadd.f32 %v330, %v312
      %v332 = vadd.f32 %v331, %v313
      %v333 = vadd.f32 %v332, %v314
      %v334 = vadd.f32 %v333, %v315
      %v335 = vadd.f32 %v334, %v316
      %v336 = vadd.f32 %v335, %v317
      %v337 = vadd.f32 %v336, %v318
      %v338 = vadd.f32 %v337, %v319
      %v339 = vadd.f32 %v338, %v320
      %v340 = vadd.f32 %v339, %v321
      %v341 = vadd.f32 %v340, %v322
      %v342 = vadd.f32 %v341, %v323
      %v343 = vadd.f32 %v342, %v324
      %v344 = vadd.f32 %v343, %v325
      %v345 = vadd.f32 %v344, %v326
      %346 = vadd.xlane.f32.xlu0 %v345
      %v347 = vpop.xlane.xlu0 %346
      %v348 = vld [vmem:[%s1] sm:$0xff]
      %vm349 = vcmask 64512
      %v351 = vsel %vm349, %v348, 0
      %353 = vmatprep.subr.mxu0 0.0
      %354 = vmatpush1.msra.mxu0 %v347
      %355 = vmatprep.subr.mxu0 0.0
      %356 = vmatpush1.msra.mxu0 0.0
      %357 = vmatprep.subr.mxu0 0.0
      %358 = vmatpush1.msra.mxu0 0.0
      %359 = vmatprep.subr.mxu0 0.0
      %360 = vmatpush1.msra.mxu0 0.0
      %361 = vmatprep.subr.mxu0 0.0
      %362 = vmatpush1.msra.mxu0 0.0
      %363 = vmatprep.subr.mxu0 0.0
      %364 = vmatpush1.msra.mxu0 0.0
      %365 = vmatprep.subr.mxu0 0.0
      %366 = vmatpush1.msra.mxu0 0.0
      %367 = vmatprep.subr.mxu0 0.0
      %368 = vmatpush1.msra.mxu0 0.0
      %369 = vmatprep.subr.mxu0 0.0
      %370 = vmatpush1.msra.mxu0 0.0
      %371 = vmatprep.subr.mxu0 0.0
      %372 = vmatpush1.msra.mxu0 0.0
      %373 = vmatprep.subr.mxu0 0.0
      %374 = vmatpush1.msra.mxu0 0.0
      %375 = vmatprep.subr.mxu0 0.0
      %376 = vmatpush1.msra.mxu0 0.0
      %377 = vmatprep.subr.mxu0 0.0
      %378 = vmatpush1.msra.mxu0 0.0
      %379 = vmatprep.subr.mxu0 0.0
      %380 = vmatpush1.msra.mxu0 0.0
      %381 = vmatprep.subr.mxu0 0.0
      %382 = vmatpush1.msra.mxu0 0.0
      %383 = vmatprep.subr.mxu0 0.0
      %384 = vmatpush1.msra.mxu0 0.0
      %385 = vmatprep.subr.mxu0 0.0
      %386 = vmatpush1.msra.mxu0 0.0
      %387 = vmatprep.subr.mxu0 0.0
      %388 = vmatpush1.msra.mxu0 0.0
      %389 = vmatprep.subr.mxu0 0.0
      %390 = vmatpush1.msra.mxu0 0.0
      %391 = vmatprep.subr.mxu0 0.0
      %392 = vmatpush1.msra.mxu0 0.0
      %393 = vmatprep.subr.mxu0 0.0
      %394 = vmatpush1.msra.mxu0 0.0
      %395 = vmatprep.subr.mxu0 0.0
      %396 = vmatpush1.msra.mxu0 0.0
      %397 = vmatprep.subr.mxu0 0.0
      %398 = vmatpush1.msra.mxu0 0.0
      %399 = vmatprep.subr.mxu0 0.0
      %400 = vmatpush1.msra.mxu0 0.0
      %401 = vmatprep.subr.mxu0 0.0
      %402 = vmatpush1.msra.mxu0 0.0
      %403 = vmatprep.subr.mxu0 0.0
      %404 = vmatpush1.msra.mxu0 0.0
      %405 = vmatprep.subr.mxu0 0.0
      %406 = vmatpush1.msra.mxu0 0.0
      %407 = vmatprep.subr.mxu0 0.0
      %408 = vmatpush1.msra.mxu0 0.0
      %409 = vmatprep.subr.mxu0 0.0
      %410 = vmatpush1.msra.mxu0 0.0
      %411 = vmatprep.subr.mxu0 0.0
      %412 = vmatpush1.msra.mxu0 0.0
      %413 = vmatprep.subr.mxu0 0.0
      %414 = vmatpush1.msra.mxu0 0.0
      %415 = vmatprep.subr.mxu0 0.0
      %416 = vmatpush1.msra.mxu0 0.0
      %417 = vmatprep.mubr.f32.mxu0 0.0
      %418 = vmatmul.mubr.f32.gmra.mrb[0].mxu0 %v351
      %v419 = vpop.f32.mrb[0].mxu0
      %v420 = vadd.f32 0.0, %v419
      %v421 = vpop.f32.mrb[0].mxu0
      %422 = vdwg.mxu0
      %v423 = vld [vmem:[%s2] sm:$0xff]
      %v424 = vadd.f32 %v420, %v423
      %v425 = vmax.f32 %v424, 0.0
      %427 = vset.pattern.permute.xlu0 0
      %428 = vperm.xlu0 %427, %v425
      %v429 = vpop.permute.xlu0 %428
      %v434 = vlaneseq
      %v435 = vshrl.u32 %v434, 7
      %v436 = vsub.s32 0, %v435
      %v437 = vrot.slane %v304, %v436
      %v438 = vlaneseq
      %v439 = vshrl.u32 %v438, 7
      %v440 = vsub.s32 1, %v439
      %v441 = vrot.slane %v304, %v440
      %v442 = vlaneseq
      %v443 = vshrl.u32 %v442, 7
      %v444 = vsub.s32 2, %v443
      %v445 = vrot.slane %v304, %v444
      %v446 = vlaneseq
      %v447 = vshrl.u32 %v446, 7
      %v448 = vsub.s32 3, %v447
      %v449 = vrot.slane %v304, %v448
      %v450 = vlaneseq
      %v451 = vshrl.u32 %v450, 7
      %v452 = vsub.s32 4, %v451
      %v453 = vrot.slane %v304, %v452
      %v454 = vlaneseq
      %v455 = vshrl.u32 %v454, 7
      %v456 = vsub.s32 5, %v455
      %v457 = vrot.slane %v304, %v456
      %v458 = vlaneseq
      %v459 = vshrl.u32 %v458, 7
      %v460 = vsub.s32 6, %v459
      %v461 = vrot.slane %v304, %v460
      %v462 = vlaneseq
      %v463 = vshrl.u32 %v462, 7
      %v464 = vsub.s32 7, %v463
      %v465 = vrot.slane %v304, %v464
      %v466 = vlaneseq
      %v467 = vshrl.u32 %v466, 7
      %v468 = vsub.s32 0, %v467
      %v469 = vrot.slane %v305, %v468
      %v470 = vlaneseq
      %v471 = vshrl.u32 %v470, 7
      %v472 = vsub.s32 1, %v471
      %v473 = vrot.slane %v305, %v472
      %v474 = vlaneseq
      %v475 = vshrl.u32 %v474, 7
      %v476 = vsub.s32 2, %v475
      %v477 = vrot.slane %v305, %v476
      %v478 = vlaneseq
      %v479 = vshrl.u32 %v478, 7
      %v480 = vsub.s32 3, %v479
      %v481 = vrot.slane %v305, %v480
      %v482 = vlaneseq
      %v483 = vshrl.u32 %v482, 7
      %v484 = vsub.s32 4, %v483
      %v485 = vrot.slane %v305, %v484
      %v486 = vlaneseq
      %v487 = vshrl.u32 %v486, 7
      %v488 = vsub.s32 5, %v487
      %v489 = vrot.slane %v305, %v488
      %v490 = vlaneseq
      %v491 = vshrl.u32 %v490, 7
      %v492 = vsub.s32 6, %v491
      %v493 = vrot.slane %v305, %v492
      %v494 = vlaneseq
      %v495 = vshrl.u32 %v494, 7
      %v496 = vsub.s32 7, %v495
      %v497 = vrot.slane %v305, %v496
      %v498 = vlaneseq
      %v499 = vshrl.u32 %v498, 7
      %v500 = vsub.s32 0, %v499
      %v501 = vrot.slane %v306, %v500
      %v502 = vlaneseq
      %v503 = vshrl.u32 %v502, 7
      %v504 = vsub.s32 1, %v503
      %v505 = vrot.slane %v306, %v504
      %v506 = vlaneseq
      %v507 = vshrl.u32 %v506, 7
      %v508 = vsub.s32 2, %v507
      %v509 = vrot.slane %v306, %v508
      %v510 = vlaneseq
      %v511 = vshrl.u32 %v510, 7
      %v512 = vsub.s32 3, %v511
      %v513 = vrot.slane %v306, %v512
      %v534 = vmul.f32 %v429, %v437
      %v535 = vmul.f32 %v429, %v441
      %v536 = vmul.f32 %v429, %v445
      %v537 = vmul.f32 %v429, %v449
      %v538 = vmul.f32 %v429, %v453
      %v539 = vmul.f32 %v429, %v457
      %v540 = vmul.f32 %v429, %v461
      %v541 = vmul.f32 %v429, %v465
      %v542 = vmul.f32 %v429, %v469
      %v543 = vmul.f32 %v429, %v473
      %v544 = vmul.f32 %v429, %v477
      %v545 = vmul.f32 %v429, %v481
      %v546 = vmul.f32 %v429, %v485
      %v547 = vmul.f32 %v429, %v489
      %v548 = vmul.f32 %v429, %v493
      %v549 = vmul.f32 %v429, %v497
      %v550 = vmul.f32 %v429, %v501
      %v551 = vmul.f32 %v429, %v505
      %v552 = vmul.f32 %v429, %v509
      %v553 = vmul.f32 %v429, %v513
      %554 = vst [vmem:[#allocation3] sm:$0xff] %v534
      %555 = vst [vmem:[#allocation3 + $0x8] sm:$0xff] %v535
      %556 = vst [vmem:[#allocation3 + $0x10] sm:$0xff] %v536
      %557 = vst [vmem:[#allocation3 + $0x18] sm:$0xff] %v537
      %558 = vst [vmem:[#allocation3 + $0x20] sm:$0xff] %v538
      %559 = vst [vmem:[#allocation3 + $0x28] sm:$0xff] %v539
      %560 = vst [vmem:[#allocation3 + $0x30] sm:$0xff] %v540
      %561 = vst [vmem:[#allocation3 + $0x38] sm:$0xff] %v541
      %562 = vst [vmem:[#allocation3 + $0x40] sm:$0xff] %v542
      %563 = vst [vmem:[#allocation3 + $0x48] sm:$0xff] %v543
      %564 = vst [vmem:[#allocation3 + $0x50] sm:$0xff] %v544
      %565 = vst [vmem:[#allocation3 + $0x58] sm:$0xff] %v545
      %566 = vst [vmem:[#allocation3 + $0x60] sm:$0xff] %v546
      %567 = vst [vmem:[#allocation3 + $0x68] sm:$0xff] %v547
      %568 = vst [vmem:[#allocation3 + $0x70] sm:$0xff] %v548
      %569 = vst [vmem:[#allocation3 + $0x78] sm:$0xff] %v549
      %570 = vst [vmem:[#allocation3 + $0x80] sm:$0xff] %v550
      %571 = vst [vmem:[#allocation3 + $0x88] sm:$0xff] %v551
      %572 = vst [vmem:[#allocation3 + $0x90] sm:$0xff] %v552
      %573 = vst [vmem:[#allocation3 + $0x98] sm:$0xff] %v553
      %v574 = vld [vmem:[#allocation2 + $0x60] sm:$0xff]
      %v575 = vld [vmem:[#allocation2 + $0x68] sm:$0xff]
      %v576 = vld [vmem:[#allocation2 + $0x70] sm:$0xff]
      %v577 = vld [vmem:[#allocation2 + $0x78] sm:$0xff]
      %v578 = vld [vmem:[#allocation2 + $0x80] sm:$0xff]
      %v579 = vld [vmem:[#allocation2 + $0x88] sm:$0xff]
      %v580 = vld [vmem:[#allocation2 + $0x90] sm:$0xff]
      %v581 = vld [vmem:[#allocation2 + $0x98] sm:$0xff]
      %v582 = vld [vmem:[#allocation2 + $0xa0] sm:$0xff]
      %v583 = vld [vmem:[#allocation2 + $0xa8] sm:$0xff]
      %v584 = vld [vmem:[#allocation2 + $0xb0] sm:$0xff]
      %v585 = vld [vmem:[#allocation2 + $0xb8] sm:$0xff]
      %v586 = vld [vmem:[#allocation2 + $0xc0] sm:$0xff]
      %v587 = vld [vmem:[#allocation2 + $0xc8] sm:$0xff]
      %v588 = vld [vmem:[#allocation2 + $0xd0] sm:$0xff]
      %v589 = vld [vmem:[#allocation2 + $0xd8] sm:$0xff]
      %v590 = vld [vmem:[#allocation2 + $0xe0] sm:$0xff]
      %v591 = vld [vmem:[#allocation2 + $0xe8] sm:$0xff]
      %v592 = vld [vmem:[#allocation2 + $0xf0] sm:$0xff]
      %v593 = vld [vmem:[#allocation2 + $0xf8] sm:$0xff]
      %v594 = vld [vmem:[#allocation2 + $0x100] sm:$0xff]
      %v595 = vld [vmem:[#allocation2 + $0x108] sm:$0xff]
      %v596 = vld [vmem:[#allocation2 + $0x110] sm:$0xff]
      %v597 = vld [vmem:[#allocation2 + $0x118] sm:$0xff]
      %v598 = vld [vmem:[#allocation2 + $0x120] sm:$0xff]
      %v599 = vld [vmem:[#allocation2 + $0x128] sm:$0xff]
      %v600 = vld [vmem:[#allocation2 + $0x130] sm:$0xff]
      %v601 = vld [vmem:[#allocation2 + $0x138] sm:$0xff]
      %v602 = vld [vmem:[#allocation2 + $0x140] sm:$0xff]
      %v603 = vld [vmem:[#allocation2 + $0x148] sm:$0xff]
      %v604 = vld [vmem:[#allocation2 + $0x150] sm:$0xff]
      %v605 = vld [vmem:[#allocation2 + $0x158] sm:$0xff]
      %v606 = vld [vmem:[#allocation2 + $0x160] sm:$0xff]
      %v607 = vld [vmem:[#allocation2 + $0x168] sm:$0xff]
      %v608 = vld [vmem:[#allocation2 + $0x30] sm:$0xff]
      %v609 = vld [vmem:[#allocation2 + $0x38] sm:$0xff]
      %v610 = vld [vmem:[#allocation2 + $0x40] sm:$0xff]
      %v611 = vld [vmem:[#allocation2 + $0x48] sm:$0xff]
      %v612 = vld [vmem:[#allocation2 + $0x50] sm:$0xff]
      %v613 = vld [vmem:[#allocation2 + $0x58] sm:$0xff]
      %v614 = vld [vmem:[#allocation2 + $0x170] sm:$0xff]
      %v615 = vld [vmem:[#allocation2 + $0x178] sm:$0xff]
      %v616 = vld [vmem:[#allocation2 + $0x180] sm:$0xff]
      %v617 = vld [vmem:[#allocation2 + $0x188] sm:$0xff]
      %v618 = vld [vmem:[#allocation2 + $0x190] sm:$0xff]
      %v619 = vld [vmem:[#allocation2 + $0x198] sm:$0xff]
      %v620 = vld [vmem:[#allocation2] sm:$0xff]
      %v621 = vld [vmem:[#allocation2 + $0x8] sm:$0xff]
      %v622 = vld [vmem:[#allocation2 + $0x10] sm:$0xff]
      %v623 = vld [vmem:[#allocation2 + $0x18] sm:$0xff]
      %v624 = vld [vmem:[#allocation2 + $0x20] sm:$0xff]
      %v625 = vld [vmem:[#allocation2 + $0x28] sm:$0xff]
      %v626 = vld [vmem:[#allocation2 + $0x1a0] sm:$0xff]
      %v627 = vld [vmem:[#allocation2 + $0x1a8] sm:$0xff]
      %v628 = vld [vmem:[#allocation2 + $0x1b0] sm:$0xff]
      %v629 = vld [vmem:[#allocation2 + $0x1b8] sm:$0xff]
      %v630 = vld [vmem:[#allocation2 + $0x1c0] sm:$0xff]
      %v631 = vld [vmem:[#allocation2 + $0x128] sm:$0xff]
      %v632 = vld [vmem:[#allocation2 + $0x130] sm:$0xff]
      %v633 = vld [vmem:[#allocation2 + $0x138] sm:$0xff]
      %v634 = vld [vmem:[#allocation2 + $0x140] sm:$0xff]
      %v635 = vld [vmem:[#allocation2 + $0x148] sm:$0xff]
      %v636 = vld [vmem:[#allocation2 + $0x150] sm:$0xff]
      %v637 = vld [vmem:[#allocation2 + $0x158] sm:$0xff]
      %v638 = vld [vmem:[#allocation2 + $0x160] sm:$0xff]
      %v639 = vld [vmem:[#allocation2 + $0x168] sm:$0xff]
      %v640 = vld [vmem:[#allocation2 + $0x170] sm:$0xff]
      %v641 = vld [vmem:[#allocation2 + $0x178] sm:$0xff]
      %v642 = vld [vmem:[#allocation2 + $0x180] sm:$0xff]
      %v643 = vld [vmem:[#allocation2 + $0x188] sm:$0xff]
      %v644 = vld [vmem:[#allocation2 + $0x190] sm:$0xff]
      %v645 = vld [vmem:[#allocation2 + $0x198] sm:$0xff]
      %v646 = vld [vmem:[#allocation2 + $0x1a0] sm:$0xff]
      %v647 = vld [vmem:[#allocation2 + $0x1a8] sm:$0xff]
      %v648 = vld [vmem:[#allocation2 + $0x1b0] sm:$0xff]
      %v649 = vld [vmem:[#allocation2 + $0x1b8] sm:$0xff]
      %v650 = vld [vmem:[#allocation2 + $0x1c0] sm:$0xff]
      %v651 = vld [vmem:[#allocation2 + $0x1c8] sm:$0xff]
      %673 = vrot.lane.b32.xlu0 %v574, 6
      %v674 = vpop.permute.xlu0 %673
      %675 = vrot.lane.b32.xlu0 %v575, 6
      %v676 = vpop.permute.xlu0 %675
      %677 = vrot.lane.b32.xlu0 %v576, 6
      %v678 = vpop.permute.xlu0 %677
      %679 = vrot.lane.b32.xlu0 %v577, 6
      %v680 = vpop.permute.xlu0 %679
      %681 = vrot.lane.b32.xlu0 %v578, 6
      %v682 = vpop.permute.xlu0 %681
      %683 = vrot.lane.b32.xlu0 %v579, 6
      %v684 = vpop.permute.xlu0 %683
      %685 = vrot.lane.b32.xlu0 %v580, 6
      %v686 = vpop.permute.xlu0 %685
      %687 = vrot.lane.b32.xlu0 %v581, 6
      %v688 = vpop.permute.xlu0 %687
      %689 = vrot.lane.b32.xlu0 %v582, 6
      %v690 = vpop.permute.xlu0 %689
      %691 = vrot.lane.b32.xlu0 %v583, 6
      %v692 = vpop.permute.xlu0 %691
      %693 = vrot.lane.b32.xlu0 %v584, 6
      %v694 = vpop.permute.xlu0 %693
      %695 = vrot.lane.b32.xlu0 %v585, 6
      %v696 = vpop.permute.xlu0 %695
      %697 = vrot.lane.b32.xlu0 %v586, 6
      %v698 = vpop.permute.xlu0 %697
      %699 = vrot.lane.b32.xlu0 %v587, 6
      %v700 = vpop.permute.xlu0 %699
      %701 = vrot.lane.b32.xlu0 %v588, 6
      %v702 = vpop.permute.xlu0 %701
      %703 = vrot.lane.b32.xlu0 %v589, 6
      %v704 = vpop.permute.xlu0 %703
      %705 = vrot.lane.b32.xlu0 %v590, 6
      %v706 = vpop.permute.xlu0 %705
      %707 = vrot.lane.b32.xlu0 %v591, 6
      %v708 = vpop.permute.xlu0 %707
      %709 = vrot.lane.b32.xlu0 %v592, 6
      %v710 = vpop.permute.xlu0 %709
      %711 = vrot.lane.b32.xlu0 %v593, 6
      %v712 = vpop.permute.xlu0 %711
      %713 = vrot.lane.b32.xlu0 %v594, 6
      %v714 = vpop.permute.xlu0 %713
      %vm715 = vcmask 48128
      %v716 = vsel %vm715, %v674, %v676
      %v717 = vsel %vm715, %v676, %v678
      %v718 = vsel %vm715, %v678, %v680
      %v719 = vsel %vm715, %v680, %v682
      %v720 = vsel %vm715, %v682, %v684
      %v721 = vsel %vm715, %v684, %v686
      %v722 = vsel %vm715, %v686, %v688
      %v723 = vsel %vm715, %v688, %v690
      %v724 = vsel %vm715, %v690, %v692
      %v725 = vsel %vm715, %v692, %v694
      %v726 = vsel %vm715, %v694, %v696
      %v727 = vsel %vm715, %v696, %v698
      %v728 = vsel %vm715, %v698, %v700
      %v729 = vsel %vm715, %v700, %v702
      %v730 = vsel %vm715, %v702, %v704
      %v731 = vsel %vm715, %v704, %v706
      %v732 = vsel %vm715, %v706, %v708
      %v733 = vsel %vm715, %v708, %v710
      %v734 = vsel %vm715, %v710, %v712
      %v735 = vsel %vm715, %v712, %v714
      %757 = vrot.lane.b32.xlu0 %v575, 122
      %v758 = vpop.permute.xlu0 %757
      %759 = vrot.lane.b32.xlu0 %v576, 122
      %v760 = vpop.permute.xlu0 %759
      %761 = vrot.lane.b32.xlu0 %v577, 122
      %v762 = vpop.permute.xlu0 %761
      %763 = vrot.lane.b32.xlu0 %v578, 122
      %v764 = vpop.permute.xlu0 %763
      %765 = vrot.lane.b32.xlu0 %v579, 122
      %v766 = vpop.permute.xlu0 %765
      %767 = vrot.lane.b32.xlu0 %v580, 122
      %v768 = vpop.permute.xlu0 %767
      %769 = vrot.lane.b32.xlu0 %v581, 122
      %v770 = vpop.permute.xlu0 %769
      %771 = vrot.lane.b32.xlu0 %v582, 122
      %v772 = vpop.permute.xlu0 %771
      %773 = vrot.lane.b32.xlu0 %v583, 122
      %v774 = vpop.permute.xlu0 %773
      %775 = vrot.lane.b32.xlu0 %v584, 122
      %v776 = vpop.permute.xlu0 %775
      %777 = vrot.lane.b32.xlu0 %v585, 122
      %v778 = vpop.permute.xlu0 %777
      %779 = vrot.lane.b32.xlu0 %v586, 122
      %v780 = vpop.permute.xlu0 %779
      %781 = vrot.lane.b32.xlu0 %v587, 122
      %v782 = vpop.permute.xlu0 %781
      %783 = vrot.lane.b32.xlu0 %v588, 122
      %v784 = vpop.permute.xlu0 %783
      %785 = vrot.lane.b32.xlu0 %v589, 122
      %v786 = vpop.permute.xlu0 %785
      %787 = vrot.lane.b32.xlu0 %v590, 122
      %v788 = vpop.permute.xlu0 %787
      %789 = vrot.lane.b32.xlu0 %v591, 122
      %v790 = vpop.permute.xlu0 %789
      %791 = vrot.lane.b32.xlu0 %v592, 122
      %v792 = vpop.permute.xlu0 %791
      %793 = vrot.lane.b32.xlu0 %v593, 122
      %v794 = vpop.permute.xlu0 %793
      %795 = vrot.lane.b32.xlu0 %v594, 122
      %v796 = vpop.permute.xlu0 %795
      %797 = vrot.lane.b32.xlu0 %v595, 122
      %v798 = vpop.permute.xlu0 %797
      %vm799 = vcmask 998400
      %v800 = vsel %vm799, %v758, %v760
      %v801 = vsel %vm799, %v760, %v762
      %v802 = vsel %vm799, %v762, %v764
      %v803 = vsel %vm799, %v764, %v766
      %v804 = vsel %vm799, %v766, %v768
      %v805 = vsel %vm799, %v768, %v770
      %v806 = vsel %vm799, %v770, %v772
      %v807 = vsel %vm799, %v772, %v774
      %v808 = vsel %vm799, %v774, %v776
      %v809 = vsel %vm799, %v776, %v778
      %v810 = vsel %vm799, %v778, %v780
      %v811 = vsel %vm799, %v780, %v782
      %v812 = vsel %vm799, %v782, %v784
      %v813 = vsel %vm799, %v784, %v786
      %v814 = vsel %vm799, %v786, %v788
      %v815 = vsel %vm799, %v788, %v790
      %v816 = vsel %vm799, %v790, %v792
      %v817 = vsel %vm799, %v792, %v794
      %v818 = vsel %vm799, %v794, %v796
      %v819 = vsel %vm799, %v796, %v798
      %845 = vrot.lane.b32.xlu0 %v595, 6
      %v846 = vpop.permute.xlu0 %845
      %847 = vrot.lane.b32.xlu0 %v596, 6
      %v848 = vpop.permute.xlu0 %847
      %849 = vrot.lane.b32.xlu0 %v597, 6
      %v850 = vpop.permute.xlu0 %849
      %851 = vrot.lane.b32.xlu0 %v598, 6
      %v852 = vpop.permute.xlu0 %851
      %853 = vrot.lane.b32.xlu0 %v599, 6
      %v854 = vpop.permute.xlu0 %853
      %855 = vrot.lane.b32.xlu0 %v600, 6
      %v856 = vpop.permute.xlu0 %855
      %v857 = vsel %vm715, %v714, %v846
      %v858 = vsel %vm715, %v846, %v848
      %v859 = vsel %vm715, %v848, %v850
      %v860 = vsel %vm715, %v850, %v852
      %v861 = vsel %vm715, %v852, %v854
      %v862 = vsel %vm715, %v854, %v856
      %870 = vrot.lane.b32.xlu0 %v596, 122
      %v871 = vpop.permute.xlu0 %870
      %872 = vrot.lane.b32.xlu0 %v597, 122
      %v873 = vpop.permute.xlu0 %872
      %874 = vrot.lane.b32.xlu0 %v598, 122
      %v875 = vpop.permute.xlu0 %874
      %876 = vrot.lane.b32.xlu0 %v599, 122
      %v877 = vpop.permute.xlu0 %876
      %878 = vrot.lane.b32.xlu0 %v600, 122
      %v879 = vpop.permute.xlu0 %878
      %880 = vrot.lane.b32.xlu0 %v601, 122
      %v881 = vpop.permute.xlu0 %880
      %v882 = vsel %vm799, %v798, %v871
      %v883 = vsel %vm799, %v871, %v873
      %v884 = vsel %vm799, %v873, %v875
      %v885 = vsel %vm799, %v875, %v877
      %v886 = vsel %vm799, %v877, %v879
      %v887 = vsel %vm799, %v879, %v881
      %899 = vrot.lane.b32.xlu0 %v601, 6
      %v900 = vpop.permute.xlu0 %899
      %901 = vrot.lane.b32.xlu0 %v602, 6
      %v902 = vpop.permute.xlu0 %901
      %903 = vrot.lane.b32.xlu0 %v603, 6
      %v904 = vpop.permute.xlu0 %903
      %905 = vrot.lane.b32.xlu0 %v604, 6
      %v906 = vpop.permute.xlu0 %905
      %907 = vrot.lane.b32.xlu0 %v605, 6
      %v908 = vpop.permute.xlu0 %907
      %909 = vrot.lane.b32.xlu0 %v606, 6
      %v910 = vpop.permute.xlu0 %909
      %v911 = vsel %vm715, %v856, %v900
      %v912 = vsel %vm715, %v900, %v902
      %v913 = vsel %vm715, %v902, %v904
      %v914 = vsel %vm715, %v904, %v906
      %v915 = vsel %vm715, %v906, %v908
      %v916 = vsel %vm715, %v908, %v910
      %924 = vrot.lane.b32.xlu0 %v602, 122
      %v925 = vpop.permute.xlu0 %924
      %926 = vrot.lane.b32.xlu0 %v603, 122
      %v927 = vpop.permute.xlu0 %926
      %928 = vrot.lane.b32.xlu0 %v604, 122
      %v929 = vpop.permute.xlu0 %928
      %930 = vrot.lane.b32.xlu0 %v605, 122
      %v931 = vpop.permute.xlu0 %930
      %932 = vrot.lane.b32.xlu0 %v606, 122
      %v933 = vpop.permute.xlu0 %932
      %934 = vrot.lane.b32.xlu0 %v607, 122
      %v935 = vpop.permute.xlu0 %934
      %v936 = vsel %vm799, %v881, %v925
      %v937 = vsel %vm799, %v925, %v927
      %v938 = vsel %vm799, %v927, %v929
      %v939 = vsel %vm799, %v929, %v931
      %v940 = vsel %vm799, %v931, %v933
      %v941 = vsel %vm799, %v933, %v935
      %954 = vrot.lane.b32.xlu0 %v608, 12
      %v955 = vpop.permute.xlu0 %954
      %956 = vrot.lane.b32.xlu0 %v609, 12
      %v957 = vpop.permute.xlu0 %956
      %958 = vrot.lane.b32.xlu0 %v610, 12
      %v959 = vpop.permute.xlu0 %958
      %960 = vrot.lane.b32.xlu0 %v611, 12
      %v961 = vpop.permute.xlu0 %960
      %962 = vrot.lane.b32.xlu0 %v612, 12
      %v963 = vpop.permute.xlu0 %962
      %964 = vrot.lane.b32.xlu0 %v613, 12
      %v965 = vpop.permute.xlu0 %964
      %966 = vrot.lane.b32.xlu0 %v574, 12
      %v967 = vpop.permute.xlu0 %966
      %968 = vrot.lane.b32.xlu0 %v575, 12
      %v969 = vpop.permute.xlu0 %968
      %970 = vrot.lane.b32.xlu0 %v576, 12
      %v971 = vpop.permute.xlu0 %970
      %972 = vrot.lane.b32.xlu0 %v577, 12
      %v973 = vpop.permute.xlu0 %972
      %974 = vrot.lane.b32.xlu0 %v578, 12
      %v975 = vpop.permute.xlu0 %974
      %976 = vrot.lane.b32.xlu0 %v579, 12
      %v977 = vpop.permute.xlu0 %976
      %978 = vrot.lane.b32.xlu0 %v580, 12
      %v979 = vpop.permute.xlu0 %978
      %980 = vrot.lane.b32.xlu0 %v581, 12
      %v981 = vpop.permute.xlu0 %980
      %982 = vrot.lane.b32.xlu0 %v582, 12
      %v983 = vpop.permute.xlu0 %982
      %984 = vrot.lane.b32.xlu0 %v583, 12
      %v985 = vpop.permute.xlu0 %984
      %986 = vrot.lane.b32.xlu0 %v584, 12
      %v987 = vpop.permute.xlu0 %986
      %988 = vrot.lane.b32.xlu0 %v585, 12
      %v989 = vpop.permute.xlu0 %988
      %990 = vrot.lane.b32.xlu0 %v586, 12
      %v991 = vpop.permute.xlu0 %990
      %992 = vrot.lane.b32.xlu0 %v587, 12
      %v993 = vpop.permute.xlu0 %992
      %994 = vrot.lane.b32.xlu0 %v588, 12
      %v995 = vpop.permute.xlu0 %994
      %vm996 = vcmask 97280
      %v997 = vsel %vm996, %v955, %v957
      %v998 = vsel %vm996, %v957, %v959
      %v999 = vsel %vm996, %v959, %v961
      %v1000 = vsel %vm996, %v961, %v963
      %v1001 = vsel %vm996, %v963, %v965
      %v1002 = vsel %vm996, %v965, %v967
      %v1003 = vsel %vm996, %v967, %v969
      %v1004 = vsel %vm996, %v969, %v971
      %v1005 = vsel %vm996, %v971, %v973
      %v1006 = vsel %vm996, %v973, %v975
      %v1007 = vsel %vm996, %v975, %v977
      %v1008 = vsel %vm996, %v977, %v979
      %v1009 = vsel %vm996, %v979, %v981
      %v1010 = vsel %vm996, %v981, %v983
      %v1011 = vsel %vm996, %v983, %v985
      %v1012 = vsel %vm996, %v985, %v987
      %v1013 = vsel %vm996, %v987, %v989
      %v1014 = vsel %vm996, %v989, %v991
      %v1015 = vsel %vm996, %v991, %v993
      %v1016 = vsel %vm996, %v993, %v995
      %1037 = vrot.lane.b32.xlu0 %v609, 116
      %v1038 = vpop.permute.xlu0 %1037
      %1039 = vrot.lane.b32.xlu0 %v610, 116
      %v1040 = vpop.permute.xlu0 %1039
      %1041 = vrot.lane.b32.xlu0 %v611, 116
      %v1042 = vpop.permute.xlu0 %1041
      %1043 = vrot.lane.b32.xlu0 %v612, 116
      %v1044 = vpop.permute.xlu0 %1043
      %1045 = vrot.lane.b32.xlu0 %v613, 116
      %v1046 = vpop.permute.xlu0 %1045
      %1047 = vrot.lane.b32.xlu0 %v574, 116
      %v1048 = vpop.permute.xlu0 %1047
      %1049 = vrot.lane.b32.xlu0 %v575, 116
      %v1050 = vpop.permute.xlu0 %1049
      %1051 = vrot.lane.b32.xlu0 %v576, 116
      %v1052 = vpop.permute.xlu0 %1051
      %1053 = vrot.lane.b32.xlu0 %v577, 116
      %v1054 = vpop.permute.xlu0 %1053
      %1055 = vrot.lane.b32.xlu0 %v578, 116
      %v1056 = vpop.permute.xlu0 %1055
      %1057 = vrot.lane.b32.xlu0 %v579, 116
      %v1058 = vpop.permute.xlu0 %1057
      %1059 = vrot.lane.b32.xlu0 %v580, 116
      %v1060 = vpop.permute.xlu0 %1059
      %1061 = vrot.lane.b32.xlu0 %v581, 116
      %v1062 = vpop.permute.xlu0 %1061
      %1063 = vrot.lane.b32.xlu0 %v582, 116
      %v1064 = vpop.permute.xlu0 %1063
      %1065 = vrot.lane.b32.xlu0 %v583, 116
      %v1066 = vpop.permute.xlu0 %1065
      %1067 = vrot.lane.b32.xlu0 %v584, 116
      %v1068 = vpop.permute.xlu0 %1067
      %1069 = vrot.lane.b32.xlu0 %v585, 116
      %v1070 = vpop.permute.xlu0 %1069
      %1071 = vrot.lane.b32.xlu0 %v586, 116
      %v1072 = vpop.permute.xlu0 %1071
      %1073 = vrot.lane.b32.xlu0 %v587, 116
      %v1074 = vpop.permute.xlu0 %1073
      %1075 = vrot.lane.b32.xlu0 %v588, 116
      %v1076 = vpop.permute.xlu0 %1075
      %1077 = vrot.lane.b32.xlu0 %v589, 116
      %v1078 = vpop.permute.xlu0 %1077
      %vm1079 = vcmask 949248
      %v1080 = vsel %vm1079, %v1038, %v1040
      %v1081 = vsel %vm1079, %v1040, %v1042
      %v1082 = vsel %vm1079, %v1042, %v1044
      %v1083 = vsel %vm1079, %v1044, %v1046
      %v1084 = vsel %vm1079, %v1046, %v1048
      %v1085 = vsel %vm1079, %v1048, %v1050
      %v1086 = vsel %vm1079, %v1050, %v1052
      %v1087 = vsel %vm1079, %v1052, %v1054
      %v1088 = vsel %vm1079, %v1054, %v1056
      %v1089 = vsel %vm1079, %v1056, %v1058
      %v1090 = vsel %vm1079, %v1058, %v1060
      %v1091 = vsel %vm1079, %v1060, %v1062
      %v1092 = vsel %vm1079, %v1062, %v1064
      %v1093 = vsel %vm1079, %v1064, %v1066
      %v1094 = vsel %vm1079, %v1066, %v1068
      %v1095 = vsel %vm1079, %v1068, %v1070
      %v1096 = vsel %vm1079, %v1070, %v1072
      %v1097 = vsel %vm1079, %v1072, %v1074
      %v1098 = vsel %vm1079, %v1074, %v1076
      %v1099 = vsel %vm1079, %v1076, %v1078
      %1120 = vrot.lane.b32.xlu0 %v589, 12
      %v1121 = vpop.permute.xlu0 %1120
      %1122 = vrot.lane.b32.xlu0 %v590, 12
      %v1123 = vpop.permute.xlu0 %1122
      %1124 = vrot.lane.b32.xlu0 %v591, 12
      %v1125 = vpop.permute.xlu0 %1124
      %1126 = vrot.lane.b32.xlu0 %v592, 12
      %v1127 = vpop.permute.xlu0 %1126
      %1128 = vrot.lane.b32.xlu0 %v593, 12
      %v1129 = vpop.permute.xlu0 %1128
      %1130 = vrot.lane.b32.xlu0 %v594, 12
      %v1131 = vpop.permute.xlu0 %1130
      %1132 = vrot.lane.b32.xlu0 %v595, 12
      %v1133 = vpop.permute.xlu0 %1132
      %1134 = vrot.lane.b32.xlu0 %v596, 12
      %v1135 = vpop.permute.xlu0 %1134
      %1136 = vrot.lane.b32.xlu0 %v597, 12
      %v1137 = vpop.permute.xlu0 %1136
      %1138 = vrot.lane.b32.xlu0 %v598, 12
      %v1139 = vpop.permute.xlu0 %1138
      %1140 = vrot.lane.b32.xlu0 %v599, 12
      %v1141 = vpop.permute.xlu0 %1140
      %1142 = vrot.lane.b32.xlu0 %v600, 12
      %v1143 = vpop.permute.xlu0 %1142
      %v1144 = vsel %vm996, %v995, %v1121
      %v1145 = vsel %vm996, %v1121, %v1123
      %v1146 = vsel %vm996, %v1123, %v1125
      %v1147 = vsel %vm996, %v1125, %v1127
      %v1148 = vsel %vm996, %v1127, %v1129
      %v1149 = vsel %vm996, %v1129, %v1131
      %v1150 = vsel %vm996, %v1131, %v1133
      %v1151 = vsel %vm996, %v1133, %v1135
      %v1152 = vsel %vm996, %v1135, %v1137
      %v1153 = vsel %vm996, %v1137, %v1139
      %v1154 = vsel %vm996, %v1139, %v1141
      %v1155 = vsel %vm996, %v1141, %v1143
      %1168 = vrot.lane.b32.xlu0 %v590, 116
      %v1169 = vpop.permute.xlu0 %1168
      %1170 = vrot.lane.b32.xlu0 %v591, 116
      %v1171 = vpop.permute.xlu0 %1170
      %1172 = vrot.lane.b32.xlu0 %v592, 116
      %v1173 = vpop.permute.xlu0 %1172
      %1174 = vrot.lane.b32.xlu0 %v593, 116
      %v1175 = vpop.permute.xlu0 %1174
      %1176 = vrot.lane.b32.xlu0 %v594, 116
      %v1177 = vpop.permute.xlu0 %1176
      %1178 = vrot.lane.b32.xlu0 %v595, 116
      %v1179 = vpop.permute.xlu0 %1178
      %1180 = vrot.lane.b32.xlu0 %v596, 116
      %v1181 = vpop.permute.xlu0 %1180
      %1182 = vrot.lane.b32.xlu0 %v597, 116
      %v1183 = vpop.permute.xlu0 %1182
      %1184 = vrot.lane.b32.xlu0 %v598, 116
      %v1185 = vpop.permute.xlu0 %1184
      %1186 = vrot.lane.b32.xlu0 %v599, 116
      %v1187 = vpop.permute.xlu0 %1186
      %1188 = vrot.lane.b32.xlu0 %v600, 116
      %v1189 = vpop.permute.xlu0 %1188
      %1190 = vrot.lane.b32.xlu0 %v601, 116
      %v1191 = vpop.permute.xlu0 %1190
      %v1192 = vsel %vm1079, %v1078, %v1169
      %v1193 = vsel %vm1079, %v1169, %v1171
      %v1194 = vsel %vm1079, %v1171, %v1173
      %v1195 = vsel %vm1079, %v1173, %v1175
      %v1196 = vsel %vm1079, %v1175, %v1177
      %v1197 = vsel %vm1079, %v1177, %v1179
      %v1198 = vsel %vm1079, %v1179, %v1181
      %v1199 = vsel %vm1079, %v1181, %v1183
      %v1200 = vsel %vm1079, %v1183, %v1185
      %v1201 = vsel %vm1079, %v1185, %v1187
      %v1202 = vsel %vm1079, %v1187, %v1189
      %v1203 = vsel %vm1079, %v1189, %v1191
      %1221 = vrot.lane.b32.xlu0 %v601, 12
      %v1222 = vpop.permute.xlu0 %1221
      %1223 = vrot.lane.b32.xlu0 %v602, 12
      %v1224 = vpop.permute.xlu0 %1223
      %1225 = vrot.lane.b32.xlu0 %v603, 12
      %v1226 = vpop.permute.xlu0 %1225
      %1227 = vrot.lane.b32.xlu0 %v604, 12
      %v1228 = vpop.permute.xlu0 %1227
      %1229 = vrot.lane.b32.xlu0 %v605, 12
      %v1230 = vpop.permute.xlu0 %1229
      %1231 = vrot.lane.b32.xlu0 %v606, 12
      %v1232 = vpop.permute.xlu0 %1231
      %1233 = vrot.lane.b32.xlu0 %v607, 12
      %v1234 = vpop.permute.xlu0 %1233
      %1235 = vrot.lane.b32.xlu0 %v614, 12
      %v1236 = vpop.permute.xlu0 %1235
      %1237 = vrot.lane.b32.xlu0 %v615, 12
      %v1238 = vpop.permute.xlu0 %1237
      %1239 = vrot.lane.b32.xlu0 %v616, 12
      %v1240 = vpop.permute.xlu0 %1239
      %1241 = vrot.lane.b32.xlu0 %v617, 12
      %v1242 = vpop.permute.xlu0 %1241
      %1243 = vrot.lane.b32.xlu0 %v618, 12
      %v1244 = vpop.permute.xlu0 %1243
      %v1245 = vsel %vm996, %v1143, %v1222
      %v1246 = vsel %vm996, %v1222, %v1224
      %v1247 = vsel %vm996, %v1224, %v1226
      %v1248 = vsel %vm996, %v1226, %v1228
      %v1249 = vsel %vm996, %v1228, %v1230
      %v1250 = vsel %vm996, %v1230, %v1232
      %v1251 = vsel %vm996, %v1232, %v1234
      %v1252 = vsel %vm996, %v1234, %v1236
      %v1253 = vsel %vm996, %v1236, %v1238
      %v1254 = vsel %vm996, %v1238, %v1240
      %v1255 = vsel %vm996, %v1240, %v1242
      %v1256 = vsel %vm996, %v1242, %v1244
      %1275 = vrot.lane.b32.xlu0 %v620, 30
      %v1276 = vpop.permute.xlu0 %1275
      %1277 = vrot.lane.b32.xlu0 %v621, 30
      %v1278 = vpop.permute.xlu0 %1277
      %1279 = vrot.lane.b32.xlu0 %v622, 30
      %v1280 = vpop.permute.xlu0 %1279
      %1281 = vrot.lane.b32.xlu0 %v623, 30
      %v1282 = vpop.permute.xlu0 %1281
      %1283 = vrot.lane.b32.xlu0 %v624, 30
      %v1284 = vpop.permute.xlu0 %1283
      %1285 = vrot.lane.b32.xlu0 %v625, 30
      %v1286 = vpop.permute.xlu0 %1285
      %1287 = vrot.lane.b32.xlu0 %v608, 30
      %v1288 = vpop.permute.xlu0 %1287
      %1289 = vrot.lane.b32.xlu0 %v609, 30
      %v1290 = vpop.permute.xlu0 %1289
      %1291 = vrot.lane.b32.xlu0 %v610, 30
      %v1292 = vpop.permute.xlu0 %1291
      %1293 = vrot.lane.b32.xlu0 %v611, 30
      %v1294 = vpop.permute.xlu0 %1293
      %1295 = vrot.lane.b32.xlu0 %v612, 30
      %v1296 = vpop.permute.xlu0 %1295
      %1297 = vrot.lane.b32.xlu0 %v613, 30
      %v1298 = vpop.permute.xlu0 %1297
      %1299 = vrot.lane.b32.xlu0 %v574, 30
      %v1300 = vpop.permute.xlu0 %1299
      %1301 = vrot.lane.b32.xlu0 %v575, 30
      %v1302 = vpop.permute.xlu0 %1301
      %1303 = vrot.lane.b32.xlu0 %v576, 30
      %v1304 = vpop.permute.xlu0 %1303
      %1305 = vrot.lane.b32.xlu0 %v577, 30
      %v1306 = vpop.permute.xlu0 %1305
      %1307 = vrot.lane.b32.xlu0 %v578, 30
      %v1308 = vpop.permute.xlu0 %1307
      %1309 = vrot.lane.b32.xlu0 %v579, 30
      %v1310 = vpop.permute.xlu0 %1309
      %1311 = vrot.lane.b32.xlu0 %v580, 30
      %v1312 = vpop.permute.xlu0 %1311
      %1313 = vrot.lane.b32.xlu0 %v581, 30
      %v1314 = vpop.permute.xlu0 %1313
      %1315 = vrot.lane.b32.xlu0 %v582, 30
      %v1316 = vpop.permute.xlu0 %1315
      %vm1317 = vcmask 244736
      %v1318 = vsel %vm1317, %v1276, %v1278
      %v1319 = vsel %vm1317, %v1278, %v1280
      %v1320 = vsel %vm1317, %v1280, %v1282
      %v1321 = vsel %vm1317, %v1282, %v1284
      %v1322 = vsel %vm1317, %v1284, %v1286
      %v1323 = vsel %vm1317, %v1286, %v1288
      %v1324 = vsel %vm1317, %v1288, %v1290
      %v1325 = vsel %vm1317, %v1290, %v1292
      %v1326 = vsel %vm1317, %v1292, %v1294
      %v1327 = vsel %vm1317, %v1294, %v1296
      %v1328 = vsel %vm1317, %v1296, %v1298
      %v1329 = vsel %vm1317, %v1298, %v1300
      %v1330 = vsel %vm1317, %v1300, %v1302
      %v1331 = vsel %vm1317, %v1302, %v1304
      %v1332 = vsel %vm1317, %v1304, %v1306
      %v1333 = vsel %vm1317, %v1306, %v1308
      %v1334 = vsel %vm1317, %v1308, %v1310
      %v1335 = vsel %vm1317, %v1310, %v1312
      %v1336 = vsel %vm1317, %v1312, %v1314
      %v1337 = vsel %vm1317, %v1314, %v1316
      %1338 = vrot.lane.b32.xlu0 %v621, 12
      %v1339 = vpop.permute.xlu0 %1338
      %1340 = vrot.lane.b32.xlu0 %v622, 12
      %v1341 = vpop.permute.xlu0 %1340
      %1342 = vrot.lane.b32.xlu0 %v623, 12
      %v1343 = vpop.permute.xlu0 %1342
      %1344 = vrot.lane.b32.xlu0 %v624, 12
      %v1345 = vpop.permute.xlu0 %1344
      %1346 = vrot.lane.b32.xlu0 %v625, 12
      %v1347 = vpop.permute.xlu0 %1346
      %v1348 = vsel %vm996, %v1339, %v1341
      %v1349 = vsel %vm996, %v1341, %v1343
      %v1350 = vsel %vm996, %v1343, %v1345
      %v1351 = vsel %vm996, %v1345, %v1347
      %v1352 = vsel %vm996, %v1347, %v955
      %1353 = vrot.lane.b32.xlu0 %v621, 122
      %v1354 = vpop.permute.xlu0 %1353
      %1355 = vrot.lane.b32.xlu0 %v622, 122
      %v1356 = vpop.permute.xlu0 %1355
      %1357 = vrot.lane.b32.xlu0 %v623, 122
      %v1358 = vpop.permute.xlu0 %1357
      %1359 = vrot.lane.b32.xlu0 %v624, 122
      %v1360 = vpop.permute.xlu0 %1359
      %1361 = vrot.lane.b32.xlu0 %v625, 122
      %v1362 = vpop.permute.xlu0 %1361
      %1363 = vrot.lane.b32.xlu0 %v608, 122
      %v1364 = vpop.permute.xlu0 %1363
      %1365 = vrot.lane.b32.xlu0 %v609, 122
      %v1366 = vpop.permute.xlu0 %1365
      %1367 = vrot.lane.b32.xlu0 %v610, 122
      %v1368 = vpop.permute.xlu0 %1367
      %1369 = vrot.lane.b32.xlu0 %v611, 122
      %v1370 = vpop.permute.xlu0 %1369
      %1371 = vrot.lane.b32.xlu0 %v612, 122
      %v1372 = vpop.permute.xlu0 %1371
      %1373 = vrot.lane.b32.xlu0 %v613, 122
      %v1374 = vpop.permute.xlu0 %1373
      %1375 = vrot.lane.b32.xlu0 %v574, 122
      %v1376 = vpop.permute.xlu0 %1375
      %v1377 = vsel %vm799, %v1354, %v1356
      %v1378 = vsel %vm799, %v1356, %v1358
      %v1379 = vsel %vm799, %v1358, %v1360
      %v1380 = vsel %vm799, %v1360, %v1362
      %v1381 = vsel %vm799, %v1362, %v1364
      %v1382 = vsel %vm799, %v1364, %v1366
      %v1383 = vsel %vm799, %v1366, %v1368
      %v1384 = vsel %vm799, %v1368, %v1370
      %v1385 = vsel %vm799, %v1370, %v1372
      %v1386 = vsel %vm799, %v1372, %v1374
      %v1387 = vsel %vm799, %v1374, %v1376
      %v1388 = vsel %vm799, %v1376, %v758
      %1389 = vrot.lane.b32.xlu0 %v583, 30
      %v1390 = vpop.permute.xlu0 %1389
      %1391 = vrot.lane.b32.xlu0 %v584, 30
      %v1392 = vpop.permute.xlu0 %1391
      %1393 = vrot.lane.b32.xlu0 %v585, 30
      %v1394 = vpop.permute.xlu0 %1393
      %1395 = vrot.lane.b32.xlu0 %v586, 30
      %v1396 = vpop.permute.xlu0 %1395
      %1397 = vrot.lane.b32.xlu0 %v587, 30
      %v1398 = vpop.permute.xlu0 %1397
      %1399 = vrot.lane.b32.xlu0 %v588, 30
      %v1400 = vpop.permute.xlu0 %1399
      %1401 = vrot.lane.b32.xlu0 %v589, 30
      %v1402 = vpop.permute.xlu0 %1401
      %1403 = vrot.lane.b32.xlu0 %v590, 30
      %v1404 = vpop.permute.xlu0 %1403
      %1405 = vrot.lane.b32.xlu0 %v591, 30
      %v1406 = vpop.permute.xlu0 %1405
      %1407 = vrot.lane.b32.xlu0 %v592, 30
      %v1408 = vpop.permute.xlu0 %1407
      %1409 = vrot.lane.b32.xlu0 %v593, 30
      %v1410 = vpop.permute.xlu0 %1409
      %1411 = vrot.lane.b32.xlu0 %v594, 30
      %v1412 = vpop.permute.xlu0 %1411
      %1413 = vrot.lane.b32.xlu0 %v595, 30
      %v1414 = vpop.permute.xlu0 %1413
      %1415 = vrot.lane.b32.xlu0 %v596, 30
      %v1416 = vpop.permute.xlu0 %1415
      %1417 = vrot.lane.b32.xlu0 %v597, 30
      %v1418 = vpop.permute.xlu0 %1417
      %1419 = vrot.lane.b32.xlu0 %v598, 30
      %v1420 = vpop.permute.xlu0 %1419
      %1421 = vrot.lane.b32.xlu0 %v599, 30
      %v1422 = vpop.permute.xlu0 %1421
      %1423 = vrot.lane.b32.xlu0 %v600, 30
      %v1424 = vpop.permute.xlu0 %1423
      %v1425 = vsel %vm1317, %v1316, %v1390
      %v1426 = vsel %vm1317, %v1390, %v1392
      %v1427 = vsel %vm1317, %v1392, %v1394
      %v1428 = vsel %vm1317, %v1394, %v1396
      %v1429 = vsel %vm1317, %v1396, %v1398
      %v1430 = vsel %vm1317, %v1398, %v1400
      %v1431 = vsel %vm1317, %v1400, %v1402
      %v1432 = vsel %vm1317, %v1402, %v1404
      %v1433 = vsel %vm1317, %v1404, %v1406
      %v1434 = vsel %vm1317, %v1406, %v1408
      %v1435 = vsel %vm1317, %v1408, %v1410
      %v1436 = vsel %vm1317, %v1410, %v1412
      %v1437 = vsel %vm1317, %v1412, %v1414
      %v1438 = vsel %vm1317, %v1414, %v1416
      %v1439 = vsel %vm1317, %v1416, %v1418
      %v1440 = vsel %vm1317, %v1418, %v1420
      %v1441 = vsel %vm1317, %v1420, %v1422
      %v1442 = vsel %vm1317, %v1422, %v1424
      %1449 = vrot.lane.b32.xlu0 %v601, 30
      %v1450 = vpop.permute.xlu0 %1449
      %1451 = vrot.lane.b32.xlu0 %v602, 30
      %v1452 = vpop.permute.xlu0 %1451
      %1453 = vrot.lane.b32.xlu0 %v603, 30
      %v1454 = vpop.permute.xlu0 %1453
      %1455 = vrot.lane.b32.xlu0 %v604, 30
      %v1456 = vpop.permute.xlu0 %1455
      %1457 = vrot.lane.b32.xlu0 %v605, 30
      %v1458 = vpop.permute.xlu0 %1457
      %1459 = vrot.lane.b32.xlu0 %v606, 30
      %v1460 = vpop.permute.xlu0 %1459
      %1461 = vrot.lane.b32.xlu0 %v607, 30
      %v1462 = vpop.permute.xlu0 %1461
      %1463 = vrot.lane.b32.xlu0 %v614, 30
      %v1464 = vpop.permute.xlu0 %1463
      %1465 = vrot.lane.b32.xlu0 %v615, 30
      %v1466 = vpop.permute.xlu0 %1465
      %1467 = vrot.lane.b32.xlu0 %v616, 30
      %v1468 = vpop.permute.xlu0 %1467
      %1469 = vrot.lane.b32.xlu0 %v617, 30
      %v1470 = vpop.permute.xlu0 %1469
      %1471 = vrot.lane.b32.xlu0 %v618, 30
      %v1472 = vpop.permute.xlu0 %1471
      %1473 = vrot.lane.b32.xlu0 %v619, 30
      %v1474 = vpop.permute.xlu0 %1473
      %1475 = vrot.lane.b32.xlu0 %v626, 30
      %v1476 = vpop.permute.xlu0 %1475
      %1477 = vrot.lane.b32.xlu0 %v627, 30
      %v1478 = vpop.permute.xlu0 %1477
      %1479 = vrot.lane.b32.xlu0 %v628, 30
      %v1480 = vpop.permute.xlu0 %1479
      %1481 = vrot.lane.b32.xlu0 %v629, 30
      %v1482 = vpop.permute.xlu0 %1481
      %1483 = vrot.lane.b32.xlu0 %v630, 30
      %v1484 = vpop.permute.xlu0 %1483
      %v1485 = vsel %vm1317, %v1424, %v1450
      %v1486 = vsel %vm1317, %v1450, %v1452
      %v1487 = vsel %vm1317, %v1452, %v1454
      %v1488 = vsel %vm1317, %v1454, %v1456
      %v1489 = vsel %vm1317, %v1456, %v1458
      %v1490 = vsel %vm1317, %v1458, %v1460
      %v1491 = vsel %vm1317, %v1460, %v1462
      %v1492 = vsel %vm1317, %v1462, %v1464
      %v1493 = vsel %vm1317, %v1464, %v1466
      %v1494 = vsel %vm1317, %v1466, %v1468
      %v1495 = vsel %vm1317, %v1468, %v1470
      %v1496 = vsel %vm1317, %v1470, %v1472
      %v1497 = vsel %vm1317, %v1472, %v1474
      %v1498 = vsel %vm1317, %v1474, %v1476
      %v1499 = vsel %vm1317, %v1476, %v1478
      %v1500 = vsel %vm1317, %v1478, %v1480
      %v1501 = vsel %vm1317, %v1480, %v1482
      %v1502 = vsel %vm1317, %v1482, %v1484
      %1503 = vrot.lane.b32.xlu0 %v619, 12
      %v1504 = vpop.permute.xlu0 %1503
      %1505 = vrot.lane.b32.xlu0 %v626, 12
      %v1506 = vpop.permute.xlu0 %1505
      %1507 = vrot.lane.b32.xlu0 %v627, 12
      %v1508 = vpop.permute.xlu0 %1507
      %1509 = vrot.lane.b32.xlu0 %v628, 12
      %v1510 = vpop.permute.xlu0 %1509
      %1511 = vrot.lane.b32.xlu0 %v629, 12
      %v1512 = vpop.permute.xlu0 %1511
      %1513 = vrot.lane.b32.xlu0 %v630, 12
      %v1514 = vpop.permute.xlu0 %1513
      %v1515 = vsel %vm996, %v1244, %v1504
      %v1516 = vsel %vm996, %v1504, %v1506
      %v1517 = vsel %vm996, %v1506, %v1508
      %v1518 = vsel %vm996, %v1508, %v1510
      %v1519 = vsel %vm996, %v1510, %v1512
      %v1520 = vsel %vm996, %v1512, %v1514
      %1542 = vrot.lane.b32.xlu0 %v631, 122
      %v1543 = vpop.permute.xlu0 %1542
      %1544 = vrot.lane.b32.xlu0 %v632, 122
      %v1545 = vpop.permute.xlu0 %1544
      %1546 = vrot.lane.b32.xlu0 %v633, 122
      %v1547 = vpop.permute.xlu0 %1546
      %1548 = vrot.lane.b32.xlu0 %v634, 122
      %v1549 = vpop.permute.xlu0 %1548
      %1550 = vrot.lane.b32.xlu0 %v635, 122
      %v1551 = vpop.permute.xlu0 %1550
      %1552 = vrot.lane.b32.xlu0 %v636, 122
      %v1553 = vpop.permute.xlu0 %1552
      %1554 = vrot.lane.b32.xlu0 %v637, 122
      %v1555 = vpop.permute.xlu0 %1554
      %1556 = vrot.lane.b32.xlu0 %v638, 122
      %v1557 = vpop.permute.xlu0 %1556
      %1558 = vrot.lane.b32.xlu0 %v639, 122
      %v1559 = vpop.permute.xlu0 %1558
      %1560 = vrot.lane.b32.xlu0 %v640, 122
      %v1561 = vpop.permute.xlu0 %1560
      %1562 = vrot.lane.b32.xlu0 %v641, 122
      %v1563 = vpop.permute.xlu0 %1562
      %1564 = vrot.lane.b32.xlu0 %v642, 122
      %v1565 = vpop.permute.xlu0 %1564
      %1566 = vrot.lane.b32.xlu0 %v643, 122
      %v1567 = vpop.permute.xlu0 %1566
      %1568 = vrot.lane.b32.xlu0 %v644, 122
      %v1569 = vpop.permute.xlu0 %1568
      %1570 = vrot.lane.b32.xlu0 %v645, 122
      %v1571 = vpop.permute.xlu0 %1570
      %1572 = vrot.lane.b32.xlu0 %v646, 122
      %v1573 = vpop.permute.xlu0 %1572
      %1574 = vrot.lane.b32.xlu0 %v647, 122
      %v1575 = vpop.permute.xlu0 %1574
      %1576 = vrot.lane.b32.xlu0 %v648, 122
      %v1577 = vpop.permute.xlu0 %1576
      %1578 = vrot.lane.b32.xlu0 %v649, 122
      %v1579 = vpop.permute.xlu0 %1578
      %1580 = vrot.lane.b32.xlu0 %v650, 122
      %v1581 = vpop.permute.xlu0 %1580
      %1582 = vrot.lane.b32.xlu0 %v651, 122
      %v1583 = vpop.permute.xlu0 %1582
      %v1584 = vsel %vm799, %v1543, %v1545
      %v1585 = vsel %vm799, %v1545, %v1547
      %v1586 = vsel %vm799, %v1547, %v1549
      %v1587 = vsel %vm799, %v1549, %v1551
      %v1588 = vsel %vm799, %v1551, %v1553
      %v1589 = vsel %vm799, %v1553, %v1555
      %v1590 = vsel %vm799, %v1555, %v1557
      %v1591 = vsel %vm799, %v1557, %v1559
      %v1592 = vsel %vm799, %v1559, %v1561
      %v1593 = vsel %vm799, %v1561, %v1563
      %v1594 = vsel %vm799, %v1563, %v1565
      %v1595 = vsel %vm799, %v1565, %v1567
      %v1596 = vsel %vm799, %v1567, %v1569
      %v1597 = vsel %vm799, %v1569, %v1571
      %v1598 = vsel %vm799, %v1571, %v1573
      %v1599 = vsel %vm799, %v1573, %v1575
      %v1600 = vsel %vm799, %v1575, %v1577
      %v1601 = vsel %vm799, %v1577, %v1579
      %v1602 = vsel %vm799, %v1579, %v1581
      %v1603 = vsel %vm799, %v1581, %v1583
      %1604 = vrot.lane.b32.xlu0 %v602, 116
      %v1605 = vpop.permute.xlu0 %1604
      %1606 = vrot.lane.b32.xlu0 %v603, 116
      %v1607 = vpop.permute.xlu0 %1606
      %1608 = vrot.lane.b32.xlu0 %v604, 116
      %v1609 = vpop.permute.xlu0 %1608
      %1610 = vrot.lane.b32.xlu0 %v605, 116
      %v1611 = vpop.permute.xlu0 %1610
      %1612 = vrot.lane.b32.xlu0 %v606, 116
      %v1613 = vpop.permute.xlu0 %1612
      %1614 = vrot.lane.b32.xlu0 %v607, 116
      %v1615 = vpop.permute.xlu0 %1614
      %1616 = vrot.lane.b32.xlu0 %v614, 116
      %v1617 = vpop.permute.xlu0 %1616
      %1618 = vrot.lane.b32.xlu0 %v615, 116
      %v1619 = vpop.permute.xlu0 %1618
      %1620 = vrot.lane.b32.xlu0 %v616, 116
      %v1621 = vpop.permute.xlu0 %1620
      %1622 = vrot.lane.b32.xlu0 %v617, 116
      %v1623 = vpop.permute.xlu0 %1622
      %1624 = vrot.lane.b32.xlu0 %v618, 116
      %v1625 = vpop.permute.xlu0 %1624
      %1626 = vrot.lane.b32.xlu0 %v619, 116
      %v1627 = vpop.permute.xlu0 %1626
      %1628 = vrot.lane.b32.xlu0 %v1318, 116
      %v1629 = vpop.permute.xlu0 %1628
      %1630 = vrot.lane.b32.xlu0 %v1319, 116
      %v1631 = vpop.permute.xlu0 %1630
      %1632 = vrot.lane.b32.xlu0 %v1320, 116
      %v1633 = vpop.permute.xlu0 %1632
      %1634 = vrot.lane.b32.xlu0 %v1321, 116
      %v1635 = vpop.permute.xlu0 %1634
      %1636 = vrot.lane.b32.xlu0 %v1322, 116
      %v1637 = vpop.permute.xlu0 %1636
      %1638 = vrot.lane.b32.xlu0 %v1323, 116
      %v1639 = vpop.permute.xlu0 %1638
      %1640 = vrot.lane.b32.xlu0 %v1324, 116
      %v1641 = vpop.permute.xlu0 %1640
      %1642 = vrot.lane.b32.xlu0 %v1325, 116
      %v1643 = vpop.permute.xlu0 %1642
      %1644 = vrot.lane.b32.xlu0 %v1326, 116
      %v1645 = vpop.permute.xlu0 %1644
      %1646 = vrot.lane.b32.xlu0 %v1327, 116
      %v1647 = vpop.permute.xlu0 %1646
      %1648 = vrot.lane.b32.xlu0 %v1328, 116
      %v1649 = vpop.permute.xlu0 %1648
      %1650 = vrot.lane.b32.xlu0 %v1329, 116
      %v1651 = vpop.permute.xlu0 %1650
      %1652 = vrot.lane.b32.xlu0 %v1330, 116
      %v1653 = vpop.permute.xlu0 %1652
      %1654 = vrot.lane.b32.xlu0 %v1331, 116
      %v1655 = vpop.permute.xlu0 %1654
      %1656 = vrot.lane.b32.xlu0 %v1332, 116
      %v1657 = vpop.permute.xlu0 %1656
      %1658 = vrot.lane.b32.xlu0 %v1333, 116
      %v1659 = vpop.permute.xlu0 %1658
      %1660 = vrot.lane.b32.xlu0 %v1334, 116
      %v1661 = vpop.permute.xlu0 %1660
      %1662 = vrot.lane.b32.xlu0 %v1335, 116
      %v1663 = vpop.permute.xlu0 %1662
      %1664 = vrot.lane.b32.xlu0 %v1336, 116
      %v1665 = vpop.permute.xlu0 %1664
      %1666 = vrot.lane.b32.xlu0 %v1337, 116
      %v1667 = vpop.permute.xlu0 %1666
      %1668 = vrot.lane.b32.xlu0 %v1316, 116
      %v1669 = vpop.permute.xlu0 %1668
      %1670 = vrot.lane.b32.xlu0 %v1339, 116
      %v1671 = vpop.permute.xlu0 %1670
      %1672 = vrot.lane.b32.xlu0 %v1348, 116
      %v1673 = vpop.permute.xlu0 %1672
      %1674 = vrot.lane.b32.xlu0 %v1349, 116
      %v1675 = vpop.permute.xlu0 %1674
      %1676 = vrot.lane.b32.xlu0 %v1350, 116
      %v1677 = vpop.permute.xlu0 %1676
      %1678 = vrot.lane.b32.xlu0 %v1351, 116
      %v1679 = vpop.permute.xlu0 %1678
      %1680 = vrot.lane.b32.xlu0 %v1352, 116
      %v1681 = vpop.permute.xlu0 %1680
      %1682 = vrot.lane.b32.xlu0 %v997, 116
      %v1683 = vpop.permute.xlu0 %1682
      %1684 = vrot.lane.b32.xlu0 %v998, 116
      %v1685 = vpop.permute.xlu0 %1684
      %1686 = vrot.lane.b32.xlu0 %v999, 116
      %v1687 = vpop.permute.xlu0 %1686
      %1688 = vrot.lane.b32.xlu0 %v1000, 116
      %v1689 = vpop.permute.xlu0 %1688
      %1690 = vrot.lane.b32.xlu0 %v1001, 116
      %v1691 = vpop.permute.xlu0 %1690
      %1692 = vrot.lane.b32.xlu0 %v1002, 116
      %v1693 = vpop.permute.xlu0 %1692
      %1694 = vrot.lane.b32.xlu0 %v1003, 116
      %v1695 = vpop.permute.xlu0 %1694
      %1696 = vrot.lane.b32.xlu0 %v1004, 116
      %v1697 = vpop.permute.xlu0 %1696
      %1698 = vrot.lane.b32.xlu0 %v1005, 116
      %v1699 = vpop.permute.xlu0 %1698
      %1700 = vrot.lane.b32.xlu0 %v1006, 116
      %v1701 = vpop.permute.xlu0 %1700
      %1702 = vrot.lane.b32.xlu0 %v1007, 116
      %v1703 = vpop.permute.xlu0 %1702
      %1704 = vrot.lane.b32.xlu0 %v1008, 116
      %v1705 = vpop.permute.xlu0 %1704
      %1706 = vrot.lane.b32.xlu0 %v1009, 116
      %v1707 = vpop.permute.xlu0 %1706
      %1708 = vrot.lane.b32.xlu0 %v1010, 116
      %v1709 = vpop.permute.xlu0 %1708
      %1710 = vrot.lane.b32.xlu0 %v983, 116
      %v1711 = vpop.permute.xlu0 %1710
      %1712 = vrot.lane.b32.xlu0 %v1377, 116
      %v1713 = vpop.permute.xlu0 %1712
      %1714 = vrot.lane.b32.xlu0 %v1378, 116
      %v1715 = vpop.permute.xlu0 %1714
      %1716 = vrot.lane.b32.xlu0 %v1379, 116
      %v1717 = vpop.permute.xlu0 %1716
      %1718 = vrot.lane.b32.xlu0 %v1380, 116
      %v1719 = vpop.permute.xlu0 %1718
      %1720 = vrot.lane.b32.xlu0 %v1381, 116
      %v1721 = vpop.permute.xlu0 %1720
      %1722 = vrot.lane.b32.xlu0 %v1382, 116
      %v1723 = vpop.permute.xlu0 %1722
      %1724 = vrot.lane.b32.xlu0 %v1383, 116
      %v1725 = vpop.permute.xlu0 %1724
      %1726 = vrot.lane.b32.xlu0 %v1384, 116
      %v1727 = vpop.permute.xlu0 %1726
      %1728 = vrot.lane.b32.xlu0 %v1385, 116
      %v1729 = vpop.permute.xlu0 %1728
      %1730 = vrot.lane.b32.xlu0 %v1386, 116
      %v1731 = vpop.permute.xlu0 %1730
      %1732 = vrot.lane.b32.xlu0 %v1387, 116
      %v1733 = vpop.permute.xlu0 %1732
      %1734 = vrot.lane.b32.xlu0 %v1388, 116
      %v1735 = vpop.permute.xlu0 %1734
      %1736 = vrot.lane.b32.xlu0 %v800, 116
      %v1737 = vpop.permute.xlu0 %1736
      %1738 = vrot.lane.b32.xlu0 %v801, 116
      %v1739 = vpop.permute.xlu0 %1738
      %1740 = vrot.lane.b32.xlu0 %v802, 116
      %v1741 = vpop.permute.xlu0 %1740
      %1742 = vrot.lane.b32.xlu0 %v803, 116
      %v1743 = vpop.permute.xlu0 %1742
      %1744 = vrot.lane.b32.xlu0 %v804, 116
      %v1745 = vpop.permute.xlu0 %1744
      %1746 = vrot.lane.b32.xlu0 %v805, 116
      %v1747 = vpop.permute.xlu0 %1746
      %1748 = vrot.lane.b32.xlu0 %v806, 116
      %v1749 = vpop.permute.xlu0 %1748
      %1750 = vrot.lane.b32.xlu0 %v807, 116
      %v1751 = vpop.permute.xlu0 %1750
      %1752 = vrot.lane.b32.xlu0 %v774, 116
      %v1753 = vpop.permute.xlu0 %1752
      %1754 = vrot.lane.b32.xlu0 %v1425, 116
      %v1755 = vpop.permute.xlu0 %1754
      %1756 = vrot.lane.b32.xlu0 %v1426, 116
      %v1757 = vpop.permute.xlu0 %1756
      %1758 = vrot.lane.b32.xlu0 %v1427, 116
      %v1759 = vpop.permute.xlu0 %1758
      %1760 = vrot.lane.b32.xlu0 %v1428, 116
      %v1761 = vpop.permute.xlu0 %1760
      %1762 = vrot.lane.b32.xlu0 %v1429, 116
      %v1763 = vpop.permute.xlu0 %1762
      %1764 = vrot.lane.b32.xlu0 %v1430, 116
      %v1765 = vpop.permute.xlu0 %1764
      %1766 = vrot.lane.b32.xlu0 %v1431, 116
      %v1767 = vpop.permute.xlu0 %1766
      %1768 = vrot.lane.b32.xlu0 %v1432, 116
      %v1769 = vpop.permute.xlu0 %1768
      %1770 = vrot.lane.b32.xlu0 %v1433, 116
      %v1771 = vpop.permute.xlu0 %1770
      %1772 = vrot.lane.b32.xlu0 %v1434, 116
      %v1773 = vpop.permute.xlu0 %1772
      %1774 = vrot.lane.b32.xlu0 %v1435, 116
      %v1775 = vpop.permute.xlu0 %1774
      %1776 = vrot.lane.b32.xlu0 %v1436, 116
      %v1777 = vpop.permute.xlu0 %1776
      %1778 = vrot.lane.b32.xlu0 %v1437, 116
      %v1779 = vpop.permute.xlu0 %1778
      %1780 = vrot.lane.b32.xlu0 %v1438, 116
      %v1781 = vpop.permute.xlu0 %1780
      %1782 = vrot.lane.b32.xlu0 %v1439, 116
      %v1783 = vpop.permute.xlu0 %1782
      %1784 = vrot.lane.b32.xlu0 %v1440, 116
      %v1785 = vpop.permute.xlu0 %1784
      %1786 = vrot.lane.b32.xlu0 %v1441, 116
      %v1787 = vpop.permute.xlu0 %1786
      %1788 = vrot.lane.b32.xlu0 %v1442, 116
      %v1789 = vpop.permute.xlu0 %1788
      %1790 = vrot.lane.b32.xlu0 %v1424, 116
      %v1791 = vpop.permute.xlu0 %1790
      %1792 = vrot.lane.b32.xlu0 %v808, 116
      %v1793 = vpop.permute.xlu0 %1792
      %1794 = vrot.lane.b32.xlu0 %v809, 116
      %v1795 = vpop.permute.xlu0 %1794
      %1796 = vrot.lane.b32.xlu0 %v810, 116
      %v1797 = vpop.permute.xlu0 %1796
      %1798 = vrot.lane.b32.xlu0 %v811, 116
      %v1799 = vpop.permute.xlu0 %1798
      %1800 = vrot.lane.b32.xlu0 %v812, 116
      %v1801 = vpop.permute.xlu0 %1800
      %1802 = vrot.lane.b32.xlu0 %v813, 116
      %v1803 = vpop.permute.xlu0 %1802
      %1804 = vrot.lane.b32.xlu0 %v814, 116
      %v1805 = vpop.permute.xlu0 %1804
      %1806 = vrot.lane.b32.xlu0 %v815, 116
      %v1807 = vpop.permute.xlu0 %1806
      %1808 = vrot.lane.b32.xlu0 %v816, 116
      %v1809 = vpop.permute.xlu0 %1808
      %1810 = vrot.lane.b32.xlu0 %v817, 116
      %v1811 = vpop.permute.xlu0 %1810
      %1812 = vrot.lane.b32.xlu0 %v818, 116
      %v1813 = vpop.permute.xlu0 %1812
      %1814 = vrot.lane.b32.xlu0 %v819, 116
      %v1815 = vpop.permute.xlu0 %1814
      %1816 = vrot.lane.b32.xlu0 %v882, 116
      %v1817 = vpop.permute.xlu0 %1816
      %1818 = vrot.lane.b32.xlu0 %v883, 116
      %v1819 = vpop.permute.xlu0 %1818
      %1820 = vrot.lane.b32.xlu0 %v884, 116
      %v1821 = vpop.permute.xlu0 %1820
      %1822 = vrot.lane.b32.xlu0 %v885, 116
      %v1823 = vpop.permute.xlu0 %1822
      %1824 = vrot.lane.b32.xlu0 %v886, 116
      %v1825 = vpop.permute.xlu0 %1824
      %1826 = vrot.lane.b32.xlu0 %v887, 116
      %v1827 = vpop.permute.xlu0 %1826
      %1828 = vrot.lane.b32.xlu0 %v881, 116
      %v1829 = vpop.permute.xlu0 %1828
      %1830 = vrot.lane.b32.xlu0 %v1485, 116
      %v1831 = vpop.permute.xlu0 %1830
      %1832 = vrot.lane.b32.xlu0 %v1486, 116
      %v1833 = vpop.permute.xlu0 %1832
      %1834 = vrot.lane.b32.xlu0 %v1487, 116
      %v1835 = vpop.permute.xlu0 %1834
      %1836 = vrot.lane.b32.xlu0 %v1488, 116
      %v1837 = vpop.permute.xlu0 %1836
      %1838 = vrot.lane.b32.xlu0 %v1489, 116
      %v1839 = vpop.permute.xlu0 %1838
      %1840 = vrot.lane.b32.xlu0 %v1490, 116
      %v1841 = vpop.permute.xlu0 %1840
      %1842 = vrot.lane.b32.xlu0 %v1491, 116
      %v1843 = vpop.permute.xlu0 %1842
      %1844 = vrot.lane.b32.xlu0 %v1492, 116
      %v1845 = vpop.permute.xlu0 %1844
      %1846 = vrot.lane.b32.xlu0 %v1493, 116
      %v1847 = vpop.permute.xlu0 %1846
      %1848 = vrot.lane.b32.xlu0 %v1494, 116
      %v1849 = vpop.permute.xlu0 %1848
      %1850 = vrot.lane.b32.xlu0 %v1495, 116
      %v1851 = vpop.permute.xlu0 %1850
      %1852 = vrot.lane.b32.xlu0 %v1496, 116
      %v1853 = vpop.permute.xlu0 %1852
      %1854 = vrot.lane.b32.xlu0 %v1497, 116
      %v1855 = vpop.permute.xlu0 %1854
      %1856 = vrot.lane.b32.xlu0 %v1498, 116
      %v1857 = vpop.permute.xlu0 %1856
      %1858 = vrot.lane.b32.xlu0 %v1499, 116
      %v1859 = vpop.permute.xlu0 %1858
      %1860 = vrot.lane.b32.xlu0 %v1500, 116
      %v1861 = vpop.permute.xlu0 %1860
      %1862 = vrot.lane.b32.xlu0 %v1501, 116
      %v1863 = vpop.permute.xlu0 %1862
      %1864 = vrot.lane.b32.xlu0 %v1502, 116
      %v1865 = vpop.permute.xlu0 %1864
      %1866 = vrot.lane.b32.xlu0 %v1484, 116
      %v1867 = vpop.permute.xlu0 %1866
      %1868 = vrot.lane.b32.xlu0 %v1141, 116
      %v1869 = vpop.permute.xlu0 %1868
      %1870 = vrot.lane.b32.xlu0 %v1155, 116
      %v1871 = vpop.permute.xlu0 %1870
      %1872 = vrot.lane.b32.xlu0 %v1245, 116
      %v1873 = vpop.permute.xlu0 %1872
      %1874 = vrot.lane.b32.xlu0 %v1246, 116
      %v1875 = vpop.permute.xlu0 %1874
      %1876 = vrot.lane.b32.xlu0 %v1247, 116
      %v1877 = vpop.permute.xlu0 %1876
      %1878 = vrot.lane.b32.xlu0 %v1248, 116
      %v1879 = vpop.permute.xlu0 %1878
      %1880 = vrot.lane.b32.xlu0 %v1249, 116
      %v1881 = vpop.permute.xlu0 %1880
      %1882 = vrot.lane.b32.xlu0 %v1250, 116
      %v1883 = vpop.permute.xlu0 %1882
      %1884 = vrot.lane.b32.xlu0 %v1251, 116
      %v1885 = vpop.permute.xlu0 %1884
      %1886 = vrot.lane.b32.xlu0 %v1252, 116
      %v1887 = vpop.permute.xlu0 %1886
      %1888 = vrot.lane.b32.xlu0 %v1253, 116
      %v1889 = vpop.permute.xlu0 %1888
      %1890 = vrot.lane.b32.xlu0 %v1254, 116
      %v1891 = vpop.permute.xlu0 %1890
      %1892 = vrot.lane.b32.xlu0 %v1255, 116
      %v1893 = vpop.permute.xlu0 %1892
      %1894 = vrot.lane.b32.xlu0 %v1256, 116
      %v1895 = vpop.permute.xlu0 %1894
      %1896 = vrot.lane.b32.xlu0 %v1515, 116
      %v1897 = vpop.permute.xlu0 %1896
      %1898 = vrot.lane.b32.xlu0 %v1516, 116
      %v1899 = vpop.permute.xlu0 %1898
      %1900 = vrot.lane.b32.xlu0 %v1517, 116
      %v1901 = vpop.permute.xlu0 %1900
      %1902 = vrot.lane.b32.xlu0 %v1518, 116
      %v1903 = vpop.permute.xlu0 %1902
      %1904 = vrot.lane.b32.xlu0 %v1519, 116
      %v1905 = vpop.permute.xlu0 %1904
      %1906 = vrot.lane.b32.xlu0 %v1520, 116
      %v1907 = vpop.permute.xlu0 %1906
      %1908 = vrot.lane.b32.xlu0 %v1514, 116
      %v1909 = vpop.permute.xlu0 %1908
      %1910 = vrot.lane.b32.xlu0 %v1584, 116
      %v1911 = vpop.permute.xlu0 %1910
      %1912 = vrot.lane.b32.xlu0 %v1585, 116
      %v1913 = vpop.permute.xlu0 %1912
      %1914 = vrot.lane.b32.xlu0 %v1586, 116
      %v1915 = vpop.permute.xlu0 %1914
      %1916 = vrot.lane.b32.xlu0 %v1587, 116
      %v1917 = vpop.permute.xlu0 %1916
      %1918 = vrot.lane.b32.xlu0 %v1588, 116
      %v1919 = vpop.permute.xlu0 %1918
      %1920 = vrot.lane.b32.xlu0 %v1589, 116
      %v1921 = vpop.permute.xlu0 %1920
      %1922 = vrot.lane.b32.xlu0 %v1590, 116
      %v1923 = vpop.permute.xlu0 %1922
      %1924 = vrot.lane.b32.xlu0 %v1591, 116
      %v1925 = vpop.permute.xlu0 %1924
      %1926 = vrot.lane.b32.xlu0 %v1592, 116
      %v1927 = vpop.permute.xlu0 %1926
      %1928 = vrot.lane.b32.xlu0 %v1593, 116
      %v1929 = vpop.permute.xlu0 %1928
      %1930 = vrot.lane.b32.xlu0 %v1594, 116
      %v1931 = vpop.permute.xlu0 %1930
      %1932 = vrot.lane.b32.xlu0 %v1595, 116
      %v1933 = vpop.permute.xlu0 %1932
      %1934 = vrot.lane.b32.xlu0 %v1596, 116
      %v1935 = vpop.permute.xlu0 %1934
      %1936 = vrot.lane.b32.xlu0 %v1597, 116
      %v1937 = vpop.permute.xlu0 %1936
      %1938 = vrot.lane.b32.xlu0 %v1598, 116
      %v1939 = vpop.permute.xlu0 %1938
      %1940 = vrot.lane.b32.xlu0 %v1599, 116
      %v1941 = vpop.permute.xlu0 %1940
      %1942 = vrot.lane.b32.xlu0 %v1600, 116
      %v1943 = vpop.permute.xlu0 %1942
      %1944 = vrot.lane.b32.xlu0 %v1601, 116
      %v1945 = vpop.permute.xlu0 %1944
      %1946 = vrot.lane.b32.xlu0 %v1602, 116
      %v1947 = vpop.permute.xlu0 %1946
      %1948 = vrot.lane.b32.xlu0 %v1603, 116
      %v1949 = vpop.permute.xlu0 %1948
      %1950 = vrot.lane.b32.xlu0 %v1583, 116
      %v1951 = vpop.permute.xlu0 %1950
      %v1952 = vsel %vm1079, %v1191, %v1605
      %v1953 = vsel %vm1079, %v1605, %v1607
      %v1954 = vsel %vm1079, %v1607, %v1609
      %v1955 = vsel %vm1079, %v1609, %v1611
      %v1956 = vsel %vm1079, %v1611, %v1613
      %v1957 = vsel %vm1079, %v1613, %v1615
      %v1958 = vsel %vm1079, %v1615, %v1617
      %v1959 = vsel %vm1079, %v1617, %v1619
      %v1960 = vsel %vm1079, %v1619, %v1621
      %v1961 = vsel %vm1079, %v1621, %v1623
      %v1962 = vsel %vm1079, %v1623, %v1625
      %v1963 = vsel %vm1079, %v1625, %v1627
      %v1964 = vsel %vm1079, %v1629, %v1631
      %v1965 = vsel %vm1079, %v1631, %v1633
      %v1966 = vsel %vm1079, %v1633, %v1635
      %v1967 = vsel %vm1079, %v1635, %v1637
      %v1968 = vsel %vm1079, %v1637, %v1639
      %v1969 = vsel %vm1079, %v1639, %v1641
      %v1970 = vsel %vm1079, %v1641, %v1643
      %v1971 = vsel %vm1079, %v1643, %v1645
      %v1972 = vsel %vm1079, %v1645, %v1647
      %v1973 = vsel %vm1079, %v1647, %v1649
      %v1974 = vsel %vm1079, %v1649, %v1651
      %v1975 = vsel %vm1079, %v1651, %v1653
      %v1976 = vsel %vm1079, %v1653, %v1655
      %v1977 = vsel %vm1079, %v1655, %v1657
      %v1978 = vsel %vm1079, %v1657, %v1659
      %v1979 = vsel %vm1079, %v1659, %v1661
      %v1980 = vsel %vm1079, %v1661, %v1663
      %v1981 = vsel %vm1079, %v1663, %v1665
      %v1982 = vsel %vm1079, %v1665, %v1667
      %v1983 = vsel %vm1079, %v1667, %v1669
      %v1984 = vsel %vm1079, %v1671, %v1673
      %v1985 = vsel %vm1079, %v1673, %v1675
      %v1986 = vsel %vm1079, %v1675, %v1677
      %v1987 = vsel %vm1079, %v1677, %v1679
      %v1988 = vsel %vm1079, %v1679, %v1681
      %v1989 = vsel %vm1079, %v1681, %v1683
      %v1990 = vsel %vm1079, %v1683, %v1685
      %v1991 = vsel %vm1079, %v1685, %v1687
      %v1992 = vsel %vm1079, %v1687, %v1689
      %v1993 = vsel %vm1079, %v1689, %v1691
      %v1994 = vsel %vm1079, %v1691, %v1693
      %v1995 = vsel %vm1079, %v1693, %v1695
      %v1996 = vsel %vm1079, %v1695, %v1697
      %v1997 = vsel %vm1079, %v1697, %v1699
      %v1998 = vsel %vm1079, %v1699, %v1701
      %v1999 = vsel %vm1079, %v1701, %v1703
      %v2000 = vsel %vm1079, %v1703, %v1705
      %v2001 = vsel %vm1079, %v1705, %v1707
      %v2002 = vsel %vm1079, %v1707, %v1709
      %v2003 = vsel %vm1079, %v1709, %v1711
      %v2004 = vsel %vm1079, %v1713, %v1715
      %v2005 = vsel %vm1079, %v1715, %v1717
      %v2006 = vsel %vm1079, %v1717, %v1719
      %v2007 = vsel %vm1079, %v1719, %v1721
      %v2008 = vsel %vm1079, %v1721, %v1723
      %v2009 = vsel %vm1079, %v1723, %v1725
      %v2010 = vsel %vm1079, %v1725, %v1727
      %v2011 = vsel %vm1079, %v1727, %v1729
      %v2012 = vsel %vm1079, %v1729, %v1731
      %v2013 = vsel %vm1079, %v1731, %v1733
      %v2014 = vsel %vm1079, %v1733, %v1735
      %v2015 = vsel %vm1079, %v1735, %v1737
      %v2016 = vsel %vm1079, %v1737, %v1739
      %v2017 = vsel %vm1079, %v1739, %v1741
      %v2018 = vsel %vm1079, %v1741, %v1743
      %v2019 = vsel %vm1079, %v1743, %v1745
      %v2020 = vsel %vm1079, %v1745, %v1747
      %v2021 = vsel %vm1079, %v1747, %v1749
      %v2022 = vsel %vm1079, %v1749, %v1751
      %v2023 = vsel %vm1079, %v1751, %v1753
      %v2024 = vsel %vm1079, %v1667, %v1755
      %v2025 = vsel %vm1079, %v1755, %v1757
      %v2026 = vsel %vm1079, %v1757, %v1759
      %v2027 = vsel %vm1079, %v1759, %v1761
      %v2028 = vsel %vm1079, %v1761, %v1763
      %v2029 = vsel %vm1079, %v1763, %v1765
      %v2030 = vsel %vm1079, %v1765, %v1767
      %v2031 = vsel %vm1079, %v1767, %v1769
      %v2032 = vsel %vm1079, %v1769, %v1771
      %v2033 = vsel %vm1079, %v1771, %v1773
      %v2034 = vsel %vm1079, %v1773, %v1775
      %v2035 = vsel %vm1079, %v1775, %v1777
      %v2036 = vsel %vm1079, %v1777, %v1779
      %v2037 = vsel %vm1079, %v1779, %v1781
      %v2038 = vsel %vm1079, %v1781, %v1783
      %v2039 = vsel %vm1079, %v1783, %v1785
      %v2040 = vsel %vm1079, %v1785, %v1787
      %v2041 = vsel %vm1079, %v1787, %v1789
      %v2042 = vsel %vm1079, %v1789, %v1791
      %v2043 = vsel %vm1079, %v1751, %v1793
      %v2044 = vsel %vm1079, %v1793, %v1795
      %v2045 = vsel %vm1079, %v1795, %v1797
      %v2046 = vsel %vm1079, %v1797, %v1799
      %v2047 = vsel %vm1079, %v1799, %v1801
      %v2048 = vsel %vm1079, %v1801, %v1803
      %v2049 = vsel %vm1079, %v1803, %v1805
      %v2050 = vsel %vm1079, %v1805, %v1807
      %v2051 = vsel %vm1079, %v1807, %v1809
      %v2052 = vsel %vm1079, %v1809, %v1811
      %v2053 = vsel %vm1079, %v1811, %v1813
      %v2054 = vsel %vm1079, %v1813, %v1815
      %v2055 = vsel %vm1079, %v1815, %v1817
      %v2056 = vsel %vm1079, %v1817, %v1819
      %v2057 = vsel %vm1079, %v1819, %v1821
      %v2058 = vsel %vm1079, %v1821, %v1823
      %v2059 = vsel %vm1079, %v1823, %v1825
      %v2060 = vsel %vm1079, %v1825, %v1827
      %v2061 = vsel %vm1079, %v1827, %v1829
      %v2062 = vsel %vm1079, %v1789, %v1831
      %v2063 = vsel %vm1079, %v1831, %v1833
      %v2064 = vsel %vm1079, %v1833, %v1835
      %v2065 = vsel %vm1079, %v1835, %v1837
      %v2066 = vsel %vm1079, %v1837, %v1839
      %v2067 = vsel %vm1079, %v1839, %v1841
      %v2068 = vsel %vm1079, %v1841, %v1843
      %v2069 = vsel %vm1079, %v1843, %v1845
      %v2070 = vsel %vm1079, %v1845, %v1847
      %v2071 = vsel %vm1079, %v1847, %v1849
      %v2072 = vsel %vm1079, %v1849, %v1851
      %v2073 = vsel %vm1079, %v1851, %v1853
      %v2074 = vsel %vm1079, %v1853, %v1855
      %v2075 = vsel %vm1079, %v1855, %v1857
      %v2076 = vsel %vm1079, %v1857, %v1859
      %v2077 = vsel %vm1079, %v1859, %v1861
      %v2078 = vsel %vm1079, %v1861, %v1863
      %v2079 = vsel %vm1079, %v1863, %v1865
      %v2080 = vsel %vm1079, %v1865, %v1867
      %v2081 = vsel %vm1079, %v1869, %v1871
      %v2082 = vsel %vm1079, %v1871, %v1873
      %v2083 = vsel %vm1079, %v1873, %v1875
      %v2084 = vsel %vm1079, %v1875, %v1877
      %v2085 = vsel %vm1079, %v1877, %v1879
      %v2086 = vsel %vm1079, %v1879, %v1881
      %v2087 = vsel %vm1079, %v1881, %v1883
      %v2088 = vsel %vm1079, %v1883, %v1885
      %v2089 = vsel %vm1079, %v1885, %v1887
      %v2090 = vsel %vm1079, %v1887, %v1889
      %v2091 = vsel %vm1079, %v1889, %v1891
      %v2092 = vsel %vm1079, %v1891, %v1893
      %v2093 = vsel %vm1079, %v1893, %v1895
      %v2094 = vsel %vm1079, %v1895, %v1897
      %v2095 = vsel %vm1079, %v1897, %v1899
      %v2096 = vsel %vm1079, %v1899, %v1901
      %v2097 = vsel %vm1079, %v1901, %v1903
      %v2098 = vsel %vm1079, %v1903, %v1905
      %v2099 = vsel %vm1079, %v1905, %v1907
      %v2100 = vsel %vm1079, %v1907, %v1909
      %v2101 = vsel %vm1079, %v1911, %v1913
      %v2102 = vsel %vm1079, %v1913, %v1915
      %v2103 = vsel %vm1079, %v1915, %v1917
      %v2104 = vsel %vm1079, %v1917, %v1919
      %v2105 = vsel %vm1079, %v1919, %v1921
      %v2106 = vsel %vm1079, %v1921, %v1923
      %v2107 = vsel %vm1079, %v1923, %v1925
      %v2108 = vsel %vm1079, %v1925, %v1927
      %v2109 = vsel %vm1079, %v1927, %v1929
      %v2110 = vsel %vm1079, %v1929, %v1931
      %v2111 = vsel %vm1079, %v1931, %v1933
      %v2112 = vsel %vm1079, %v1933, %v1935
      %v2113 = vsel %vm1079, %v1935, %v1937
      %v2114 = vsel %vm1079, %v1937, %v1939
      %v2115 = vsel %vm1079, %v1939, %v1941
      %v2116 = vsel %vm1079, %v1941, %v1943
      %v2117 = vsel %vm1079, %v1943, %v1945
      %v2118 = vsel %vm1079, %v1945, %v1947
      %v2119 = vsel %vm1079, %v1947, %v1949
      %v2120 = vsel %vm1079, %v1949, %v1951
      %v2290 = vld [vmem:[%s1 + $0x18] sm:$0xff]
      %v2291 = vld [vmem:[%s1 + $0x20] sm:$0xff]
      %v2292 = vld [vmem:[%s1 + $0x30] sm:$0xff]
      %v2293 = vld [vmem:[%s1 + $0x38] sm:$0xff]
      %v2294 = vld [vmem:[%s1 + $0x48] sm:$0xff]
      %v2295 = vld [vmem:[%s1 + $0x50] sm:$0xff]
      %v2296 = vld [vmem:[%s1 + $0x60] sm:$0xff]
      %v2297 = vld [vmem:[%s1 + $0x68] sm:$0xff]
      %v2298 = vld [vmem:[%s2 + $0x8] sm:$0xff]
      %v2299 = vld [vmem:[%s2 + $0x10] sm:$0xff]
      %v2300 = vld [vmem:[%s2 + $0x18] sm:$0xff]
      %v2301 = vld [vmem:[%s2 + $0x20] sm:$0xff]
      %2303 = vset.pattern.permute.xlu0 0
      %2304 = vperm.xlu0 %2303, %v2298
      %v2305 = vpop.permute.xlu0 %2304
      %2308 = vset.pattern.permute.xlu0 0
      %2309 = vperm.xlu0 %2308, %v2299
      %v2310 = vpop.permute.xlu0 %2309
      %2313 = vset.pattern.permute.xlu0 0
      %2314 = vperm.xlu0 %2313, %v2300
      %v2315 = vpop.permute.xlu0 %2314
      %2318 = vset.pattern.permute.xlu0 0
      %2319 = vperm.xlu0 %2318, %v2301
      %v2320 = vpop.permute.xlu0 %2319
      %vm2322 = vcmask 588800
      %v2324 = vsel %vm2322, %v2291, 0
      %v2327 = vsel %vm2322, %v2293, 0
      %v2330 = vsel %vm2322, %v2295, 0
      %v2333 = vsel %vm2322, %v2297, 0
      %2335 = vmatprep.subr.mxu0 %v308
      %2336 = vmatpush1.msra.mxu0 %v307
      %2337 = vmatprep.subr.mxu0 %v717
      %2338 = vmatpush1.msra.mxu0 %v716
      %2339 = vmatprep.subr.mxu0 %v576
      %2340 = vmatpush1.msra.mxu0 %v575
      %2341 = vmatprep.subr.mxu0 %v801
      %2342 = vmatpush1.msra.mxu0 %v800
      %2343 = vmatprep.subr.mxu0 %v723
      %2344 = vmatpush1.msra.mxu0 %v722
      %2345 = vmatprep.subr.mxu0 %v807
      %2346 = vmatpush1.msra.mxu0 %v806
      %2347 = vmatprep.subr.mxu0 %v729
      %2348 = vmatpush1.msra.mxu0 %v728
      %2349 = vmatprep.subr.mxu0 %v588
      %2350 = vmatpush1.msra.mxu0 %v587
      %2351 = vmatprep.subr.mxu0 %v813
      %2352 = vmatpush1.msra.mxu0 %v812
      %2353 = vmatprep.subr.mxu0 %v998
      %2354 = vmatpush1.msra.mxu0 %v997
      %2355 = vmatprep.subr.mxu0 %v610
      %2356 = vmatpush1.msra.mxu0 %v609
      %2357 = vmatprep.subr.mxu0 %v1081
      %2358 = vmatpush1.msra.mxu0 %v1080
      %2359 = vmatprep.subr.mxu0 %v1010
      %2360 = vmatpush1.msra.mxu0 %v1009
      %2361 = vmatprep.subr.mxu0 %v1093
      %2362 = vmatpush1.msra.mxu0 %v1092
      %2363 = vmatprep.subr.mxu0 %v1149
      %2364 = vmatpush1.msra.mxu0 %v1148
      %2365 = vmatprep.subr.mxu0 %v594
      %2366 = vmatpush1.msra.mxu0 %v593
      %2367 = vmatprep.subr.mxu0 %v1197
      %2368 = vmatpush1.msra.mxu0 %v1196
      %2369 = vmatprep.subr.mxu0 %v1965
      %2370 = vmatpush1.msra.mxu0 %v1964
      %2371 = vmatprep.subr.mxu0 %v1985
      %2372 = vmatpush1.msra.mxu0 %v1984
      %2373 = vmatprep.subr.mxu0 %v2005
      %2374 = vmatpush1.msra.mxu0 %v2004
      %2375 = vmatprep.subr.mxu0 %v2024
      %2376 = vmatpush1.msra.mxu0 %v1982
      %2377 = vmatprep.subr.mxu0 %v2043
      %2378 = vmatpush1.msra.mxu0 %v2022
      %2379 = vmatprep.subr.mxu0 %v2062
      %2380 = vmatpush1.msra.mxu0 %v2041
      %2381 = vmatprep.subr.mxu0 %v2082
      %2382 = vmatpush1.msra.mxu0 %v2081
      %2383 = vmatprep.subr.mxu0 %v2102
      %2384 = vmatpush1.msra.mxu0 %v2101
      %2385 = vmatprep.subr.mxu0 0.0
      %2386 = vmatpush1.msra.mxu0 0.0
      %2387 = vmatprep.subr.mxu0 0.0
      %2388 = vmatpush1.msra.mxu0 0.0
      %2389 = vmatprep.subr.mxu0 0.0
      %2390 = vmatpush1.msra.mxu0 0.0
      %2391 = vmatprep.subr.mxu0 0.0
      %2392 = vmatpush1.msra.mxu0 0.0
      %2393 = vmatprep.subr.mxu0 0.0
      %2394 = vmatpush1.msra.mxu0 0.0
      %2395 = vmatprep.subr.mxu0 0.0
      %2396 = vmatpush1.msra.mxu0 0.0
      %2397 = vmatprep.subr.mxu0 0.0
      %2398 = vmatpush1.msra.mxu0 0.0
      %2399 = vmatprep.mubr.f32.mxu0 %v2324
      %2400 = vmatmul.mubr.f32.gmra.mrb[0].mxu0 %v2290
      %v2401 = vpop.f32.mrb[0].mxu0
      %v2402 = vadd.f32 %v2305, %v2401
      %v2403 = vpop.f32.mrb[0].mxu0
      %v2404 = vadd.f32 %v2305, %v2403
      %2405 = vmatprep.mubr.f32.mxu0 %v2327
      %2406 = vmatmul.mubr.f32.gmra.mrb[0].mxu0 %v2292
      %v2407 = vpop.f32.mrb[0].mxu0
      %v2408 = vadd.f32 %v2310, %v2407
      %v2409 = vpop.f32.mrb[0].mxu0
      %v2410 = vadd.f32 %v2310, %v2409
      %2411 = vmatprep.mubr.f32.mxu0 %v2330
      %2412 = vmatmul.mubr.f32.gmra.mrb[0].mxu0 %v2294
      %v2413 = vpop.f32.mrb[0].mxu0
      %v2414 = vadd.f32 %v2315, %v2413
      %v2415 = vpop.f32.mrb[0].mxu0
      %v2416 = vadd.f32 %v2315, %v2415
      %2417 = vmatprep.mubr.f32.mxu0 %v2333
      %2418 = vmatmul.mubr.f32.gmra.mrb[0].mxu0 %v2296
      %v2419 = vpop.f32.mrb[0].mxu0
      %v2420 = vadd.f32 %v2320, %v2419
      %v2421 = vpop.f32.mrb[0].mxu0
      %v2422 = vadd.f32 %v2320, %v2421
      %2423 = vdwg.mxu0
      %2424 = vmatprep.subr.mxu0 %v310
      %2425 = vmatpush1.msra.mxu0 %v309
      %2426 = vmatprep.subr.mxu0 %v719
      %2427 = vmatpush1.msra.mxu0 %v718
      %2428 = vmatprep.subr.mxu0 %v578
      %2429 = vmatpush1.msra.mxu0 %v577
      %2430 = vmatprep.subr.mxu0 %v803
      %2431 = vmatpush1.msra.mxu0 %v802
      %2432 = vmatprep.subr.mxu0 %v725
      %2433 = vmatpush1.msra.mxu0 %v724
      %2434 = vmatprep.subr.mxu0 %v809
      %2435 = vmatpush1.msra.mxu0 %v808
      %2436 = vmatprep.subr.mxu0 %v731
      %2437 = vmatpush1.msra.mxu0 %v730
      %2438 = vmatprep.subr.mxu0 %v590
      %2439 = vmatpush1.msra.mxu0 %v589
      %2440 = vmatprep.subr.mxu0 %v815
      %2441 = vmatpush1.msra.mxu0 %v814
      %2442 = vmatprep.subr.mxu0 %v1000
      %2443 = vmatpush1.msra.mxu0 %v999
      %2444 = vmatprep.subr.mxu0 %v612
      %2445 = vmatpush1.msra.mxu0 %v611
      %2446 = vmatprep.subr.mxu0 %v1083
      %2447 = vmatpush1.msra.mxu0 %v1082
      %2448 = vmatprep.subr.mxu0 %v1012
      %2449 = vmatpush1.msra.mxu0 %v1011
      %2450 = vmatprep.subr.mxu0 %v1095
      %2451 = vmatpush1.msra.mxu0 %v1094
      %2452 = vmatprep.subr.mxu0 %v1151
      %2453 = vmatpush1.msra.mxu0 %v1150
      %2454 = vmatprep.subr.mxu0 %v596
      %2455 = vmatpush1.msra.mxu0 %v595
      %2456 = vmatprep.subr.mxu0 %v1199
      %2457 = vmatpush1.msra.mxu0 %v1198
      %2458 = vmatprep.subr.mxu0 %v1967
      %2459 = vmatpush1.msra.mxu0 %v1966
      %2460 = vmatprep.subr.mxu0 %v1987
      %2461 = vmatpush1.msra.mxu0 %v1986
      %2462 = vmatprep.subr.mxu0 %v2007
      %2463 = vmatpush1.msra.mxu0 %v2006
      %2464 = vmatprep.subr.mxu0 %v2026
      %2465 = vmatpush1.msra.mxu0 %v2025
      %2466 = vmatprep.subr.mxu0 %v2045
      %2467 = vmatpush1.msra.mxu0 %v2044
      %2468 = vmatprep.subr.mxu0 %v2064
      %2469 = vmatpush1.msra.mxu0 %v2063
      %2470 = vmatprep.subr.mxu0 %v2084
      %2471 = vmatpush1.msra.mxu0 %v2083
      %2472 = vmatprep.subr.mxu0 %v2104
      %2473 = vmatpush1.msra.mxu0 %v2103
      %2474 = vmatprep.subr.mxu0 0.0
      %2475 = vmatpush1.msra.mxu0 0.0
      %2476 = vmatprep.subr.mxu0 0.0
      %2477 = vmatpush1.msra.mxu0 0.0
      %2478 = vmatprep.subr.mxu0 0.0
      %2479 = vmatpush1.msra.mxu0 0.0
      %2480 = vmatprep.subr.mxu0 0.0
      %2481 = vmatpush1.msra.mxu0 0.0
      %2482 = vmatprep.subr.mxu0 0.0
      %2483 = vmatpush1.msra.mxu0 0.0
      %2484 = vmatprep.subr.mxu0 0.0
      %2485 = vmatpush1.msra.mxu0 0.0
      %2486 = vmatprep.subr.mxu0 0.0
      %2487 = vmatpush1.msra.mxu0 0.0
      %2488 = vmatprep.mubr.f32.mxu0 %v2324
      %2489 = vmatmul.mubr.f32.gmra.mrb[0].mxu0 %v2290
      %v2490 = vpop.f32.mrb[0].mxu0
      %v2491 = vadd.f32 %v2305, %v2490
      %v2492 = vpop.f32.mrb[0].mxu0
      %v2493 = vadd.f32 %v2305, %v2492
      %2494 = vmatprep.mubr.f32.mxu0 %v2327
      %2495 = vmatmul.mubr.f32.gmra.mrb[0].mxu0 %v2292
      %v2496 = vpop.f32.mrb[0].mxu0
      %v2497 = vadd.f32 %v2310, %v2496
      %v2498 = vpop.f32.mrb[0].mxu0
      %v2499 = vadd.f32 %v2310, %v2498
      %2500 = vmatprep.mubr.f32.mxu0 %v2330
      %2501 = vmatmul.mubr.f32.gmra.mrb[0].mxu0 %v2294
      %v2502 = vpop.f32.mrb[0].mxu0
      %v2503 = vadd.f32 %v2315, %v2502
      %v2504 = vpop.f32.mrb[0].mxu0
      %v2505 = vadd.f32 %v2315, %v2504
      %2506 = vmatprep.mubr.f32.mxu0 %v2333
      %2507 = vmatmul.mubr.f32.gmra.mrb[0].mxu0 %v2296
      %v2508 = vpop.f32.mrb[0].mxu0
      %v2509 = vadd.f32 %v2320, %v2508
      %v2510 = vpop.f32.mrb[0].mxu0
      %v2511 = vadd.f32 %v2320, %v2510
      %2512 = vdwg.mxu0
      %2513 = vmatprep.subr.mxu0 %v312
      %2514 = vmatpush1.msra.mxu0 %v311
      %2515 = vmatprep.subr.mxu0 %v721
      %2516 = vmatpush1.msra.mxu0 %v720
      %2517 = vmatprep.subr.mxu0 %v580
      %2518 = vmatpush1.msra.mxu0 %v579
      %2519 = vmatprep.subr.mxu0 %v805
      %2520 = vmatpush1.msra.mxu0 %v804
      %2521 = vmatprep.subr.mxu0 %v727
      %2522 = vmatpush1.msra.mxu0 %v726
      %2523 = vmatprep.subr.mxu0 %v811
      %2524 = vmatpush1.msra.mxu0 %v810
      %2525 = vmatprep.subr.mxu0 %v733
      %2526 = vmatpush1.msra.mxu0 %v732
      %2527 = vmatprep.subr.mxu0 %v592
      %2528 = vmatpush1.msra.mxu0 %v591
      %2529 = vmatprep.subr.mxu0 %v817
      %2530 = vmatpush1.msra.mxu0 %v816
      %2531 = vmatprep.subr.mxu0 %v1002
      %2532 = vmatpush1.msra.mxu0 %v1001
      %2533 = vmatprep.subr.mxu0 %v574
      %2534 = vmatpush1.msra.mxu0 %v613
      %2535 = vmatprep.subr.mxu0 %v1085
      %2536 = vmatpush1.msra.mxu0 %v1084
      %2537 = vmatprep.subr.mxu0 %v1014
      %2538 = vmatpush1.msra.mxu0 %v1013
      %2539 = vmatprep.subr.mxu0 %v1097
      %2540 = vmatpush1.msra.mxu0 %v1096
      %2541 = vmatprep.subr.mxu0 %v1153
      %2542 = vmatpush1.msra.mxu0 %v1152
      %2543 = vmatprep.subr.mxu0 %v598
      %2544 = vmatpush1.msra.mxu0 %v597
      %2545 = vmatprep.subr.mxu0 %v1201
      %2546 = vmatpush1.msra.mxu0 %v1200
      %2547 = vmatprep.subr.mxu0 %v1969
      %2548 = vmatpush1.msra.mxu0 %v1968
      %2549 = vmatprep.subr.mxu0 %v1989
      %2550 = vmatpush1.msra.mxu0 %v1988
      %2551 = vmatprep.subr.mxu0 %v2009
      %2552 = vmatpush1.msra.mxu0 %v2008
      %2553 = vmatprep.subr.mxu0 %v2028
      %2554 = vmatpush1.msra.mxu0 %v2027
      %2555 = vmatprep.subr.mxu0 %v2047
      %2556 = vmatpush1.msra.mxu0 %v2046
      %2557 = vmatprep.subr.mxu0 %v2066
      %2558 = vmatpush1.msra.mxu0 %v2065
      %2559 = vmatprep.subr.mxu0 %v2086
      %2560 = vmatpush1.msra.mxu0 %v2085
      %2561 = vmatprep.subr.mxu0 %v2106
      %2562 = vmatpush1.msra.mxu0 %v2105
      %2563 = vmatprep.subr.mxu0 0.0
      %2564 = vmatpush1.msra.mxu0 0.0
      %2565 = vmatprep.subr.mxu0 0.0
      %2566 = vmatpush1.msra.mxu0 0.0
      %2567 = vmatprep.subr.mxu0 0.0
      %2568 = vmatpush1.msra.mxu0 0.0
      %2569 = vmatprep.subr.mxu0 0.0
      %2570 = vmatpush1.msra.mxu0 0.0
      %2571 = vmatprep.subr.mxu0 0.0
      %2572 = vmatpush1.msra.mxu0 0.0
      %2573 = vmatprep.subr.mxu0 0.0
      %2574 = vmatpush1.msra.mxu0 0.0
      %2575 = vmatprep.subr.mxu0 0.0
      %2576 = vmatpush1.msra.mxu0 0.0
      %2577 = vmatprep.mubr.f32.mxu0 %v2324
      %2578 = vmatmul.mubr.f32.gmra.mrb[0].mxu0 %v2290
      %v2579 = vpop.f32.mrb[0].mxu0
      %v2580 = vadd.f32 %v2305, %v2579
      %v2581 = vpop.f32.mrb[0].mxu0
      %v2582 = vadd.f32 %v2305, %v2581
      %2583 = vmatprep.mubr.f32.mxu0 %v2327
      %2584 = vmatmul.mubr.f32.gmra.mrb[0].mxu0 %v2292
      %v2585 = vpop.f32.mrb[0].mxu0
      %v2586 = vadd.f32 %v2310, %v2585
      %v2587 = vpop.f32.mrb[0].mxu0
      %v2588 = vadd.f32 %v2310, %v2587
      %2589 = vmatprep.mubr.f32.mxu0 %v2330
      %2590 = vmatmul.mubr.f32.gmra.mrb[0].mxu0 %v2294
      %v2591 = vpop.f32.mrb[0].mxu0
      %v2592 = vadd.f32 %v2315, %v2591
      %v2593 = vpop.f32.mrb[0].mxu0
      %v2594 = vadd.f32 %v2315, %v2593
      %2595 = vmatprep.mubr.f32.mxu0 %v2333
      %2596 = vmatmul.mubr.f32.gmra.mrb[0].mxu0 %v2296
      %v2597 = vpop.f32.mrb[0].mxu0
      %v2598 = vadd.f32 %v2320, %v2597
      %v2599 = vpop.f32.mrb[0].mxu0
      %v2600 = vadd.f32 %v2320, %v2599
      %2601 = vdwg.mxu0
      %2602 = vmatprep.subr.mxu0 %v314
      %2603 = vmatpush1.msra.mxu0 %v313
      %2604 = vmatprep.subr.mxu0 %v723
      %2605 = vmatpush1.msra.mxu0 %v722
      %2606 = vmatprep.subr.mxu0 %v582
      %2607 = vmatpush1.msra.mxu0 %v581
      %2608 = vmatprep.subr.mxu0 %v807
      %2609 = vmatpush1.msra.mxu0 %v806
      %2610 = vmatprep.subr.mxu0 %v729
      %2611 = vmatpush1.msra.mxu0 %v728
      %2612 = vmatprep.subr.mxu0 %v813
      %2613 = vmatpush1.msra.mxu0 %v812
      %2614 = vmatprep.subr.mxu0 %v735
      %2615 = vmatpush1.msra.mxu0 %v734
      %2616 = vmatprep.subr.mxu0 %v594
      %2617 = vmatpush1.msra.mxu0 %v593
      %2618 = vmatprep.subr.mxu0 %v819
      %2619 = vmatpush1.msra.mxu0 %v818
      %2620 = vmatprep.subr.mxu0 %v1004
      %2621 = vmatpush1.msra.mxu0 %v1003
      %2622 = vmatprep.subr.mxu0 %v576
      %2623 = vmatpush1.msra.mxu0 %v575
      %2624 = vmatprep.subr.mxu0 %v1087
      %2625 = vmatpush1.msra.mxu0 %v1086
      %2626 = vmatprep.subr.mxu0 %v1016
      %2627 = vmatpush1.msra.mxu0 %v1015
      %2628 = vmatprep.subr.mxu0 %v1099
      %2629 = vmatpush1.msra.mxu0 %v1098
      %2630 = vmatprep.subr.mxu0 %v1155
      %2631 = vmatpush1.msra.mxu0 %v1154
      %2632 = vmatprep.subr.mxu0 %v600
      %2633 = vmatpush1.msra.mxu0 %v599
      %2634 = vmatprep.subr.mxu0 %v1203
      %2635 = vmatpush1.msra.mxu0 %v1202
      %2636 = vmatprep.subr.mxu0 %v1971
      %2637 = vmatpush1.msra.mxu0 %v1970
      %2638 = vmatprep.subr.mxu0 %v1991
      %2639 = vmatpush1.msra.mxu0 %v1990
      %2640 = vmatprep.subr.mxu0 %v2011
      %2641 = vmatpush1.msra.mxu0 %v2010
      %2642 = vmatprep.subr.mxu0 %v2030
      %2643 = vmatpush1.msra.mxu0 %v2029
      %2644 = vmatprep.subr.mxu0 %v2049
      %2645 = vmatpush1.msra.mxu0 %v2048
      %2646 = vmatprep.subr.mxu0 %v2068
      %2647 = vmatpush1.msra.mxu0 %v2067
      %2648 = vmatprep.subr.mxu0 %v2088
      %2649 = vmatpush1.msra.mxu0 %v2087
      %2650 = vmatprep.subr.mxu0 %v2108
      %2651 = vmatpush1.msra.mxu0 %v2107
      %2652 = vmatprep.subr.mxu0 0.0
      %2653 = vmatpush1.msra.mxu0 0.0
      %2654 = vmatprep.subr.mxu0 0.0
      %2655 = vmatpush1.msra.mxu0 0.0
      %2656 = vmatprep.subr.mxu0 0.0
      %2657 = vmatpush1.msra.mxu0 0.0
      %2658 = vmatprep.subr.mxu0 0.0
      %2659 = vmatpush1.msra.mxu0 0.0
      %2660 = vmatprep.subr.mxu0 0.0
      %2661 = vmatpush1.msra.mxu0 0.0
      %2662 = vmatprep.subr.mxu0 0.0
      %2663 = vmatpush1.msra.mxu0 0.0
      %2664 = vmatprep.subr.mxu0 0.0
      %2665 = vmatpush1.msra.mxu0 0.0
      %2666 = vmatprep.mubr.f32.mxu0 %v2324
      %2667 = vmatmul.mubr.f32.gmra.mrb[0].mxu0 %v2290
      %v2668 = vpop.f32.mrb[0].mxu0
      %v2669 = vadd.f32 %v2305, %v2668
      %v2670 = vpop.f32.mrb[0].mxu0
      %v2671 = vadd.f32 %v2305, %v2670
      %2672 = vmatprep.mubr.f32.mxu0 %v2327
      %2673 = vmatmul.mubr.f32.gmra.mrb[0].mxu0 %v2292
      %v2674 = vpop.f32.mrb[0].mxu0
      %v2675 = vadd.f32 %v2310, %v2674
      %v2676 = vpop.f32.mrb[0].mxu0
      %v2677 = vadd.f32 %v2310, %v2676
      %2678 = vmatprep.mubr.f32.mxu0 %v2330
      %2679 = vmatmul.mubr.f32.gmra.mrb[0].mxu0 %v2294
      %v2680 = vpop.f32.mrb[0].mxu0
      %v2681 = vadd.f32 %v2315, %v2680
      %v2682 = vpop.f32.mrb[0].mxu0
      %v2683 = vadd.f32 %v2315, %v2682
      %2684 = vmatprep.mubr.f32.mxu0 %v2333
      %2685 = vmatmul.mubr.f32.gmra.mrb[0].mxu0 %v2296
      %v2686 = vpop.f32.mrb[0].mxu0
      %v2687 = vadd.f32 %v2320, %v2686
      %v2688 = vpop.f32.mrb[0].mxu0
      %v2689 = vadd.f32 %v2320, %v2688
      %2690 = vdwg.mxu0
      %2691 = vmatprep.subr.mxu0 %v316
      %2692 = vmatpush1.msra.mxu0 %v315
      %2693 = vmatprep.subr.mxu0 %v725
      %2694 = vmatpush1.msra.mxu0 %v724
      %2695 = vmatprep.subr.mxu0 %v584
      %2696 = vmatpush1.msra.mxu0 %v583
      %2697 = vmatprep.subr.mxu0 %v809
      %2698 = vmatpush1.msra.mxu0 %v808
      %2699 = vmatprep.subr.mxu0 %v731
      %2700 = vmatpush1.msra.mxu0 %v730
      %2701 = vmatprep.subr.mxu0 %v815
      %2702 = vmatpush1.msra.mxu0 %v814
      %2703 = vmatprep.subr.mxu0 %v858
      %2704 = vmatpush1.msra.mxu0 %v857
      %2705 = vmatprep.subr.mxu0 %v596
      %2706 = vmatpush1.msra.mxu0 %v595
      %2707 = vmatprep.subr.mxu0 %v883
      %2708 = vmatpush1.msra.mxu0 %v882
      %2709 = vmatprep.subr.mxu0 %v1006
      %2710 = vmatpush1.msra.mxu0 %v1005
      %2711 = vmatprep.subr.mxu0 %v578
      %2712 = vmatpush1.msra.mxu0 %v577
      %2713 = vmatprep.subr.mxu0 %v1089
      %2714 = vmatpush1.msra.mxu0 %v1088
      %2715 = vmatprep.subr.mxu0 %v1145
      %2716 = vmatpush1.msra.mxu0 %v1144
      %2717 = vmatprep.subr.mxu0 %v1193
      %2718 = vmatpush1.msra.mxu0 %v1192
      %2719 = vmatprep.subr.mxu0 %v1246
      %2720 = vmatpush1.msra.mxu0 %v1245
      %2721 = vmatprep.subr.mxu0 %v602
      %2722 = vmatpush1.msra.mxu0 %v601
      %2723 = vmatprep.subr.mxu0 %v1953
      %2724 = vmatpush1.msra.mxu0 %v1952
      %2725 = vmatprep.subr.mxu0 %v1973
      %2726 = vmatpush1.msra.mxu0 %v1972
      %2727 = vmatprep.subr.mxu0 %v1993
      %2728 = vmatpush1.msra.mxu0 %v1992
      %2729 = vmatprep.subr.mxu0 %v2013
      %2730 = vmatpush1.msra.mxu0 %v2012
      %2731 = vmatprep.subr.mxu0 %v2032
      %2732 = vmatpush1.msra.mxu0 %v2031
      %2733 = vmatprep.subr.mxu0 %v2051
      %2734 = vmatpush1.msra.mxu0 %v2050
      %2735 = vmatprep.subr.mxu0 %v2070
      %2736 = vmatpush1.msra.mxu0 %v2069
      %2737 = vmatprep.subr.mxu0 %v2090
      %2738 = vmatpush1.msra.mxu0 %v2089
      %2739 = vmatprep.subr.mxu0 %v2110
      %2740 = vmatpush1.msra.mxu0 %v2109
      %2741 = vmatprep.subr.mxu0 0.0
      %2742 = vmatpush1.msra.mxu0 0.0
      %2743 = vmatprep.subr.mxu0 0.0
      %2744 = vmatpush1.msra.mxu0 0.0
      %2745 = vmatprep.subr.mxu0 0.0
      %2746 = vmatpush1.msra.mxu0 0.0
      %2747 = vmatprep.subr.mxu0 0.0
      %2748 = vmatpush1.msra.mxu0 0.0
      %2749 = vmatprep.subr.mxu0 0.0
      %2750 = vmatpush1.msra.mxu0 0.0
      %2751 = vmatprep.subr.mxu0 0.0
      %2752 = vmatpush1.msra.mxu0 0.0
      %2753 = vmatprep.subr.mxu0 0.0
      %2754 = vmatpush1.msra.mxu0 0.0
      %2755 = vmatprep.mubr.f32.mxu0 %v2324
      %2756 = vmatmul.mubr.f32.gmra.mrb[0].mxu0 %v2290
      %v2757 = vpop.f32.mrb[0].mxu0
      %v2758 = vadd.f32 %v2305, %v2757
      %v2759 = vpop.f32.mrb[0].mxu0
      %v2760 = vadd.f32 %v2305, %v2759
      %2761 = vmatprep.mubr.f32.mxu0 %v2327
      %2762 = vmatmul.mubr.f32.gmra.mrb[0].mxu0 %v2292
      %v2763 = vpop.f32.mrb[0].mxu0
      %v2764 = vadd.f32 %v2310, %v2763
      %v2765 = vpop.f32.mrb[0].mxu0
      %v2766 = vadd.f32 %v2310, %v2765
      %2767 = vmatprep.mubr.f32.mxu0 %v2330
      %2768 = vmatmul.mubr.f32.gmra.mrb[0].mxu0 %v2294
      %v2769 = vpop.f32.mrb[0].mxu0
      %v2770 = vadd.f32 %v2315, %v2769
      %v2771 = vpop.f32.mrb[0].mxu0
      %v2772 = vadd.f32 %v2315, %v2771
      %2773 = vmatprep.mubr.f32.mxu0 %v2333
      %2774 = vmatmul.mubr.f32.gmra.mrb[0].mxu0 %v2296
      %v2775 = vpop.f32.mrb[0].mxu0
      %v2776 = vadd.f32 %v2320, %v2775
      %v2777 = vpop.f32.mrb[0].mxu0
      %v2778 = vadd.f32 %v2320, %v2777
      %2779 = vdwg.mxu0
      %2780 = vmatprep.subr.mxu0 %v318
      %2781 = vmatpush1.msra.mxu0 %v317
      %2782 = vmatprep.subr.mxu0 %v727
      %2783 = vmatpush1.msra.mxu0 %v726
      %2784 = vmatprep.subr.mxu0 %v586
      %2785 = vmatpush1.msra.mxu0 %v585
      %2786 = vmatprep.subr.mxu0 %v811
      %2787 = vmatpush1.msra.mxu0 %v810
      %2788 = vmatprep.subr.mxu0 %v733
      %2789 = vmatpush1.msra.mxu0 %v732
      %2790 = vmatprep.subr.mxu0 %v817
      %2791 = vmatpush1.msra.mxu0 %v816
      %2792 = vmatprep.subr.mxu0 %v860
      %2793 = vmatpush1.msra.mxu0 %v859
      %2794 = vmatprep.subr.mxu0 %v598
      %2795 = vmatpush1.msra.mxu0 %v597
      %2796 = vmatprep.subr.mxu0 %v885
      %2797 = vmatpush1.msra.mxu0 %v884
      %2798 = vmatprep.subr.mxu0 %v1008
      %2799 = vmatpush1.msra.mxu0 %v1007
      %2800 = vmatprep.subr.mxu0 %v580
      %2801 = vmatpush1.msra.mxu0 %v579
      %2802 = vmatprep.subr.mxu0 %v1091
      %2803 = vmatpush1.msra.mxu0 %v1090
      %2804 = vmatprep.subr.mxu0 %v1147
      %2805 = vmatpush1.msra.mxu0 %v1146
      %2806 = vmatprep.subr.mxu0 %v1195
      %2807 = vmatpush1.msra.mxu0 %v1194
      %2808 = vmatprep.subr.mxu0 %v1248
      %2809 = vmatpush1.msra.mxu0 %v1247
      %2810 = vmatprep.subr.mxu0 %v604
      %2811 = vmatpush1.msra.mxu0 %v603
      %2812 = vmatprep.subr.mxu0 %v1955
      %2813 = vmatpush1.msra.mxu0 %v1954
      %2814 = vmatprep.subr.mxu0 %v1975
      %2815 = vmatpush1.msra.mxu0 %v1974
      %2816 = vmatprep.subr.mxu0 %v1995
      %2817 = vmatpush1.msra.mxu0 %v1994
      %2818 = vmatprep.subr.mxu0 %v2015
      %2819 = vmatpush1.msra.mxu0 %v2014
      %2820 = vmatprep.subr.mxu0 %v2034
      %2821 = vmatpush1.msra.mxu0 %v2033
      %2822 = vmatprep.subr.mxu0 %v2053
      %2823 = vmatpush1.msra.mxu0 %v2052
      %2824 = vmatprep.subr.mxu0 %v2072
      %2825 = vmatpush1.msra.mxu0 %v2071
      %2826 = vmatprep.subr.mxu0 %v2092
      %2827 = vmatpush1.msra.mxu0 %v2091
      %2828 = vmatprep.subr.mxu0 %v2112
      %2829 = vmatpush1.msra.mxu0 %v2111
      %2830 = vmatprep.subr.mxu0 0.0
      %2831 = vmatpush1.msra.mxu0 0.0
      %2832 = vmatprep.subr.mxu0 0.0
      %2833 = vmatpush1.msra.mxu0 0.0
      %2834 = vmatprep.subr.mxu0 0.0
      %2835 = vmatpush1.msra.mxu0 0.0
      %2836 = vmatprep.subr.mxu0 0.0
      %2837 = vmatpush1.msra.mxu0 0.0
      %2838 = vmatprep.subr.mxu0 0.0
      %2839 = vmatpush1.msra.mxu0 0.0
      %2840 = vmatprep.subr.mxu0 0.0
      %2841 = vmatpush1.msra.mxu0 0.0
      %2842 = vmatprep.subr.mxu0 0.0
      %2843 = vmatpush1.msra.mxu0 0.0
      %2844 = vmatprep.mubr.f32.mxu0 %v2324
      %2845 = vmatmul.mubr.f32.gmra.mrb[0].mxu0 %v2290
      %v2846 = vpop.f32.mrb[0].mxu0
      %v2847 = vadd.f32 %v2305, %v2846
      %v2848 = vpop.f32.mrb[0].mxu0
      %v2849 = vadd.f32 %v2305, %v2848
      %2850 = vmatprep.mubr.f32.mxu0 %v2327
      %2851 = vmatmul.mubr.f32.gmra.mrb[0].mxu0 %v2292
      %v2852 = vpop.f32.mrb[0].mxu0
      %v2853 = vadd.f32 %v2310, %v2852
      %v2854 = vpop.f32.mrb[0].mxu0
      %v2855 = vadd.f32 %v2310, %v2854
      %2856 = vmatprep.mubr.f32.mxu0 %v2330
      %2857 = vmatmul.mubr.f32.gmra.mrb[0].mxu0 %v2294
      %v2858 = vpop.f32.mrb[0].mxu0
      %v2859 = vadd.f32 %v2315, %v2858
      %v2860 = vpop.f32.mrb[0].mxu0
      %v2861 = vadd.f32 %v2315, %v2860
      %2862 = vmatprep.mubr.f32.mxu0 %v2333
      %2863 = vmatmul.mubr.f32.gmra.mrb[0].mxu0 %v2296
      %v2864 = vpop.f32.mrb[0].mxu0
      %v2865 = vadd.f32 %v2320, %v2864
      %v2866 = vpop.f32.mrb[0].mxu0
      %v2867 = vadd.f32 %v2320, %v2866
      %2868 = vdwg.mxu0
      %2869 = vmatprep.subr.mxu0 %v320
      %2870 = vmatpush1.msra.mxu0 %v319
      %2871 = vmatprep.subr.mxu0 %v729
      %2872 = vmatpush1.msra.mxu0 %v728
      %2873 = vmatprep.subr.mxu0 %v588
      %2874 = vmatpush1.msra.mxu0 %v587
      %2875 = vmatprep.subr.mxu0 %v813
      %2876 = vmatpush1.msra.mxu0 %v812
      %2877 = vmatprep.subr.mxu0 %v735
      %2878 = vmatpush1.msra.mxu0 %v734
      %2879 = vmatprep.subr.mxu0 %v819
      %2880 = vmatpush1.msra.mxu0 %v818
      %2881 = vmatprep.subr.mxu0 %v862
      %2882 = vmatpush1.msra.mxu0 %v861
      %2883 = vmatprep.subr.mxu0 %v600
      %2884 = vmatpush1.msra.mxu0 %v599
      %2885 = vmatprep.subr.mxu0 %v887
      %2886 = vmatpush1.msra.mxu0 %v886
      %2887 = vmatprep.subr.mxu0 %v1010
      %2888 = vmatpush1.msra.mxu0 %v1009
      %2889 = vmatprep.subr.mxu0 %v582
      %2890 = vmatpush1.msra.mxu0 %v581
      %2891 = vmatprep.subr.mxu0 %v1093
      %2892 = vmatpush1.msra.mxu0 %v1092
      %2893 = vmatprep.subr.mxu0 %v1149
      %2894 = vmatpush1.msra.mxu0 %v1148
      %2895 = vmatprep.subr.mxu0 %v1197
      %2896 = vmatpush1.msra.mxu0 %v1196
      %2897 = vmatprep.subr.mxu0 %v1250
      %2898 = vmatpush1.msra.mxu0 %v1249
      %2899 = vmatprep.subr.mxu0 %v606
      %2900 = vmatpush1.msra.mxu0 %v605
      %2901 = vmatprep.subr.mxu0 %v1957
      %2902 = vmatpush1.msra.mxu0 %v1956
      %2903 = vmatprep.subr.mxu0 %v1977
      %2904 = vmatpush1.msra.mxu0 %v1976
      %2905 = vmatprep.subr.mxu0 %v1997
      %2906 = vmatpush1.msra.mxu0 %v1996
      %2907 = vmatprep.subr.mxu0 %v2017
      %2908 = vmatpush1.msra.mxu0 %v2016
      %2909 = vmatprep.subr.mxu0 %v2036
      %2910 = vmatpush1.msra.mxu0 %v2035
      %2911 = vmatprep.subr.mxu0 %v2055
      %2912 = vmatpush1.msra.mxu0 %v2054
      %2913 = vmatprep.subr.mxu0 %v2074
      %2914 = vmatpush1.msra.mxu0 %v2073
      %2915 = vmatprep.subr.mxu0 %v2094
      %2916 = vmatpush1.msra.mxu0 %v2093
      %2917 = vmatprep.subr.mxu0 %v2114
      %2918 = vmatpush1.msra.mxu0 %v2113
      %2919 = vmatprep.subr.mxu0 0.0
      %2920 = vmatpush1.msra.mxu0 0.0
      %2921 = vmatprep.subr.mxu0 0.0
      %2922 = vmatpush1.msra.mxu0 0.0
      %2923 = vmatprep.subr.mxu0 0.0
      %2924 = vmatpush1.msra.mxu0 0.0
      %2925 = vmatprep.subr.mxu0 0.0
      %2926 = vmatpush1.msra.mxu0 0.0
      %2927 = vmatprep.subr.mxu0 0.0
      %2928 = vmatpush1.msra.mxu0 0.0
      %2929 = vmatprep.subr.mxu0 0.0
      %2930 = vmatpush1.msra.mxu0 0.0
      %2931 = vmatprep.subr.mxu0 0.0
      %2932 = vmatpush1.msra.mxu0 0.0
      %2933 = vmatprep.mubr.f32.mxu0 %v2324
      %2934 = vmatmul.mubr.f32.gmra.mrb[0].mxu0 %v2290
      %v2935 = vpop.f32.mrb[0].mxu0
      %v2936 = vadd.f32 %v2305, %v2935
      %v2937 = vpop.f32.mrb[0].mxu0
      %v2938 = vadd.f32 %v2305, %v2937
      %2939 = vmatprep.mubr.f32.mxu0 %v2327
      %2940 = vmatmul.mubr.f32.gmra.mrb[0].mxu0 %v2292
      %v2941 = vpop.f32.mrb[0].mxu0
      %v2942 = vadd.f32 %v2310, %v2941
      %v2943 = vpop.f32.mrb[0].mxu0
      %v2944 = vadd.f32 %v2310, %v2943
      %2945 = vmatprep.mubr.f32.mxu0 %v2330
      %2946 = vmatmul.mubr.f32.gmra.mrb[0].mxu0 %v2294
      %v2947 = vpop.f32.mrb[0].mxu0
      %v2948 = vadd.f32 %v2315, %v2947
      %v2949 = vpop.f32.mrb[0].mxu0
      %v2950 = vadd.f32 %v2315, %v2949
      %2951 = vmatprep.mubr.f32.mxu0 %v2333
      %2952 = vmatmul.mubr.f32.gmra.mrb[0].mxu0 %v2296
      %v2953 = vpop.f32.mrb[0].mxu0
      %v2954 = vadd.f32 %v2320, %v2953
      %v2955 = vpop.f32.mrb[0].mxu0
      %v2956 = vadd.f32 %v2320, %v2955
      %2957 = vdwg.mxu0
      %2958 = vmatprep.subr.mxu0 %v322
      %2959 = vmatpush1.msra.mxu0 %v321
      %2960 = vmatprep.subr.mxu0 %v731
      %2961 = vmatpush1.msra.mxu0 %v730
      %2962 = vmatprep.subr.mxu0 %v590
      %2963 = vmatpush1.msra.mxu0 %v589
      %2964 = vmatprep.subr.mxu0 %v815
      %2965 = vmatpush1.msra.mxu0 %v814
      %2966 = vmatprep.subr.mxu0 %v858
      %2967 = vmatpush1.msra.mxu0 %v857
      %2968 = vmatprep.subr.mxu0 %v883
      %2969 = vmatpush1.msra.mxu0 %v882
      %2970 = vmatprep.subr.mxu0 %v912
      %2971 = vmatpush1.msra.mxu0 %v911
      %2972 = vmatprep.subr.mxu0 %v602
      %2973 = vmatpush1.msra.mxu0 %v601
      %2974 = vmatprep.subr.mxu0 %v937
      %2975 = vmatpush1.msra.mxu0 %v936
      %2976 = vmatprep.subr.mxu0 %v1012
      %2977 = vmatpush1.msra.mxu0 %v1011
      %2978 = vmatprep.subr.mxu0 %v584
      %2979 = vmatpush1.msra.mxu0 %v583
      %2980 = vmatprep.subr.mxu0 %v1095
      %2981 = vmatpush1.msra.mxu0 %v1094
      %2982 = vmatprep.subr.mxu0 %v1151
      %2983 = vmatpush1.msra.mxu0 %v1150
      %2984 = vmatprep.subr.mxu0 %v1199
      %2985 = vmatpush1.msra.mxu0 %v1198
      %2986 = vmatprep.subr.mxu0 %v1252
      %2987 = vmatpush1.msra.mxu0 %v1251
      %2988 = vmatprep.subr.mxu0 %v614
      %2989 = vmatpush1.msra.mxu0 %v607
      %2990 = vmatprep.subr.mxu0 %v1959
      %2991 = vmatpush1.msra.mxu0 %v1958
      %2992 = vmatprep.subr.mxu0 %v1979
      %2993 = vmatpush1.msra.mxu0 %v1978
      %2994 = vmatprep.subr.mxu0 %v1999
      %2995 = vmatpush1.msra.mxu0 %v1998
      %2996 = vmatprep.subr.mxu0 %v2019
      %2997 = vmatpush1.msra.mxu0 %v2018
      %2998 = vmatprep.subr.mxu0 %v2038
      %2999 = vmatpush1.msra.mxu0 %v2037
      %3000 = vmatprep.subr.mxu0 %v2057
      %3001 = vmatpush1.msra.mxu0 %v2056
      %3002 = vmatprep.subr.mxu0 %v2076
      %3003 = vmatpush1.msra.mxu0 %v2075
      %3004 = vmatprep.subr.mxu0 %v2096
      %3005 = vmatpush1.msra.mxu0 %v2095
      %3006 = vmatprep.subr.mxu0 %v2116
      %3007 = vmatpush1.msra.mxu0 %v2115
      %3008 = vmatprep.subr.mxu0 0.0
      %3009 = vmatpush1.msra.mxu0 0.0
      %3010 = vmatprep.subr.mxu0 0.0
      %3011 = vmatpush1.msra.mxu0 0.0
      %3012 = vmatprep.subr.mxu0 0.0
      %3013 = vmatpush1.msra.mxu0 0.0
      %3014 = vmatprep.subr.mxu0 0.0
      %3015 = vmatpush1.msra.mxu0 0.0
      %3016 = vmatprep.subr.mxu0 0.0
      %3017 = vmatpush1.msra.mxu0 0.0
      %3018 = vmatprep.subr.mxu0 0.0
      %3019 = vmatpush1.msra.mxu0 0.0
      %3020 = vmatprep.subr.mxu0 0.0
      %3021 = vmatpush1.msra.mxu0 0.0
      %3022 = vmatprep.mubr.f32.mxu0 %v2324
      %3023 = vmatmul.mubr.f32.gmra.mrb[0].mxu0 %v2290
      %v3024 = vpop.f32.mrb[0].mxu0
      %v3025 = vadd.f32 %v2305, %v3024
      %v3026 = vpop.f32.mrb[0].mxu0
      %v3027 = vadd.f32 %v2305, %v3026
      %3028 = vmatprep.mubr.f32.mxu0 %v2327
      %3029 = vmatmul.mubr.f32.gmra.mrb[0].mxu0 %v2292
      %v3030 = vpop.f32.mrb[0].mxu0
      %v3031 = vadd.f32 %v2310, %v3030
      %v3032 = vpop.f32.mrb[0].mxu0
      %v3033 = vadd.f32 %v2310, %v3032
      %3034 = vmatprep.mubr.f32.mxu0 %v2330
      %3035 = vmatmul.mubr.f32.gmra.mrb[0].mxu0 %v2294
      %v3036 = vpop.f32.mrb[0].mxu0
      %v3037 = vadd.f32 %v2315, %v3036
      %v3038 = vpop.f32.mrb[0].mxu0
      %v3039 = vadd.f32 %v2315, %v3038
      %3040 = vmatprep.mubr.f32.mxu0 %v2333
      %3041 = vmatmul.mubr.f32.gmra.mrb[0].mxu0 %v2296
      %v3042 = vpop.f32.mrb[0].mxu0
      %v3043 = vadd.f32 %v2320, %v3042
      %v3044 = vpop.f32.mrb[0].mxu0
      %v3045 = vadd.f32 %v2320, %v3044
      %3046 = vdwg.mxu0
      %3047 = vmatprep.subr.mxu0 %v324
      %3048 = vmatpush1.msra.mxu0 %v323
      %3049 = vmatprep.subr.mxu0 %v733
      %3050 = vmatpush1.msra.mxu0 %v732
      %3051 = vmatprep.subr.mxu0 %v592
      %3052 = vmatpush1.msra.mxu0 %v591
      %3053 = vmatprep.subr.mxu0 %v817
      %3054 = vmatpush1.msra.mxu0 %v816
      %3055 = vmatprep.subr.mxu0 %v860
      %3056 = vmatpush1.msra.mxu0 %v859
      %3057 = vmatprep.subr.mxu0 %v885
      %3058 = vmatpush1.msra.mxu0 %v884
      %3059 = vmatprep.subr.mxu0 %v914
      %3060 = vmatpush1.msra.mxu0 %v913
      %3061 = vmatprep.subr.mxu0 %v604
      %3062 = vmatpush1.msra.mxu0 %v603
      %3063 = vmatprep.subr.mxu0 %v939
      %3064 = vmatpush1.msra.mxu0 %v938
      %3065 = vmatprep.subr.mxu0 %v1014
      %3066 = vmatpush1.msra.mxu0 %v1013
      %3067 = vmatprep.subr.mxu0 %v586
      %3068 = vmatpush1.msra.mxu0 %v585
      %3069 = vmatprep.subr.mxu0 %v1097
      %3070 = vmatpush1.msra.mxu0 %v1096
      %3071 = vmatprep.subr.mxu0 %v1153
      %3072 = vmatpush1.msra.mxu0 %v1152
      %3073 = vmatprep.subr.mxu0 %v1201
      %3074 = vmatpush1.msra.mxu0 %v1200
      %3075 = vmatprep.subr.mxu0 %v1254
      %3076 = vmatpush1.msra.mxu0 %v1253
      %3077 = vmatprep.subr.mxu0 %v616
      %3078 = vmatpush1.msra.mxu0 %v615
      %3079 = vmatprep.subr.mxu0 %v1961
      %3080 = vmatpush1.msra.mxu0 %v1960
      %3081 = vmatprep.subr.mxu0 %v1981
      %3082 = vmatpush1.msra.mxu0 %v1980
      %3083 = vmatprep.subr.mxu0 %v2001
      %3084 = vmatpush1.msra.mxu0 %v2000
      %3085 = vmatprep.subr.mxu0 %v2021
      %3086 = vmatpush1.msra.mxu0 %v2020
      %3087 = vmatprep.subr.mxu0 %v2040
      %3088 = vmatpush1.msra.mxu0 %v2039
      %3089 = vmatprep.subr.mxu0 %v2059
      %3090 = vmatpush1.msra.mxu0 %v2058
      %3091 = vmatprep.subr.mxu0 %v2078
      %3092 = vmatpush1.msra.mxu0 %v2077
      %3093 = vmatprep.subr.mxu0 %v2098
      %3094 = vmatpush1.msra.mxu0 %v2097
      %3095 = vmatprep.subr.mxu0 %v2118
      %3096 = vmatpush1.msra.mxu0 %v2117
      %3097 = vmatprep.subr.mxu0 0.0
      %3098 = vmatpush1.msra.mxu0 0.0
      %3099 = vmatprep.subr.mxu0 0.0
      %3100 = vmatpush1.msra.mxu0 0.0
      %3101 = vmatprep.subr.mxu0 0.0
      %3102 = vmatpush1.msra.mxu0 0.0
      %3103 = vmatprep.subr.mxu0 0.0
      %3104 = vmatpush1.msra.mxu0 0.0
      %3105 = vmatprep.subr.mxu0 0.0
      %3106 = vmatpush1.msra.mxu0 0.0
      %3107 = vmatprep.subr.mxu0 0.0
      %3108 = vmatpush1.msra.mxu0 0.0
      %3109 = vmatprep.subr.mxu0 0.0
      %3110 = vmatpush1.msra.mxu0 0.0
      %3111 = vmatprep.mubr.f32.mxu0 %v2324
      %3112 = vmatmul.mubr.f32.gmra.mrb[0].mxu0 %v2290
      %v3113 = vpop.f32.mrb[0].mxu0
      %v3114 = vadd.f32 %v2305, %v3113
      %v3115 = vpop.f32.mrb[0].mxu0
      %v3116 = vadd.f32 %v2305, %v3115
      %3117 = vmatprep.mubr.f32.mxu0 %v2327
      %3118 = vmatmul.mubr.f32.gmra.mrb[0].mxu0 %v2292
      %v3119 = vpop.f32.mrb[0].mxu0
      %v3120 = vadd.f32 %v2310, %v3119
      %v3121 = vpop.f32.mrb[0].mxu0
      %v3122 = vadd.f32 %v2310, %v3121
      %3123 = vmatprep.mubr.f32.mxu0 %v2330
      %3124 = vmatmul.mubr.f32.gmra.mrb[0].mxu0 %v2294
      %v3125 = vpop.f32.mrb[0].mxu0
      %v3126 = vadd.f32 %v2315, %v3125
      %v3127 = vpop.f32.mrb[0].mxu0
      %v3128 = vadd.f32 %v2315, %v3127
      %3129 = vmatprep.mubr.f32.mxu0 %v2333
      %3130 = vmatmul.mubr.f32.gmra.mrb[0].mxu0 %v2296
      %v3131 = vpop.f32.mrb[0].mxu0
      %v3132 = vadd.f32 %v2320, %v3131
      %v3133 = vpop.f32.mrb[0].mxu0
      %v3134 = vadd.f32 %v2320, %v3133
      %3135 = vdwg.mxu0
      %3136 = vmatprep.subr.mxu0 %v326
      %3137 = vmatpush1.msra.mxu0 %v325
      %3138 = vmatprep.subr.mxu0 %v735
      %3139 = vmatpush1.msra.mxu0 %v734
      %3140 = vmatprep.subr.mxu0 %v594
      %3141 = vmatpush1.msra.mxu0 %v593
      %3142 = vmatprep.subr.mxu0 %v819
      %3143 = vmatpush1.msra.mxu0 %v818
      %3144 = vmatprep.subr.mxu0 %v862
      %3145 = vmatpush1.msra.mxu0 %v861
      %3146 = vmatprep.subr.mxu0 %v887
      %3147 = vmatpush1.msra.mxu0 %v886
      %3148 = vmatprep.subr.mxu0 %v916
      %3149 = vmatpush1.msra.mxu0 %v915
      %3150 = vmatprep.subr.mxu0 %v606
      %3151 = vmatpush1.msra.mxu0 %v605
      %3152 = vmatprep.subr.mxu0 %v941
      %3153 = vmatpush1.msra.mxu0 %v940
      %3154 = vmatprep.subr.mxu0 %v1016
      %3155 = vmatpush1.msra.mxu0 %v1015
      %3156 = vmatprep.subr.mxu0 %v588
      %3157 = vmatpush1.msra.mxu0 %v587
      %3158 = vmatprep.subr.mxu0 %v1099
      %3159 = vmatpush1.msra.mxu0 %v1098
      %3160 = vmatprep.subr.mxu0 %v1155
      %3161 = vmatpush1.msra.mxu0 %v1154
      %3162 = vmatprep.subr.mxu0 %v1203
      %3163 = vmatpush1.msra.mxu0 %v1202
      %3164 = vmatprep.subr.mxu0 %v1256
      %3165 = vmatpush1.msra.mxu0 %v1255
      %3166 = vmatprep.subr.mxu0 %v618
      %3167 = vmatpush1.msra.mxu0 %v617
      %3168 = vmatprep.subr.mxu0 %v1963
      %3169 = vmatpush1.msra.mxu0 %v1962
      %3170 = vmatprep.subr.mxu0 %v1983
      %3171 = vmatpush1.msra.mxu0 %v1982
      %3172 = vmatprep.subr.mxu0 %v2003
      %3173 = vmatpush1.msra.mxu0 %v2002
      %3174 = vmatprep.subr.mxu0 %v2023
      %3175 = vmatpush1.msra.mxu0 %v2022
      %3176 = vmatprep.subr.mxu0 %v2042
      %3177 = vmatpush1.msra.mxu0 %v2041
      %3178 = vmatprep.subr.mxu0 %v2061
      %3179 = vmatpush1.msra.mxu0 %v2060
      %3180 = vmatprep.subr.mxu0 %v2080
      %3181 = vmatpush1.msra.mxu0 %v2079
      %3182 = vmatprep.subr.mxu0 %v2100
      %3183 = vmatpush1.msra.mxu0 %v2099
      %3184 = vmatprep.subr.mxu0 %v2120
      %3185 = vmatpush1.msra.mxu0 %v2119
      %3186 = vmatprep.subr.mxu0 0.0
      %3187 = vmatpush1.msra.mxu0 0.0
      %3188 = vmatprep.subr.mxu0 0.0
      %3189 = vmatpush1.msra.mxu0 0.0
      %3190 = vmatprep.subr.mxu0 0.0
      %3191 = vmatpush1.msra.mxu0 0.0
      %3192 = vmatprep.subr.mxu0 0.0
      %3193 = vmatpush1.msra.mxu0 0.0
      %3194 = vmatprep.subr.mxu0 0.0
      %3195 = vmatpush1.msra.mxu0 0.0
      %3196 = vmatprep.subr.mxu0 0.0
      %3197 = vmatpush1.msra.mxu0 0.0
      %3198 = vmatprep.subr.mxu0 0.0
      %3199 = vmatpush1.msra.mxu0 0.0
      %3200 = vmatprep.mubr.f32.mxu0 %v2324
      %3201 = vmatmul.mubr.f32.gmra.mrb[0].mxu0 %v2290
      %v3202 = vpop.f32.mrb[0].mxu0
      %v3203 = vadd.f32 %v2305, %v3202
      %v3204 = vpop.f32.mrb[0].mxu0
      %v3205 = vadd.f32 %v2305, %v3204
      %3206 = vmatprep.mubr.f32.mxu0 %v2327
      %3207 = vmatmul.mubr.f32.gmra.mrb[0].mxu0 %v2292
      %v3208 = vpop.f32.mrb[0].mxu0
      %v3209 = vadd.f32 %v2310, %v3208
      %v3210 = vpop.f32.mrb[0].mxu0
      %v3211 = vadd.f32 %v2310, %v3210
      %3212 = vmatprep.mubr.f32.mxu0 %v2330
      %3213 = vmatmul.mubr.f32.gmra.mrb[0].mxu0 %v2294
      %v3214 = vpop.f32.mrb[0].mxu0
      %v3215 = vadd.f32 %v2315, %v3214
      %v3216 = vpop.f32.mrb[0].mxu0
      %v3217 = vadd.f32 %v2315, %v3216
      %3218 = vmatprep.mubr.f32.mxu0 %v2333
      %3219 = vmatmul.mubr.f32.gmra.mrb[0].mxu0 %v2296
      %v3220 = vpop.f32.mrb[0].mxu0
      %v3221 = vadd.f32 %v2320, %v3220
      %v3222 = vpop.f32.mrb[0].mxu0
      %v3223 = vadd.f32 %v2320, %v3222
      %3224 = vdwg.mxu0
      %v3225 = vmax.f32 %v2402, 0.0
      %v3226 = vmax.f32 %v2404, 0.0
      %v3227 = vmax.f32 %v2491, 0.0
      %v3228 = vmax.f32 %v2493, 0.0
      %v3229 = vmax.f32 %v2580, 0.0
      %v3230 = vmax.f32 %v2582, 0.0
      %v3231 = vmax.f32 %v2669, 0.0
      %v3232 = vmax.f32 %v2671, 0.0
      %v3233 = vmax.f32 %v2758, 0.0
      %v3234 = vmax.f32 %v2760, 0.0
      %v3235 = vmax.f32 %v2847, 0.0
      %v3236 = vmax.f32 %v2849, 0.0
      %v3237 = vmax.f32 %v2936, 0.0
      %v3238 = vmax.f32 %v2938, 0.0
      %v3239 = vmax.f32 %v3025, 0.0
      %v3240 = vmax.f32 %v3027, 0.0
      %v3241 = vmax.f32 %v3114, 0.0
      %v3242 = vmax.f32 %v3116, 0.0
      %v3243 = vmax.f32 %v3203, 0.0
      %v3244 = vmax.f32 %v3205, 0.0
      %v3245 = vmax.f32 %v2408, 0.0
      %v3246 = vmax.f32 %v2410, 0.0
      %v3247 = vmax.f32 %v2497, 0.0
      %v3248 = vmax.f32 %v2499, 0.0
      %v3249 = vmax.f32 %v2586, 0.0
      %v3250 = vmax.f32 %v2588, 0.0
      %v3251 = vmax.f32 %v2675, 0.0
      %v3252 = vmax.f32 %v2677, 0.0
      %v3253 = vmax.f32 %v2764, 0.0
      %v3254 = vmax.f32 %v2766, 0.0
      %v3255 = vmax.f32 %v2853, 0.0
      %v3256 = vmax.f32 %v2855, 0.0
      %v3257 = vmax.f32 %v2942, 0.0
      %v3258 = vmax.f32 %v2944, 0.0
      %v3259 = vmax.f32 %v3031, 0.0
      %v3260 = vmax.f32 %v3033, 0.0
      %v3261 = vmax.f32 %v3120, 0.0
      %v3262 = vmax.f32 %v3122, 0.0
      %v3263 = vmax.f32 %v3209, 0.0
      %v3264 = vmax.f32 %v3211, 0.0
      %v3265 = vmax.f32 %v2414, 0.0
      %v3266 = vmax.f32 %v2416, 0.0
      %v3267 = vmax.f32 %v2503, 0.0
      %v3268 = vmax.f32 %v2505, 0.0
      %v3269 = vmax.f32 %v2592, 0.0
      %v3270 = vmax.f32 %v2594, 0.0
      %v3271 = vmax.f32 %v2681, 0.0
      %v3272 = vmax.f32 %v2683, 0.0
      %v3273 = vmax.f32 %v2770, 0.0
      %v3274 = vmax.f32 %v2772, 0.0
      %v3275 = vmax.f32 %v2859, 0.0
      %v3276 = vmax.f32 %v2861, 0.0
      %v3277 = vmax.f32 %v2948, 0.0
      %v3278 = vmax.f32 %v2950, 0.0
      %v3279 = vmax.f32 %v3037, 0.0
      %v3280 = vmax.f32 %v3039, 0.0
      %v3281 = vmax.f32 %v3126, 0.0
      %v3282 = vmax.f32 %v3128, 0.0
      %v3283 = vmax.f32 %v3215, 0.0
      %v3284 = vmax.f32 %v3217, 0.0
      %v3285 = vmax.f32 %v2420, 0.0
      %v3286 = vmax.f32 %v2422, 0.0
      %v3287 = vmax.f32 %v2509, 0.0
      %v3288 = vmax.f32 %v2511, 0.0
      %v3289 = vmax.f32 %v2598, 0.0
      %v3290 = vmax.f32 %v2600, 0.0
      %v3291 = vmax.f32 %v2687, 0.0
      %v3292 = vmax.f32 %v2689, 0.0
      %v3293 = vmax.f32 %v2776, 0.0
      %v3294 = vmax.f32 %v2778, 0.0
      %v3295 = vmax.f32 %v2865, 0.0
      %v3296 = vmax.f32 %v2867, 0.0
      %v3297 = vmax.f32 %v2954, 0.0
      %v3298 = vmax.f32 %v2956, 0.0
      %v3299 = vmax.f32 %v3043, 0.0
      %v3300 = vmax.f32 %v3045, 0.0
      %v3301 = vmax.f32 %v3132, 0.0
      %v3302 = vmax.f32 %v3134, 0.0
      %v3303 = vmax.f32 %v3221, 0.0
      %v3304 = vmax.f32 %v3223, 0.0
      %v3305 = vmul.f32 %v3225, %v437
      %v3306 = vmul.f32 %v3226, %v441
      %v3307 = vmul.f32 %v3227, %v445
      %v3308 = vmul.f32 %v3228, %v449
      %v3309 = vmul.f32 %v3229, %v453
      %v3310 = vmul.f32 %v3230, %v457
      %v3311 = vmul.f32 %v3231, %v461
      %v3312 = vmul.f32 %v3232, %v465
      %v3313 = vmul.f32 %v3233, %v469
      %v3314 = vmul.f32 %v3234, %v473
      %v3315 = vmul.f32 %v3235, %v477
      %v3316 = vmul.f32 %v3236, %v481
      %v3317 = vmul.f32 %v3237, %v485
      %v3318 = vmul.f32 %v3238, %v489
      %v3319 = vmul.f32 %v3239, %v493
      %v3320 = vmul.f32 %v3240, %v497
      %v3321 = vmul.f32 %v3241, %v501
      %v3322 = vmul.f32 %v3242, %v505
      %v3323 = vmul.f32 %v3243, %v509
      %v3324 = vmul.f32 %v3244, %v513
      %v3325 = vmul.f32 %v3245, %v437
      %v3326 = vmul.f32 %v3246, %v441
      %v3327 = vmul.f32 %v3247, %v445
      %v3328 = vmul.f32 %v3248, %v449
      %v3329 = vmul.f32 %v3249, %v453
      %v3330 = vmul.f32 %v3250, %v457
      %v3331 = vmul.f32 %v3251, %v461
      %v3332 = vmul.f32 %v3252, %v465
      %v3333 = vmul.f32 %v3253, %v469
      %v3334 = vmul.f32 %v3254, %v473
      %v3335 = vmul.f32 %v3255, %v477
      %v3336 = vmul.f32 %v3256, %v481
      %v3337 = vmul.f32 %v3257, %v485
      %v3338 = vmul.f32 %v3258, %v489
      %v3339 = vmul.f32 %v3259, %v493
      %v3340 = vmul.f32 %v3260, %v497
      %v3341 = vmul.f32 %v3261, %v501
      %v3342 = vmul.f32 %v3262, %v505
      %v3343 = vmul.f32 %v3263, %v509
      %v3344 = vmul.f32 %v3264, %v513
      %v3345 = vmul.f32 %v3265, %v437
      %v3346 = vmul.f32 %v3266, %v441
      %v3347 = vmul.f32 %v3267, %v445
      %v3348 = vmul.f32 %v3268, %v449
      %v3349 = vmul.f32 %v3269, %v453
      %v3350 = vmul.f32 %v3270, %v457
      %v3351 = vmul.f32 %v3271, %v461
      %v3352 = vmul.f32 %v3272, %v465
      %v3353 = vmul.f32 %v3273, %v469
      %v3354 = vmul.f32 %v3274, %v473
      %v3355 = vmul.f32 %v3275, %v477
      %v3356 = vmul.f32 %v3276, %v481
      %v3357 = vmul.f32 %v3277, %v485
      %v3358 = vmul.f32 %v3278, %v489
      %v3359 = vmul.f32 %v3279, %v493
      %v3360 = vmul.f32 %v3280, %v497
      %v3361 = vmul.f32 %v3281, %v501
      %v3362 = vmul.f32 %v3282, %v505
      %v3363 = vmul.f32 %v3283, %v509
      %v3364 = vmul.f32 %v3284, %v513
      %v3365 = vmul.f32 %v3285, %v437
      %v3366 = vmul.f32 %v3286, %v441
      %v3367 = vmul.f32 %v3287, %v445
      %v3368 = vmul.f32 %v3288, %v449
      %v3369 = vmul.f32 %v3289, %v453
      %v3370 = vmul.f32 %v3290, %v457
      %v3371 = vmul.f32 %v3291, %v461
      %v3372 = vmul.f32 %v3292, %v465
      %v3373 = vmul.f32 %v3293, %v469
      %v3374 = vmul.f32 %v3294, %v473
      %v3375 = vmul.f32 %v3295, %v477
      %v3376 = vmul.f32 %v3296, %v481
      %v3377 = vmul.f32 %v3297, %v485
      %v3378 = vmul.f32 %v3298, %v489
      %v3379 = vmul.f32 %v3299, %v493
      %v3380 = vmul.f32 %v3300, %v497
      %v3381 = vmul.f32 %v3301, %v501
      %v3382 = vmul.f32 %v3302, %v505
      %v3383 = vmul.f32 %v3303, %v509
      %v3384 = vmul.f32 %v3304, %v513
      %3385 = vst [vmem:[#allocation3 + $0xa0] sm:$0xff] %v3305
      %3386 = vst [vmem:[#allocation3 + $0xa8] sm:$0xff] %v3306
      %3387 = vst [vmem:[#allocation3 + $0xb0] sm:$0xff] %v3307
      %3388 = vst [vmem:[#allocation3 + $0xb8] sm:$0xff] %v3308
      %3389 = vst [vmem:[#allocation3 + $0xc0] sm:$0xff] %v3309
      %3390 = vst [vmem:[#allocation3 + $0xc8] sm:$0xff] %v3310
      %3391 = vst [vmem:[#allocation3 + $0xd0] sm:$0xff] %v3311
      %3392 = vst [vmem:[#allocation3 + $0xd8] sm:$0xff] %v3312
      %3393 = vst [vmem:[#allocation3 + $0xe0] sm:$0xff] %v3313
      %3394 = vst [vmem:[#allocation3 + $0xe8] sm:$0xff] %v3314
      %3395 = vst [vmem:[#allocation3 + $0xf0] sm:$0xff] %v3315
      %3396 = vst [vmem:[#allocation3 + $0xf8] sm:$0xff] %v3316
      %3397 = vst [vmem:[#allocation3 + $0x100] sm:$0xff] %v3317
      %3398 = vst [vmem:[#allocation3 + $0x108] sm:$0xff] %v3318
      %3399 = vst [vmem:[#allocation3 + $0x110] sm:$0xff] %v3319
      %3400 = vst [vmem:[#allocation3 + $0x118] sm:$0xff] %v3320
      %3401 = vst [vmem:[#allocation3 + $0x120] sm:$0xff] %v3321
      %3402 = vst [vmem:[#allocation3 + $0x128] sm:$0xff] %v3322
      %3403 = vst [vmem:[#allocation3 + $0x130] sm:$0xff] %v3323
      %3404 = vst [vmem:[#allocation3 + $0x138] sm:$0xff] %v3324
      %3405 = vst [vmem:[#allocation3 + $0x140] sm:$0xff] %v3325
      %3406 = vst [vmem:[#allocation3 + $0x148] sm:$0xff] %v3326
      %3407 = vst [vmem:[#allocation3 + $0x150] sm:$0xff] %v3327
      %3408 = vst [vmem:[#allocation3 + $0x158] sm:$0xff] %v3328
      %3409 = vst [vmem:[#allocation3 + $0x160] sm:$0xff] %v3329
      %3410 = vst [vmem:[#allocation3 + $0x168] sm:$0xff] %v3330
      %3411 = vst [vmem:[#allocation3 + $0x170] sm:$0xff] %v3331
      %3412 = vst [vmem:[#allocation3 + $0x178] sm:$0xff] %v3332
      %3413 = vst [vmem:[#allocation3 + $0x180] sm:$0xff] %v3333
      %3414 = vst [vmem:[#allocation3 + $0x188] sm:$0xff] %v3334
      %3415 = vst [vmem:[#allocation3 + $0x190] sm:$0xff] %v3335
      %3416 = vst [vmem:[#allocation3 + $0x198] sm:$0xff] %v3336
      %3417 = vst [vmem:[#allocation3 + $0x1a0] sm:$0xff] %v3337
      %3418 = vst [vmem:[#allocation3 + $0x1a8] sm:$0xff] %v3338
      %3419 = vst [vmem:[#allocation3 + $0x1b0] sm:$0xff] %v3339
      %3420 = vst [vmem:[#allocation3 + $0x1b8] sm:$0xff] %v3340
      %3421 = vst [vmem:[#allocation3 + $0x1c0] sm:$0xff] %v3341
      %3422 = vst [vmem:[#allocation3 + $0x1c8] sm:$0xff] %v3342
      %3423 = vst [vmem:[#allocation3 + $0x1d0] sm:$0xff] %v3343
      %3424 = vst [vmem:[#allocation3 + $0x1d8] sm:$0xff] %v3344
      %3425 = vst [vmem:[#allocation3 + $0x1e0] sm:$0xff] %v3345
      %3426 = vst [vmem:[#allocation3 + $0x1e8] sm:$0xff] %v3346
      %3427 = vst [vmem:[#allocation3 + $0x1f0] sm:$0xff] %v3347
      %3428 = vst [vmem:[#allocation3 + $0x1f8] sm:$0xff] %v3348
      %3429 = vst [vmem:[#allocation3 + $0x200] sm:$0xff] %v3349
      %3430 = vst [vmem:[#allocation3 + $0x208] sm:$0xff] %v3350
      %3431 = vst [vmem:[#allocation3 + $0x210] sm:$0xff] %v3351
      %3432 = vst [vmem:[#allocation3 + $0x218] sm:$0xff] %v3352
      %3433 = vst [vmem:[#allocation3 + $0x220] sm:$0xff] %v3353
      %3434 = vst [vmem:[#allocation3 + $0x228] sm:$0xff] %v3354
      %3435 = vst [vmem:[#allocation3 + $0x230] sm:$0xff] %v3355
      %3436 = vst [vmem:[#allocation3 + $0x238] sm:$0xff] %v3356
      %3437 = vst [vmem:[#allocation3 + $0x240] sm:$0xff] %v3357
      %3438 = vst [vmem:[#allocation3 + $0x248] sm:$0xff] %v3358
      %3439 = vst [vmem:[#allocation3 + $0x250] sm:$0xff] %v3359
      %3440 = vst [vmem:[#allocation3 + $0x258] sm:$0xff] %v3360
      %3441 = vst [vmem:[#allocation3 + $0x260] sm:$0xff] %v3361
      %3442 = vst [vmem:[#allocation3 + $0x268] sm:$0xff] %v3362
      %3443 = vst [vmem:[#allocation3 + $0x270] sm:$0xff] %v3363
      %3444 = vst [vmem:[#allocation3 + $0x278] sm:$0xff] %v3364
      %3445 = vst [vmem:[#allocation3 + $0x280] sm:$0xff] %v3365
      %3446 = vst [vmem:[#allocation3 + $0x288] sm:$0xff] %v3366
      %3447 = vst [vmem:[#allocation3 + $0x290] sm:$0xff] %v3367
      %3448 = vst [vmem:[#allocation3 + $0x298] sm:$0xff] %v3368
      %3449 = vst [vmem:[#allocation3 + $0x2a0] sm:$0xff] %v3369
      %3450 = vst [vmem:[#allocation3 + $0x2a8] sm:$0xff] %v3370
      %3451 = vst [vmem:[#allocation3 + $0x2b0] sm:$0xff] %v3371
      %3452 = vst [vmem:[#allocation3 + $0x2b8] sm:$0xff] %v3372
      %3453 = vst [vmem:[#allocation3 + $0x2c0] sm:$0xff] %v3373
      %3454 = vst [vmem:[#allocation3 + $0x2c8] sm:$0xff] %v3374
      %3455 = vst [vmem:[#allocation3 + $0x2d0] sm:$0xff] %v3375
      %3456 = vst [vmem:[#allocation3 + $0x2d8] sm:$0xff] %v3376
      %3457 = vst [vmem:[#allocation3 + $0x2e0] sm:$0xff] %v3377
      %3458 = vst [vmem:[#allocation3 + $0x2e8] sm:$0xff] %v3378
      %3459 = vst [vmem:[#allocation3 + $0x2f0] sm:$0xff] %v3379
      %3460 = vst [vmem:[#allocation3 + $0x2f8] sm:$0xff] %v3380
      %3461 = vst [vmem:[#allocation3 + $0x300] sm:$0xff] %v3381
      %3462 = vst [vmem:[#allocation3 + $0x308] sm:$0xff] %v3382
      %3463 = vst [vmem:[#allocation3 + $0x310] sm:$0xff] %v3383
      %3464 = vst [vmem:[#allocation3 + $0x318] sm:$0xff] %v3384
      %v3465 = vld [vmem:[%s1 + $0x78] sm:$0xff]
      %v3466 = vld [vmem:[#allocation3] sm:$0xff]
      %v3467 = vld [vmem:[#allocation3 + $0x8] sm:$0xff]
      %v3468 = vld [vmem:[#allocation3 + $0x10] sm:$0xff]
      %v3469 = vld [vmem:[#allocation3 + $0x18] sm:$0xff]
      %v3470 = vld [vmem:[#allocation3 + $0x20] sm:$0xff]
      %v3471 = vld [vmem:[#allocation3 + $0x28] sm:$0xff]
      %v3472 = vld [vmem:[#allocation3 + $0x30] sm:$0xff]
      %v3473 = vld [vmem:[#allocation3 + $0x38] sm:$0xff]
      %v3474 = vld [vmem:[#allocation3 + $0x40] sm:$0xff]
      %v3475 = vld [vmem:[#allocation3 + $0x48] sm:$0xff]
      %v3476 = vld [vmem:[#allocation3 + $0x50] sm:$0xff]
      %v3477 = vld [vmem:[#allocation3 + $0x58] sm:$0xff]
      %v3478 = vld [vmem:[#allocation3 + $0x60] sm:$0xff]
      %v3479 = vld [vmem:[#allocation3 + $0x68] sm:$0xff]
      %v3480 = vld [vmem:[#allocation3 + $0x70] sm:$0xff]
      %v3481 = vld [vmem:[#allocation3 + $0x78] sm:$0xff]
      %v3482 = vld [vmem:[#allocation3 + $0x80] sm:$0xff]
      %v3483 = vld [vmem:[#allocation3 + $0xa0] sm:$0xff]
      %v3484 = vld [vmem:[#allocation3 + $0xa8] sm:$0xff]
      %v3485 = vld [vmem:[#allocation3 + $0xb0] sm:$0xff]
      %v3486 = vld [vmem:[#allocation3 + $0xb8] sm:$0xff]
      %v3487 = vld [vmem:[#allocation3 + $0xc0] sm:$0xff]
      %v3488 = vld [vmem:[#allocation3 + $0xc8] sm:$0xff]
      %v3489 = vld [vmem:[#allocation3 + $0xd0] sm:$0xff]
      %v3490 = vld [vmem:[#allocation3 + $0xd8] sm:$0xff]
      %v3491 = vld [vmem:[#allocation3 + $0xe0] sm:$0xff]
      %v3492 = vld [vmem:[#allocation3 + $0xe8] sm:$0xff]
      %v3493 = vld [vmem:[#allocation3 + $0xf0] sm:$0xff]
      %v3494 = vld [vmem:[#allocation3 + $0xf8] sm:$0xff]
      %v3495 = vld [vmem:[#allocation3 + $0x100] sm:$0xff]
      %v3496 = vld [vmem:[#allocation3 + $0x108] sm:$0xff]
      %v3497 = vld [vmem:[#allocation3 + $0x110] sm:$0xff]
      %v3498 = vld [vmem:[#allocation3 + $0x118] sm:$0xff]
      %v3499 = vld [vmem:[#allocation3 + $0x120] sm:$0xff]
      %v3500 = vld [vmem:[#allocation3 + $0x140] sm:$0xff]
      %v3501 = vld [vmem:[#allocation3 + $0x148] sm:$0xff]
      %v3502 = vld [vmem:[#allocation3 + $0x150] sm:$0xff]
      %v3503 = vld [vmem:[#allocation3 + $0x158] sm:$0xff]
      %v3504 = vld [vmem:[#allocation3 + $0x160] sm:$0xff]
      %v3505 = vld [vmem:[#allocation3 + $0x168] sm:$0xff]
      %v3506 = vld [vmem:[#allocation3 + $0x170] sm:$0xff]
      %v3507 = vld [vmem:[#allocation3 + $0x178] sm:$0xff]
      %v3508 = vld [vmem:[#allocation3 + $0x180] sm:$0xff]
      %v3509 = vld [vmem:[#allocation3 + $0x188] sm:$0xff]
      %v3510 = vld [vmem:[#allocation3 + $0x190] sm:$0xff]
      %v3511 = vld [vmem:[#allocation3 + $0x198] sm:$0xff]
      %v3512 = vld [vmem:[#allocation3 + $0x1a0] sm:$0xff]
      %v3513 = vld [vmem:[#allocation3 + $0x1a8] sm:$0xff]
      %v3514 = vld [vmem:[#allocation3 + $0x1b0] sm:$0xff]
      %v3515 = vld [vmem:[#allocation3 + $0x1b8] sm:$0xff]
      %v3516 = vld [vmem:[#allocation3 + $0x1c0] sm:$0xff]
      %v3517 = vld [vmem:[#allocation3 + $0x1e0] sm:$0xff]
      %v3518 = vld [vmem:[#allocation3 + $0x1e8] sm:$0xff]
      %v3519 = vld [vmem:[#allocation3 + $0x1f0] sm:$0xff]
      %v3520 = vld [vmem:[#allocation3 + $0x1f8] sm:$0xff]
      %v3521 = vld [vmem:[#allocation3 + $0x200] sm:$0xff]
      %v3522 = vld [vmem:[#allocation3 + $0x208] sm:$0xff]
      %v3523 = vld [vmem:[#allocation3 + $0x210] sm:$0xff]
      %v3524 = vld [vmem:[#allocation3 + $0x218] sm:$0xff]
      %v3525 = vld [vmem:[#allocation3 + $0x220] sm:$0xff]
      %v3526 = vld [vmem:[#allocation3 + $0x228] sm:$0xff]
      %v3527 = vld [vmem:[#allocation3 + $0x230] sm:$0xff]
      %v3528 = vld [vmem:[#allocation3 + $0x238] sm:$0xff]
      %v3529 = vld [vmem:[#allocation3 + $0x240] sm:$0xff]
      %v3530 = vld [vmem:[#allocation3 + $0x248] sm:$0xff]
      %v3531 = vld [vmem:[#allocation3 + $0x250] sm:$0xff]
      %v3532 = vld [vmem:[#allocation3 + $0x258] sm:$0xff]
      %v3533 = vld [vmem:[#allocation3 + $0x260] sm:$0xff]
      %v3534 = vld [vmem:[#allocation3 + $0x280] sm:$0xff]
      %v3535 = vld [vmem:[#allocation3 + $0x288] sm:$0xff]
      %v3536 = vld [vmem:[#allocation3 + $0x290] sm:$0xff]
      %v3537 = vld [vmem:[#allocation3 + $0x298] sm:$0xff]
      %v3538 = vld [vmem:[#allocation3 + $0x2a0] sm:$0xff]
      %v3539 = vld [vmem:[#allocation3 + $0x2a8] sm:$0xff]
      %v3540 = vld [vmem:[#allocation3 + $0x2b0] sm:$0xff]
      %v3541 = vld [vmem:[#allocation3 + $0x2b8] sm:$0xff]
      %v3542 = vld [vmem:[#allocation3 + $0x2c0] sm:$0xff]
      %v3543 = vld [vmem:[#allocation3 + $0x2c8] sm:$0xff]
      %v3544 = vld [vmem:[#allocation3 + $0x2d0] sm:$0xff]
      %v3545 = vld [vmem:[#allocation3 + $0x2d8] sm:$0xff]
      %v3546 = vld [vmem:[#allocation3 + $0x2e0] sm:$0xff]
      %v3547 = vld [vmem:[#allocation3 + $0x2e8] sm:$0xff]
      %v3548 = vld [vmem:[#allocation3 + $0x2f0] sm:$0xff]
      %v3549 = vld [vmem:[#allocation3 + $0x2f8] sm:$0xff]
      %v3550 = vld [vmem:[#allocation3 + $0x300] sm:$0xff]
      %3552 = vrot.lane.b32.xlu0 %v3465, 88
      %v3553 = vpop.permute.xlu0 %3552
      %vm3554 = vcmask 326656
      %v3555 = vsel %vm3554, %v3553, 0
      %3557 = vmatprep.subr.mxu0 %v3468
      %3558 = vmatpush1.msra.mxu0 %v3467
      %3559 = vmatprep.subr.mxu0 %v3485
      %3560 = vmatpush1.msra.mxu0 %v3484
      %3561 = vmatprep.subr.mxu0 %v3502
      %3562 = vmatpush1.msra.mxu0 %v3501
      %3563 = vmatprep.subr.mxu0 %v3519
      %3564 = vmatpush1.msra.mxu0 %v3518
      %3565 = vmatprep.subr.mxu0 %v3536
      %3566 = vmatpush1.msra.mxu0 %v3535
      %3567 = vmatprep.subr.mxu0 0.0
      %3568 = vmatpush1.msra.mxu0 0.0
      %3569 = vmatprep.subr.mxu0 0.0
      %3570 = vmatpush1.msra.mxu0 0.0
      %3571 = vmatprep.subr.mxu0 0.0
      %3572 = vmatpush1.msra.mxu0 0.0
      %3573 = vmatprep.subr.mxu0 0.0
      %3574 = vmatpush1.msra.mxu0 0.0
      %3575 = vmatprep.subr.mxu0 0.0
      %3576 = vmatpush1.msra.mxu0 0.0
      %3577 = vmatprep.subr.mxu0 0.0
      %3578 = vmatpush1.msra.mxu0 0.0
      %3579 = vmatprep.subr.mxu0 0.0
      %3580 = vmatpush1.msra.mxu0 0.0
      %3581 = vmatprep.subr.mxu0 0.0
      %3582 = vmatpush1.msra.mxu0 0.0
      %3583 = vmatprep.subr.mxu0 0.0
      %3584 = vmatpush1.msra.mxu0 0.0
      %3585 = vmatprep.subr.mxu0 0.0
      %3586 = vmatpush1.msra.mxu0 0.0
      %3587 = vmatprep.subr.mxu0 0.0
      %3588 = vmatpush1.msra.mxu0 0.0
      %3589 = vmatprep.subr.mxu0 0.0
      %3590 = vmatpush1.msra.mxu0 0.0
      %3591 = vmatprep.subr.mxu0 0.0
      %3592 = vmatpush1.msra.mxu0 0.0
      %3593 = vmatprep.subr.mxu0 0.0
      %3594 = vmatpush1.msra.mxu0 0.0
      %3595 = vmatprep.subr.mxu0 0.0
      %3596 = vmatpush1.msra.mxu0 0.0
      %3597 = vmatprep.subr.mxu0 0.0
      %3598 = vmatpush1.msra.mxu0 0.0
      %3599 = vmatprep.subr.mxu0 0.0
      %3600 = vmatpush1.msra.mxu0 0.0
      %3601 = vmatprep.subr.mxu0 0.0
      %3602 = vmatpush1.msra.mxu0 0.0
      %3603 = vmatprep.subr.mxu0 0.0
      %3604 = vmatpush1.msra.mxu0 0.0
      %3605 = vmatprep.subr.mxu0 0.0
      %3606 = vmatpush1.msra.mxu0 0.0
      %3607 = vmatprep.subr.mxu0 0.0
      %3608 = vmatpush1.msra.mxu0 0.0
      %3609 = vmatprep.subr.mxu0 0.0
      %3610 = vmatpush1.msra.mxu0 0.0
      %3611 = vmatprep.subr.mxu0 0.0
      %3612 = vmatpush1.msra.mxu0 0.0
      %3613 = vmatprep.subr.mxu0 0.0
      %3614 = vmatpush1.msra.mxu0 0.0
      %3615 = vmatprep.subr.mxu0 0.0
      %3616 = vmatpush1.msra.mxu0 0.0
      %3617 = vmatprep.subr.mxu0 0.0
      %3618 = vmatpush1.msra.mxu0 0.0
      %3619 = vmatprep.subr.mxu0 0.0
      %3620 = vmatpush1.msra.mxu0 0.0
      %3621 = vmatprep.mubr.f32.mxu0 0.0
      %3622 = vmatmul.mubr.f32.gmra.mrb[0].mxu0 %v3555
      %v3623 = vpop.f32.mrb[0].mxu0
      %v3624 = vadd.f32 0.0, %v3623
      %v3625 = vpop.f32.mrb[0].mxu0
      %v3626 = vadd.f32 0.0, %v3625
      %3627 = vdwg.mxu0
      %3628 = vmatprep.subr.mxu0 %v3470
      %3629 = vmatpush1.msra.mxu0 %v3469
      %3630 = vmatprep.subr.mxu0 %v3487
      %3631 = vmatpush1.msra.mxu0 %v3486
      %3632 = vmatprep.subr.mxu0 %v3504
      %3633 = vmatpush1.msra.mxu0 %v3503
      %3634 = vmatprep.subr.mxu0 %v3521
      %3635 = vmatpush1.msra.mxu0 %v3520
      %3636 = vmatprep.subr.mxu0 %v3538
      %3637 = vmatpush1.msra.mxu0 %v3537
      %3638 = vmatprep.subr.mxu0 0.0
      %3639 = vmatpush1.msra.mxu0 0.0
      %3640 = vmatprep.subr.mxu0 0.0
      %3641 = vmatpush1.msra.mxu0 0.0
      %3642 = vmatprep.subr.mxu0 0.0
      %3643 = vmatpush1.msra.mxu0 0.0
      %3644 = vmatprep.subr.mxu0 0.0
      %3645 = vmatpush1.msra.mxu0 0.0
      %3646 = vmatprep.subr.mxu0 0.0
      %3647 = vmatpush1.msra.mxu0 0.0
      %3648 = vmatprep.subr.mxu0 0.0
      %3649 = vmatpush1.msra.mxu0 0.0
      %3650 = vmatprep.subr.mxu0 0.0
      %3651 = vmatpush1.msra.mxu0 0.0
      %3652 = vmatprep.subr.mxu0 0.0
      %3653 = vmatpush1.msra.mxu0 0.0
      %3654 = vmatprep.subr.mxu0 0.0
      %3655 = vmatpush1.msra.mxu0 0.0
      %3656 = vmatprep.subr.mxu0 0.0
      %3657 = vmatpush1.msra.mxu0 0.0
      %3658 = vmatprep.subr.mxu0 0.0
      %3659 = vmatpush1.msra.mxu0 0.0
      %3660 = vmatprep.subr.mxu0 0.0
      %3661 = vmatpush1.msra.mxu0 0.0
      %3662 = vmatprep.subr.mxu0 0.0
      %3663 = vmatpush1.msra.mxu0 0.0
      %3664 = vmatprep.subr.mxu0 0.0
      %3665 = vmatpush1.msra.mxu0 0.0
      %3666 = vmatprep.subr.mxu0 0.0
      %3667 = vmatpush1.msra.mxu0 0.0
      %3668 = vmatprep.subr.mxu0 0.0
      %3669 = vmatpush1.msra.mxu0 0.0
      %3670 = vmatprep.subr.mxu0 0.0
      %3671 = vmatpush1.msra.mxu0 0.0
      %3672 = vmatprep.subr.mxu0 0.0
      %3673 = vmatpush1.msra.mxu0 0.0
      %3674 = vmatprep.subr.mxu0 0.0
      %3675 = vmatpush1.msra.mxu0 0.0
      %3676 = vmatprep.subr.mxu0 0.0
      %3677 = vmatpush1.msra.mxu0 0.0
      %3678 = vmatprep.subr.mxu0 0.0
      %3679 = vmatpush1.msra.mxu0 0.0
      %3680 = vmatprep.subr.mxu0 0.0
      %3681 = vmatpush1.msra.mxu0 0.0
      %3682 = vmatprep.subr.mxu0 0.0
      %3683 = vmatpush1.msra.mxu0 0.0
      %3684 = vmatprep.subr.mxu0 0.0
      %3685 = vmatpush1.msra.mxu0 0.0
      %3686 = vmatprep.subr.mxu0 0.0
      %3687 = vmatpush1.msra.mxu0 0.0
      %3688 = vmatprep.subr.mxu0 0.0
      %3689 = vmatpush1.msra.mxu0 0.0
      %3690 = vmatprep.subr.mxu0 0.0
      %3691 = vmatpush1.msra.mxu0 0.0
      %3692 = vmatprep.mubr.f32.mxu0 0.0
      %3693 = vmatmul.mubr.f32.gmra.mrb[0].mxu0 %v3555
      %v3694 = vpop.f32.mrb[0].mxu0
      %v3695 = vadd.f32 0.0, %v3694
      %v3696 = vpop.f32.mrb[0].mxu0
      %v3697 = vadd.f32 0.0, %v3696
      %3698 = vdwg.mxu0
      %3699 = vmatprep.subr.mxu0 %v3472
      %3700 = vmatpush1.msra.mxu0 %v3471
      %3701 = vmatprep.subr.mxu0 %v3489
      %3702 = vmatpush1.msra.mxu0 %v3488
      %3703 = vmatprep.subr.mxu0 %v3506
      %3704 = vmatpush1.msra.mxu0 %v3505
      %3705 = vmatprep.subr.mxu0 %v3523
      %3706 = vmatpush1.msra.mxu0 %v3522
      %3707 = vmatprep.subr.mxu0 %v3540
      %3708 = vmatpush1.msra.mxu0 %v3539
      %3709 = vmatprep.subr.mxu0 0.0
      %3710 = vmatpush1.msra.mxu0 0.0
      %3711 = vmatprep.subr.mxu0 0.0
      %3712 = vmatpush1.msra.mxu0 0.0
      %3713 = vmatprep.subr.mxu0 0.0
      %3714 = vmatpush1.msra.mxu0 0.0
      %3715 = vmatprep.subr.mxu0 0.0
      %3716 = vmatpush1.msra.mxu0 0.0
      %3717 = vmatprep.subr.mxu0 0.0
      %3718 = vmatpush1.msra.mxu0 0.0
      %3719 = vmatprep.subr.mxu0 0.0
      %3720 = vmatpush1.msra.mxu0 0.0
      %3721 = vmatprep.subr.mxu0 0.0
      %3722 = vmatpush1.msra.mxu0 0.0
      %3723 = vmatprep.subr.mxu0 0.0
      %3724 = vmatpush1.msra.mxu0 0.0
      %3725 = vmatprep.subr.mxu0 0.0
      %3726 = vmatpush1.msra.mxu0 0.0
      %3727 = vmatprep.subr.mxu0 0.0
      %3728 = vmatpush1.msra.mxu0 0.0
      %3729 = vmatprep.subr.mxu0 0.0
      %3730 = vmatpush1.msra.mxu0 0.0
      %3731 = vmatprep.subr.mxu0 0.0
      %3732 = vmatpush1.msra.mxu0 0.0
      %3733 = vmatprep.subr.mxu0 0.0
      %3734 = vmatpush1.msra.mxu0 0.0
      %3735 = vmatprep.subr.mxu0 0.0
      %3736 = vmatpush1.msra.mxu0 0.0
      %3737 = vmatprep.subr.mxu0 0.0
      %3738 = vmatpush1.msra.mxu0 0.0
      %3739 = vmatprep.subr.mxu0 0.0
      %3740 = vmatpush1.msra.mxu0 0.0
      %3741 = vmatprep.subr.mxu0 0.0
      %3742 = vmatpush1.msra.mxu0 0.0
      %3743 = vmatprep.subr.mxu0 0.0
      %3744 = vmatpush1.msra.mxu0 0.0
      %3745 = vmatprep.subr.mxu0 0.0
      %3746 = vmatpush1.msra.mxu0 0.0
      %3747 = vmatprep.subr.mxu0 0.0
      %3748 = vmatpush1.msra.mxu0 0.0
      %3749 = vmatprep.subr.mxu0 0.0
      %3750 = vmatpush1.msra.mxu0 0.0
      %3751 = vmatprep.subr.mxu0 0.0
      %3752 = vmatpush1.msra.mxu0 0.0
      %3753 = vmatprep.subr.mxu0 0.0
      %3754 = vmatpush1.msra.mxu0 0.0
      %3755 = vmatprep.subr.mxu0 0.0
      %3756 = vmatpush1.msra.mxu0 0.0
      %3757 = vmatprep.subr.mxu0 0.0
      %3758 = vmatpush1.msra.mxu0 0.0
      %3759 = vmatprep.subr.mxu0 0.0
      %3760 = vmatpush1.msra.mxu0 0.0
      %3761 = vmatprep.subr.mxu0 0.0
      %3762 = vmatpush1.msra.mxu0 0.0
      %3763 = vmatprep.mubr.f32.mxu0 0.0
      %3764 = vmatmul.mubr.f32.gmra.mrb[0].mxu0 %v3555
      %v3765 = vpop.f32.mrb[0].mxu0
      %v3766 = vadd.f32 0.0, %v3765
      %v3767 = vpop.f32.mrb[0].mxu0
      %v3768 = vadd.f32 0.0, %v3767
      %3769 = vdwg.mxu0
      %3770 = vmatprep.subr.mxu0 %v3474
      %3771 = vmatpush1.msra.mxu0 %v3473
      %3772 = vmatprep.subr.mxu0 %v3491
      %3773 = vmatpush1.msra.mxu0 %v3490
      %3774 = vmatprep.subr.mxu0 %v3508
      %3775 = vmatpush1.msra.mxu0 %v3507
      %3776 = vmatprep.subr.mxu0 %v3525
      %3777 = vmatpush1.msra.mxu0 %v3524
      %3778 = vmatprep.subr.mxu0 %v3542
      %3779 = vmatpush1.msra.mxu0 %v3541
      %3780 = vmatprep.subr.mxu0 0.0
      %3781 = vmatpush1.msra.mxu0 0.0
      %3782 = vmatprep.subr.mxu0 0.0
      %3783 = vmatpush1.msra.mxu0 0.0
      %3784 = vmatprep.subr.mxu0 0.0
      %3785 = vmatpush1.msra.mxu0 0.0
      %3786 = vmatprep.subr.mxu0 0.0
      %3787 = vmatpush1.msra.mxu0 0.0
      %3788 = vmatprep.subr.mxu0 0.0
      %3789 = vmatpush1.msra.mxu0 0.0
      %3790 = vmatprep.subr.mxu0 0.0
      %3791 = vmatpush1.msra.mxu0 0.0
      %3792 = vmatprep.subr.mxu0 0.0
      %3793 = vmatpush1.msra.mxu0 0.0
      %3794 = vmatprep.subr.mxu0 0.0
      %3795 = vmatpush1.msra.mxu0 0.0
      %3796 = vmatprep.subr.mxu0 0.0
      %3797 = vmatpush1.msra.mxu0 0.0
      %3798 = vmatprep.subr.mxu0 0.0
      %3799 = vmatpush1.msra.mxu0 0.0
      %3800 = vmatprep.subr.mxu0 0.0
      %3801 = vmatpush1.msra.mxu0 0.0
      %3802 = vmatprep.subr.mxu0 0.0
      %3803 = vmatpush1.msra.mxu0 0.0
      %3804 = vmatprep.subr.mxu0 0.0
      %3805 = vmatpush1.msra.mxu0 0.0
      %3806 = vmatprep.subr.mxu0 0.0
      %3807 = vmatpush1.msra.mxu0 0.0
      %3808 = vmatprep.subr.mxu0 0.0
      %3809 = vmatpush1.msra.mxu0 0.0
      %3810 = vmatprep.subr.mxu0 0.0
      %3811 = vmatpush1.msra.mxu0 0.0
      %3812 = vmatprep.subr.mxu0 0.0
      %3813 = vmatpush1.msra.mxu0 0.0
      %3814 = vmatprep.subr.mxu0 0.0
      %3815 = vmatpush1.msra.mxu0 0.0
      %3816 = vmatprep.subr.mxu0 0.0
      %3817 = vmatpush1.msra.mxu0 0.0
      %3818 = vmatprep.subr.mxu0 0.0
      %3819 = vmatpush1.msra.mxu0 0.0
      %3820 = vmatprep.subr.mxu0 0.0
      %3821 = vmatpush1.msra.mxu0 0.0
      %3822 = vmatprep.subr.mxu0 0.0
      %3823 = vmatpush1.msra.mxu0 0.0
      %3824 = vmatprep.subr.mxu0 0.0
      %3825 = vmatpush1.msra.mxu0 0.0
      %3826 = vmatprep.subr.mxu0 0.0
      %3827 = vmatpush1.msra.mxu0 0.0
      %3828 = vmatprep.subr.mxu0 0.0
      %3829 = vmatpush1.msra.mxu0 0.0
      %3830 = vmatprep.subr.mxu0 0.0
      %3831 = vmatpush1.msra.mxu0 0.0
      %3832 = vmatprep.subr.mxu0 0.0
      %3833 = vmatpush1.msra.mxu0 0.0
      %3834 = vmatprep.mubr.f32.mxu0 0.0
      %3835 = vmatmul.mubr.f32.gmra.mrb[0].mxu0 %v3555
      %v3836 = vpop.f32.mrb[0].mxu0
      %v3837 = vadd.f32 0.0, %v3836
      %v3838 = vpop.f32.mrb[0].mxu0
      %v3839 = vadd.f32 0.0, %v3838
      %3840 = vdwg.mxu0
      %3841 = vmatprep.subr.mxu0 %v3476
      %3842 = vmatpush1.msra.mxu0 %v3475
      %3843 = vmatprep.subr.mxu0 %v3493
      %3844 = vmatpush1.msra.mxu0 %v3492
      %3845 = vmatprep.subr.mxu0 %v3510
      %3846 = vmatpush1.msra.mxu0 %v3509
      %3847 = vmatprep.subr.mxu0 %v3527
      %3848 = vmatpush1.msra.mxu0 %v3526
      %3849 = vmatprep.subr.mxu0 %v3544
      %3850 = vmatpush1.msra.mxu0 %v3543
      %3851 = vmatprep.subr.mxu0 0.0
      %3852 = vmatpush1.msra.mxu0 0.0
      %3853 = vmatprep.subr.mxu0 0.0
      %3854 = vmatpush1.msra.mxu0 0.0
      %3855 = vmatprep.subr.mxu0 0.0
      %3856 = vmatpush1.msra.mxu0 0.0
      %3857 = vmatprep.subr.mxu0 0.0
      %3858 = vmatpush1.msra.mxu0 0.0
      %3859 = vmatprep.subr.mxu0 0.0
      %3860 = vmatpush1.msra.mxu0 0.0
      %3861 = vmatprep.subr.mxu0 0.0
      %3862 = vmatpush1.msra.mxu0 0.0
      %3863 = vmatprep.subr.mxu0 0.0
      %3864 = vmatpush1.msra.mxu0 0.0
      %3865 = vmatprep.subr.mxu0 0.0
      %3866 = vmatpush1.msra.mxu0 0.0
      %3867 = vmatprep.subr.mxu0 0.0
      %3868 = vmatpush1.msra.mxu0 0.0
      %3869 = vmatprep.subr.mxu0 0.0
      %3870 = vmatpush1.msra.mxu0 0.0
      %3871 = vmatprep.subr.mxu0 0.0
      %3872 = vmatpush1.msra.mxu0 0.0
      %3873 = vmatprep.subr.mxu0 0.0
      %3874 = vmatpush1.msra.mxu0 0.0
      %3875 = vmatprep.subr.mxu0 0.0
      %3876 = vmatpush1.msra.mxu0 0.0
      %3877 = vmatprep.subr.mxu0 0.0
      %3878 = vmatpush1.msra.mxu0 0.0
      %3879 = vmatprep.subr.mxu0 0.0
      %3880 = vmatpush1.msra.mxu0 0.0
      %3881 = vmatprep.subr.mxu0 0.0
      %3882 = vmatpush1.msra.mxu0 0.0
      %3883 = vmatprep.subr.mxu0 0.0
      %3884 = vmatpush1.msra.mxu0 0.0
      %3885 = vmatprep.subr.mxu0 0.0
      %3886 = vmatpush1.msra.mxu0 0.0
      %3887 = vmatprep.subr.mxu0 0.0
      %3888 = vmatpush1.msra.mxu0 0.0
      %3889 = vmatprep.subr.mxu0 0.0
      %3890 = vmatpush1.msra.mxu0 0.0
      %3891 = vmatprep.subr.mxu0 0.0
      %3892 = vmatpush1.msra.mxu0 0.0
      %3893 = vmatprep.subr.mxu0 0.0
      %3894 = vmatpush1.msra.mxu0 0.0
      %3895 = vmatprep.subr.mxu0 0.0
      %3896 = vmatpush1.msra.mxu0 0.0
      %3897 = vmatprep.subr.mxu0 0.0
      %3898 = vmatpush1.msra.mxu0 0.0
      %3899 = vmatprep.subr.mxu0 0.0
      %3900 = vmatpush1.msra.mxu0 0.0
      %3901 = vmatprep.subr.mxu0 0.0
      %3902 = vmatpush1.msra.mxu0 0.0
      %3903 = vmatprep.subr.mxu0 0.0
      %3904 = vmatpush1.msra.mxu0 0.0
      %3905 = vmatprep.mubr.f32.mxu0 0.0
      %3906 = vmatmul.mubr.f32.gmra.mrb[0].mxu0 %v3555
      %v3907 = vpop.f32.mrb[0].mxu0
      %v3908 = vadd.f32 0.0, %v3907
      %v3909 = vpop.f32.mrb[0].mxu0
      %v3910 = vadd.f32 0.0, %v3909
      %3911 = vdwg.mxu0
      %3912 = vmatprep.subr.mxu0 %v3478
      %3913 = vmatpush1.msra.mxu0 %v3477
      %3914 = vmatprep.subr.mxu0 %v3495
      %3915 = vmatpush1.msra.mxu0 %v3494
      %3916 = vmatprep.subr.mxu0 %v3512
      %3917 = vmatpush1.msra.mxu0 %v3511
      %3918 = vmatprep.subr.mxu0 %v3529
      %3919 = vmatpush1.msra.mxu0 %v3528
      %3920 = vmatprep.subr.mxu0 %v3546
      %3921 = vmatpush1.msra.mxu0 %v3545
      %3922 = vmatprep.subr.mxu0 0.0
      %3923 = vmatpush1.msra.mxu0 0.0
      %3924 = vmatprep.subr.mxu0 0.0
      %3925 = vmatpush1.msra.mxu0 0.0
      %3926 = vmatprep.subr.mxu0 0.0
      %3927 = vmatpush1.msra.mxu0 0.0
      %3928 = vmatprep.subr.mxu0 0.0
      %3929 = vmatpush1.msra.mxu0 0.0
      %3930 = vmatprep.subr.mxu0 0.0
      %3931 = vmatpush1.msra.mxu0 0.0
      %3932 = vmatprep.subr.mxu0 0.0
      %3933 = vmatpush1.msra.mxu0 0.0
      %3934 = vmatprep.subr.mxu0 0.0
      %3935 = vmatpush1.msra.mxu0 0.0
      %3936 = vmatprep.subr.mxu0 0.0
      %3937 = vmatpush1.msra.mxu0 0.0
      %3938 = vmatprep.subr.mxu0 0.0
      %3939 = vmatpush1.msra.mxu0 0.0
      %3940 = vmatprep.subr.mxu0 0.0
      %3941 = vmatpush1.msra.mxu0 0.0
      %3942 = vmatprep.subr.mxu0 0.0
      %3943 = vmatpush1.msra.mxu0 0.0
      %3944 = vmatprep.subr.mxu0 0.0
      %3945 = vmatpush1.msra.mxu0 0.0
      %3946 = vmatprep.subr.mxu0 0.0
      %3947 = vmatpush1.msra.mxu0 0.0
      %3948 = vmatprep.subr.mxu0 0.0
      %3949 = vmatpush1.msra.mxu0 0.0
      %3950 = vmatprep.subr.mxu0 0.0
      %3951 = vmatpush1.msra.mxu0 0.0
      %3952 = vmatprep.subr.mxu0 0.0
      %3953 = vmatpush1.msra.mxu0 0.0
      %3954 = vmatprep.subr.mxu0 0.0
      %3955 = vmatpush1.msra.mxu0 0.0
      %3956 = vmatprep.subr.mxu0 0.0
      %3957 = vmatpush1.msra.mxu0 0.0
      %3958 = vmatprep.subr.mxu0 0.0
      %3959 = vmatpush1.msra.mxu0 0.0
      %3960 = vmatprep.subr.mxu0 0.0
      %3961 = vmatpush1.msra.mxu0 0.0
      %3962 = vmatprep.subr.mxu0 0.0
      %3963 = vmatpush1.msra.mxu0 0.0
      %3964 = vmatprep.subr.mxu0 0.0
      %3965 = vmatpush1.msra.mxu0 0.0
      %3966 = vmatprep.subr.mxu0 0.0
      %3967 = vmatpush1.msra.mxu0 0.0
      %3968 = vmatprep.subr.mxu0 0.0
      %3969 = vmatpush1.msra.mxu0 0.0
      %3970 = vmatprep.subr.mxu0 0.0
      %3971 = vmatpush1.msra.mxu0 0.0
      %3972 = vmatprep.subr.mxu0 0.0
      %3973 = vmatpush1.msra.mxu0 0.0
      %3974 = vmatprep.subr.mxu0 0.0
      %3975 = vmatpush1.msra.mxu0 0.0
      %3976 = vmatprep.mubr.f32.mxu0 0.0
      %3977 = vmatmul.mubr.f32.gmra.mrb[0].mxu0 %v3555
      %v3978 = vpop.f32.mrb[0].mxu0
      %v3979 = vadd.f32 0.0, %v3978
      %v3980 = vpop.f32.mrb[0].mxu0
      %v3981 = vadd.f32 0.0, %v3980
      %3982 = vdwg.mxu0
      %3983 = vmatprep.subr.mxu0 %v3480
      %3984 = vmatpush1.msra.mxu0 %v3479
      %3985 = vmatprep.subr.mxu0 %v3497
      %3986 = vmatpush1.msra.mxu0 %v3496
      %3987 = vmatprep.subr.mxu0 %v3514
      %3988 = vmatpush1.msra.mxu0 %v3513
      %3989 = vmatprep.subr.mxu0 %v3531
      %3990 = vmatpush1.msra.mxu0 %v3530
      %3991 = vmatprep.subr.mxu0 %v3548
      %3992 = vmatpush1.msra.mxu0 %v3547
      %3993 = vmatprep.subr.mxu0 0.0
      %3994 = vmatpush1.msra.mxu0 0.0
      %3995 = vmatprep.subr.mxu0 0.0
      %3996 = vmatpush1.msra.mxu0 0.0
      %3997 = vmatprep.subr.mxu0 0.0
      %3998 = vmatpush1.msra.mxu0 0.0
      %3999 = vmatprep.subr.mxu0 0.0
      %4000 = vmatpush1.msra.mxu0 0.0
      %4001 = vmatprep.subr.mxu0 0.0
      %4002 = vmatpush1.msra.mxu0 0.0
      %4003 = vmatprep.subr.mxu0 0.0
      %4004 = vmatpush1.msra.mxu0 0.0
      %4005 = vmatprep.subr.mxu0 0.0
      %4006 = vmatpush1.msra.mxu0 0.0
      %4007 = vmatprep.subr.mxu0 0.0
      %4008 = vmatpush1.msra.mxu0 0.0
      %4009 = vmatprep.subr.mxu0 0.0
      %4010 = vmatpush1.msra.mxu0 0.0
      %4011 = vmatprep.subr.mxu0 0.0
      %4012 = vmatpush1.msra.mxu0 0.0
      %4013 = vmatprep.subr.mxu0 0.0
      %4014 = vmatpush1.msra.mxu0 0.0
      %4015 = vmatprep.subr.mxu0 0.0
      %4016 = vmatpush1.msra.mxu0 0.0
      %4017 = vmatprep.subr.mxu0 0.0
      %4018 = vmatpush1.msra.mxu0 0.0
      %4019 = vmatprep.subr.mxu0 0.0
      %4020 = vmatpush1.msra.mxu0 0.0
      %4021 = vmatprep.subr.mxu0 0.0
      %4022 = vmatpush1.msra.mxu0 0.0
      %4023 = vmatprep.subr.mxu0 0.0
      %4024 = vmatpush1.msra.mxu0 0.0
      %4025 = vmatprep.subr.mxu0 0.0
      %4026 = vmatpush1.msra.mxu0 0.0
      %4027 = vmatprep.subr.mxu0 0.0
      %4028 = vmatpush1.msra.mxu0 0.0
      %4029 = vmatprep.subr.mxu0 0.0
      %4030 = vmatpush1.msra.mxu0 0.0
      %4031 = vmatprep.subr.mxu0 0.0
      %4032 = vmatpush1.msra.mxu0 0.0
      %4033 = vmatprep.subr.mxu0 0.0
      %4034 = vmatpush1.msra.mxu0 0.0
      %4035 = vmatprep.subr.mxu0 0.0
      %4036 = vmatpush1.msra.mxu0 0.0
      %4037 = vmatprep.subr.mxu0 0.0
      %4038 = vmatpush1.msra.mxu0 0.0
      %4039 = vmatprep.subr.mxu0 0.0
      %4040 = vmatpush1.msra.mxu0 0.0
      %4041 = vmatprep.subr.mxu0 0.0
      %4042 = vmatpush1.msra.mxu0 0.0
      %4043 = vmatprep.subr.mxu0 0.0
      %4044 = vmatpush1.msra.mxu0 0.0
      %4045 = vmatprep.subr.mxu0 0.0
      %4046 = vmatpush1.msra.mxu0 0.0
      %4047 = vmatprep.mubr.f32.mxu0 0.0
      %4048 = vmatmul.mubr.f32.gmra.mrb[0].mxu0 %v3555
      %v4049 = vpop.f32.mrb[0].mxu0
      %v4050 = vadd.f32 0.0, %v4049
      %v4051 = vpop.f32.mrb[0].mxu0
      %v4052 = vadd.f32 0.0, %v4051
      %4053 = vdwg.mxu0
      %4054 = vmatprep.subr.mxu0 %v3482
      %4055 = vmatpush1.msra.mxu0 %v3481
      %4056 = vmatprep.subr.mxu0 %v3499
      %4057 = vmatpush1.msra.mxu0 %v3498
      %4058 = vmatprep.subr.mxu0 %v3516
      %4059 = vmatpush1.msra.mxu0 %v3515
      %4060 = vmatprep.subr.mxu0 %v3533
      %4061 = vmatpush1.msra.mxu0 %v3532
      %4062 = vmatprep.subr.mxu0 %v3550
      %4063 = vmatpush1.msra.mxu0 %v3549
      %4064 = vmatprep.subr.mxu0 0.0
      %4065 = vmatpush1.msra.mxu0 0.0
      %4066 = vmatprep.subr.mxu0 0.0
      %4067 = vmatpush1.msra.mxu0 0.0
      %4068 = vmatprep.subr.mxu0 0.0
      %4069 = vmatpush1.msra.mxu0 0.0
      %4070 = vmatprep.subr.mxu0 0.0
      %4071 = vmatpush1.msra.mxu0 0.0
      %4072 = vmatprep.subr.mxu0 0.0
      %4073 = vmatpush1.msra.mxu0 0.0
      %4074 = vmatprep.subr.mxu0 0.0
      %4075 = vmatpush1.msra.mxu0 0.0
      %4076 = vmatprep.subr.mxu0 0.0
      %4077 = vmatpush1.msra.mxu0 0.0
      %4078 = vmatprep.subr.mxu0 0.0
      %4079 = vmatpush1.msra.mxu0 0.0
      %4080 = vmatprep.subr.mxu0 0.0
      %4081 = vmatpush1.msra.mxu0 0.0
      %4082 = vmatprep.subr.mxu0 0.0
      %4083 = vmatpush1.msra.mxu0 0.0
      %4084 = vmatprep.subr.mxu0 0.0
      %4085 = vmatpush1.msra.mxu0 0.0
      %4086 = vmatprep.subr.mxu0 0.0
      %4087 = vmatpush1.msra.mxu0 0.0
      %4088 = vmatprep.subr.mxu0 0.0
      %4089 = vmatpush1.msra.mxu0 0.0
      %4090 = vmatprep.subr.mxu0 0.0
      %4091 = vmatpush1.msra.mxu0 0.0
      %4092 = vmatprep.subr.mxu0 0.0
      %4093 = vmatpush1.msra.mxu0 0.0
      %4094 = vmatprep.subr.mxu0 0.0
      %4095 = vmatpush1.msra.mxu0 0.0
      %4096 = vmatprep.subr.mxu0 0.0
      %4097 = vmatpush1.msra.mxu0 0.0
      %4098 = vmatprep.subr.mxu0 0.0
      %4099 = vmatpush1.msra.mxu0 0.0
      %4100 = vmatprep.subr.mxu0 0.0
      %4101 = vmatpush1.msra.mxu0 0.0
      %4102 = vmatprep.subr.mxu0 0.0
      %4103 = vmatpush1.msra.mxu0 0.0
      %4104 = vmatprep.subr.mxu0 0.0
      %4105 = vmatpush1.msra.mxu0 0.0
      %4106 = vmatprep.subr.mxu0 0.0
      %4107 = vmatpush1.msra.mxu0 0.0
      %4108 = vmatprep.subr.mxu0 0.0
      %4109 = vmatpush1.msra.mxu0 0.0
      %4110 = vmatprep.subr.mxu0 0.0
      %4111 = vmatpush1.msra.mxu0 0.0
      %4112 = vmatprep.subr.mxu0 0.0
      %4113 = vmatpush1.msra.mxu0 0.0
      %4114 = vmatprep.subr.mxu0 0.0
      %4115 = vmatpush1.msra.mxu0 0.0
      %4116 = vmatprep.subr.mxu0 0.0
      %4117 = vmatpush1.msra.mxu0 0.0
      %4118 = vmatprep.mubr.f32.mxu0 0.0
      %4119 = vmatmul.mubr.f32.gmra.mrb[0].mxu0 %v3555
      %v4120 = vpop.f32.mrb[0].mxu0
      %v4121 = vadd.f32 0.0, %v4120
      %v4122 = vpop.f32.mrb[0].mxu0
      %v4123 = vadd.f32 0.0, %v4122
      %4124 = vdwg.mxu0
      %4210 = vrot.lane.b32.xlu0 %v3466, 1
      %v4211 = vpop.permute.xlu0 %4210
      %4212 = vrot.lane.b32.xlu0 %v3467, 1
      %v4213 = vpop.permute.xlu0 %4212
      %4214 = vrot.lane.b32.xlu0 %v3468, 1
      %v4215 = vpop.permute.xlu0 %4214
      %4216 = vrot.lane.b32.xlu0 %v3469, 1
      %v4217 = vpop.permute.xlu0 %4216
      %4218 = vrot.lane.b32.xlu0 %v3470, 1
      %v4219 = vpop.permute.xlu0 %4218
      %4220 = vrot.lane.b32.xlu0 %v3471, 1
      %v4221 = vpop.permute.xlu0 %4220
      %4222 = vrot.lane.b32.xlu0 %v3472, 1
      %v4223 = vpop.permute.xlu0 %4222
      %4224 = vrot.lane.b32.xlu0 %v3473, 1
      %v4225 = vpop.permute.xlu0 %4224
      %4226 = vrot.lane.b32.xlu0 %v3474, 1
      %v4227 = vpop.permute.xlu0 %4226
      %4228 = vrot.lane.b32.xlu0 %v3475, 1
      %v4229 = vpop.permute.xlu0 %4228
      %4230 = vrot.lane.b32.xlu0 %v3476, 1
      %v4231 = vpop.permute.xlu0 %4230
      %4232 = vrot.lane.b32.xlu0 %v3477, 1
      %v4233 = vpop.permute.xlu0 %4232
      %4234 = vrot.lane.b32.xlu0 %v3478, 1
      %v4235 = vpop.permute.xlu0 %4234
      %4236 = vrot.lane.b32.xlu0 %v3479, 1
      %v4237 = vpop.permute.xlu0 %4236
      %4238 = vrot.lane.b32.xlu0 %v3480, 1
      %v4239 = vpop.permute.xlu0 %4238
      %4240 = vrot.lane.b32.xlu0 %v3481, 1
      %v4241 = vpop.permute.xlu0 %4240
      %4242 = vrot.lane.b32.xlu0 %v3482, 1
      %v4243 = vpop.permute.xlu0 %4242
      %4244 = vrot.lane.b32.xlu0 %v3483, 1
      %v4245 = vpop.permute.xlu0 %4244
      %4246 = vrot.lane.b32.xlu0 %v3484, 1
      %v4247 = vpop.permute.xlu0 %4246
      %4248 = vrot.lane.b32.xlu0 %v3485, 1
      %v4249 = vpop.permute.xlu0 %4248
      %4250 = vrot.lane.b32.xlu0 %v3486, 1
      %v4251 = vpop.permute.xlu0 %4250
      %4252 = vrot.lane.b32.xlu0 %v3487, 1
      %v4253 = vpop.permute.xlu0 %4252
      %4254 = vrot.lane.b32.xlu0 %v3488, 1
      %v4255 = vpop.permute.xlu0 %4254
      %4256 = vrot.lane.b32.xlu0 %v3489, 1
      %v4257 = vpop.permute.xlu0 %4256
      %4258 = vrot.lane.b32.xlu0 %v3490, 1
      %v4259 = vpop.permute.xlu0 %4258
      %4260 = vrot.lane.b32.xlu0 %v3491, 1
      %v4261 = vpop.permute.xlu0 %4260
      %4262 = vrot.lane.b32.xlu0 %v3492, 1
      %v4263 = vpop.permute.xlu0 %4262
      %4264 = vrot.lane.b32.xlu0 %v3493, 1
      %v4265 = vpop.permute.xlu0 %4264
      %4266 = vrot.lane.b32.xlu0 %v3494, 1
      %v4267 = vpop.permute.xlu0 %4266
      %4268 = vrot.lane.b32.xlu0 %v3495, 1
      %v4269 = vpop.permute.xlu0 %4268
      %4270 = vrot.lane.b32.xlu0 %v3496, 1
      %v4271 = vpop.permute.xlu0 %4270
      %4272 = vrot.lane.b32.xlu0 %v3497, 1
      %v4273 = vpop.permute.xlu0 %4272
      %4274 = vrot.lane.b32.xlu0 %v3498, 1
      %v4275 = vpop.permute.xlu0 %4274
      %4276 = vrot.lane.b32.xlu0 %v3499, 1
      %v4277 = vpop.permute.xlu0 %4276
      %4278 = vrot.lane.b32.xlu0 %v3500, 1
      %v4279 = vpop.permute.xlu0 %4278
      %4280 = vrot.lane.b32.xlu0 %v3501, 1
      %v4281 = vpop.permute.xlu0 %4280
      %4282 = vrot.lane.b32.xlu0 %v3502, 1
      %v4283 = vpop.permute.xlu0 %4282
      %4284 = vrot.lane.b32.xlu0 %v3503, 1
      %v4285 = vpop.permute.xlu0 %4284
      %4286 = vrot.lane.b32.xlu0 %v3504, 1
      %v4287 = vpop.permute.xlu0 %4286
      %4288 = vrot.lane.b32.xlu0 %v3505, 1
      %v4289 = vpop.permute.xlu0 %4288
      %4290 = vrot.lane.b32.xlu0 %v3506, 1
      %v4291 = vpop.permute.xlu0 %4290
      %4292 = vrot.lane.b32.xlu0 %v3507, 1
      %v4293 = vpop.permute.xlu0 %4292
      %4294 = vrot.lane.b32.xlu0 %v3508, 1
      %v4295 = vpop.permute.xlu0 %4294
      %4296 = vrot.lane.b32.xlu0 %v3509, 1
      %v4297 = vpop.permute.xlu0 %4296
      %4298 = vrot.lane.b32.xlu0 %v3510, 1
      %v4299 = vpop.permute.xlu0 %4298
      %4300 = vrot.lane.b32.xlu0 %v3511, 1
      %v4301 = vpop.permute.xlu0 %4300
      %4302 = vrot.lane.b32.xlu0 %v3512, 1
      %v4303 = vpop.permute.xlu0 %4302
      %4304 = vrot.lane.b32.xlu0 %v3513, 1
      %v4305 = vpop.permute.xlu0 %4304
      %4306 = vrot.lane.b32.xlu0 %v3514, 1
      %v4307 = vpop.permute.xlu0 %4306
      %4308 = vrot.lane.b32.xlu0 %v3515, 1
      %v4309 = vpop.permute.xlu0 %4308
      %4310 = vrot.lane.b32.xlu0 %v3516, 1
      %v4311 = vpop.permute.xlu0 %4310
      %4312 = vrot.lane.b32.xlu0 %v3517, 1
      %v4313 = vpop.permute.xlu0 %4312
      %4314 = vrot.lane.b32.xlu0 %v3518, 1
      %v4315 = vpop.permute.xlu0 %4314
      %4316 = vrot.lane.b32.xlu0 %v3519, 1
      %v4317 = vpop.permute.xlu0 %4316
      %4318 = vrot.lane.b32.xlu0 %v3520, 1
      %v4319 = vpop.permute.xlu0 %4318
      %4320 = vrot.lane.b32.xlu0 %v3521, 1
      %v4321 = vpop.permute.xlu0 %4320
      %4322 = vrot.lane.b32.xlu0 %v3522, 1
      %v4323 = vpop.permute.xlu0 %4322
      %4324 = vrot.lane.b32.xlu0 %v3523, 1
      %v4325 = vpop.permute.xlu0 %4324
      %4326 = vrot.lane.b32.xlu0 %v3524, 1
      %v4327 = vpop.permute.xlu0 %4326
      %4328 = vrot.lane.b32.xlu0 %v3525, 1
      %v4329 = vpop.permute.xlu0 %4328
      %4330 = vrot.lane.b32.xlu0 %v3526, 1
      %v4331 = vpop.permute.xlu0 %4330
      %4332 = vrot.lane.b32.xlu0 %v3527, 1
      %v4333 = vpop.permute.xlu0 %4332
      %4334 = vrot.lane.b32.xlu0 %v3528, 1
      %v4335 = vpop.permute.xlu0 %4334
      %4336 = vrot.lane.b32.xlu0 %v3529, 1
      %v4337 = vpop.permute.xlu0 %4336
      %4338 = vrot.lane.b32.xlu0 %v3530, 1
      %v4339 = vpop.permute.xlu0 %4338
      %4340 = vrot.lane.b32.xlu0 %v3531, 1
      %v4341 = vpop.permute.xlu0 %4340
      %4342 = vrot.lane.b32.xlu0 %v3532, 1
      %v4343 = vpop.permute.xlu0 %4342
      %4344 = vrot.lane.b32.xlu0 %v3533, 1
      %v4345 = vpop.permute.xlu0 %4344
      %4346 = vrot.lane.b32.xlu0 %v3534, 1
      %v4347 = vpop.permute.xlu0 %4346
      %4348 = vrot.lane.b32.xlu0 %v3535, 1
      %v4349 = vpop.permute.xlu0 %4348
      %4350 = vrot.lane.b32.xlu0 %v3536, 1
      %v4351 = vpop.permute.xlu0 %4350
      %4352 = vrot.lane.b32.xlu0 %v3537, 1
      %v4353 = vpop.permute.xlu0 %4352
      %4354 = vrot.lane.b32.xlu0 %v3538, 1
      %v4355 = vpop.permute.xlu0 %4354
      %4356 = vrot.lane.b32.xlu0 %v3539, 1
      %v4357 = vpop.permute.xlu0 %4356
      %4358 = vrot.lane.b32.xlu0 %v3540, 1
      %v4359 = vpop.permute.xlu0 %4358
      %4360 = vrot.lane.b32.xlu0 %v3541, 1
      %v4361 = vpop.permute.xlu0 %4360
      %4362 = vrot.lane.b32.xlu0 %v3542, 1
      %v4363 = vpop.permute.xlu0 %4362
      %4364 = vrot.lane.b32.xlu0 %v3543, 1
      %v4365 = vpop.permute.xlu0 %4364
      %4366 = vrot.lane.b32.xlu0 %v3544, 1
      %v4367 = vpop.permute.xlu0 %4366
      %4368 = vrot.lane.b32.xlu0 %v3545, 1
      %v4369 = vpop.permute.xlu0 %4368
      %4370 = vrot.lane.b32.xlu0 %v3546, 1
      %v4371 = vpop.permute.xlu0 %4370
      %4372 = vrot.lane.b32.xlu0 %v3547, 1
      %v4373 = vpop.permute.xlu0 %4372
      %4374 = vrot.lane.b32.xlu0 %v3548, 1
      %v4375 = vpop.permute.xlu0 %4374
      %4376 = vrot.lane.b32.xlu0 %v3549, 1
      %v4377 = vpop.permute.xlu0 %4376
      %4378 = vrot.lane.b32.xlu0 %v3550, 1
      %v4379 = vpop.permute.xlu0 %4378
      %vm4380 = vcmask 7168
      %v4381 = vsel %vm4380, %v4211, %v4213
      %v4382 = vsel %vm4380, %v4213, %v4215
      %v4383 = vsel %vm4380, %v4215, %v4217
      %v4384 = vsel %vm4380, %v4217, %v4219
      %v4385 = vsel %vm4380, %v4219, %v4221
      %v4386 = vsel %vm4380, %v4221, %v4223
      %v4387 = vsel %vm4380, %v4223, %v4225
      %v4388 = vsel %vm4380, %v4225, %v4227
      %v4389 = vsel %vm4380, %v4227, %v4229
      %v4390 = vsel %vm4380, %v4229, %v4231
      %v4391 = vsel %vm4380, %v4231, %v4233
      %v4392 = vsel %vm4380, %v4233, %v4235
      %v4393 = vsel %vm4380, %v4235, %v4237
      %v4394 = vsel %vm4380, %v4237, %v4239
      %v4395 = vsel %vm4380, %v4239, %v4241
      %v4396 = vsel %vm4380, %v4241, %v4243
      %v4397 = vsel %vm4380, %v4245, %v4247
      %v4398 = vsel %vm4380, %v4247, %v4249
      %v4399 = vsel %vm4380, %v4249, %v4251
      %v4400 = vsel %vm4380, %v4251, %v4253
      %v4401 = vsel %vm4380, %v4253, %v4255
      %v4402 = vsel %vm4380, %v4255, %v4257
      %v4403 = vsel %vm4380, %v4257, %v4259
      %v4404 = vsel %vm4380, %v4259, %v4261
      %v4405 = vsel %vm4380, %v4261, %v4263
      %v4406 = vsel %vm4380, %v4263, %v4265
      %v4407 = vsel %vm4380, %v4265, %v4267
      %v4408 = vsel %vm4380, %v4267, %v4269
      %v4409 = vsel %vm4380, %v4269, %v4271
      %v4410 = vsel %vm4380, %v4271, %v4273
      %v4411 = vsel %vm4380, %v4273, %v4275
      %v4412 = vsel %vm4380, %v4275, %v4277
      %v4413 = vsel %vm4380, %v4279, %v4281
      %v4414 = vsel %vm4380, %v4281, %v4283
      %v4415 = vsel %vm4380, %v4283, %v4285
      %v4416 = vsel %vm4380, %v4285, %v4287
      %v4417 = vsel %vm4380, %v4287, %v4289
      %v4418 = vsel %vm4380, %v4289, %v4291
      %v4419 = vsel %vm4380, %v4291, %v4293
      %v4420 = vsel %vm4380, %v4293, %v4295
      %v4421 = vsel %vm4380, %v4295, %v4297
      %v4422 = vsel %vm4380, %v4297, %v4299
      %v4423 = vsel %vm4380, %v4299, %v4301
      %v4424 = vsel %vm4380, %v4301, %v4303
      %v4425 = vsel %vm4380, %v4303, %v4305
      %v4426 = vsel %vm4380, %v4305, %v4307
      %v4427 = vsel %vm4380, %v4307, %v4309
      %v4428 = vsel %vm4380, %v4309, %v4311
      %v4429 = vsel %vm4380, %v4313, %v4315
      %v4430 = vsel %vm4380, %v4315, %v4317
      %v4431 = vsel %vm4380, %v4317, %v4319
      %v4432 = vsel %vm4380, %v4319, %v4321
      %v4433 = vsel %vm4380, %v4321, %v4323
      %v4434 = vsel %vm4380, %v4323, %v4325
      %v4435 = vsel %vm4380, %v4325, %v4327
      %v4436 = vsel %vm4380, %v4327, %v4329
      %v4437 = vsel %vm4380, %v4329, %v4331
      %v4438 = vsel %vm4380, %v4331, %v4333
      %v4439 = vsel %vm4380, %v4333, %v4335
      %v4440 = vsel %vm4380, %v4335, %v4337
      %v4441 = vsel %vm4380, %v4337, %v4339
      %v4442 = vsel %vm4380, %v4339, %v4341
      %v4443 = vsel %vm4380, %v4341, %v4343
      %v4444 = vsel %vm4380, %v4343, %v4345
      %v4445 = vsel %vm4380, %v4347, %v4349
      %v4446 = vsel %vm4380, %v4349, %v4351
      %v4447 = vsel %vm4380, %v4351, %v4353
      %v4448 = vsel %vm4380, %v4353, %v4355
      %v4449 = vsel %vm4380, %v4355, %v4357
      %v4450 = vsel %vm4380, %v4357, %v4359
      %v4451 = vsel %vm4380, %v4359, %v4361
      %v4452 = vsel %vm4380, %v4361, %v4363
      %v4453 = vsel %vm4380, %v4363, %v4365
      %v4454 = vsel %vm4380, %v4365, %v4367
      %v4455 = vsel %vm4380, %v4367, %v4369
      %v4456 = vsel %vm4380, %v4369, %v4371
      %v4457 = vsel %vm4380, %v4371, %v4373
      %v4458 = vsel %vm4380, %v4373, %v4375
      %v4459 = vsel %vm4380, %v4375, %v4377
      %v4460 = vsel %vm4380, %v4377, %v4379
      %v4541 = vsel %vm3554, %v3465, 0
      %4543 = vmatprep.subr.mxu0 %v4382
      %4544 = vmatpush1.msra.mxu0 %v4381
      %4545 = vmatprep.subr.mxu0 %v4398
      %4546 = vmatpush1.msra.mxu0 %v4397
      %4547 = vmatprep.subr.mxu0 %v4414
      %4548 = vmatpush1.msra.mxu0 %v4413
      %4549 = vmatprep.subr.mxu0 %v4430
      %4550 = vmatpush1.msra.mxu0 %v4429
      %4551 = vmatprep.subr.mxu0 %v4446
      %4552 = vmatpush1.msra.mxu0 %v4445
      %4553 = vmatprep.subr.mxu0 0.0
      %4554 = vmatpush1.msra.mxu0 0.0
      %4555 = vmatprep.subr.mxu0 0.0
      %4556 = vmatpush1.msra.mxu0 0.0
      %4557 = vmatprep.subr.mxu0 0.0
      %4558 = vmatpush1.msra.mxu0 0.0
      %4559 = vmatprep.subr.mxu0 0.0
      %4560 = vmatpush1.msra.mxu0 0.0
      %4561 = vmatprep.subr.mxu0 0.0
      %4562 = vmatpush1.msra.mxu0 0.0
      %4563 = vmatprep.subr.mxu0 0.0
      %4564 = vmatpush1.msra.mxu0 0.0
      %4565 = vmatprep.subr.mxu0 0.0
      %4566 = vmatpush1.msra.mxu0 0.0
      %4567 = vmatprep.subr.mxu0 0.0
      %4568 = vmatpush1.msra.mxu0 0.0
      %4569 = vmatprep.subr.mxu0 0.0
      %4570 = vmatpush1.msra.mxu0 0.0
      %4571 = vmatprep.subr.mxu0 0.0
      %4572 = vmatpush1.msra.mxu0 0.0
      %4573 = vmatprep.subr.mxu0 0.0
      %4574 = vmatpush1.msra.mxu0 0.0
      %4575 = vmatprep.subr.mxu0 0.0
      %4576 = vmatpush1.msra.mxu0 0.0
      %4577 = vmatprep.subr.mxu0 0.0
      %4578 = vmatpush1.msra.mxu0 0.0
      %4579 = vmatprep.subr.mxu0 0.0
      %4580 = vmatpush1.msra.mxu0 0.0
      %4581 = vmatprep.subr.mxu0 0.0
      %4582 = vmatpush1.msra.mxu0 0.0
      %4583 = vmatprep.subr.mxu0 0.0
      %4584 = vmatpush1.msra.mxu0 0.0
      %4585 = vmatprep.subr.mxu0 0.0
      %4586 = vmatpush1.msra.mxu0 0.0
      %4587 = vmatprep.subr.mxu0 0.0
      %4588 = vmatpush1.msra.mxu0 0.0
      %4589 = vmatprep.subr.mxu0 0.0
      %4590 = vmatpush1.msra.mxu0 0.0
      %4591 = vmatprep.subr.mxu0 0.0
      %4592 = vmatpush1.msra.mxu0 0.0
      %4593 = vmatprep.subr.mxu0 0.0
      %4594 = vmatpush1.msra.mxu0 0.0
      %4595 = vmatprep.subr.mxu0 0.0
      %4596 = vmatpush1.msra.mxu0 0.0
      %4597 = vmatprep.subr.mxu0 0.0
      %4598 = vmatpush1.msra.mxu0 0.0
      %4599 = vmatprep.subr.mxu0 0.0
      %4600 = vmatpush1.msra.mxu0 0.0
      %4601 = vmatprep.subr.mxu0 0.0
      %4602 = vmatpush1.msra.mxu0 0.0
      %4603 = vmatprep.subr.mxu0 0.0
      %4604 = vmatpush1.msra.mxu0 0.0
      %4605 = vmatprep.subr.mxu0 0.0
      %4606 = vmatpush1.msra.mxu0 0.0
      %4607 = vmatprep.mubr.f32.mxu0 0.0
      %4608 = vmatmul.mubr.f32.gmra.mrb[0].mxu0 %v4541
      %v4609 = vpop.f32.mrb[0].mxu0
      %v4610 = vadd.f32 %v3624, %v4609
      %v4611 = vpop.f32.mrb[0].mxu0
      %v4612 = vadd.f32 %v3626, %v4611
      %4613 = vdwg.mxu0
      %4614 = vmatprep.subr.mxu0 %v4384
      %4615 = vmatpush1.msra.mxu0 %v4383
      %4616 = vmatprep.subr.mxu0 %v4400
      %4617 = vmatpush1.msra.mxu0 %v4399
      %4618 = vmatprep.subr.mxu0 %v4416
      %4619 = vmatpush1.msra.mxu0 %v4415
      %4620 = vmatprep.subr.mxu0 %v4432
      %4621 = vmatpush1.msra.mxu0 %v4431
      %4622 = vmatprep.subr.mxu0 %v4448
      %4623 = vmatpush1.msra.mxu0 %v4447
      %4624 = vmatprep.subr.mxu0 0.0
      %4625 = vmatpush1.msra.mxu0 0.0
      %4626 = vmatprep.subr.mxu0 0.0
      %4627 = vmatpush1.msra.mxu0 0.0
      %4628 = vmatprep.subr.mxu0 0.0
      %4629 = vmatpush1.msra.mxu0 0.0
      %4630 = vmatprep.subr.mxu0 0.0
      %4631 = vmatpush1.msra.mxu0 0.0
      %4632 = vmatprep.subr.mxu0 0.0
      %4633 = vmatpush1.msra.mxu0 0.0
      %4634 = vmatprep.subr.mxu0 0.0
      %4635 = vmatpush1.msra.mxu0 0.0
      %4636 = vmatprep.subr.mxu0 0.0
      %4637 = vmatpush1.msra.mxu0 0.0
      %4638 = vmatprep.subr.mxu0 0.0
      %4639 = vmatpush1.msra.mxu0 0.0
      %4640 = vmatprep.subr.mxu0 0.0
      %4641 = vmatpush1.msra.mxu0 0.0
      %4642 = vmatprep.subr.mxu0 0.0
      %4643 = vmatpush1.msra.mxu0 0.0
      %4644 = vmatprep.subr.mxu0 0.0
      %4645 = vmatpush1.msra.mxu0 0.0
      %4646 = vmatprep.subr.mxu0 0.0
      %4647 = vmatpush1.msra.mxu0 0.0
      %4648 = vmatprep.subr.mxu0 0.0
      %4649 = vmatpush1.msra.mxu0 0.0
      %4650 = vmatprep.subr.mxu0 0.0
      %4651 = vmatpush1.msra.mxu0 0.0
      %4652 = vmatprep.subr.mxu0 0.0
      %4653 = vmatpush1.msra.mxu0 0.0
      %4654 = vmatprep.subr.mxu0 0.0
      %4655 = vmatpush1.msra.mxu0 0.0
      %4656 = vmatprep.subr.mxu0 0.0
      %4657 = vmatpush1.msra.mxu0 0.0
      %4658 = vmatprep.subr.mxu0 0.0
      %4659 = vmatpush1.msra.mxu0 0.0
      %4660 = vmatprep.subr.mxu0 0.0
      %4661 = vmatpush1.msra.mxu0 0.0
      %4662 = vmatprep.subr.mxu0 0.0
      %4663 = vmatpush1.msra.mxu0 0.0
      %4664 = vmatprep.subr.mxu0 0.0
      %4665 = vmatpush1.msra.mxu0 0.0
      %4666 = vmatprep.subr.mxu0 0.0
      %4667 = vmatpush1.msra.mxu0 0.0
      %4668 = vmatprep.subr.mxu0 0.0
      %4669 = vmatpush1.msra.mxu0 0.0
      %4670 = vmatprep.subr.mxu0 0.0
      %4671 = vmatpush1.msra.mxu0 0.0
      %4672 = vmatprep.subr.mxu0 0.0
      %4673 = vmatpush1.msra.mxu0 0.0
      %4674 = vmatprep.subr.mxu0 0.0
      %4675 = vmatpush1.msra.mxu0 0.0
      %4676 = vmatprep.subr.mxu0 0.0
      %4677 = vmatpush1.msra.mxu0 0.0
      %4678 = vmatprep.mubr.f32.mxu0 0.0
      %4679 = vmatmul.mubr.f32.gmra.mrb[0].mxu0 %v4541
      %v4680 = vpop.f32.mrb[0].mxu0
      %v4681 = vadd.f32 %v3695, %v4680
      %v4682 = vpop.f32.mrb[0].mxu0
      %v4683 = vadd.f32 %v3697, %v4682
      %4684 = vdwg.mxu0
      %4685 = vmatprep.subr.mxu0 %v4386
      %4686 = vmatpush1.msra.mxu0 %v4385
      %4687 = vmatprep.subr.mxu0 %v4402
      %4688 = vmatpush1.msra.mxu0 %v4401
      %4689 = vmatprep.subr.mxu0 %v4418
      %4690 = vmatpush1.msra.mxu0 %v4417
      %4691 = vmatprep.subr.mxu0 %v4434
      %4692 = vmatpush1.msra.mxu0 %v4433
      %4693 = vmatprep.subr.mxu0 %v4450
      %4694 = vmatpush1.msra.mxu0 %v4449
      %4695 = vmatprep.subr.mxu0 0.0
      %4696 = vmatpush1.msra.mxu0 0.0
      %4697 = vmatprep.subr.mxu0 0.0
      %4698 = vmatpush1.msra.mxu0 0.0
      %4699 = vmatprep.subr.mxu0 0.0
      %4700 = vmatpush1.msra.mxu0 0.0
      %4701 = vmatprep.subr.mxu0 0.0
      %4702 = vmatpush1.msra.mxu0 0.0
      %4703 = vmatprep.subr.mxu0 0.0
      %4704 = vmatpush1.msra.mxu0 0.0
      %4705 = vmatprep.subr.mxu0 0.0
      %4706 = vmatpush1.msra.mxu0 0.0
      %4707 = vmatprep.subr.mxu0 0.0
      %4708 = vmatpush1.msra.mxu0 0.0
      %4709 = vmatprep.subr.mxu0 0.0
      %4710 = vmatpush1.msra.mxu0 0.0
      %4711 = vmatprep.subr.mxu0 0.0
      %4712 = vmatpush1.msra.mxu0 0.0
      %4713 = vmatprep.subr.mxu0 0.0
      %4714 = vmatpush1.msra.mxu0 0.0
      %4715 = vmatprep.subr.mxu0 0.0
      %4716 = vmatpush1.msra.mxu0 0.0
      %4717 = vmatprep.subr.mxu0 0.0
      %4718 = vmatpush1.msra.mxu0 0.0
      %4719 = vmatprep.subr.mxu0 0.0
      %4720 = vmatpush1.msra.mxu0 0.0
      %4721 = vmatprep.subr.mxu0 0.0
      %4722 = vmatpush1.msra.mxu0 0.0
      %4723 = vmatprep.subr.mxu0 0.0
      %4724 = vmatpush1.msra.mxu0 0.0
      %4725 = vmatprep.subr.mxu0 0.0
      %4726 = vmatpush1.msra.mxu0 0.0
      %4727 = vmatprep.subr.mxu0 0.0
      %4728 = vmatpush1.msra.mxu0 0.0
      %4729 = vmatprep.subr.mxu0 0.0
      %4730 = vmatpush1.msra.mxu0 0.0
      %4731 = vmatprep.subr.mxu0 0.0
      %4732 = vmatpush1.msra.mxu0 0.0
      %4733 = vmatprep.subr.mxu0 0.0
      %4734 = vmatpush1.msra.mxu0 0.0
      %4735 = vmatprep.subr.mxu0 0.0
      %4736 = vmatpush1.msra.mxu0 0.0
      %4737 = vmatprep.subr.mxu0 0.0
      %4738 = vmatpush1.msra.mxu0 0.0
      %4739 = vmatprep.subr.mxu0 0.0
      %4740 = vmatpush1.msra.mxu0 0.0
      %4741 = vmatprep.subr.mxu0 0.0
      %4742 = vmatpush1.msra.mxu0 0.0
      %4743 = vmatprep.subr.mxu0 0.0
      %4744 = vmatpush1.msra.mxu0 0.0
      %4745 = vmatprep.subr.mxu0 0.0
      %4746 = vmatpush1.msra.mxu0 0.0
      %4747 = vmatprep.subr.mxu0 0.0
      %4748 = vmatpush1.msra.mxu0 0.0
      %4749 = vmatprep.mubr.f32.mxu0 0.0
      %4750 = vmatmul.mubr.f32.gmra.mrb[0].mxu0 %v4541
      %v4751 = vpop.f32.mrb[0].mxu0
      %v4752 = vadd.f32 %v3766, %v4751
      %v4753 = vpop.f32.mrb[0].mxu0
      %v4754 = vadd.f32 %v3768, %v4753
      %4755 = vdwg.mxu0
      %4756 = vmatprep.subr.mxu0 %v4388
      %4757 = vmatpush1.msra.mxu0 %v4387
      %4758 = vmatprep.subr.mxu0 %v4404
      %4759 = vmatpush1.msra.mxu0 %v4403
      %4760 = vmatprep.subr.mxu0 %v4420
      %4761 = vmatpush1.msra.mxu0 %v4419
      %4762 = vmatprep.subr.mxu0 %v4436
      %4763 = vmatpush1.msra.mxu0 %v4435
      %4764 = vmatprep.subr.mxu0 %v4452
      %4765 = vmatpush1.msra.mxu0 %v4451
      %4766 = vmatprep.subr.mxu0 0.0
      %4767 = vmatpush1.msra.mxu0 0.0
      %4768 = vmatprep.subr.mxu0 0.0
      %4769 = vmatpush1.msra.mxu0 0.0
      %4770 = vmatprep.subr.mxu0 0.0
      %4771 = vmatpush1.msra.mxu0 0.0
      %4772 = vmatprep.subr.mxu0 0.0
      %4773 = vmatpush1.msra.mxu0 0.0
      %4774 = vmatprep.subr.mxu0 0.0
      %4775 = vmatpush1.msra.mxu0 0.0
      %4776 = vmatprep.subr.mxu0 0.0
      %4777 = vmatpush1.msra.mxu0 0.0
      %4778 = vmatprep.subr.mxu0 0.0
      %4779 = vmatpush1.msra.mxu0 0.0
      %4780 = vmatprep.subr.mxu0 0.0
      %4781 = vmatpush1.msra.mxu0 0.0
      %4782 = vmatprep.subr.mxu0 0.0
      %4783 = vmatpush1.msra.mxu0 0.0
      %4784 = vmatprep.subr.mxu0 0.0
      %4785 = vmatpush1.msra.mxu0 0.0
      %4786 = vmatprep.subr.mxu0 0.0
      %4787 = vmatpush1.msra.mxu0 0.0
      %4788 = vmatprep.subr.mxu0 0.0
      %4789 = vmatpush1.msra.mxu0 0.0
      %4790 = vmatprep.subr.mxu0 0.0
      %4791 = vmatpush1.msra.mxu0 0.0
      %4792 = vmatprep.subr.mxu0 0.0
      %4793 = vmatpush1.msra.mxu0 0.0
      %4794 = vmatprep.subr.mxu0 0.0
      %4795 = vmatpush1.msra.mxu0 0.0
      %4796 = vmatprep.subr.mxu0 0.0
      %4797 = vmatpush1.msra.mxu0 0.0
      %4798 = vmatprep.subr.mxu0 0.0
      %4799 = vmatpush1.msra.mxu0 0.0
      %4800 = vmatprep.subr.mxu0 0.0
      %4801 = vmatpush1.msra.mxu0 0.0
      %4802 = vmatprep.subr.mxu0 0.0
      %4803 = vmatpush1.msra.mxu0 0.0
      %4804 = vmatprep.subr.mxu0 0.0
      %4805 = vmatpush1.msra.mxu0 0.0
      %4806 = vmatprep.subr.mxu0 0.0
      %4807 = vmatpush1.msra.mxu0 0.0
      %4808 = vmatprep.subr.mxu0 0.0
      %4809 = vmatpush1.msra.mxu0 0.0
      %4810 = vmatprep.subr.mxu0 0.0
      %4811 = vmatpush1.msra.mxu0 0.0
      %4812 = vmatprep.subr.mxu0 0.0
      %4813 = vmatpush1.msra.mxu0 0.0
      %4814 = vmatprep.subr.mxu0 0.0
      %4815 = vmatpush1.msra.mxu0 0.0
      %4816 = vmatprep.subr.mxu0 0.0
      %4817 = vmatpush1.msra.mxu0 0.0
      %4818 = vmatprep.subr.mxu0 0.0
      %4819 = vmatpush1.msra.mxu0 0.0
      %4820 = vmatprep.mubr.f32.mxu0 0.0
      %4821 = vmatmul.mubr.f32.gmra.mrb[0].mxu0 %v4541
      %v4822 = vpop.f32.mrb[0].mxu0
      %v4823 = vadd.f32 %v3837, %v4822
      %v4824 = vpop.f32.mrb[0].mxu0
      %v4825 = vadd.f32 %v3839, %v4824
      %4826 = vdwg.mxu0
      %4827 = vmatprep.subr.mxu0 %v4390
      %4828 = vmatpush1.msra.mxu0 %v4389
      %4829 = vmatprep.subr.mxu0 %v4406
      %4830 = vmatpush1.msra.mxu0 %v4405
      %4831 = vmatprep.subr.mxu0 %v4422
      %4832 = vmatpush1.msra.mxu0 %v4421
      %4833 = vmatprep.subr.mxu0 %v4438
      %4834 = vmatpush1.msra.mxu0 %v4437
      %4835 = vmatprep.subr.mxu0 %v4454
      %4836 = vmatpush1.msra.mxu0 %v4453
      %4837 = vmatprep.subr.mxu0 0.0
      %4838 = vmatpush1.msra.mxu0 0.0
      %4839 = vmatprep.subr.mxu0 0.0
      %4840 = vmatpush1.msra.mxu0 0.0
      %4841 = vmatprep.subr.mxu0 0.0
      %4842 = vmatpush1.msra.mxu0 0.0
      %4843 = vmatprep.subr.mxu0 0.0
      %4844 = vmatpush1.msra.mxu0 0.0
      %4845 = vmatprep.subr.mxu0 0.0
      %4846 = vmatpush1.msra.mxu0 0.0
      %4847 = vmatprep.subr.mxu0 0.0
      %4848 = vmatpush1.msra.mxu0 0.0
      %4849 = vmatprep.subr.mxu0 0.0
      %4850 = vmatpush1.msra.mxu0 0.0
      %4851 = vmatprep.subr.mxu0 0.0
      %4852 = vmatpush1.msra.mxu0 0.0
      %4853 = vmatprep.subr.mxu0 0.0
      %4854 = vmatpush1.msra.mxu0 0.0
      %4855 = vmatprep.subr.mxu0 0.0
      %4856 = vmatpush1.msra.mxu0 0.0
      %4857 = vmatprep.subr.mxu0 0.0
      %4858 = vmatpush1.msra.mxu0 0.0
      %4859 = vmatprep.subr.mxu0 0.0
      %4860 = vmatpush1.msra.mxu0 0.0
      %4861 = vmatprep.subr.mxu0 0.0
      %4862 = vmatpush1.msra.mxu0 0.0
      %4863 = vmatprep.subr.mxu0 0.0
      %4864 = vmatpush1.msra.mxu0 0.0
      %4865 = vmatprep.subr.mxu0 0.0
      %4866 = vmatpush1.msra.mxu0 0.0
      %4867 = vmatprep.subr.mxu0 0.0
      %4868 = vmatpush1.msra.mxu0 0.0
      %4869 = vmatprep.subr.mxu0 0.0
      %4870 = vmatpush1.msra.mxu0 0.0
      %4871 = vmatprep.subr.mxu0 0.0
      %4872 = vmatpush1.msra.mxu0 0.0
      %4873 = vmatprep.subr.mxu0 0.0
      %4874 = vmatpush1.msra.mxu0 0.0
      %4875 = vmatprep.subr.mxu0 0.0
      %4876 = vmatpush1.msra.mxu0 0.0
      %4877 = vmatprep.subr.mxu0 0.0
      %4878 = vmatpush1.msra.mxu0 0.0
      %4879 = vmatprep.subr.mxu0 0.0
      %4880 = vmatpush1.msra.mxu0 0.0
      %4881 = vmatprep.subr.mxu0 0.0
      %4882 = vmatpush1.msra.mxu0 0.0
      %4883 = vmatprep.subr.mxu0 0.0
      %4884 = vmatpush1.msra.mxu0 0.0
      %4885 = vmatprep.subr.mxu0 0.0
      %4886 = vmatpush1.msra.mxu0 0.0
      %4887 = vmatprep.subr.mxu0 0.0
      %4888 = vmatpush1.msra.mxu0 0.0
      %4889 = vmatprep.subr.mxu0 0.0
      %4890 = vmatpush1.msra.mxu0 0.0
      %4891 = vmatprep.mubr.f32.mxu0 0.0
      %4892 = vmatmul.mubr.f32.gmra.mrb[0].mxu0 %v4541
      %v4893 = vpop.f32.mrb[0].mxu0
      %v4894 = vadd.f32 %v3908, %v4893
      %v4895 = vpop.f32.mrb[0].mxu0
      %v4896 = vadd.f32 %v3910, %v4895
      %4897 = vdwg.mxu0
      %4898 = vmatprep.subr.mxu0 %v4392
      %4899 = vmatpush1.msra.mxu0 %v4391
      %4900 = vmatprep.subr.mxu0 %v4408
      %4901 = vmatpush1.msra.mxu0 %v4407
      %4902 = vmatprep.subr.mxu0 %v4424
      %4903 = vmatpush1.msra.mxu0 %v4423
      %4904 = vmatprep.subr.mxu0 %v4440
      %4905 = vmatpush1.msra.mxu0 %v4439
      %4906 = vmatprep.subr.mxu0 %v4456
      %4907 = vmatpush1.msra.mxu0 %v4455
      %4908 = vmatprep.subr.mxu0 0.0
      %4909 = vmatpush1.msra.mxu0 0.0
      %4910 = vmatprep.subr.mxu0 0.0
      %4911 = vmatpush1.msra.mxu0 0.0
      %4912 = vmatprep.subr.mxu0 0.0
      %4913 = vmatpush1.msra.mxu0 0.0
      %4914 = vmatprep.subr.mxu0 0.0
      %4915 = vmatpush1.msra.mxu0 0.0
      %4916 = vmatprep.subr.mxu0 0.0
      %4917 = vmatpush1.msra.mxu0 0.0
      %4918 = vmatprep.subr.mxu0 0.0
      %4919 = vmatpush1.msra.mxu0 0.0
      %4920 = vmatprep.subr.mxu0 0.0
      %4921 = vmatpush1.msra.mxu0 0.0
      %4922 = vmatprep.subr.mxu0 0.0
      %4923 = vmatpush1.msra.mxu0 0.0
      %4924 = vmatprep.subr.mxu0 0.0
      %4925 = vmatpush1.msra.mxu0 0.0
      %4926 = vmatprep.subr.mxu0 0.0
      %4927 = vmatpush1.msra.mxu0 0.0
      %4928 = vmatprep.subr.mxu0 0.0
      %4929 = vmatpush1.msra.mxu0 0.0
      %4930 = vmatprep.subr.mxu0 0.0
      %4931 = vmatpush1.msra.mxu0 0.0
      %4932 = vmatprep.subr.mxu0 0.0
      %4933 = vmatpush1.msra.mxu0 0.0
      %4934 = vmatprep.subr.mxu0 0.0
      %4935 = vmatpush1.msra.mxu0 0.0
      %4936 = vmatprep.subr.mxu0 0.0
      %4937 = vmatpush1.msra.mxu0 0.0
      %4938 = vmatprep.subr.mxu0 0.0
      %4939 = vmatpush1.msra.mxu0 0.0
      %4940 = vmatprep.subr.mxu0 0.0
      %4941 = vmatpush1.msra.mxu0 0.0
      %4942 = vmatprep.subr.mxu0 0.0
      %4943 = vmatpush1.msra.mxu0 0.0
      %4944 = vmatprep.subr.mxu0 0.0
      %4945 = vmatpush1.msra.mxu0 0.0
      %4946 = vmatprep.subr.mxu0 0.0
      %4947 = vmatpush1.msra.mxu0 0.0
      %4948 = vmatprep.subr.mxu0 0.0
      %4949 = vmatpush1.msra.mxu0 0.0
      %4950 = vmatprep.subr.mxu0 0.0
      %4951 = vmatpush1.msra.mxu0 0.0
      %4952 = vmatprep.subr.mxu0 0.0
      %4953 = vmatpush1.msra.mxu0 0.0
      %4954 = vmatprep.subr.mxu0 0.0
      %4955 = vmatpush1.msra.mxu0 0.0
      %4956 = vmatprep.subr.mxu0 0.0
      %4957 = vmatpush1.msra.mxu0 0.0
      %4958 = vmatprep.subr.mxu0 0.0
      %4959 = vmatpush1.msra.mxu0 0.0
      %4960 = vmatprep.subr.mxu0 0.0
      %4961 = vmatpush1.msra.mxu0 0.0
      %4962 = vmatprep.mubr.f32.mxu0 0.0
      %4963 = vmatmul.mubr.f32.gmra.mrb[0].mxu0 %v4541
      %v4964 = vpop.f32.mrb[0].mxu0
      %v4965 = vadd.f32 %v3979, %v4964
      %v4966 = vpop.f32.mrb[0].mxu0
      %v4967 = vadd.f32 %v3981, %v4966
      %4968 = vdwg.mxu0
      %4969 = vmatprep.subr.mxu0 %v4394
      %4970 = vmatpush1.msra.mxu0 %v4393
      %4971 = vmatprep.subr.mxu0 %v4410
      %4972 = vmatpush1.msra.mxu0 %v4409
      %4973 = vmatprep.subr.mxu0 %v4426
      %4974 = vmatpush1.msra.mxu0 %v4425
      %4975 = vmatprep.subr.mxu0 %v4442
      %4976 = vmatpush1.msra.mxu0 %v4441
      %4977 = vmatprep.subr.mxu0 %v4458
      %4978 = vmatpush1.msra.mxu0 %v4457
      %4979 = vmatprep.subr.mxu0 0.0
      %4980 = vmatpush1.msra.mxu0 0.0
      %4981 = vmatprep.subr.mxu0 0.0
      %4982 = vmatpush1.msra.mxu0 0.0
      %4983 = vmatprep.subr.mxu0 0.0
      %4984 = vmatpush1.msra.mxu0 0.0
      %4985 = vmatprep.subr.mxu0 0.0
      %4986 = vmatpush1.msra.mxu0 0.0
      %4987 = vmatprep.subr.mxu0 0.0
      %4988 = vmatpush1.msra.mxu0 0.0
      %4989 = vmatprep.subr.mxu0 0.0
      %4990 = vmatpush1.msra.mxu0 0.0
      %4991 = vmatprep.subr.mxu0 0.0
      %4992 = vmatpush1.msra.mxu0 0.0
      %4993 = vmatprep.subr.mxu0 0.0
      %4994 = vmatpush1.msra.mxu0 0.0
      %4995 = vmatprep.subr.mxu0 0.0
      %4996 = vmatpush1.msra.mxu0 0.0
      %4997 = vmatprep.subr.mxu0 0.0
      %4998 = vmatpush1.msra.mxu0 0.0
      %4999 = vmatprep.subr.mxu0 0.0
      %5000 = vmatpush1.msra.mxu0 0.0
      %5001 = vmatprep.subr.mxu0 0.0
      %5002 = vmatpush1.msra.mxu0 0.0
      %5003 = vmatprep.subr.mxu0 0.0
      %5004 = vmatpush1.msra.mxu0 0.0
      %5005 = vmatprep.subr.mxu0 0.0
      %5006 = vmatpush1.msra.mxu0 0.0
      %5007 = vmatprep.subr.mxu0 0.0
      %5008 = vmatpush1.msra.mxu0 0.0
      %5009 = vmatprep.subr.mxu0 0.0
      %5010 = vmatpush1.msra.mxu0 0.0
      %5011 = vmatprep.subr.mxu0 0.0
      %5012 = vmatpush1.msra.mxu0 0.0
      %5013 = vmatprep.subr.mxu0 0.0
      %5014 = vmatpush1.msra.mxu0 0.0
      %5015 = vmatprep.subr.mxu0 0.0
      %5016 = vmatpush1.msra.mxu0 0.0
      %5017 = vmatprep.subr.mxu0 0.0
      %5018 = vmatpush1.msra.mxu0 0.0
      %5019 = vmatprep.subr.mxu0 0.0
      %5020 = vmatpush1.msra.mxu0 0.0
      %5021 = vmatprep.subr.mxu0 0.0
      %5022 = vmatpush1.msra.mxu0 0.0
      %5023 = vmatprep.subr.mxu0 0.0
      %5024 = vmatpush1.msra.mxu0 0.0
      %5025 = vmatprep.subr.mxu0 0.0
      %5026 = vmatpush1.msra.mxu0 0.0
      %5027 = vmatprep.subr.mxu0 0.0
      %5028 = vmatpush1.msra.mxu0 0.0
      %5029 = vmatprep.subr.mxu0 0.0
      %5030 = vmatpush1.msra.mxu0 0.0
      %5031 = vmatprep.subr.mxu0 0.0
      %5032 = vmatpush1.msra.mxu0 0.0
      %5033 = vmatprep.mubr.f32.mxu0 0.0
      %5034 = vmatmul.mubr.f32.gmra.mrb[0].mxu0 %v4541
      %v5035 = vpop.f32.mrb[0].mxu0
      %v5036 = vadd.f32 %v4050, %v5035
      %v5037 = vpop.f32.mrb[0].mxu0
      %v5038 = vadd.f32 %v4052, %v5037
      %5039 = vdwg.mxu0
      %5040 = vmatprep.subr.mxu0 %v4396
      %5041 = vmatpush1.msra.mxu0 %v4395
      %5042 = vmatprep.subr.mxu0 %v4412
      %5043 = vmatpush1.msra.mxu0 %v4411
      %5044 = vmatprep.subr.mxu0 %v4428
      %5045 = vmatpush1.msra.mxu0 %v4427
      %5046 = vmatprep.subr.mxu0 %v4444
      %5047 = vmatpush1.msra.mxu0 %v4443
      %5048 = vmatprep.subr.mxu0 %v4460
      %5049 = vmatpush1.msra.mxu0 %v4459
      %5050 = vmatprep.subr.mxu0 0.0
      %5051 = vmatpush1.msra.mxu0 0.0
      %5052 = vmatprep.subr.mxu0 0.0
      %5053 = vmatpush1.msra.mxu0 0.0
      %5054 = vmatprep.subr.mxu0 0.0
      %5055 = vmatpush1.msra.mxu0 0.0
      %5056 = vmatprep.subr.mxu0 0.0
      %5057 = vmatpush1.msra.mxu0 0.0
      %5058 = vmatprep.subr.mxu0 0.0
      %5059 = vmatpush1.msra.mxu0 0.0
      %5060 = vmatprep.subr.mxu0 0.0
      %5061 = vmatpush1.msra.mxu0 0.0
      %5062 = vmatprep.subr.mxu0 0.0
      %5063 = vmatpush1.msra.mxu0 0.0
      %5064 = vmatprep.subr.mxu0 0.0
      %5065 = vmatpush1.msra.mxu0 0.0
      %5066 = vmatprep.subr.mxu0 0.0
      %5067 = vmatpush1.msra.mxu0 0.0
      %5068 = vmatprep.subr.mxu0 0.0
      %5069 = vmatpush1.msra.mxu0 0.0
      %5070 = vmatprep.subr.mxu0 0.0
      %5071 = vmatpush1.msra.mxu0 0.0
      %5072 = vmatprep.subr.mxu0 0.0
      %5073 = vmatpush1.msra.mxu0 0.0
      %5074 = vmatprep.subr.mxu0 0.0
      %5075 = vmatpush1.msra.mxu0 0.0
      %5076 = vmatprep.subr.mxu0 0.0
      %5077 = vmatpush1.msra.mxu0 0.0
      %5078 = vmatprep.subr.mxu0 0.0
      %5079 = vmatpush1.msra.mxu0 0.0
      %5080 = vmatprep.subr.mxu0 0.0
      %5081 = vmatpush1.msra.mxu0 0.0
      %5082 = vmatprep.subr.mxu0 0.0
      %5083 = vmatpush1.msra.mxu0 0.0
      %5084 = vmatprep.subr.mxu0 0.0
      %5085 = vmatpush1.msra.mxu0 0.0
      %5086 = vmatprep.subr.mxu0 0.0
      %5087 = vmatpush1.msra.mxu0 0.0
      %5088 = vmatprep.subr.mxu0 0.0
      %5089 = vmatpush1.msra.mxu0 0.0
      %5090 = vmatprep.subr.mxu0 0.0
      %5091 = vmatpush1.msra.mxu0 0.0
      %5092 = vmatprep.subr.mxu0 0.0
      %5093 = vmatpush1.msra.mxu0 0.0
      %5094 = vmatprep.subr.mxu0 0.0
      %5095 = vmatpush1.msra.mxu0 0.0
      %5096 = vmatprep.subr.mxu0 0.0
      %5097 = vmatpush1.msra.mxu0 0.0
      %5098 = vmatprep.subr.mxu0 0.0
      %5099 = vmatpush1.msra.mxu0 0.0
      %5100 = vmatprep.subr.mxu0 0.0
      %5101 = vmatpush1.msra.mxu0 0.0
      %5102 = vmatprep.subr.mxu0 0.0
      %5103 = vmatpush1.msra.mxu0 0.0
      %5104 = vmatprep.mubr.f32.mxu0 0.0
      %5105 = vmatmul.mubr.f32.gmra.mrb[0].mxu0 %v4541
      %v5106 = vpop.f32.mrb[0].mxu0
      %v5107 = vadd.f32 %v4121, %v5106
      %v5108 = vpop.f32.mrb[0].mxu0
      %v5109 = vadd.f32 %v4123, %v5108
      %5110 = vdwg.mxu0
      %v5111 = vld [vmem:[#allocation3 + $0x8] sm:$0xff]
      %v5112 = vld [vmem:[#allocation3 + $0x10] sm:$0xff]
      %v5113 = vld [vmem:[#allocation3 + $0x18] sm:$0xff]
      %v5114 = vld [vmem:[#allocation3 + $0x20] sm:$0xff]
      %v5115 = vld [vmem:[#allocation3 + $0x28] sm:$0xff]
      %v5116 = vld [vmem:[#allocation3 + $0x30] sm:$0xff]
      %v5117 = vld [vmem:[#allocation3 + $0x38] sm:$0xff]
      %v5118 = vld [vmem:[#allocation3 + $0x40] sm:$0xff]
      %v5119 = vld [vmem:[#allocation3 + $0x48] sm:$0xff]
      %v5120 = vld [vmem:[#allocation3 + $0x50] sm:$0xff]
      %v5121 = vld [vmem:[#allocation3 + $0x58] sm:$0xff]
      %v5122 = vld [vmem:[#allocation3 + $0x60] sm:$0xff]
      %v5123 = vld [vmem:[#allocation3 + $0x68] sm:$0xff]
      %v5124 = vld [vmem:[#allocation3 + $0x70] sm:$0xff]
      %v5125 = vld [vmem:[#allocation3 + $0x78] sm:$0xff]
      %v5126 = vld [vmem:[#allocation3 + $0x80] sm:$0xff]
      %v5127 = vld [vmem:[#allocation3 + $0x88] sm:$0xff]
      %v5128 = vld [vmem:[#allocation3 + $0xa8] sm:$0xff]
      %v5129 = vld [vmem:[#allocation3 + $0xb0] sm:$0xff]
      %v5130 = vld [vmem:[#allocation3 + $0xb8] sm:$0xff]
      %v5131 = vld [vmem:[#allocation3 + $0xc0] sm:$0xff]
      %v5132 = vld [vmem:[#allocation3 + $0xc8] sm:$0xff]
      %v5133 = vld [vmem:[#allocation3 + $0xd0] sm:$0xff]
      %v5134 = vld [vmem:[#allocation3 + $0xd8] sm:$0xff]
      %v5135 = vld [vmem:[#allocation3 + $0xe0] sm:$0xff]
      %v5136 = vld [vmem:[#allocation3 + $0xe8] sm:$0xff]
      %v5137 = vld [vmem:[#allocation3 + $0xf0] sm:$0xff]
      %v5138 = vld [vmem:[#allocation3 + $0xf8] sm:$0xff]
      %v5139 = vld [vmem:[#allocation3 + $0x100] sm:$0xff]
      %v5140 = vld [vmem:[#allocation3 + $0x108] sm:$0xff]
      %v5141 = vld [vmem:[#allocation3 + $0x110] sm:$0xff]
      %v5142 = vld [vmem:[#allocation3 + $0x118] sm:$0xff]
      %v5143 = vld [vmem:[#allocation3 + $0x120] sm:$0xff]
      %v5144 = vld [vmem:[#allocation3 + $0x128] sm:$0xff]
      %v5145 = vld [vmem:[#allocation3 + $0x148] sm:$0xff]
      %v5146 = vld [vmem:[#allocation3 + $0x150] sm:$0xff]
      %v5147 = vld [vmem:[#allocation3 + $0x158] sm:$0xff]
      %v5148 = vld [vmem:[#allocation3 + $0x160] sm:$0xff]
      %v5149 = vld [vmem:[#allocation3 + $0x168] sm:$0xff]
      %v5150 = vld [vmem:[#allocation3 + $0x170] sm:$0xff]
      %v5151 = vld [vmem:[#allocation3 + $0x178] sm:$0xff]
      %v5152 = vld [vmem:[#allocation3 + $0x180] sm:$0xff]
      %v5153 = vld [vmem:[#allocation3 + $0x188] sm:$0xff]
      %v5154 = vld [vmem:[#allocation3 + $0x190] sm:$0xff]
      %v5155 = vld [vmem:[#allocation3 + $0x198] sm:$0xff]
      %v5156 = vld [vmem:[#allocation3 + $0x1a0] sm:$0xff]
      %v5157 = vld [vmem:[#allocation3 + $0x1a8] sm:$0xff]
      %v5158 = vld [vmem:[#allocation3 + $0x1b0] sm:$0xff]
      %v5159 = vld [vmem:[#allocation3 + $0x1b8] sm:$0xff]
      %v5160 = vld [vmem:[#allocation3 + $0x1c0] sm:$0xff]
      %v5161 = vld [vmem:[#allocation3 + $0x1c8] sm:$0xff]
      %v5162 = vld [vmem:[#allocation3 + $0x1e8] sm:$0xff]
      %v5163 = vld [vmem:[#allocation3 + $0x1f0] sm:$0xff]
      %v5164 = vld [vmem:[#allocation3 + $0x1f8] sm:$0xff]
      %v5165 = vld [vmem:[#allocation3 + $0x200] sm:$0xff]
      %v5166 = vld [vmem:[#allocation3 + $0x208] sm:$0xff]
      %v5167 = vld [vmem:[#allocation3 + $0x210] sm:$0xff]
      %v5168 = vld [vmem:[#allocation3 + $0x218] sm:$0xff]
      %v5169 = vld [vmem:[#allocation3 + $0x220] sm:$0xff]
      %v5170 = vld [vmem:[#allocation3 + $0x228] sm:$0xff]
      %v5171 = vld [vmem:[#allocation3 + $0x230] sm:$0xff]
      %v5172 = vld [vmem:[#allocation3 + $0x238] sm:$0xff]
      %v5173 = vld [vmem:[#allocation3 + $0x240] sm:$0xff]
      %v5174 = vld [vmem:[#allocation3 + $0x248] sm:$0xff]
      %v5175 = vld [vmem:[#allocation3 + $0x250] sm:$0xff]
      %v5176 = vld [vmem:[#allocation3 + $0x258] sm:$0xff]
      %v5177 = vld [vmem:[#allocation3 + $0x260] sm:$0xff]
      %v5178 = vld [vmem:[#allocation3 + $0x268] sm:$0xff]
      %v5179 = vld [vmem:[#allocation3 + $0x288] sm:$0xff]
      %v5180 = vld [vmem:[#allocation3 + $0x290] sm:$0xff]
      %v5181 = vld [vmem:[#allocation3 + $0x298] sm:$0xff]
      %v5182 = vld [vmem:[#allocation3 + $0x2a0] sm:$0xff]
      %v5183 = vld [vmem:[#allocation3 + $0x2a8] sm:$0xff]
      %v5184 = vld [vmem:[#allocation3 + $0x2b0] sm:$0xff]
      %v5185 = vld [vmem:[#allocation3 + $0x2b8] sm:$0xff]
      %v5186 = vld [vmem:[#allocation3 + $0x2c0] sm:$0xff]
      %v5187 = vld [vmem:[#allocation3 + $0x2c8] sm:$0xff]
      %v5188 = vld [vmem:[#allocation3 + $0x2d0] sm:$0xff]
      %v5189 = vld [vmem:[#allocation3 + $0x2d8] sm:$0xff]
      %v5190 = vld [vmem:[#allocation3 + $0x2e0] sm:$0xff]
      %v5191 = vld [vmem:[#allocation3 + $0x2e8] sm:$0xff]
      %v5192 = vld [vmem:[#allocation3 + $0x2f0] sm:$0xff]
      %v5193 = vld [vmem:[#allocation3 + $0x2f8] sm:$0xff]
      %v5194 = vld [vmem:[#allocation3 + $0x300] sm:$0xff]
      %v5195 = vld [vmem:[#allocation3 + $0x308] sm:$0xff]
      %5196 = vrot.lane.b32.xlu0 %v3465, 48
      %v5197 = vpop.permute.xlu0 %5196
      %5283 = vrot.lane.b32.xlu0 %v5111, 127
      %v5284 = vpop.permute.xlu0 %5283
      %5285 = vrot.lane.b32.xlu0 %v5112, 127
      %v5286 = vpop.permute.xlu0 %5285
      %5287 = vrot.lane.b32.xlu0 %v5113, 127
      %v5288 = vpop.permute.xlu0 %5287
      %5289 = vrot.lane.b32.xlu0 %v5114, 127
      %v5290 = vpop.permute.xlu0 %5289
      %5291 = vrot.lane.b32.xlu0 %v5115, 127
      %v5292 = vpop.permute.xlu0 %5291
      %5293 = vrot.lane.b32.xlu0 %v5116, 127
      %v5294 = vpop.permute.xlu0 %5293
      %5295 = vrot.lane.b32.xlu0 %v5117, 127
      %v5296 = vpop.permute.xlu0 %5295
      %5297 = vrot.lane.b32.xlu0 %v5118, 127
      %v5298 = vpop.permute.xlu0 %5297
      %5299 = vrot.lane.b32.xlu0 %v5119, 127
      %v5300 = vpop.permute.xlu0 %5299
      %5301 = vrot.lane.b32.xlu0 %v5120, 127
      %v5302 = vpop.permute.xlu0 %5301
      %5303 = vrot.lane.b32.xlu0 %v5121, 127
      %v5304 = vpop.permute.xlu0 %5303
      %5305 = vrot.lane.b32.xlu0 %v5122, 127
      %v5306 = vpop.permute.xlu0 %5305
      %5307 = vrot.lane.b32.xlu0 %v5123, 127
      %v5308 = vpop.permute.xlu0 %5307
      %5309 = vrot.lane.b32.xlu0 %v5124, 127
      %v5310 = vpop.permute.xlu0 %5309
      %5311 = vrot.lane.b32.xlu0 %v5125, 127
      %v5312 = vpop.permute.xlu0 %5311
      %5313 = vrot.lane.b32.xlu0 %v5126, 127
      %v5314 = vpop.permute.xlu0 %5313
      %5315 = vrot.lane.b32.xlu0 %v5127, 127
      %v5316 = vpop.permute.xlu0 %5315
      %5317 = vrot.lane.b32.xlu0 %v5128, 127
      %v5318 = vpop.permute.xlu0 %5317
      %5319 = vrot.lane.b32.xlu0 %v5129, 127
      %v5320 = vpop.permute.xlu0 %5319
      %5321 = vrot.lane.b32.xlu0 %v5130, 127
      %v5322 = vpop.permute.xlu0 %5321
      %5323 = vrot.lane.b32.xlu0 %v5131, 127
      %v5324 = vpop.permute.xlu0 %5323
      %5325 = vrot.lane.b32.xlu0 %v5132, 127
      %v5326 = vpop.permute.xlu0 %5325
      %5327 = vrot.lane.b32.xlu0 %v5133, 127
      %v5328 = vpop.permute.xlu0 %5327
      %5329 = vrot.lane.b32.xlu0 %v5134, 127
      %v5330 = vpop.permute.xlu0 %5329
      %5331 = vrot.lane.b32.xlu0 %v5135, 127
      %v5332 = vpop.permute.xlu0 %5331
      %5333 = vrot.lane.b32.xlu0 %v5136, 127
      %v5334 = vpop.permute.xlu0 %5333
      %5335 = vrot.lane.b32.xlu0 %v5137, 127
      %v5336 = vpop.permute.xlu0 %5335
      %5337 = vrot.lane.b32.xlu0 %v5138, 127
      %v5338 = vpop.permute.xlu0 %5337
      %5339 = vrot.lane.b32.xlu0 %v5139, 127
      %v5340 = vpop.permute.xlu0 %5339
      %5341 = vrot.lane.b32.xlu0 %v5140, 127
      %v5342 = vpop.permute.xlu0 %5341
      %5343 = vrot.lane.b32.xlu0 %v5141, 127
      %v5344 = vpop.permute.xlu0 %5343
      %5345 = vrot.lane.b32.xlu0 %v5142, 127
      %v5346 = vpop.permute.xlu0 %5345
      %5347 = vrot.lane.b32.xlu0 %v5143, 127
      %v5348 = vpop.permute.xlu0 %5347
      %5349 = vrot.lane.b32.xlu0 %v5144, 127
      %v5350 = vpop.permute.xlu0 %5349
      %5351 = vrot.lane.b32.xlu0 %v5145, 127
      %v5352 = vpop.permute.xlu0 %5351
      %5353 = vrot.lane.b32.xlu0 %v5146, 127
      %v5354 = vpop.permute.xlu0 %5353
      %5355 = vrot.lane.b32.xlu0 %v5147, 127
      %v5356 = vpop.permute.xlu0 %5355
      %5357 = vrot.lane.b32.xlu0 %v5148, 127
      %v5358 = vpop.permute.xlu0 %5357
      %5359 = vrot.lane.b32.xlu0 %v5149, 127
      %v5360 = vpop.permute.xlu0 %5359
      %5361 = vrot.lane.b32.xlu0 %v5150, 127
      %v5362 = vpop.permute.xlu0 %5361
      %5363 = vrot.lane.b32.xlu0 %v5151, 127
      %v5364 = vpop.permute.xlu0 %5363
      %5365 = vrot.lane.b32.xlu0 %v5152, 127
      %v5366 = vpop.permute.xlu0 %5365
      %5367 = vrot.lane.b32.xlu0 %v5153, 127
      %v5368 = vpop.permute.xlu0 %5367
      %5369 = vrot.lane.b32.xlu0 %v5154, 127
      %v5370 = vpop.permute.xlu0 %5369
      %5371 = vrot.lane.b32.xlu0 %v5155, 127
      %v5372 = vpop.permute.xlu0 %5371
      %5373 = vrot.lane.b32.xlu0 %v5156, 127
      %v5374 = vpop.permute.xlu0 %5373
      %5375 = vrot.lane.b32.xlu0 %v5157, 127
      %v5376 = vpop.permute.xlu0 %5375
      %5377 = vrot.lane.b32.xlu0 %v5158, 127
      %v5378 = vpop.permute.xlu0 %5377
      %5379 = vrot.lane.b32.xlu0 %v5159, 127
      %v5380 = vpop.permute.xlu0 %5379
      %5381 = vrot.lane.b32.xlu0 %v5160, 127
      %v5382 = vpop.permute.xlu0 %5381
      %5383 = vrot.lane.b32.xlu0 %v5161, 127
      %v5384 = vpop.permute.xlu0 %5383
      %5385 = vrot.lane.b32.xlu0 %v5162, 127
      %v5386 = vpop.permute.xlu0 %5385
      %5387 = vrot.lane.b32.xlu0 %v5163, 127
      %v5388 = vpop.permute.xlu0 %5387
      %5389 = vrot.lane.b32.xlu0 %v5164, 127
      %v5390 = vpop.permute.xlu0 %5389
      %5391 = vrot.lane.b32.xlu0 %v5165, 127
      %v5392 = vpop.permute.xlu0 %5391
      %5393 = vrot.lane.b32.xlu0 %v5166, 127
      %v5394 = vpop.permute.xlu0 %5393
      %5395 = vrot.lane.b32.xlu0 %v5167, 127
      %v5396 = vpop.permute.xlu0 %5395
      %5397 = vrot.lane.b32.xlu0 %v5168, 127
      %v5398 = vpop.permute.xlu0 %5397
      %5399 = vrot.lane.b32.xlu0 %v5169, 127
      %v5400 = vpop.permute.xlu0 %5399
      %5401 = vrot.lane.b32.xlu0 %v5170, 127
      %v5402 = vpop.permute.xlu0 %5401
      %5403 = vrot.lane.b32.xlu0 %v5171, 127
      %v5404 = vpop.permute.xlu0 %5403
      %5405 = vrot.lane.b32.xlu0 %v5172, 127
      %v5406 = vpop.permute.xlu0 %5405
      %5407 = vrot.lane.b32.xlu0 %v5173, 127
      %v5408 = vpop.permute.xlu0 %5407
      %5409 = vrot.lane.b32.xlu0 %v5174, 127
      %v5410 = vpop.permute.xlu0 %5409
      %5411 = vrot.lane.b32.xlu0 %v5175, 127
      %v5412 = vpop.permute.xlu0 %5411
      %5413 = vrot.lane.b32.xlu0 %v5176, 127
      %v5414 = vpop.permute.xlu0 %5413
      %5415 = vrot.lane.b32.xlu0 %v5177, 127
      %v5416 = vpop.permute.xlu0 %5415
      %5417 = vrot.lane.b32.xlu0 %v5178, 127
      %v5418 = vpop.permute.xlu0 %5417
      %5419 = vrot.lane.b32.xlu0 %v5179, 127
      %v5420 = vpop.permute.xlu0 %5419
      %5421 = vrot.lane.b32.xlu0 %v5180, 127
      %v5422 = vpop.permute.xlu0 %5421
      %5423 = vrot.lane.b32.xlu0 %v5181, 127
      %v5424 = vpop.permute.xlu0 %5423
      %5425 = vrot.lane.b32.xlu0 %v5182, 127
      %v5426 = vpop.permute.xlu0 %5425
      %5427 = vrot.lane.b32.xlu0 %v5183, 127
      %v5428 = vpop.permute.xlu0 %5427
      %5429 = vrot.lane.b32.xlu0 %v5184, 127
      %v5430 = vpop.permute.xlu0 %5429
      %5431 = vrot.lane.b32.xlu0 %v5185, 127
      %v5432 = vpop.permute.xlu0 %5431
      %5433 = vrot.lane.b32.xlu0 %v5186, 127
      %v5434 = vpop.permute.xlu0 %5433
      %5435 = vrot.lane.b32.xlu0 %v5187, 127
      %v5436 = vpop.permute.xlu0 %5435
      %5437 = vrot.lane.b32.xlu0 %v5188, 127
      %v5438 = vpop.permute.xlu0 %5437
      %5439 = vrot.lane.b32.xlu0 %v5189, 127
      %v5440 = vpop.permute.xlu0 %5439
      %5441 = vrot.lane.b32.xlu0 %v5190, 127
      %v5442 = vpop.permute.xlu0 %5441
      %5443 = vrot.lane.b32.xlu0 %v5191, 127
      %v5444 = vpop.permute.xlu0 %5443
      %5445 = vrot.lane.b32.xlu0 %v5192, 127
      %v5446 = vpop.permute.xlu0 %5445
      %5447 = vrot.lane.b32.xlu0 %v5193, 127
      %v5448 = vpop.permute.xlu0 %5447
      %5449 = vrot.lane.b32.xlu0 %v5194, 127
      %v5450 = vpop.permute.xlu0 %5449
      %5451 = vrot.lane.b32.xlu0 %v5195, 127
      %v5452 = vpop.permute.xlu0 %5451
      %vm5453 = vcmask 1039360
      %v5454 = vsel %vm5453, %v5284, %v5286
      %v5455 = vsel %vm5453, %v5286, %v5288
      %v5456 = vsel %vm5453, %v5288, %v5290
      %v5457 = vsel %vm5453, %v5290, %v5292
      %v5458 = vsel %vm5453, %v5292, %v5294
      %v5459 = vsel %vm5453, %v5294, %v5296
      %v5460 = vsel %vm5453, %v5296, %v5298
      %v5461 = vsel %vm5453, %v5298, %v5300
      %v5462 = vsel %vm5453, %v5300, %v5302
      %v5463 = vsel %vm5453, %v5302, %v5304
      %v5464 = vsel %vm5453, %v5304, %v5306
      %v5465 = vsel %vm5453, %v5306, %v5308
      %v5466 = vsel %vm5453, %v5308, %v5310
      %v5467 = vsel %vm5453, %v5310, %v5312
      %v5468 = vsel %vm5453, %v5312, %v5314
      %v5469 = vsel %vm5453, %v5314, %v5316
      %v5470 = vsel %vm5453, %v5318, %v5320
      %v5471 = vsel %vm5453, %v5320, %v5322
      %v5472 = vsel %vm5453, %v5322, %v5324
      %v5473 = vsel %vm5453, %v5324, %v5326
      %v5474 = vsel %vm5453, %v5326, %v5328
      %v5475 = vsel %vm5453, %v5328, %v5330
      %v5476 = vsel %vm5453, %v5330, %v5332
      %v5477 = vsel %vm5453, %v5332, %v5334
      %v5478 = vsel %vm5453, %v5334, %v5336
      %v5479 = vsel %vm5453, %v5336, %v5338
      %v5480 = vsel %vm5453, %v5338, %v5340
      %v5481 = vsel %vm5453, %v5340, %v5342
      %v5482 = vsel %vm5453, %v5342, %v5344
      %v5483 = vsel %vm5453, %v5344, %v5346
      %v5484 = vsel %vm5453, %v5346, %v5348
      %v5485 = vsel %vm5453, %v5348, %v5350
      %v5486 = vsel %vm5453, %v5352, %v5354
      %v5487 = vsel %vm5453, %v5354, %v5356
      %v5488 = vsel %vm5453, %v5356, %v5358
      %v5489 = vsel %vm5453, %v5358, %v5360
      %v5490 = vsel %vm5453, %v5360, %v5362
      %v5491 = vsel %vm5453, %v5362, %v5364
      %v5492 = vsel %vm5453, %v5364, %v5366
      %v5493 = vsel %vm5453, %v5366, %v5368
      %v5494 = vsel %vm5453, %v5368, %v5370
      %v5495 = vsel %vm5453, %v5370, %v5372
      %v5496 = vsel %vm5453, %v5372, %v5374
      %v5497 = vsel %vm5453, %v5374, %v5376
      %v5498 = vsel %vm5453, %v5376, %v5378
      %v5499 = vsel %vm5453, %v5378, %v5380
      %v5500 = vsel %vm5453, %v5380, %v5382
      %v5501 = vsel %vm5453, %v5382, %v5384
      %v5502 = vsel %vm5453, %v5386, %v5388
      %v5503 = vsel %vm5453, %v5388, %v5390
      %v5504 = vsel %vm5453, %v5390, %v5392
      %v5505 = vsel %vm5453, %v5392, %v5394
      %v5506 = vsel %vm5453, %v5394, %v5396
      %v5507 = vsel %vm5453, %v5396, %v5398
      %v5508 = vsel %vm5453, %v5398, %v5400
      %v5509 = vsel %vm5453, %v5400, %v5402
      %v5510 = vsel %vm5453, %v5402, %v5404
      %v5511 = vsel %vm5453, %v5404, %v5406
      %v5512 = vsel %vm5453, %v5406, %v5408
      %v5513 = vsel %vm5453, %v5408, %v5410
      %v5514 = vsel %vm5453, %v5410, %v5412
      %v5515 = vsel %vm5453, %v5412, %v5414
      %v5516 = vsel %vm5453, %v5414, %v5416
      %v5517 = vsel %vm5453, %v5416, %v5418
      %v5518 = vsel %vm5453, %v5420, %v5422
      %v5519 = vsel %vm5453, %v5422, %v5424
      %v5520 = vsel %vm5453, %v5424, %v5426
      %v5521 = vsel %vm5453, %v5426, %v5428
      %v5522 = vsel %vm5453, %v5428, %v5430
      %v5523 = vsel %vm5453, %v5430, %v5432
      %v5524 = vsel %vm5453, %v5432, %v5434
      %v5525 = vsel %vm5453, %v5434, %v5436
      %v5526 = vsel %vm5453, %v5436, %v5438
      %v5527 = vsel %vm5453, %v5438, %v5440
      %v5528 = vsel %vm5453, %v5440, %v5442
      %v5529 = vsel %vm5453, %v5442, %v5444
      %v5530 = vsel %vm5453, %v5444, %v5446
      %v5531 = vsel %vm5453, %v5446, %v5448
      %v5532 = vsel %vm5453, %v5448, %v5450
      %v5533 = vsel %vm5453, %v5450, %v5452
      %v5614 = vsel %vm3554, %v5197, 0
      %5616 = vmatprep.subr.mxu0 %v5455
      %5617 = vmatpush1.msra.mxu0 %v5454
      %5618 = vmatprep.subr.mxu0 %v5471
      %5619 = vmatpush1.msra.mxu0 %v5470
      %5620 = vmatprep.subr.mxu0 %v5487
      %5621 = vmatpush1.msra.mxu0 %v5486
      %5622 = vmatprep.subr.mxu0 %v5503
      %5623 = vmatpush1.msra.mxu0 %v5502
      %5624 = vmatprep.subr.mxu0 %v5519
      %5625 = vmatpush1.msra.mxu0 %v5518
      %5626 = vmatprep.subr.mxu0 0.0
      %5627 = vmatpush1.msra.mxu0 0.0
      %5628 = vmatprep.subr.mxu0 0.0
      %5629 = vmatpush1.msra.mxu0 0.0
      %5630 = vmatprep.subr.mxu0 0.0
      %5631 = vmatpush1.msra.mxu0 0.0
      %5632 = vmatprep.subr.mxu0 0.0
      %5633 = vmatpush1.msra.mxu0 0.0
      %5634 = vmatprep.subr.mxu0 0.0
      %5635 = vmatpush1.msra.mxu0 0.0
      %5636 = vmatprep.subr.mxu0 0.0
      %5637 = vmatpush1.msra.mxu0 0.0
      %5638 = vmatprep.subr.mxu0 0.0
      %5639 = vmatpush1.msra.mxu0 0.0
      %5640 = vmatprep.subr.mxu0 0.0
      %5641 = vmatpush1.msra.mxu0 0.0
      %5642 = vmatprep.subr.mxu0 0.0
      %5643 = vmatpush1.msra.mxu0 0.0
      %5644 = vmatprep.subr.mxu0 0.0
      %5645 = vmatpush1.msra.mxu0 0.0
      %5646 = vmatprep.subr.mxu0 0.0
      %5647 = vmatpush1.msra.mxu0 0.0
      %5648 = vmatprep.subr.mxu0 0.0
      %5649 = vmatpush1.msra.mxu0 0.0
      %5650 = vmatprep.subr.mxu0 0.0
      %5651 = vmatpush1.msra.mxu0 0.0
      %5652 = vmatprep.subr.mxu0 0.0
      %5653 = vmatpush1.msra.mxu0 0.0
      %5654 = vmatprep.subr.mxu0 0.0
      %5655 = vmatpush1.msra.mxu0 0.0
      %5656 = vmatprep.subr.mxu0 0.0
      %5657 = vmatpush1.msra.mxu0 0.0
      %5658 = vmatprep.subr.mxu0 0.0
      %5659 = vmatpush1.msra.mxu0 0.0
      %5660 = vmatprep.subr.mxu0 0.0
      %5661 = vmatpush1.msra.mxu0 0.0
      %5662 = vmatprep.subr.mxu0 0.0
      %5663 = vmatpush1.msra.mxu0 0.0
      %5664 = vmatprep.subr.mxu0 0.0
      %5665 = vmatpush1.msra.mxu0 0.0
      %5666 = vmatprep.subr.mxu0 0.0
      %5667 = vmatpush1.msra.mxu0 0.0
      %5668 = vmatprep.subr.mxu0 0.0
      %5669 = vmatpush1.msra.mxu0 0.0
      %5670 = vmatprep.subr.mxu0 0.0
      %5671 = vmatpush1.msra.mxu0 0.0
      %5672 = vmatprep.subr.mxu0 0.0
      %5673 = vmatpush1.msra.mxu0 0.0
      %5674 = vmatprep.subr.mxu0 0.0
      %5675 = vmatpush1.msra.mxu0 0.0
      %5676 = vmatprep.subr.mxu0 0.0
      %5677 = vmatpush1.msra.mxu0 0.0
      %5678 = vmatprep.subr.mxu0 0.0
      %5679 = vmatpush1.msra.mxu0 0.0
      %5680 = vmatprep.mubr.f32.mxu0 0.0
      %5681 = vmatmul.mubr.f32.gmra.mrb[0].mxu0 %v5614
      %v5682 = vpop.f32.mrb[0].mxu0
      %v5683 = vadd.f32 0.0, %v5682
      %v5684 = vpop.f32.mrb[0].mxu0
      %v5685 = vadd.f32 0.0, %v5684
      %5686 = vdwg.mxu0
      %5687 = vmatprep.subr.mxu0 %v5457
      %5688 = vmatpush1.msra.mxu0 %v5456
      %5689 = vmatprep.subr.mxu0 %v5473
      %5690 = vmatpush1.msra.mxu0 %v5472
      %5691 = vmatprep.subr.mxu0 %v5489
      %5692 = vmatpush1.msra.mxu0 %v5488
      %5693 = vmatprep.subr.mxu0 %v5505
      %5694 = vmatpush1.msra.mxu0 %v5504
      %5695 = vmatprep.subr.mxu0 %v5521
      %5696 = vmatpush1.msra.mxu0 %v5520
      %5697 = vmatprep.subr.mxu0 0.0
      %5698 = vmatpush1.msra.mxu0 0.0
      %5699 = vmatprep.subr.mxu0 0.0
      %5700 = vmatpush1.msra.mxu0 0.0
      %5701 = vmatprep.subr.mxu0 0.0
      %5702 = vmatpush1.msra.mxu0 0.0
      %5703 = vmatprep.subr.mxu0 0.0
      %5704 = vmatpush1.msra.mxu0 0.0
      %5705 = vmatprep.subr.mxu0 0.0
      %5706 = vmatpush1.msra.mxu0 0.0
      %5707 = vmatprep.subr.mxu0 0.0
      %5708 = vmatpush1.msra.mxu0 0.0
      %5709 = vmatprep.subr.mxu0 0.0
      %5710 = vmatpush1.msra.mxu0 0.0
      %5711 = vmatprep.subr.mxu0 0.0
      %5712 = vmatpush1.msra.mxu0 0.0
      %5713 = vmatprep.subr.mxu0 0.0
      %5714 = vmatpush1.msra.mxu0 0.0
      %5715 = vmatprep.subr.mxu0 0.0
      %5716 = vmatpush1.msra.mxu0 0.0
      %5717 = vmatprep.subr.mxu0 0.0
      %5718 = vmatpush1.msra.mxu0 0.0
      %5719 = vmatprep.subr.mxu0 0.0
      %5720 = vmatpush1.msra.mxu0 0.0
      %5721 = vmatprep.subr.mxu0 0.0
      %5722 = vmatpush1.msra.mxu0 0.0
      %5723 = vmatprep.subr.mxu0 0.0
      %5724 = vmatpush1.msra.mxu0 0.0
      %5725 = vmatprep.subr.mxu0 0.0
      %5726 = vmatpush1.msra.mxu0 0.0
      %5727 = vmatprep.subr.mxu0 0.0
      %5728 = vmatpush1.msra.mxu0 0.0
      %5729 = vmatprep.subr.mxu0 0.0
      %5730 = vmatpush1.msra.mxu0 0.0
      %5731 = vmatprep.subr.mxu0 0.0
      %5732 = vmatpush1.msra.mxu0 0.0
      %5733 = vmatprep.subr.mxu0 0.0
      %5734 = vmatpush1.msra.mxu0 0.0
      %5735 = vmatprep.subr.mxu0 0.0
      %5736 = vmatpush1.msra.mxu0 0.0
      %5737 = vmatprep.subr.mxu0 0.0
      %5738 = vmatpush1.msra.mxu0 0.0
      %5739 = vmatprep.subr.mxu0 0.0
      %5740 = vmatpush1.msra.mxu0 0.0
      %5741 = vmatprep.subr.mxu0 0.0
      %5742 = vmatpush1.msra.mxu0 0.0
      %5743 = vmatprep.subr.mxu0 0.0
      %5744 = vmatpush1.msra.mxu0 0.0
      %5745 = vmatprep.subr.mxu0 0.0
      %5746 = vmatpush1.msra.mxu0 0.0
      %5747 = vmatprep.subr.mxu0 0.0
      %5748 = vmatpush1.msra.mxu0 0.0
      %5749 = vmatprep.subr.mxu0 0.0
      %5750 = vmatpush1.msra.mxu0 0.0
      %5751 = vmatprep.mubr.f32.mxu0 0.0
      %5752 = vmatmul.mubr.f32.gmra.mrb[0].mxu0 %v5614
      %v5753 = vpop.f32.mrb[0].mxu0
      %v5754 = vadd.f32 0.0, %v5753
      %v5755 = vpop.f32.mrb[0].mxu0
      %v5756 = vadd.f32 0.0, %v5755
      %5757 = vdwg.mxu0
      %5758 = vmatprep.subr.mxu0 %v5459
      %5759 = vmatpush1.msra.mxu0 %v5458
      %5760 = vmatprep.subr.mxu0 %v5475
      %5761 = vmatpush1.msra.mxu0 %v5474
      %5762 = vmatprep.subr.mxu0 %v5491
      %5763 = vmatpush1.msra.mxu0 %v5490
      %5764 = vmatprep.subr.mxu0 %v5507
      %5765 = vmatpush1.msra.mxu0 %v5506
      %5766 = vmatprep.subr.mxu0 %v5523
      %5767 = vmatpush1.msra.mxu0 %v5522
      %5768 = vmatprep.subr.mxu0 0.0
      %5769 = vmatpush1.msra.mxu0 0.0
      %5770 = vmatprep.subr.mxu0 0.0
      %5771 = vmatpush1.msra.mxu0 0.0
      %5772 = vmatprep.subr.mxu0 0.0
      %5773 = vmatpush1.msra.mxu0 0.0
      %5774 = vmatprep.subr.mxu0 0.0
      %5775 = vmatpush1.msra.mxu0 0.0
      %5776 = vmatprep.subr.mxu0 0.0
      %5777 = vmatpush1.msra.mxu0 0.0
      %5778 = vmatprep.subr.mxu0 0.0
      %5779 = vmatpush1.msra.mxu0 0.0
      %5780 = vmatprep.subr.mxu0 0.0
      %5781 = vmatpush1.msra.mxu0 0.0
      %5782 = vmatprep.subr.mxu0 0.0
      %5783 = vmatpush1.msra.mxu0 0.0
      %5784 = vmatprep.subr.mxu0 0.0
      %5785 = vmatpush1.msra.mxu0 0.0
      %5786 = vmatprep.subr.mxu0 0.0
      %5787 = vmatpush1.msra.mxu0 0.0
      %5788 = vmatprep.subr.mxu0 0.0
      %5789 = vmatpush1.msra.mxu0 0.0
      %5790 = vmatprep.subr.mxu0 0.0
      %5791 = vmatpush1.msra.mxu0 0.0
      %5792 = vmatprep.subr.mxu0 0.0
      %5793 = vmatpush1.msra.mxu0 0.0
      %5794 = vmatprep.subr.mxu0 0.0
      %5795 = vmatpush1.msra.mxu0 0.0
      %5796 = vmatprep.subr.mxu0 0.0
      %5797 = vmatpush1.msra.mxu0 0.0
      %5798 = vmatprep.subr.mxu0 0.0
      %5799 = vmatpush1.msra.mxu0 0.0
      %5800 = vmatprep.subr.mxu0 0.0
      %5801 = vmatpush1.msra.mxu0 0.0
      %5802 = vmatprep.subr.mxu0 0.0
      %5803 = vmatpush1.msra.mxu0 0.0
      %5804 = vmatprep.subr.mxu0 0.0
      %5805 = vmatpush1.msra.mxu0 0.0
      %5806 = vmatprep.subr.mxu0 0.0
      %5807 = vmatpush1.msra.mxu0 0.0
      %5808 = vmatprep.subr.mxu0 0.0
      %5809 = vmatpush1.msra.mxu0 0.0
      %5810 = vmatprep.subr.mxu0 0.0
      %5811 = vmatpush1.msra.mxu0 0.0
      %5812 = vmatprep.subr.mxu0 0.0
      %5813 = vmatpush1.msra.mxu0 0.0
      %5814 = vmatprep.subr.mxu0 0.0
      %5815 = vmatpush1.msra.mxu0 0.0
      %5816 = vmatprep.subr.mxu0 0.0
      %5817 = vmatpush1.msra.mxu0 0.0
      %5818 = vmatprep.subr.mxu0 0.0
      %5819 = vmatpush1.msra.mxu0 0.0
      %5820 = vmatprep.subr.mxu0 0.0
      %5821 = vmatpush1.msra.mxu0 0.0
      %5822 = vmatprep.mubr.f32.mxu0 0.0
      %5823 = vmatmul.mubr.f32.gmra.mrb[0].mxu0 %v5614
      %v5824 = vpop.f32.mrb[0].mxu0
      %v5825 = vadd.f32 0.0, %v5824
      %v5826 = vpop.f32.mrb[0].mxu0
      %v5827 = vadd.f32 0.0, %v5826
      %5828 = vdwg.mxu0
      %5829 = vmatprep.subr.mxu0 %v5461
      %5830 = vmatpush1.msra.mxu0 %v5460
      %5831 = vmatprep.subr.mxu0 %v5477
      %5832 = vmatpush1.msra.mxu0 %v5476
      %5833 = vmatprep.subr.mxu0 %v5493
      %5834 = vmatpush1.msra.mxu0 %v5492
      %5835 = vmatprep.subr.mxu0 %v5509
      %5836 = vmatpush1.msra.mxu0 %v5508
      %5837 = vmatprep.subr.mxu0 %v5525
      %5838 = vmatpush1.msra.mxu0 %v5524
      %5839 = vmatprep.subr.mxu0 0.0
      %5840 = vmatpush1.msra.mxu0 0.0
      %5841 = vmatprep.subr.mxu0 0.0
      %5842 = vmatpush1.msra.mxu0 0.0
      %5843 = vmatprep.subr.mxu0 0.0
      %5844 = vmatpush1.msra.mxu0 0.0
      %5845 = vmatprep.subr.mxu0 0.0
      %5846 = vmatpush1.msra.mxu0 0.0
      %5847 = vmatprep.subr.mxu0 0.0
      %5848 = vmatpush1.msra.mxu0 0.0
      %5849 = vmatprep.subr.mxu0 0.0
      %5850 = vmatpush1.msra.mxu0 0.0
      %5851 = vmatprep.subr.mxu0 0.0
      %5852 = vmatpush1.msra.mxu0 0.0
      %5853 = vmatprep.subr.mxu0 0.0
      %5854 = vmatpush1.msra.mxu0 0.0
      %5855 = vmatprep.subr.mxu0 0.0
      %5856 = vmatpush1.msra.mxu0 0.0
      %5857 = vmatprep.subr.mxu0 0.0
      %5858 = vmatpush1.msra.mxu0 0.0
      %5859 = vmatprep.subr.mxu0 0.0
      %5860 = vmatpush1.msra.mxu0 0.0
      %5861 = vmatprep.subr.mxu0 0.0
      %5862 = vmatpush1.msra.mxu0 0.0
      %5863 = vmatprep.subr.mxu0 0.0
      %5864 = vmatpush1.msra.mxu0 0.0
      %5865 = vmatprep.subr.mxu0 0.0
      %5866 = vmatpush1.msra.mxu0 0.0
      %5867 = vmatprep.subr.mxu0 0.0
      %5868 = vmatpush1.msra.mxu0 0.0
      %5869 = vmatprep.subr.mxu0 0.0
      %5870 = vmatpush1.msra.mxu0 0.0
      %5871 = vmatprep.subr.mxu0 0.0
      %5872 = vmatpush1.msra.mxu0 0.0
      %5873 = vmatprep.subr.mxu0 0.0
      %5874 = vmatpush1.msra.mxu0 0.0
      %5875 = vmatprep.subr.mxu0 0.0
      %5876 = vmatpush1.msra.mxu0 0.0
      %5877 = vmatprep.subr.mxu0 0.0
      %5878 = vmatpush1.msra.mxu0 0.0
      %5879 = vmatprep.subr.mxu0 0.0
      %5880 = vmatpush1.msra.mxu0 0.0
      %5881 = vmatprep.subr.mxu0 0.0
      %5882 = vmatpush1.msra.mxu0 0.0
      %5883 = vmatprep.subr.mxu0 0.0
      %5884 = vmatpush1.msra.mxu0 0.0
      %5885 = vmatprep.subr.mxu0 0.0
      %5886 = vmatpush1.msra.mxu0 0.0
      %5887 = vmatprep.subr.mxu0 0.0
      %5888 = vmatpush1.msra.mxu0 0.0
      %5889 = vmatprep.subr.mxu0 0.0
      %5890 = vmatpush1.msra.mxu0 0.0
      %5891 = vmatprep.subr.mxu0 0.0
      %5892 = vmatpush1.msra.mxu0 0.0
      %5893 = vmatprep.mubr.f32.mxu0 0.0
      %5894 = vmatmul.mubr.f32.gmra.mrb[0].mxu0 %v5614
      %v5895 = vpop.f32.mrb[0].mxu0
      %v5896 = vadd.f32 0.0, %v5895
      %v5897 = vpop.f32.mrb[0].mxu0
      %v5898 = vadd.f32 0.0, %v5897
      %5899 = vdwg.mxu0
      %5900 = vmatprep.subr.mxu0 %v5463
      %5901 = vmatpush1.msra.mxu0 %v5462
      %5902 = vmatprep.subr.mxu0 %v5479
      %5903 = vmatpush1.msra.mxu0 %v5478
      %5904 = vmatprep.subr.mxu0 %v5495
      %5905 = vmatpush1.msra.mxu0 %v5494
      %5906 = vmatprep.subr.mxu0 %v5511
      %5907 = vmatpush1.msra.mxu0 %v5510
      %5908 = vmatprep.subr.mxu0 %v5527
      %5909 = vmatpush1.msra.mxu0 %v5526
      %5910 = vmatprep.subr.mxu0 0.0
      %5911 = vmatpush1.msra.mxu0 0.0
      %5912 = vmatprep.subr.mxu0 0.0
      %5913 = vmatpush1.msra.mxu0 0.0
      %5914 = vmatprep.subr.mxu0 0.0
      %5915 = vmatpush1.msra.mxu0 0.0
      %5916 = vmatprep.subr.mxu0 0.0
      %5917 = vmatpush1.msra.mxu0 0.0
      %5918 = vmatprep.subr.mxu0 0.0
      %5919 = vmatpush1.msra.mxu0 0.0
      %5920 = vmatprep.subr.mxu0 0.0
      %5921 = vmatpush1.msra.mxu0 0.0
      %5922 = vmatprep.subr.mxu0 0.0
      %5923 = vmatpush1.msra.mxu0 0.0
      %5924 = vmatprep.subr.mxu0 0.0
      %5925 = vmatpush1.msra.mxu0 0.0
      %5926 = vmatprep.subr.mxu0 0.0
      %5927 = vmatpush1.msra.mxu0 0.0
      %5928 = vmatprep.subr.mxu0 0.0
      %5929 = vmatpush1.msra.mxu0 0.0
      %5930 = vmatprep.subr.mxu0 0.0
      %5931 = vmatpush1.msra.mxu0 0.0
      %5932 = vmatprep.subr.mxu0 0.0
      %5933 = vmatpush1.msra.mxu0 0.0
      %5934 = vmatprep.subr.mxu0 0.0
      %5935 = vmatpush1.msra.mxu0 0.0
      %5936 = vmatprep.subr.mxu0 0.0
      %5937 = vmatpush1.msra.mxu0 0.0
      %5938 = vmatprep.subr.mxu0 0.0
      %5939 = vmatpush1.msra.mxu0 0.0
      %5940 = vmatprep.subr.mxu0 0.0
      %5941 = vmatpush1.msra.mxu0 0.0
      %5942 = vmatprep.subr.mxu0 0.0
      %5943 = vmatpush1.msra.mxu0 0.0
      %5944 = vmatprep.subr.mxu0 0.0
      %5945 = vmatpush1.msra.mxu0 0.0
      %5946 = vmatprep.subr.mxu0 0.0
      %5947 = vmatpush1.msra.mxu0 0.0
      %5948 = vmatprep.subr.mxu0 0.0
      %5949 = vmatpush1.msra.mxu0 0.0
      %5950 = vmatprep.subr.mxu0 0.0
      %5951 = vmatpush1.msra.mxu0 0.0
      %5952 = vmatprep.subr.mxu0 0.0
      %5953 = vmatpush1.msra.mxu0 0.0
      %5954 = vmatprep.subr.mxu0 0.0
      %5955 = vmatpush1.msra.mxu0 0.0
      %5956 = vmatprep.subr.mxu0 0.0
      %5957 = vmatpush1.msra.mxu0 0.0
      %5958 = vmatprep.subr.mxu0 0.0
      %5959 = vmatpush1.msra.mxu0 0.0
      %5960 = vmatprep.subr.mxu0 0.0
      %5961 = vmatpush1.msra.mxu0 0.0
      %5962 = vmatprep.subr.mxu0 0.0
      %5963 = vmatpush1.msra.mxu0 0.0
      %5964 = vmatprep.mubr.f32.mxu0 0.0
      %5965 = vmatmul.mubr.f32.gmra.mrb[0].mxu0 %v5614
      %v5966 = vpop.f32.mrb[0].mxu0
      %v5967 = vadd.f32 0.0, %v5966
      %v5968 = vpop.f32.mrb[0].mxu0
      %v5969 = vadd.f32 0.0, %v5968
      %5970 = vdwg.mxu0
      %5971 = vmatprep.subr.mxu0 %v5465
      %5972 = vmatpush1.msra.mxu0 %v5464
      %5973 = vmatprep.subr.mxu0 %v5481
      %5974 = vmatpush1.msra.mxu0 %v5480
      %5975 = vmatprep.subr.mxu0 %v5497
      %5976 = vmatpush1.msra.mxu0 %v5496
      %5977 = vmatprep.subr.mxu0 %v5513
      %5978 = vmatpush1.msra.mxu0 %v5512
      %5979 = vmatprep.subr.mxu0 %v5529
      %5980 = vmatpush1.msra.mxu0 %v5528
      %5981 = vmatprep.subr.mxu0 0.0
      %5982 = vmatpush1.msra.mxu0 0.0
      %5983 = vmatprep.subr.mxu0 0.0
      %5984 = vmatpush1.msra.mxu0 0.0
      %5985 = vmatprep.subr.mxu0 0.0
      %5986 = vmatpush1.msra.mxu0 0.0
      %5987 = vmatprep.subr.mxu0 0.0
      %5988 = vmatpush1.msra.mxu0 0.0
      %5989 = vmatprep.subr.mxu0 0.0
      %5990 = vmatpush1.msra.mxu0 0.0
      %5991 = vmatprep.subr.mxu0 0.0
      %5992 = vmatpush1.msra.mxu0 0.0
      %5993 = vmatprep.subr.mxu0 0.0
      %5994 = vmatpush1.msra.mxu0 0.0
      %5995 = vmatprep.subr.mxu0 0.0
      %5996 = vmatpush1.msra.mxu0 0.0
      %5997 = vmatprep.subr.mxu0 0.0
      %5998 = vmatpush1.msra.mxu0 0.0
      %5999 = vmatprep.subr.mxu0 0.0
      %6000 = vmatpush1.msra.mxu0 0.0
      %6001 = vmatprep.subr.mxu0 0.0
      %6002 = vmatpush1.msra.mxu0 0.0
      %6003 = vmatprep.subr.mxu0 0.0
      %6004 = vmatpush1.msra.mxu0 0.0
      %6005 = vmatprep.subr.mxu0 0.0
      %6006 = vmatpush1.msra.mxu0 0.0
      %6007 = vmatprep.subr.mxu0 0.0
      %6008 = vmatpush1.msra.mxu0 0.0
      %6009 = vmatprep.subr.mxu0 0.0
      %6010 = vmatpush1.msra.mxu0 0.0
      %6011 = vmatprep.subr.mxu0 0.0
      %6012 = vmatpush1.msra.mxu0 0.0
      %6013 = vmatprep.subr.mxu0 0.0
      %6014 = vmatpush1.msra.mxu0 0.0
      %6015 = vmatprep.subr.mxu0 0.0
      %6016 = vmatpush1.msra.mxu0 0.0
      %6017 = vmatprep.subr.mxu0 0.0
      %6018 = vmatpush1.msra.mxu0 0.0
      %6019 = vmatprep.subr.mxu0 0.0
      %6020 = vmatpush1.msra.mxu0 0.0
      %6021 = vmatprep.subr.mxu0 0.0
      %6022 = vmatpush1.msra.mxu0 0.0
      %6023 = vmatprep.subr.mxu0 0.0
      %6024 = vmatpush1.msra.mxu0 0.0
      %6025 = vmatprep.subr.mxu0 0.0
      %6026 = vmatpush1.msra.mxu0 0.0
      %6027 = vmatprep.subr.mxu0 0.0
      %6028 = vmatpush1.msra.mxu0 0.0
      %6029 = vmatprep.subr.mxu0 0.0
      %6030 = vmatpush1.msra.mxu0 0.0
      %6031 = vmatprep.subr.mxu0 0.0
      %6032 = vmatpush1.msra.mxu0 0.0
      %6033 = vmatprep.subr.mxu0 0.0
      %6034 = vmatpush1.msra.mxu0 0.0
      %6035 = vmatprep.mubr.f32.mxu0 0.0
      %6036 = vmatmul.mubr.f32.gmra.mrb[0].mxu0 %v5614
      %v6037 = vpop.f32.mrb[0].mxu0
      %v6038 = vadd.f32 0.0, %v6037
      %v6039 = vpop.f32.mrb[0].mxu0
      %v6040 = vadd.f32 0.0, %v6039
      %6041 = vdwg.mxu0
      %6042 = vmatprep.subr.mxu0 %v5467
      %6043 = vmatpush1.msra.mxu0 %v5466
      %6044 = vmatprep.subr.mxu0 %v5483
      %6045 = vmatpush1.msra.mxu0 %v5482
      %6046 = vmatprep.subr.mxu0 %v5499
      %6047 = vmatpush1.msra.mxu0 %v5498
      %6048 = vmatprep.subr.mxu0 %v5515
      %6049 = vmatpush1.msra.mxu0 %v5514
      %6050 = vmatprep.subr.mxu0 %v5531
      %6051 = vmatpush1.msra.mxu0 %v5530
      %6052 = vmatprep.subr.mxu0 0.0
      %6053 = vmatpush1.msra.mxu0 0.0
      %6054 = vmatprep.subr.mxu0 0.0
      %6055 = vmatpush1.msra.mxu0 0.0
      %6056 = vmatprep.subr.mxu0 0.0
      %6057 = vmatpush1.msra.mxu0 0.0
      %6058 = vmatprep.subr.mxu0 0.0
      %6059 = vmatpush1.msra.mxu0 0.0
      %6060 = vmatprep.subr.mxu0 0.0
      %6061 = vmatpush1.msra.mxu0 0.0
      %6062 = vmatprep.subr.mxu0 0.0
      %6063 = vmatpush1.msra.mxu0 0.0
      %6064 = vmatprep.subr.mxu0 0.0
      %6065 = vmatpush1.msra.mxu0 0.0
      %6066 = vmatprep.subr.mxu0 0.0
      %6067 = vmatpush1.msra.mxu0 0.0
      %6068 = vmatprep.subr.mxu0 0.0
      %6069 = vmatpush1.msra.mxu0 0.0
      %6070 = vmatprep.subr.mxu0 0.0
      %6071 = vmatpush1.msra.mxu0 0.0
      %6072 = vmatprep.subr.mxu0 0.0
      %6073 = vmatpush1.msra.mxu0 0.0
      %6074 = vmatprep.subr.mxu0 0.0
      %6075 = vmatpush1.msra.mxu0 0.0
      %6076 = vmatprep.subr.mxu0 0.0
      %6077 = vmatpush1.msra.mxu0 0.0
      %6078 = vmatprep.subr.mxu0 0.0
      %6079 = vmatpush1.msra.mxu0 0.0
      %6080 = vmatprep.subr.mxu0 0.0
      %6081 = vmatpush1.msra.mxu0 0.0
      %6082 = vmatprep.subr.mxu0 0.0
      %6083 = vmatpush1.msra.mxu0 0.0
      %6084 = vmatprep.subr.mxu0 0.0
      %6085 = vmatpush1.msra.mxu0 0.0
      %6086 = vmatprep.subr.mxu0 0.0
      %6087 = vmatpush1.msra.mxu0 0.0
      %6088 = vmatprep.subr.mxu0 0.0
      %6089 = vmatpush1.msra.mxu0 0.0
      %6090 = vmatprep.subr.mxu0 0.0
      %6091 = vmatpush1.msra.mxu0 0.0
      %6092 = vmatprep.subr.mxu0 0.0
      %6093 = vmatpush1.msra.mxu0 0.0
      %6094 = vmatprep.subr.mxu0 0.0
      %6095 = vmatpush1.msra.mxu0 0.0
      %6096 = vmatprep.subr.mxu0 0.0
      %6097 = vmatpush1.msra.mxu0 0.0
      %6098 = vmatprep.subr.mxu0 0.0
      %6099 = vmatpush1.msra.mxu0 0.0
      %6100 = vmatprep.subr.mxu0 0.0
      %6101 = vmatpush1.msra.mxu0 0.0
      %6102 = vmatprep.subr.mxu0 0.0
      %6103 = vmatpush1.msra.mxu0 0.0
      %6104 = vmatprep.subr.mxu0 0.0
      %6105 = vmatpush1.msra.mxu0 0.0
      %6106 = vmatprep.mubr.f32.mxu0 0.0
      %6107 = vmatmul.mubr.f32.gmra.mrb[0].mxu0 %v5614
      %v6108 = vpop.f32.mrb[0].mxu0
      %v6109 = vadd.f32 0.0, %v6108
      %v6110 = vpop.f32.mrb[0].mxu0
      %v6111 = vadd.f32 0.0, %v6110
      %6112 = vdwg.mxu0
      %6113 = vmatprep.subr.mxu0 %v5469
      %6114 = vmatpush1.msra.mxu0 %v5468
      %6115 = vmatprep.subr.mxu0 %v5485
      %6116 = vmatpush1.msra.mxu0 %v5484
      %6117 = vmatprep.subr.mxu0 %v5501
      %6118 = vmatpush1.msra.mxu0 %v5500
      %6119 = vmatprep.subr.mxu0 %v5517
      %6120 = vmatpush1.msra.mxu0 %v5516
      %6121 = vmatprep.subr.mxu0 %v5533
      %6122 = vmatpush1.msra.mxu0 %v5532
      %6123 = vmatprep.subr.mxu0 0.0
      %6124 = vmatpush1.msra.mxu0 0.0
      %6125 = vmatprep.subr.mxu0 0.0
      %6126 = vmatpush1.msra.mxu0 0.0
      %6127 = vmatprep.subr.mxu0 0.0
      %6128 = vmatpush1.msra.mxu0 0.0
      %6129 = vmatprep.subr.mxu0 0.0
      %6130 = vmatpush1.msra.mxu0 0.0
      %6131 = vmatprep.subr.mxu0 0.0
      %6132 = vmatpush1.msra.mxu0 0.0
      %6133 = vmatprep.subr.mxu0 0.0
      %6134 = vmatpush1.msra.mxu0 0.0
      %6135 = vmatprep.subr.mxu0 0.0
      %6136 = vmatpush1.msra.mxu0 0.0
      %6137 = vmatprep.subr.mxu0 0.0
      %6138 = vmatpush1.msra.mxu0 0.0
      %6139 = vmatprep.subr.mxu0 0.0
      %6140 = vmatpush1.msra.mxu0 0.0
      %6141 = vmatprep.subr.mxu0 0.0
      %6142 = vmatpush1.msra.mxu0 0.0
      %6143 = vmatprep.subr.mxu0 0.0
      %6144 = vmatpush1.msra.mxu0 0.0
      %6145 = vmatprep.subr.mxu0 0.0
      %6146 = vmatpush1.msra.mxu0 0.0
      %6147 = vmatprep.subr.mxu0 0.0
      %6148 = vmatpush1.msra.mxu0 0.0
      %6149 = vmatprep.subr.mxu0 0.0
      %6150 = vmatpush1.msra.mxu0 0.0
      %6151 = vmatprep.subr.mxu0 0.0
      %6152 = vmatpush1.msra.mxu0 0.0
      %6153 = vmatprep.subr.mxu0 0.0
      %6154 = vmatpush1.msra.mxu0 0.0
      %6155 = vmatprep.subr.mxu0 0.0
      %6156 = vmatpush1.msra.mxu0 0.0
      %6157 = vmatprep.subr.mxu0 0.0
      %6158 = vmatpush1.msra.mxu0 0.0
      %6159 = vmatprep.subr.mxu0 0.0
      %6160 = vmatpush1.msra.mxu0 0.0
      %6161 = vmatprep.subr.mxu0 0.0
      %6162 = vmatpush1.msra.mxu0 0.0
      %6163 = vmatprep.subr.mxu0 0.0
      %6164 = vmatpush1.msra.mxu0 0.0
      %6165 = vmatprep.subr.mxu0 0.0
      %6166 = vmatpush1.msra.mxu0 0.0
      %6167 = vmatprep.subr.mxu0 0.0
      %6168 = vmatpush1.msra.mxu0 0.0
      %6169 = vmatprep.subr.mxu0 0.0
      %6170 = vmatpush1.msra.mxu0 0.0
      %6171 = vmatprep.subr.mxu0 0.0
      %6172 = vmatpush1.msra.mxu0 0.0
      %6173 = vmatprep.subr.mxu0 0.0
      %6174 = vmatpush1.msra.mxu0 0.0
      %6175 = vmatprep.subr.mxu0 0.0
      %6176 = vmatpush1.msra.mxu0 0.0
      %6177 = vmatprep.mubr.f32.mxu0 0.0
      %6178 = vmatmul.mubr.f32.gmra.mrb[0].mxu0 %v5614
      %v6179 = vpop.f32.mrb[0].mxu0
      %v6180 = vadd.f32 0.0, %v6179
      %v6181 = vpop.f32.mrb[0].mxu0
      %v6182 = vadd.f32 0.0, %v6181
      %6183 = vdwg.mxu0
      %v6184 = vadd.f32 %v4610, %v5683
      %v6185 = vadd.f32 %v4612, %v5685
      %v6186 = vadd.f32 %v4681, %v5754
      %v6187 = vadd.f32 %v4683, %v5756
      %v6188 = vadd.f32 %v4752, %v5825
      %v6189 = vadd.f32 %v4754, %v5827
      %v6190 = vadd.f32 %v4823, %v5896
      %v6191 = vadd.f32 %v4825, %v5898
      %v6192 = vadd.f32 %v4894, %v5967
      %v6193 = vadd.f32 %v4896, %v5969
      %v6194 = vadd.f32 %v4965, %v6038
      %v6195 = vadd.f32 %v4967, %v6040
      %v6196 = vadd.f32 %v5036, %v6109
      %v6197 = vadd.f32 %v5038, %v6111
      %v6198 = vadd.f32 %v5107, %v6180
      %v6199 = vadd.f32 %v5109, %v6182
      %v6200 = vld [vmem:[%s1 + $0x78] sm:$0xff]
      %v6201 = vld [vmem:[%s1 + $0x80] sm:$0xff]
      %6204 = vrot.lane.b32.xlu0 %v6200, 8
      %v6205 = vpop.permute.xlu0 %6204
      %6206 = vrot.lane.b32.xlu0 %v6201, 8
      %v6207 = vpop.permute.xlu0 %6206
      %v6208 = vsel %vm349, %v6205, %v6207
      %6209 = vrot.lane.b32.xlu0 %v5111, 1
      %v6210 = vpop.permute.xlu0 %6209
      %6211 = vrot.lane.b32.xlu0 %v5112, 1
      %v6212 = vpop.permute.xlu0 %6211
      %6213 = vrot.lane.b32.xlu0 %v5113, 1
      %v6214 = vpop.permute.xlu0 %6213
      %6215 = vrot.lane.b32.xlu0 %v5114, 1
      %v6216 = vpop.permute.xlu0 %6215
      %6217 = vrot.lane.b32.xlu0 %v5115, 1
      %v6218 = vpop.permute.xlu0 %6217
      %6219 = vrot.lane.b32.xlu0 %v5116, 1
      %v6220 = vpop.permute.xlu0 %6219
      %6221 = vrot.lane.b32.xlu0 %v5117, 1
      %v6222 = vpop.permute.xlu0 %6221
      %6223 = vrot.lane.b32.xlu0 %v5118, 1
      %v6224 = vpop.permute.xlu0 %6223
      %6225 = vrot.lane.b32.xlu0 %v5119, 1
      %v6226 = vpop.permute.xlu0 %6225
      %6227 = vrot.lane.b32.xlu0 %v5120, 1
      %v6228 = vpop.permute.xlu0 %6227
      %6229 = vrot.lane.b32.xlu0 %v5121, 1
      %v6230 = vpop.permute.xlu0 %6229
      %6231 = vrot.lane.b32.xlu0 %v5122, 1
      %v6232 = vpop.permute.xlu0 %6231
      %6233 = vrot.lane.b32.xlu0 %v5123, 1
      %v6234 = vpop.permute.xlu0 %6233
      %6235 = vrot.lane.b32.xlu0 %v5124, 1
      %v6236 = vpop.permute.xlu0 %6235
      %6237 = vrot.lane.b32.xlu0 %v5125, 1
      %v6238 = vpop.permute.xlu0 %6237
      %6239 = vrot.lane.b32.xlu0 %v5126, 1
      %v6240 = vpop.permute.xlu0 %6239
      %6241 = vrot.lane.b32.xlu0 %v5127, 1
      %v6242 = vpop.permute.xlu0 %6241
      %6243 = vrot.lane.b32.xlu0 %v5128, 1
      %v6244 = vpop.permute.xlu0 %6243
      %6245 = vrot.lane.b32.xlu0 %v5129, 1
      %v6246 = vpop.permute.xlu0 %6245
      %6247 = vrot.lane.b32.xlu0 %v5130, 1
      %v6248 = vpop.permute.xlu0 %6247
      %6249 = vrot.lane.b32.xlu0 %v5131, 1
      %v6250 = vpop.permute.xlu0 %6249
      %6251 = vrot.lane.b32.xlu0 %v5132, 1
      %v6252 = vpop.permute.xlu0 %6251
      %6253 = vrot.lane.b32.xlu0 %v5133, 1
      %v6254 = vpop.permute.xlu0 %6253
      %6255 = vrot.lane.b32.xlu0 %v5134, 1
      %v6256 = vpop.permute.xlu0 %6255
      %6257 = vrot.lane.b32.xlu0 %v5135, 1
      %v6258 = vpop.permute.xlu0 %6257
      %6259 = vrot.lane.b32.xlu0 %v5136, 1
      %v6260 = vpop.permute.xlu0 %6259
      %6261 = vrot.lane.b32.xlu0 %v5137, 1
      %v6262 = vpop.permute.xlu0 %6261
      %6263 = vrot.lane.b32.xlu0 %v5138, 1
      %v6264 = vpop.permute.xlu0 %6263
      %6265 = vrot.lane.b32.xlu0 %v5139, 1
      %v6266 = vpop.permute.xlu0 %6265
      %6267 = vrot.lane.b32.xlu0 %v5140, 1
      %v6268 = vpop.permute.xlu0 %6267
      %6269 = vrot.lane.b32.xlu0 %v5141, 1
      %v6270 = vpop.permute.xlu0 %6269
      %6271 = vrot.lane.b32.xlu0 %v5142, 1
      %v6272 = vpop.permute.xlu0 %6271
      %6273 = vrot.lane.b32.xlu0 %v5143, 1
      %v6274 = vpop.permute.xlu0 %6273
      %6275 = vrot.lane.b32.xlu0 %v5144, 1
      %v6276 = vpop.permute.xlu0 %6275
      %6277 = vrot.lane.b32.xlu0 %v5145, 1
      %v6278 = vpop.permute.xlu0 %6277
      %6279 = vrot.lane.b32.xlu0 %v5146, 1
      %v6280 = vpop.permute.xlu0 %6279
      %6281 = vrot.lane.b32.xlu0 %v5147, 1
      %v6282 = vpop.permute.xlu0 %6281
      %6283 = vrot.lane.b32.xlu0 %v5148, 1
      %v6284 = vpop.permute.xlu0 %6283
      %6285 = vrot.lane.b32.xlu0 %v5149, 1
      %v6286 = vpop.permute.xlu0 %6285
      %6287 = vrot.lane.b32.xlu0 %v5150, 1
      %v6288 = vpop.permute.xlu0 %6287
      %6289 = vrot.lane.b32.xlu0 %v5151, 1
      %v6290 = vpop.permute.xlu0 %6289
      %6291 = vrot.lane.b32.xlu0 %v5152, 1
      %v6292 = vpop.permute.xlu0 %6291
      %6293 = vrot.lane.b32.xlu0 %v5153, 1
      %v6294 = vpop.permute.xlu0 %6293
      %6295 = vrot.lane.b32.xlu0 %v5154, 1
      %v6296 = vpop.permute.xlu0 %6295
      %6297 = vrot.lane.b32.xlu0 %v5155, 1
      %v6298 = vpop.permute.xlu0 %6297
      %6299 = vrot.lane.b32.xlu0 %v5156, 1
      %v6300 = vpop.permute.xlu0 %6299
      %6301 = vrot.lane.b32.xlu0 %v5157, 1
      %v6302 = vpop.permute.xlu0 %6301
      %6303 = vrot.lane.b32.xlu0 %v5158, 1
      %v6304 = vpop.permute.xlu0 %6303
      %6305 = vrot.lane.b32.xlu0 %v5159, 1
      %v6306 = vpop.permute.xlu0 %6305
      %6307 = vrot.lane.b32.xlu0 %v5160, 1
      %v6308 = vpop.permute.xlu0 %6307
      %6309 = vrot.lane.b32.xlu0 %v5161, 1
      %v6310 = vpop.permute.xlu0 %6309
      %6311 = vrot.lane.b32.xlu0 %v5162, 1
      %v6312 = vpop.permute.xlu0 %6311
      %6313 = vrot.lane.b32.xlu0 %v5163, 1
      %v6314 = vpop.permute.xlu0 %6313
      %6315 = vrot.lane.b32.xlu0 %v5164, 1
      %v6316 = vpop.permute.xlu0 %6315
      %6317 = vrot.lane.b32.xlu0 %v5165, 1
      %v6318 = vpop.permute.xlu0 %6317
      %6319 = vrot.lane.b32.xlu0 %v5166, 1
      %v6320 = vpop.permute.xlu0 %6319
      %6321 = vrot.lane.b32.xlu0 %v5167, 1
      %v6322 = vpop.permute.xlu0 %6321
      %6323 = vrot.lane.b32.xlu0 %v5168, 1
      %v6324 = vpop.permute.xlu0 %6323
      %6325 = vrot.lane.b32.xlu0 %v5169, 1
      %v6326 = vpop.permute.xlu0 %6325
      %6327 = vrot.lane.b32.xlu0 %v5170, 1
      %v6328 = vpop.permute.xlu0 %6327
      %6329 = vrot.lane.b32.xlu0 %v5171, 1
      %v6330 = vpop.permute.xlu0 %6329
      %6331 = vrot.lane.b32.xlu0 %v5172, 1
      %v6332 = vpop.permute.xlu0 %6331
      %6333 = vrot.lane.b32.xlu0 %v5173, 1
      %v6334 = vpop.permute.xlu0 %6333
      %6335 = vrot.lane.b32.xlu0 %v5174, 1
      %v6336 = vpop.permute.xlu0 %6335
      %6337 = vrot.lane.b32.xlu0 %v5175, 1
      %v6338 = vpop.permute.xlu0 %6337
      %6339 = vrot.lane.b32.xlu0 %v5176, 1
      %v6340 = vpop.permute.xlu0 %6339
      %6341 = vrot.lane.b32.xlu0 %v5177, 1
      %v6342 = vpop.permute.xlu0 %6341
      %6343 = vrot.lane.b32.xlu0 %v5178, 1
      %v6344 = vpop.permute.xlu0 %6343
      %6345 = vrot.lane.b32.xlu0 %v5179, 1
      %v6346 = vpop.permute.xlu0 %6345
      %6347 = vrot.lane.b32.xlu0 %v5180, 1
      %v6348 = vpop.permute.xlu0 %6347
      %6349 = vrot.lane.b32.xlu0 %v5181, 1
      %v6350 = vpop.permute.xlu0 %6349
      %6351 = vrot.lane.b32.xlu0 %v5182, 1
      %v6352 = vpop.permute.xlu0 %6351
      %6353 = vrot.lane.b32.xlu0 %v5183, 1
      %v6354 = vpop.permute.xlu0 %6353
      %6355 = vrot.lane.b32.xlu0 %v5184, 1
      %v6356 = vpop.permute.xlu0 %6355
      %6357 = vrot.lane.b32.xlu0 %v5185, 1
      %v6358 = vpop.permute.xlu0 %6357
      %6359 = vrot.lane.b32.xlu0 %v5186, 1
      %v6360 = vpop.permute.xlu0 %6359
      %6361 = vrot.lane.b32.xlu0 %v5187, 1
      %v6362 = vpop.permute.xlu0 %6361
      %6363 = vrot.lane.b32.xlu0 %v5188, 1
      %v6364 = vpop.permute.xlu0 %6363
      %6365 = vrot.lane.b32.xlu0 %v5189, 1
      %v6366 = vpop.permute.xlu0 %6365
      %6367 = vrot.lane.b32.xlu0 %v5190, 1
      %v6368 = vpop.permute.xlu0 %6367
      %6369 = vrot.lane.b32.xlu0 %v5191, 1
      %v6370 = vpop.permute.xlu0 %6369
      %6371 = vrot.lane.b32.xlu0 %v5192, 1
      %v6372 = vpop.permute.xlu0 %6371
      %6373 = vrot.lane.b32.xlu0 %v5193, 1
      %v6374 = vpop.permute.xlu0 %6373
      %6375 = vrot.lane.b32.xlu0 %v5194, 1
      %v6376 = vpop.permute.xlu0 %6375
      %6377 = vrot.lane.b32.xlu0 %v5195, 1
      %v6378 = vpop.permute.xlu0 %6377
      %v6379 = vsel %vm4380, %v6210, %v6212
      %v6380 = vsel %vm4380, %v6212, %v6214
      %v6381 = vsel %vm4380, %v6214, %v6216
      %v6382 = vsel %vm4380, %v6216, %v6218
      %v6383 = vsel %vm4380, %v6218, %v6220
      %v6384 = vsel %vm4380, %v6220, %v6222
      %v6385 = vsel %vm4380, %v6222, %v6224
      %v6386 = vsel %vm4380, %v6224, %v6226
      %v6387 = vsel %vm4380, %v6226, %v6228
      %v6388 = vsel %vm4380, %v6228, %v6230
      %v6389 = vsel %vm4380, %v6230, %v6232
      %v6390 = vsel %vm4380, %v6232, %v6234
      %v6391 = vsel %vm4380, %v6234, %v6236
      %v6392 = vsel %vm4380, %v6236, %v6238
      %v6393 = vsel %vm4380, %v6238, %v6240
      %v6394 = vsel %vm4380, %v6240, %v6242
      %v6395 = vsel %vm4380, %v6244, %v6246
      %v6396 = vsel %vm4380, %v6246, %v6248
      %v6397 = vsel %vm4380, %v6248, %v6250
      %v6398 = vsel %vm4380, %v6250, %v6252
      %v6399 = vsel %vm4380, %v6252, %v6254
      %v6400 = vsel %vm4380, %v6254, %v6256
      %v6401 = vsel %vm4380, %v6256, %v6258
      %v6402 = vsel %vm4380, %v6258, %v6260
      %v6403 = vsel %vm4380, %v6260, %v6262
      %v6404 = vsel %vm4380, %v6262, %v6264
      %v6405 = vsel %vm4380, %v6264, %v6266
      %v6406 = vsel %vm4380, %v6266, %v6268
      %v6407 = vsel %vm4380, %v6268, %v6270
      %v6408 = vsel %vm4380, %v6270, %v6272
      %v6409 = vsel %vm4380, %v6272, %v6274
      %v6410 = vsel %vm4380, %v6274, %v6276
      %v6411 = vsel %vm4380, %v6278, %v6280
      %v6412 = vsel %vm4380, %v6280, %v6282
      %v6413 = vsel %vm4380, %v6282, %v6284
      %v6414 = vsel %vm4380, %v6284, %v6286
      %v6415 = vsel %vm4380, %v6286, %v6288
      %v6416 = vsel %vm4380, %v6288, %v6290
      %v6417 = vsel %vm4380, %v6290, %v6292
      %v6418 = vsel %vm4380, %v6292, %v6294
      %v6419 = vsel %vm4380, %v6294, %v6296
      %v6420 = vsel %vm4380, %v6296, %v6298
      %v6421 = vsel %vm4380, %v6298, %v6300
      %v6422 = vsel %vm4380, %v6300, %v6302
      %v6423 = vsel %vm4380, %v6302, %v6304
      %v6424 = vsel %vm4380, %v6304, %v6306
      %v6425 = vsel %vm4380, %v6306, %v6308
      %v6426 = vsel %vm4380, %v6308, %v6310
      %v6427 = vsel %vm4380, %v6312, %v6314
      %v6428 = vsel %vm4380, %v6314, %v6316
      %v6429 = vsel %vm4380, %v6316, %v6318
      %v6430 = vsel %vm4380, %v6318, %v6320
      %v6431 = vsel %vm4380, %v6320, %v6322
      %v6432 = vsel %vm4380, %v6322, %v6324
      %v6433 = vsel %vm4380, %v6324, %v6326
      %v6434 = vsel %vm4380, %v6326, %v6328
      %v6435 = vsel %vm4380, %v6328, %v6330
      %v6436 = vsel %vm4380, %v6330, %v6332
      %v6437 = vsel %vm4380, %v6332, %v6334
      %v6438 = vsel %vm4380, %v6334, %v6336
      %v6439 = vsel %vm4380, %v6336, %v6338
      %v6440 = vsel %vm4380, %v6338, %v6340
      %v6441 = vsel %vm4380, %v6340, %v6342
      %v6442 = vsel %vm4380, %v6342, %v6344
      %v6443 = vsel %vm4380, %v6346, %v6348
      %v6444 = vsel %vm4380, %v6348, %v6350
      %v6445 = vsel %vm4380, %v6350, %v6352
      %v6446 = vsel %vm4380, %v6352, %v6354
      %v6447 = vsel %vm4380, %v6354, %v6356
      %v6448 = vsel %vm4380, %v6356, %v6358
      %v6449 = vsel %vm4380, %v6358, %v6360
      %v6450 = vsel %vm4380, %v6360, %v6362
      %v6451 = vsel %vm4380, %v6362, %v6364
      %v6452 = vsel %vm4380, %v6364, %v6366
      %v6453 = vsel %vm4380, %v6366, %v6368
      %v6454 = vsel %vm4380, %v6368, %v6370
      %v6455 = vsel %vm4380, %v6370, %v6372
      %v6456 = vsel %vm4380, %v6372, %v6374
      %v6457 = vsel %vm4380, %v6374, %v6376
      %v6458 = vsel %vm4380, %v6376, %v6378
      %v6539 = vsel %vm3554, %v6208, 0
      %6541 = vmatprep.subr.mxu0 %v6380
      %6542 = vmatpush1.msra.mxu0 %v6379
      %6543 = vmatprep.subr.mxu0 %v6396
      %6544 = vmatpush1.msra.mxu0 %v6395
      %6545 = vmatprep.subr.mxu0 %v6412
      %6546 = vmatpush1.msra.mxu0 %v6411
      %6547 = vmatprep.subr.mxu0 %v6428
      %6548 = vmatpush1.msra.mxu0 %v6427
      %6549 = vmatprep.subr.mxu0 %v6444
      %6550 = vmatpush1.msra.mxu0 %v6443
      %6551 = vmatprep.subr.mxu0 0.0
      %6552 = vmatpush1.msra.mxu0 0.0
      %6553 = vmatprep.subr.mxu0 0.0
      %6554 = vmatpush1.msra.mxu0 0.0
      %6555 = vmatprep.subr.mxu0 0.0
      %6556 = vmatpush1.msra.mxu0 0.0
      %6557 = vmatprep.subr.mxu0 0.0
      %6558 = vmatpush1.msra.mxu0 0.0
      %6559 = vmatprep.subr.mxu0 0.0
      %6560 = vmatpush1.msra.mxu0 0.0
      %6561 = vmatprep.subr.mxu0 0.0
      %6562 = vmatpush1.msra.mxu0 0.0
      %6563 = vmatprep.subr.mxu0 0.0
      %6564 = vmatpush1.msra.mxu0 0.0
      %6565 = vmatprep.subr.mxu0 0.0
      %6566 = vmatpush1.msra.mxu0 0.0
      %6567 = vmatprep.subr.mxu0 0.0
      %6568 = vmatpush1.msra.mxu0 0.0
      %6569 = vmatprep.subr.mxu0 0.0
      %6570 = vmatpush1.msra.mxu0 0.0
      %6571 = vmatprep.subr.mxu0 0.0
      %6572 = vmatpush1.msra.mxu0 0.0
      %6573 = vmatprep.subr.mxu0 0.0
      %6574 = vmatpush1.msra.mxu0 0.0
      %6575 = vmatprep.subr.mxu0 0.0
      %6576 = vmatpush1.msra.mxu0 0.0
      %6577 = vmatprep.subr.mxu0 0.0
      %6578 = vmatpush1.msra.mxu0 0.0
      %6579 = vmatprep.subr.mxu0 0.0
      %6580 = vmatpush1.msra.mxu0 0.0
      %6581 = vmatprep.subr.mxu0 0.0
      %6582 = vmatpush1.msra.mxu0 0.0
      %6583 = vmatprep.subr.mxu0 0.0
      %6584 = vmatpush1.msra.mxu0 0.0
      %6585 = vmatprep.subr.mxu0 0.0
      %6586 = vmatpush1.msra.mxu0 0.0
      %6587 = vmatprep.subr.mxu0 0.0
      %6588 = vmatpush1.msra.mxu0 0.0
      %6589 = vmatprep.subr.mxu0 0.0
      %6590 = vmatpush1.msra.mxu0 0.0
      %6591 = vmatprep.subr.mxu0 0.0
      %6592 = vmatpush1.msra.mxu0 0.0
      %6593 = vmatprep.subr.mxu0 0.0
      %6594 = vmatpush1.msra.mxu0 0.0
      %6595 = vmatprep.subr.mxu0 0.0
      %6596 = vmatpush1.msra.mxu0 0.0
      %6597 = vmatprep.subr.mxu0 0.0
      %6598 = vmatpush1.msra.mxu0 0.0
      %6599 = vmatprep.subr.mxu0 0.0
      %6600 = vmatpush1.msra.mxu0 0.0
      %6601 = vmatprep.subr.mxu0 0.0
      %6602 = vmatpush1.msra.mxu0 0.0
      %6603 = vmatprep.subr.mxu0 0.0
      %6604 = vmatpush1.msra.mxu0 0.0
      %6605 = vmatprep.mubr.f32.mxu0 0.0
      %6606 = vmatmul.mubr.f32.gmra.mrb[0].mxu0 %v6539
      %v6607 = vpop.f32.mrb[0].mxu0
      %v6608 = vadd.f32 0.0, %v6607
      %v6609 = vpop.f32.mrb[0].mxu0
      %v6610 = vadd.f32 0.0, %v6609
      %6611 = vdwg.mxu0
      %6612 = vmatprep.subr.mxu0 %v6382
      %6613 = vmatpush1.msra.mxu0 %v6381
      %6614 = vmatprep.subr.mxu0 %v6398
      %6615 = vmatpush1.msra.mxu0 %v6397
      %6616 = vmatprep.subr.mxu0 %v6414
      %6617 = vmatpush1.msra.mxu0 %v6413
      %6618 = vmatprep.subr.mxu0 %v6430
      %6619 = vmatpush1.msra.mxu0 %v6429
      %6620 = vmatprep.subr.mxu0 %v6446
      %6621 = vmatpush1.msra.mxu0 %v6445
      %6622 = vmatprep.subr.mxu0 0.0
      %6623 = vmatpush1.msra.mxu0 0.0
      %6624 = vmatprep.subr.mxu0 0.0
      %6625 = vmatpush1.msra.mxu0 0.0
      %6626 = vmatprep.subr.mxu0 0.0
      %6627 = vmatpush1.msra.mxu0 0.0
      %6628 = vmatprep.subr.mxu0 0.0
      %6629 = vmatpush1.msra.mxu0 0.0
      %6630 = vmatprep.subr.mxu0 0.0
      %6631 = vmatpush1.msra.mxu0 0.0
      %6632 = vmatprep.subr.mxu0 0.0
      %6633 = vmatpush1.msra.mxu0 0.0
      %6634 = vmatprep.subr.mxu0 0.0
      %6635 = vmatpush1.msra.mxu0 0.0
      %6636 = vmatprep.subr.mxu0 0.0
      %6637 = vmatpush1.msra.mxu0 0.0
      %6638 = vmatprep.subr.mxu0 0.0
      %6639 = vmatpush1.msra.mxu0 0.0
      %6640 = vmatprep.subr.mxu0 0.0
      %6641 = vmatpush1.msra.mxu0 0.0
      %6642 = vmatprep.subr.mxu0 0.0
      %6643 = vmatpush1.msra.mxu0 0.0
      %6644 = vmatprep.subr.mxu0 0.0
      %6645 = vmatpush1.msra.mxu0 0.0
      %6646 = vmatprep.subr.mxu0 0.0
      %6647 = vmatpush1.msra.mxu0 0.0
      %6648 = vmatprep.subr.mxu0 0.0
      %6649 = vmatpush1.msra.mxu0 0.0
      %6650 = vmatprep.subr.mxu0 0.0
      %6651 = vmatpush1.msra.mxu0 0.0
      %6652 = vmatprep.subr.mxu0 0.0
      %6653 = vmatpush1.msra.mxu0 0.0
      %6654 = vmatprep.subr.mxu0 0.0
      %6655 = vmatpush1.msra.mxu0 0.0
      %6656 = vmatprep.subr.mxu0 0.0
      %6657 = vmatpush1.msra.mxu0 0.0
      %6658 = vmatprep.subr.mxu0 0.0
      %6659 = vmatpush1.msra.mxu0 0.0
      %6660 = vmatprep.subr.mxu0 0.0
      %6661 = vmatpush1.msra.mxu0 0.0
      %6662 = vmatprep.subr.mxu0 0.0
      %6663 = vmatpush1.msra.mxu0 0.0
      %6664 = vmatprep.subr.mxu0 0.0
      %6665 = vmatpush1.msra.mxu0 0.0
      %6666 = vmatprep.subr.mxu0 0.0
      %6667 = vmatpush1.msra.mxu0 0.0
      %6668 = vmatprep.subr.mxu0 0.0
      %6669 = vmatpush1.msra.mxu0 0.0
      %6670 = vmatprep.subr.mxu0 0.0
      %6671 = vmatpush1.msra.mxu0 0.0
      %6672 = vmatprep.subr.mxu0 0.0
      %6673 = vmatpush1.msra.mxu0 0.0
      %6674 = vmatprep.subr.mxu0 0.0
      %6675 = vmatpush1.msra.mxu0 0.0
      %6676 = vmatprep.mubr.f32.mxu0 0.0
      %6677 = vmatmul.mubr.f32.gmra.mrb[0].mxu0 %v6539
      %v6678 = vpop.f32.mrb[0].mxu0
      %v6679 = vadd.f32 0.0, %v6678
      %v6680 = vpop.f32.mrb[0].mxu0
      %v6681 = vadd.f32 0.0, %v6680
      %6682 = vdwg.mxu0
      %6683 = vmatprep.subr.mxu0 %v6384
      %6684 = vmatpush1.msra.mxu0 %v6383
      %6685 = vmatprep.subr.mxu0 %v6400
      %6686 = vmatpush1.msra.mxu0 %v6399
      %6687 = vmatprep.subr.mxu0 %v6416
      %6688 = vmatpush1.msra.mxu0 %v6415
      %6689 = vmatprep.subr.mxu0 %v6432
      %6690 = vmatpush1.msra.mxu0 %v6431
      %6691 = vmatprep.subr.mxu0 %v6448
      %6692 = vmatpush1.msra.mxu0 %v6447
      %6693 = vmatprep.subr.mxu0 0.0
      %6694 = vmatpush1.msra.mxu0 0.0
      %6695 = vmatprep.subr.mxu0 0.0
      %6696 = vmatpush1.msra.mxu0 0.0
      %6697 = vmatprep.subr.mxu0 0.0
      %6698 = vmatpush1.msra.mxu0 0.0
      %6699 = vmatprep.subr.mxu0 0.0
      %6700 = vmatpush1.msra.mxu0 0.0
      %6701 = vmatprep.subr.mxu0 0.0
      %6702 = vmatpush1.msra.mxu0 0.0
      %6703 = vmatprep.subr.mxu0 0.0
      %6704 = vmatpush1.msra.mxu0 0.0
      %6705 = vmatprep.subr.mxu0 0.0
      %6706 = vmatpush1.msra.mxu0 0.0
      %6707 = vmatprep.subr.mxu0 0.0
      %6708 = vmatpush1.msra.mxu0 0.0
      %6709 = vmatprep.subr.mxu0 0.0
      %6710 = vmatpush1.msra.mxu0 0.0
      %6711 = vmatprep.subr.mxu0 0.0
      %6712 = vmatpush1.msra.mxu0 0.0
      %6713 = vmatprep.subr.mxu0 0.0
      %6714 = vmatpush1.msra.mxu0 0.0
      %6715 = vmatprep.subr.mxu0 0.0
      %6716 = vmatpush1.msra.mxu0 0.0
      %6717 = vmatprep.subr.mxu0 0.0
      %6718 = vmatpush1.msra.mxu0 0.0
      %6719 = vmatprep.subr.mxu0 0.0
      %6720 = vmatpush1.msra.mxu0 0.0
      %6721 = vmatprep.subr.mxu0 0.0
      %6722 = vmatpush1.msra.mxu0 0.0
      %6723 = vmatprep.subr.mxu0 0.0
      %6724 = vmatpush1.msra.mxu0 0.0
      %6725 = vmatprep.subr.mxu0 0.0
      %6726 = vmatpush1.msra.mxu0 0.0
      %6727 = vmatprep.subr.mxu0 0.0
      %6728 = vmatpush1.msra.mxu0 0.0
      %6729 = vmatprep.subr.mxu0 0.0
      %6730 = vmatpush1.msra.mxu0 0.0
      %6731 = vmatprep.subr.mxu0 0.0
      %6732 = vmatpush1.msra.mxu0 0.0
      %6733 = vmatprep.subr.mxu0 0.0
      %6734 = vmatpush1.msra.mxu0 0.0
      %6735 = vmatprep.subr.mxu0 0.0
      %6736 = vmatpush1.msra.mxu0 0.0
      %6737 = vmatprep.subr.mxu0 0.0
      %6738 = vmatpush1.msra.mxu0 0.0
      %6739 = vmatprep.subr.mxu0 0.0
      %6740 = vmatpush1.msra.mxu0 0.0
      %6741 = vmatprep.subr.mxu0 0.0
      %6742 = vmatpush1.msra.mxu0 0.0
      %6743 = vmatprep.subr.mxu0 0.0
      %6744 = vmatpush1.msra.mxu0 0.0
      %6745 = vmatprep.subr.mxu0 0.0
      %6746 = vmatpush1.msra.mxu0 0.0
      %6747 = vmatprep.mubr.f32.mxu0 0.0
      %6748 = vmatmul.mubr.f32.gmra.mrb[0].mxu0 %v6539
      %v6749 = vpop.f32.mrb[0].mxu0
      %v6750 = vadd.f32 0.0, %v6749
      %v6751 = vpop.f32.mrb[0].mxu0
      %v6752 = vadd.f32 0.0, %v6751
      %6753 = vdwg.mxu0
      %6754 = vmatprep.subr.mxu0 %v6386
      %6755 = vmatpush1.msra.mxu0 %v6385
      %6756 = vmatprep.subr.mxu0 %v6402
      %6757 = vmatpush1.msra.mxu0 %v6401
      %6758 = vmatprep.subr.mxu0 %v6418
      %6759 = vmatpush1.msra.mxu0 %v6417
      %6760 = vmatprep.subr.mxu0 %v6434
      %6761 = vmatpush1.msra.mxu0 %v6433
      %6762 = vmatprep.subr.mxu0 %v6450
      %6763 = vmatpush1.msra.mxu0 %v6449
      %6764 = vmatprep.subr.mxu0 0.0
      %6765 = vmatpush1.msra.mxu0 0.0
      %6766 = vmatprep.subr.mxu0 0.0
      %6767 = vmatpush1.msra.mxu0 0.0
      %6768 = vmatprep.subr.mxu0 0.0
      %6769 = vmatpush1.msra.mxu0 0.0
      %6770 = vmatprep.subr.mxu0 0.0
      %6771 = vmatpush1.msra.mxu0 0.0
      %6772 = vmatprep.subr.mxu0 0.0
      %6773 = vmatpush1.msra.mxu0 0.0
      %6774 = vmatprep.subr.mxu0 0.0
      %6775 = vmatpush1.msra.mxu0 0.0
      %6776 = vmatprep.subr.mxu0 0.0
      %6777 = vmatpush1.msra.mxu0 0.0
      %6778 = vmatprep.subr.mxu0 0.0
      %6779 = vmatpush1.msra.mxu0 0.0
      %6780 = vmatprep.subr.mxu0 0.0
      %6781 = vmatpush1.msra.mxu0 0.0
      %6782 = vmatprep.subr.mxu0 0.0
      %6783 = vmatpush1.msra.mxu0 0.0
      %6784 = vmatprep.subr.mxu0 0.0
      %6785 = vmatpush1.msra.mxu0 0.0
      %6786 = vmatprep.subr.mxu0 0.0
      %6787 = vmatpush1.msra.mxu0 0.0
      %6788 = vmatprep.subr.mxu0 0.0
      %6789 = vmatpush1.msra.mxu0 0.0
      %6790 = vmatprep.subr.mxu0 0.0
      %6791 = vmatpush1.msra.mxu0 0.0
      %6792 = vmatprep.subr.mxu0 0.0
      %6793 = vmatpush1.msra.mxu0 0.0
      %6794 = vmatprep.subr.mxu0 0.0
      %6795 = vmatpush1.msra.mxu0 0.0
      %6796 = vmatprep.subr.mxu0 0.0
      %6797 = vmatpush1.msra.mxu0 0.0
      %6798 = vmatprep.subr.mxu0 0.0
      %6799 = vmatpush1.msra.mxu0 0.0
      %6800 = vmatprep.subr.mxu0 0.0
      %6801 = vmatpush1.msra.mxu0 0.0
      %6802 = vmatprep.subr.mxu0 0.0
      %6803 = vmatpush1.msra.mxu0 0.0
      %6804 = vmatprep.subr.mxu0 0.0
      %6805 = vmatpush1.msra.mxu0 0.0
      %6806 = vmatprep.subr.mxu0 0.0
      %6807 = vmatpush1.msra.mxu0 0.0
      %6808 = vmatprep.subr.mxu0 0.0
      %6809 = vmatpush1.msra.mxu0 0.0
      %6810 = vmatprep.subr.mxu0 0.0
      %6811 = vmatpush1.msra.mxu0 0.0
      %6812 = vmatprep.subr.mxu0 0.0
      %6813 = vmatpush1.msra.mxu0 0.0
      %6814 = vmatprep.subr.mxu0 0.0
      %6815 = vmatpush1.msra.mxu0 0.0
      %6816 = vmatprep.subr.mxu0 0.0
      %6817 = vmatpush1.msra.mxu0 0.0
      %6818 = vmatprep.mubr.f32.mxu0 0.0
      %6819 = vmatmul.mubr.f32.gmra.mrb[0].mxu0 %v6539
      %v6820 = vpop.f32.mrb[0].mxu0
      %v6821 = vadd.f32 0.0, %v6820
      %v6822 = vpop.f32.mrb[0].mxu0
      %v6823 = vadd.f32 0.0, %v6822
      %6824 = vdwg.mxu0
      %6825 = vmatprep.subr.mxu0 %v6388
      %6826 = vmatpush1.msra.mxu0 %v6387
      %6827 = vmatprep.subr.mxu0 %v6404
      %6828 = vmatpush1.msra.mxu0 %v6403
      %6829 = vmatprep.subr.mxu0 %v6420
      %6830 = vmatpush1.msra.mxu0 %v6419
      %6831 = vmatprep.subr.mxu0 %v6436
      %6832 = vmatpush1.msra.mxu0 %v6435
      %6833 = vmatprep.subr.mxu0 %v6452
      %6834 = vmatpush1.msra.mxu0 %v6451
      %6835 = vmatprep.subr.mxu0 0.0
      %6836 = vmatpush1.msra.mxu0 0.0
      %6837 = vmatprep.subr.mxu0 0.0
      %6838 = vmatpush1.msra.mxu0 0.0
      %6839 = vmatprep.subr.mxu0 0.0
      %6840 = vmatpush1.msra.mxu0 0.0
      %6841 = vmatprep.subr.mxu0 0.0
      %6842 = vmatpush1.msra.mxu0 0.0
      %6843 = vmatprep.subr.mxu0 0.0
      %6844 = vmatpush1.msra.mxu0 0.0
      %6845 = vmatprep.subr.mxu0 0.0
      %6846 = vmatpush1.msra.mxu0 0.0
      %6847 = vmatprep.subr.mxu0 0.0
      %6848 = vmatpush1.msra.mxu0 0.0
      %6849 = vmatprep.subr.mxu0 0.0
      %6850 = vmatpush1.msra.mxu0 0.0
      %6851 = vmatprep.subr.mxu0 0.0
      %6852 = vmatpush1.msra.mxu0 0.0
      %6853 = vmatprep.subr.mxu0 0.0
      %6854 = vmatpush1.msra.mxu0 0.0
      %6855 = vmatprep.subr.mxu0 0.0
      %6856 = vmatpush1.msra.mxu0 0.0
      %6857 = vmatprep.subr.mxu0 0.0
      %6858 = vmatpush1.msra.mxu0 0.0
      %6859 = vmatprep.subr.mxu0 0.0
      %6860 = vmatpush1.msra.mxu0 0.0
      %6861 = vmatprep.subr.mxu0 0.0
      %6862 = vmatpush1.msra.mxu0 0.0
      %6863 = vmatprep.subr.mxu0 0.0
      %6864 = vmatpush1.msra.mxu0 0.0
      %6865 = vmatprep.subr.mxu0 0.0
      %6866 = vmatpush1.msra.mxu0 0.0
      %6867 = vmatprep.subr.mxu0 0.0
      %6868 = vmatpush1.msra.mxu0 0.0
      %6869 = vmatprep.subr.mxu0 0.0
      %6870 = vmatpush1.msra.mxu0 0.0
      %6871 = vmatprep.subr.mxu0 0.0
      %6872 = vmatpush1.msra.mxu0 0.0
      %6873 = vmatprep.subr.mxu0 0.0
      %6874 = vmatpush1.msra.mxu0 0.0
      %6875 = vmatprep.subr.mxu0 0.0
      %6876 = vmatpush1.msra.mxu0 0.0
      %6877 = vmatprep.subr.mxu0 0.0
      %6878 = vmatpush1.msra.mxu0 0.0
      %6879 = vmatprep.subr.mxu0 0.0
      %6880 = vmatpush1.msra.mxu0 0.0
      %6881 = vmatprep.subr.mxu0 0.0
      %6882 = vmatpush1.msra.mxu0 0.0
      %6883 = vmatprep.subr.mxu0 0.0
      %6884 = vmatpush1.msra.mxu0 0.0
      %6885 = vmatprep.subr.mxu0 0.0
      %6886 = vmatpush1.msra.mxu0 0.0
      %6887 = vmatprep.subr.mxu0 0.0
      %6888 = vmatpush1.msra.mxu0 0.0
      %6889 = vmatprep.mubr.f32.mxu0 0.0
      %6890 = vmatmul.mubr.f32.gmra.mrb[0].mxu0 %v6539
      %v6891 = vpop.f32.mrb[0].mxu0
      %v6892 = vadd.f32 0.0, %v6891
      %v6893 = vpop.f32.mrb[0].mxu0
      %v6894 = vadd.f32 0.0, %v6893
      %6895 = vdwg.mxu0
      %6896 = vmatprep.subr.mxu0 %v6390
      %6897 = vmatpush1.msra.mxu0 %v6389
      %6898 = vmatprep.subr.mxu0 %v6406
      %6899 = vmatpush1.msra.mxu0 %v6405
      %6900 = vmatprep.subr.mxu0 %v6422
      %6901 = vmatpush1.msra.mxu0 %v6421
      %6902 = vmatprep.subr.mxu0 %v6438
      %6903 = vmatpush1.msra.mxu0 %v6437
      %6904 = vmatprep.subr.mxu0 %v6454
      %6905 = vmatpush1.msra.mxu0 %v6453
      %6906 = vmatprep.subr.mxu0 0.0
      %6907 = vmatpush1.msra.mxu0 0.0
      %6908 = vmatprep.subr.mxu0 0.0
      %6909 = vmatpush1.msra.mxu0 0.0
      %6910 = vmatprep.subr.mxu0 0.0
      %6911 = vmatpush1.msra.mxu0 0.0
      %6912 = vmatprep.subr.mxu0 0.0
      %6913 = vmatpush1.msra.mxu0 0.0
      %6914 = vmatprep.subr.mxu0 0.0
      %6915 = vmatpush1.msra.mxu0 0.0
      %6916 = vmatprep.subr.mxu0 0.0
      %6917 = vmatpush1.msra.mxu0 0.0
      %6918 = vmatprep.subr.mxu0 0.0
      %6919 = vmatpush1.msra.mxu0 0.0
      %6920 = vmatprep.subr.mxu0 0.0
      %6921 = vmatpush1.msra.mxu0 0.0
      %6922 = vmatprep.subr.mxu0 0.0
      %6923 = vmatpush1.msra.mxu0 0.0
      %6924 = vmatprep.subr.mxu0 0.0
      %6925 = vmatpush1.msra.mxu0 0.0
      %6926 = vmatprep.subr.mxu0 0.0
      %6927 = vmatpush1.msra.mxu0 0.0
      %6928 = vmatprep.subr.mxu0 0.0
      %6929 = vmatpush1.msra.mxu0 0.0
      %6930 = vmatprep.subr.mxu0 0.0
      %6931 = vmatpush1.msra.mxu0 0.0
      %6932 = vmatprep.subr.mxu0 0.0
      %6933 = vmatpush1.msra.mxu0 0.0
      %6934 = vmatprep.subr.mxu0 0.0
      %6935 = vmatpush1.msra.mxu0 0.0
      %6936 = vmatprep.subr.mxu0 0.0
      %6937 = vmatpush1.msra.mxu0 0.0
      %6938 = vmatprep.subr.mxu0 0.0
      %6939 = vmatpush1.msra.mxu0 0.0
      %6940 = vmatprep.subr.mxu0 0.0
      %6941 = vmatpush1.msra.mxu0 0.0
      %6942 = vmatprep.subr.mxu0 0.0
      %6943 = vmatpush1.msra.mxu0 0.0
      %6944 = vmatprep.subr.mxu0 0.0
      %6945 = vmatpush1.msra.mxu0 0.0
      %6946 = vmatprep.subr.mxu0 0.0
      %6947 = vmatpush1.msra.mxu0 0.0
      %6948 = vmatprep.subr.mxu0 0.0
      %6949 = vmatpush1.msra.mxu0 0.0
      %6950 = vmatprep.subr.mxu0 0.0
      %6951 = vmatpush1.msra.mxu0 0.0
      %6952 = vmatprep.subr.mxu0 0.0
      %6953 = vmatpush1.msra.mxu0 0.0
      %6954 = vmatprep.subr.mxu0 0.0
      %6955 = vmatpush1.msra.mxu0 0.0
      %6956 = vmatprep.subr.mxu0 0.0
      %6957 = vmatpush1.msra.mxu0 0.0
      %6958 = vmatprep.subr.mxu0 0.0
      %6959 = vmatpush1.msra.mxu0 0.0
      %6960 = vmatprep.mubr.f32.mxu0 0.0
      %6961 = vmatmul.mubr.f32.gmra.mrb[0].mxu0 %v6539
      %v6962 = vpop.f32.mrb[0].mxu0
      %v6963 = vadd.f32 0.0, %v6962
      %v6964 = vpop.f32.mrb[0].mxu0
      %v6965 = vadd.f32 0.0, %v6964
      %6966 = vdwg.mxu0
      %6967 = vmatprep.subr.mxu0 %v6392
      %6968 = vmatpush1.msra.mxu0 %v6391
      %6969 = vmatprep.subr.mxu0 %v6408
      %6970 = vmatpush1.msra.mxu0 %v6407
      %6971 = vmatprep.subr.mxu0 %v6424
      %6972 = vmatpush1.msra.mxu0 %v6423
      %6973 = vmatprep.subr.mxu0 %v6440
      %6974 = vmatpush1.msra.mxu0 %v6439
      %6975 = vmatprep.subr.mxu0 %v6456
      %6976 = vmatpush1.msra.mxu0 %v6455
      %6977 = vmatprep.subr.mxu0 0.0
      %6978 = vmatpush1.msra.mxu0 0.0
      %6979 = vmatprep.subr.mxu0 0.0
      %6980 = vmatpush1.msra.mxu0 0.0
      %6981 = vmatprep.subr.mxu0 0.0
      %6982 = vmatpush1.msra.mxu0 0.0
      %6983 = vmatprep.subr.mxu0 0.0
      %6984 = vmatpush1.msra.mxu0 0.0
      %6985 = vmatprep.subr.mxu0 0.0
      %6986 = vmatpush1.msra.mxu0 0.0
      %6987 = vmatprep.subr.mxu0 0.0
      %6988 = vmatpush1.msra.mxu0 0.0
      %6989 = vmatprep.subr.mxu0 0.0
      %6990 = vmatpush1.msra.mxu0 0.0
      %6991 = vmatprep.subr.mxu0 0.0
      %6992 = vmatpush1.msra.mxu0 0.0
      %6993 = vmatprep.subr.mxu0 0.0
      %6994 = vmatpush1.msra.mxu0 0.0
      %6995 = vmatprep.subr.mxu0 0.0
      %6996 = vmatpush1.msra.mxu0 0.0
      %6997 = vmatprep.subr.mxu0 0.0
      %6998 = vmatpush1.msra.mxu0 0.0
      %6999 = vmatprep.subr.mxu0 0.0
      %7000 = vmatpush1.msra.mxu0 0.0
      %7001 = vmatprep.subr.mxu0 0.0
      %7002 = vmatpush1.msra.mxu0 0.0
      %7003 = vmatprep.subr.mxu0 0.0
      %7004 = vmatpush1.msra.mxu0 0.0
      %7005 = vmatprep.subr.mxu0 0.0
      %7006 = vmatpush1.msra.mxu0 0.0
      %7007 = vmatprep.subr.mxu0 0.0
      %7008 = vmatpush1.msra.mxu0 0.0
      %7009 = vmatprep.subr.mxu0 0.0
      %7010 = vmatpush1.msra.mxu0 0.0
      %7011 = vmatprep.subr.mxu0 0.0
      %7012 = vmatpush1.msra.mxu0 0.0
      %7013 = vmatprep.subr.mxu0 0.0
      %7014 = vmatpush1.msra.mxu0 0.0
      %7015 = vmatprep.subr.mxu0 0.0
      %7016 = vmatpush1.msra.mxu0 0.0
      %7017 = vmatprep.subr.mxu0 0.0
      %7018 = vmatpush1.msra.mxu0 0.0
      %7019 = vmatprep.subr.mxu0 0.0
      %7020 = vmatpush1.msra.mxu0 0.0
      %7021 = vmatprep.subr.mxu0 0.0
      %7022 = vmatpush1.msra.mxu0 0.0
      %7023 = vmatprep.subr.mxu0 0.0
      %7024 = vmatpush1.msra.mxu0 0.0
      %7025 = vmatprep.subr.mxu0 0.0
      %7026 = vmatpush1.msra.mxu0 0.0
      %7027 = vmatprep.subr.mxu0 0.0
      %7028 = vmatpush1.msra.mxu0 0.0
      %7029 = vmatprep.subr.mxu0 0.0
      %7030 = vmatpush1.msra.mxu0 0.0
      %7031 = vmatprep.mubr.f32.mxu0 0.0
      %7032 = vmatmul.mubr.f32.gmra.mrb[0].mxu0 %v6539
      %v7033 = vpop.f32.mrb[0].mxu0
      %v7034 = vadd.f32 0.0, %v7033
      %v7035 = vpop.f32.mrb[0].mxu0
      %v7036 = vadd.f32 0.0, %v7035
      %7037 = vdwg.mxu0
      %7038 = vmatprep.subr.mxu0 %v6394
      %7039 = vmatpush1.msra.mxu0 %v6393
      %7040 = vmatprep.subr.mxu0 %v6410
      %7041 = vmatpush1.msra.mxu0 %v6409
      %7042 = vmatprep.subr.mxu0 %v6426
      %7043 = vmatpush1.msra.mxu0 %v6425
      %7044 = vmatprep.subr.mxu0 %v6442
      %7045 = vmatpush1.msra.mxu0 %v6441
      %7046 = vmatprep.subr.mxu0 %v6458
      %7047 = vmatpush1.msra.mxu0 %v6457
      %7048 = vmatprep.subr.mxu0 0.0
      %7049 = vmatpush1.msra.mxu0 0.0
      %7050 = vmatprep.subr.mxu0 0.0
      %7051 = vmatpush1.msra.mxu0 0.0
      %7052 = vmatprep.subr.mxu0 0.0
      %7053 = vmatpush1.msra.mxu0 0.0
      %7054 = vmatprep.subr.mxu0 0.0
      %7055 = vmatpush1.msra.mxu0 0.0
      %7056 = vmatprep.subr.mxu0 0.0
      %7057 = vmatpush1.msra.mxu0 0.0
      %7058 = vmatprep.subr.mxu0 0.0
      %7059 = vmatpush1.msra.mxu0 0.0
      %7060 = vmatprep.subr.mxu0 0.0
      %7061 = vmatpush1.msra.mxu0 0.0
      %7062 = vmatprep.subr.mxu0 0.0
      %7063 = vmatpush1.msra.mxu0 0.0
      %7064 = vmatprep.subr.mxu0 0.0
      %7065 = vmatpush1.msra.mxu0 0.0
      %7066 = vmatprep.subr.mxu0 0.0
      %7067 = vmatpush1.msra.mxu0 0.0
      %7068 = vmatprep.subr.mxu0 0.0
      %7069 = vmatpush1.msra.mxu0 0.0
      %7070 = vmatprep.subr.mxu0 0.0
      %7071 = vmatpush1.msra.mxu0 0.0
      %7072 = vmatprep.subr.mxu0 0.0
      %7073 = vmatpush1.msra.mxu0 0.0
      %7074 = vmatprep.subr.mxu0 0.0
      %7075 = vmatpush1.msra.mxu0 0.0
      %7076 = vmatprep.subr.mxu0 0.0
      %7077 = vmatpush1.msra.mxu0 0.0
      %7078 = vmatprep.subr.mxu0 0.0
      %7079 = vmatpush1.msra.mxu0 0.0
      %7080 = vmatprep.subr.mxu0 0.0
      %7081 = vmatpush1.msra.mxu0 0.0
      %7082 = vmatprep.subr.mxu0 0.0
      %7083 = vmatpush1.msra.mxu0 0.0
      %7084 = vmatprep.subr.mxu0 0.0
      %7085 = vmatpush1.msra.mxu0 0.0
      %7086 = vmatprep.subr.mxu0 0.0
      %7087 = vmatpush1.msra.mxu0 0.0
      %7088 = vmatprep.subr.mxu0 0.0
      %7089 = vmatpush1.msra.mxu0 0.0
      %7090 = vmatprep.subr.mxu0 0.0
      %7091 = vmatpush1.msra.mxu0 0.0
      %7092 = vmatprep.subr.mxu0 0.0
      %7093 = vmatpush1.msra.mxu0 0.0
      %7094 = vmatprep.subr.mxu0 0.0
      %7095 = vmatpush1.msra.mxu0 0.0
      %7096 = vmatprep.subr.mxu0 0.0
      %7097 = vmatpush1.msra.mxu0 0.0
      %7098 = vmatprep.subr.mxu0 0.0
      %7099 = vmatpush1.msra.mxu0 0.0
      %7100 = vmatprep.subr.mxu0 0.0
      %7101 = vmatpush1.msra.mxu0 0.0
      %7102 = vmatprep.mubr.f32.mxu0 0.0
      %7103 = vmatmul.mubr.f32.gmra.mrb[0].mxu0 %v6539
      %v7104 = vpop.f32.mrb[0].mxu0
      %v7105 = vadd.f32 0.0, %v7104
      %v7106 = vpop.f32.mrb[0].mxu0
      %v7107 = vadd.f32 0.0, %v7106
      %7108 = vdwg.mxu0
      %v7109 = vadd.f32 %v6184, %v6608
      %v7110 = vadd.f32 %v6185, %v6610
      %v7111 = vadd.f32 %v6186, %v6679
      %v7112 = vadd.f32 %v6187, %v6681
      %v7113 = vadd.f32 %v6188, %v6750
      %v7114 = vadd.f32 %v6189, %v6752
      %v7115 = vadd.f32 %v6190, %v6821
      %v7116 = vadd.f32 %v6191, %v6823
      %v7117 = vadd.f32 %v6192, %v6892
      %v7118 = vadd.f32 %v6193, %v6894
      %v7119 = vadd.f32 %v6194, %v6963
      %v7120 = vadd.f32 %v6195, %v6965
      %v7121 = vadd.f32 %v6196, %v7034
      %v7122 = vadd.f32 %v6197, %v7036
      %v7123 = vadd.f32 %v6198, %v7105
      %v7124 = vadd.f32 %v6199, %v7107
      %7125 = vrot.lane.b32.xlu0 %v6201, 96
      %v7126 = vpop.permute.xlu0 %7125
      %v7127 = vsel %vm3554, %v7126, 0
      %7129 = vmatprep.subr.mxu0 %v5113
      %7130 = vmatpush1.msra.mxu0 %v5112
      %7131 = vmatprep.subr.mxu0 %v5130
      %7132 = vmatpush1.msra.mxu0 %v5129
      %7133 = vmatprep.subr.mxu0 %v5147
      %7134 = vmatpush1.msra.mxu0 %v5146
      %7135 = vmatprep.subr.mxu0 %v5164
      %7136 = vmatpush1.msra.mxu0 %v5163
      %7137 = vmatprep.subr.mxu0 %v5181
      %7138 = vmatpush1.msra.mxu0 %v5180
      %7139 = vmatprep.subr.mxu0 0.0
      %7140 = vmatpush1.msra.mxu0 0.0
      %7141 = vmatprep.subr.mxu0 0.0
      %7142 = vmatpush1.msra.mxu0 0.0
      %7143 = vmatprep.subr.mxu0 0.0
      %7144 = vmatpush1.msra.mxu0 0.0
      %7145 = vmatprep.subr.mxu0 0.0
      %7146 = vmatpush1.msra.mxu0 0.0
      %7147 = vmatprep.subr.mxu0 0.0
      %7148 = vmatpush1.msra.mxu0 0.0
      %7149 = vmatprep.subr.mxu0 0.0
      %7150 = vmatpush1.msra.mxu0 0.0
      %7151 = vmatprep.subr.mxu0 0.0
      %7152 = vmatpush1.msra.mxu0 0.0
      %7153 = vmatprep.subr.mxu0 0.0
      %7154 = vmatpush1.msra.mxu0 0.0
      %7155 = vmatprep.subr.mxu0 0.0
      %7156 = vmatpush1.msra.mxu0 0.0
      %7157 = vmatprep.subr.mxu0 0.0
      %7158 = vmatpush1.msra.mxu0 0.0
      %7159 = vmatprep.subr.mxu0 0.0
      %7160 = vmatpush1.msra.mxu0 0.0
      %7161 = vmatprep.subr.mxu0 0.0
      %7162 = vmatpush1.msra.mxu0 0.0
      %7163 = vmatprep.subr.mxu0 0.0
      %7164 = vmatpush1.msra.mxu0 0.0
      %7165 = vmatprep.subr.mxu0 0.0
      %7166 = vmatpush1.msra.mxu0 0.0
      %7167 = vmatprep.subr.mxu0 0.0
      %7168 = vmatpush1.msra.mxu0 0.0
      %7169 = vmatprep.subr.mxu0 0.0
      %7170 = vmatpush1.msra.mxu0 0.0
      %7171 = vmatprep.subr.mxu0 0.0
      %7172 = vmatpush1.msra.mxu0 0.0
      %7173 = vmatprep.subr.mxu0 0.0
      %7174 = vmatpush1.msra.mxu0 0.0
      %7175 = vmatprep.subr.mxu0 0.0
      %7176 = vmatpush1.msra.mxu0 0.0
      %7177 = vmatprep.subr.mxu0 0.0
      %7178 = vmatpush1.msra.mxu0 0.0
      %7179 = vmatprep.subr.mxu0 0.0
      %7180 = vmatpush1.msra.mxu0 0.0
      %7181 = vmatprep.subr.mxu0 0.0
      %7182 = vmatpush1.msra.mxu0 0.0
      %7183 = vmatprep.subr.mxu0 0.0
      %7184 = vmatpush1.msra.mxu0 0.0
      %7185 = vmatprep.subr.mxu0 0.0
      %7186 = vmatpush1.msra.mxu0 0.0
      %7187 = vmatprep.subr.mxu0 0.0
      %7188 = vmatpush1.msra.mxu0 0.0
      %7189 = vmatprep.subr.mxu0 0.0
      %7190 = vmatpush1.msra.mxu0 0.0
      %7191 = vmatprep.subr.mxu0 0.0
      %7192 = vmatpush1.msra.mxu0 0.0
      %7193 = vmatprep.mubr.f32.mxu0 0.0
      %7194 = vmatmul.mubr.f32.gmra.mrb[0].mxu0 %v7127
      %v7195 = vpop.f32.mrb[0].mxu0
      %v7196 = vadd.f32 0.0, %v7195
      %v7197 = vpop.f32.mrb[0].mxu0
      %v7198 = vadd.f32 0.0, %v7197
      %7199 = vdwg.mxu0
      %7200 = vmatprep.subr.mxu0 %v5115
      %7201 = vmatpush1.msra.mxu0 %v5114
      %7202 = vmatprep.subr.mxu0 %v5132
      %7203 = vmatpush1.msra.mxu0 %v5131
      %7204 = vmatprep.subr.mxu0 %v5149
      %7205 = vmatpush1.msra.mxu0 %v5148
      %7206 = vmatprep.subr.mxu0 %v5166
      %7207 = vmatpush1.msra.mxu0 %v5165
      %7208 = vmatprep.subr.mxu0 %v5183
      %7209 = vmatpush1.msra.mxu0 %v5182
      %7210 = vmatprep.subr.mxu0 0.0
      %7211 = vmatpush1.msra.mxu0 0.0
      %7212 = vmatprep.subr.mxu0 0.0
      %7213 = vmatpush1.msra.mxu0 0.0
      %7214 = vmatprep.subr.mxu0 0.0
      %7215 = vmatpush1.msra.mxu0 0.0
      %7216 = vmatprep.subr.mxu0 0.0
      %7217 = vmatpush1.msra.mxu0 0.0
      %7218 = vmatprep.subr.mxu0 0.0
      %7219 = vmatpush1.msra.mxu0 0.0
      %7220 = vmatprep.subr.mxu0 0.0
      %7221 = vmatpush1.msra.mxu0 0.0
      %7222 = vmatprep.subr.mxu0 0.0
      %7223 = vmatpush1.msra.mxu0 0.0
      %7224 = vmatprep.subr.mxu0 0.0
      %7225 = vmatpush1.msra.mxu0 0.0
      %7226 = vmatprep.subr.mxu0 0.0
      %7227 = vmatpush1.msra.mxu0 0.0
      %7228 = vmatprep.subr.mxu0 0.0
      %7229 = vmatpush1.msra.mxu0 0.0
      %7230 = vmatprep.subr.mxu0 0.0
      %7231 = vmatpush1.msra.mxu0 0.0
      %7232 = vmatprep.subr.mxu0 0.0
      %7233 = vmatpush1.msra.mxu0 0.0
      %7234 = vmatprep.subr.mxu0 0.0
      %7235 = vmatpush1.msra.mxu0 0.0
      %7236 = vmatprep.subr.mxu0 0.0
      %7237 = vmatpush1.msra.mxu0 0.0
      %7238 = vmatprep.subr.mxu0 0.0
      %7239 = vmatpush1.msra.mxu0 0.0
      %7240 = vmatprep.subr.mxu0 0.0
      %7241 = vmatpush1.msra.mxu0 0.0
      %7242 = vmatprep.subr.mxu0 0.0
      %7243 = vmatpush1.msra.mxu0 0.0
      %7244 = vmatprep.subr.mxu0 0.0
      %7245 = vmatpush1.msra.mxu0 0.0
      %7246 = vmatprep.subr.mxu0 0.0
      %7247 = vmatpush1.msra.mxu0 0.0
      %7248 = vmatprep.subr.mxu0 0.0
      %7249 = vmatpush1.msra.mxu0 0.0
      %7250 = vmatprep.subr.mxu0 0.0
      %7251 = vmatpush1.msra.mxu0 0.0
      %7252 = vmatprep.subr.mxu0 0.0
      %7253 = vmatpush1.msra.mxu0 0.0
      %7254 = vmatprep.subr.mxu0 0.0
      %7255 = vmatpush1.msra.mxu0 0.0
      %7256 = vmatprep.subr.mxu0 0.0
      %7257 = vmatpush1.msra.mxu0 0.0
      %7258 = vmatprep.subr.mxu0 0.0
      %7259 = vmatpush1.msra.mxu0 0.0
      %7260 = vmatprep.subr.mxu0 0.0
      %7261 = vmatpush1.msra.mxu0 0.0
      %7262 = vmatprep.subr.mxu0 0.0
      %7263 = vmatpush1.msra.mxu0 0.0
      %7264 = vmatprep.mubr.f32.mxu0 0.0
      %7265 = vmatmul.mubr.f32.gmra.mrb[0].mxu0 %v7127
      %v7266 = vpop.f32.mrb[0].mxu0
      %v7267 = vadd.f32 0.0, %v7266
      %v7268 = vpop.f32.mrb[0].mxu0
      %v7269 = vadd.f32 0.0, %v7268
      %7270 = vdwg.mxu0
      %7271 = vmatprep.subr.mxu0 %v5117
      %7272 = vmatpush1.msra.mxu0 %v5116
      %7273 = vmatprep.subr.mxu0 %v5134
      %7274 = vmatpush1.msra.mxu0 %v5133
      %7275 = vmatprep.subr.mxu0 %v5151
      %7276 = vmatpush1.msra.mxu0 %v5150
      %7277 = vmatprep.subr.mxu0 %v5168
      %7278 = vmatpush1.msra.mxu0 %v5167
      %7279 = vmatprep.subr.mxu0 %v5185
      %7280 = vmatpush1.msra.mxu0 %v5184
      %7281 = vmatprep.subr.mxu0 0.0
      %7282 = vmatpush1.msra.mxu0 0.0
      %7283 = vmatprep.subr.mxu0 0.0
      %7284 = vmatpush1.msra.mxu0 0.0
      %7285 = vmatprep.subr.mxu0 0.0
      %7286 = vmatpush1.msra.mxu0 0.0
      %7287 = vmatprep.subr.mxu0 0.0
      %7288 = vmatpush1.msra.mxu0 0.0
      %7289 = vmatprep.subr.mxu0 0.0
      %7290 = vmatpush1.msra.mxu0 0.0
      %7291 = vmatprep.subr.mxu0 0.0
      %7292 = vmatpush1.msra.mxu0 0.0
      %7293 = vmatprep.subr.mxu0 0.0
      %7294 = vmatpush1.msra.mxu0 0.0
      %7295 = vmatprep.subr.mxu0 0.0
      %7296 = vmatpush1.msra.mxu0 0.0
      %7297 = vmatprep.subr.mxu0 0.0
      %7298 = vmatpush1.msra.mxu0 0.0
      %7299 = vmatprep.subr.mxu0 0.0
      %7300 = vmatpush1.msra.mxu0 0.0
      %7301 = vmatprep.subr.mxu0 0.0
      %7302 = vmatpush1.msra.mxu0 0.0
      %7303 = vmatprep.subr.mxu0 0.0
      %7304 = vmatpush1.msra.mxu0 0.0
      %7305 = vmatprep.subr.mxu0 0.0
      %7306 = vmatpush1.msra.mxu0 0.0
      %7307 = vmatprep.subr.mxu0 0.0
      %7308 = vmatpush1.msra.mxu0 0.0
      %7309 = vmatprep.subr.mxu0 0.0
      %7310 = vmatpush1.msra.mxu0 0.0
      %7311 = vmatprep.subr.mxu0 0.0
      %7312 = vmatpush1.msra.mxu0 0.0
      %7313 = vmatprep.subr.mxu0 0.0
      %7314 = vmatpush1.msra.mxu0 0.0
      %7315 = vmatprep.subr.mxu0 0.0
      %7316 = vmatpush1.msra.mxu0 0.0
      %7317 = vmatprep.subr.mxu0 0.0
      %7318 = vmatpush1.msra.mxu0 0.0
      %7319 = vmatprep.subr.mxu0 0.0
      %7320 = vmatpush1.msra.mxu0 0.0
      %7321 = vmatprep.subr.mxu0 0.0
      %7322 = vmatpush1.msra.mxu0 0.0
      %7323 = vmatprep.subr.mxu0 0.0
      %7324 = vmatpush1.msra.mxu0 0.0
      %7325 = vmatprep.subr.mxu0 0.0
      %7326 = vmatpush1.msra.mxu0 0.0
      %7327 = vmatprep.subr.mxu0 0.0
      %7328 = vmatpush1.msra.mxu0 0.0
      %7329 = vmatprep.subr.mxu0 0.0
      %7330 = vmatpush1.msra.mxu0 0.0
      %7331 = vmatprep.subr.mxu0 0.0
      %7332 = vmatpush1.msra.mxu0 0.0
      %7333 = vmatprep.subr.mxu0 0.0
      %7334 = vmatpush1.msra.mxu0 0.0
      %7335 = vmatprep.mubr.f32.mxu0 0.0
      %7336 = vmatmul.mubr.f32.gmra.mrb[0].mxu0 %v7127
      %v7337 = vpop.f32.mrb[0].mxu0
      %v7338 = vadd.f32 0.0, %v7337
      %v7339 = vpop.f32.mrb[0].mxu0
      %v7340 = vadd.f32 0.0, %v7339
      %7341 = vdwg.mxu0
      %7342 = vmatprep.subr.mxu0 %v5119
      %7343 = vmatpush1.msra.mxu0 %v5118
      %7344 = vmatprep.subr.mxu0 %v5136
      %7345 = vmatpush1.msra.mxu0 %v5135
      %7346 = vmatprep.subr.mxu0 %v5153
      %7347 = vmatpush1.msra.mxu0 %v5152
      %7348 = vmatprep.subr.mxu0 %v5170
      %7349 = vmatpush1.msra.mxu0 %v5169
      %7350 = vmatprep.subr.mxu0 %v5187
      %7351 = vmatpush1.msra.mxu0 %v5186
      %7352 = vmatprep.subr.mxu0 0.0
      %7353 = vmatpush1.msra.mxu0 0.0
      %7354 = vmatprep.subr.mxu0 0.0
      %7355 = vmatpush1.msra.mxu0 0.0
      %7356 = vmatprep.subr.mxu0 0.0
      %7357 = vmatpush1.msra.mxu0 0.0
      %7358 = vmatprep.subr.mxu0 0.0
      %7359 = vmatpush1.msra.mxu0 0.0
      %7360 = vmatprep.subr.mxu0 0.0
      %7361 = vmatpush1.msra.mxu0 0.0
      %7362 = vmatprep.subr.mxu0 0.0
      %7363 = vmatpush1.msra.mxu0 0.0
      %7364 = vmatprep.subr.mxu0 0.0
      %7365 = vmatpush1.msra.mxu0 0.0
      %7366 = vmatprep.subr.mxu0 0.0
      %7367 = vmatpush1.msra.mxu0 0.0
      %7368 = vmatprep.subr.mxu0 0.0
      %7369 = vmatpush1.msra.mxu0 0.0
      %7370 = vmatprep.subr.mxu0 0.0
      %7371 = vmatpush1.msra.mxu0 0.0
      %7372 = vmatprep.subr.mxu0 0.0
      %7373 = vmatpush1.msra.mxu0 0.0
      %7374 = vmatprep.subr.mxu0 0.0
      %7375 = vmatpush1.msra.mxu0 0.0
      %7376 = vmatprep.subr.mxu0 0.0
      %7377 = vmatpush1.msra.mxu0 0.0
      %7378 = vmatprep.subr.mxu0 0.0
      %7379 = vmatpush1.msra.mxu0 0.0
      %7380 = vmatprep.subr.mxu0 0.0
      %7381 = vmatpush1.msra.mxu0 0.0
      %7382 = vmatprep.subr.mxu0 0.0
      %7383 = vmatpush1.msra.mxu0 0.0
      %7384 = vmatprep.subr.mxu0 0.0
      %7385 = vmatpush1.msra.mxu0 0.0
      %7386 = vmatprep.subr.mxu0 0.0
      %7387 = vmatpush1.msra.mxu0 0.0
      %7388 = vmatprep.subr.mxu0 0.0
      %7389 = vmatpush1.msra.mxu0 0.0
      %7390 = vmatprep.subr.mxu0 0.0
      %7391 = vmatpush1.msra.mxu0 0.0
      %7392 = vmatprep.subr.mxu0 0.0
      %7393 = vmatpush1.msra.mxu0 0.0
      %7394 = vmatprep.subr.mxu0 0.0
      %7395 = vmatpush1.msra.mxu0 0.0
      %7396 = vmatprep.subr.mxu0 0.0
      %7397 = vmatpush1.msra.mxu0 0.0
      %7398 = vmatprep.subr.mxu0 0.0
      %7399 = vmatpush1.msra.mxu0 0.0
      %7400 = vmatprep.subr.mxu0 0.0
      %7401 = vmatpush1.msra.mxu0 0.0
      %7402 = vmatprep.subr.mxu0 0.0
      %7403 = vmatpush1.msra.mxu0 0.0
      %7404 = vmatprep.subr.mxu0 0.0
      %7405 = vmatpush1.msra.mxu0 0.0
      %7406 = vmatprep.mubr.f32.mxu0 0.0
      %7407 = vmatmul.mubr.f32.gmra.mrb[0].mxu0 %v7127
      %v7408 = vpop.f32.mrb[0].mxu0
      %v7409 = vadd.f32 0.0, %v7408
      %v7410 = vpop.f32.mrb[0].mxu0
      %v7411 = vadd.f32 0.0, %v7410
      %7412 = vdwg.mxu0
      %7413 = vmatprep.subr.mxu0 %v5121
      %7414 = vmatpush1.msra.mxu0 %v5120
      %7415 = vmatprep.subr.mxu0 %v5138
      %7416 = vmatpush1.msra.mxu0 %v5137
      %7417 = vmatprep.subr.mxu0 %v5155
      %7418 = vmatpush1.msra.mxu0 %v5154
      %7419 = vmatprep.subr.mxu0 %v5172
      %7420 = vmatpush1.msra.mxu0 %v5171
      %7421 = vmatprep.subr.mxu0 %v5189
      %7422 = vmatpush1.msra.mxu0 %v5188
      %7423 = vmatprep.subr.mxu0 0.0
      %7424 = vmatpush1.msra.mxu0 0.0
      %7425 = vmatprep.subr.mxu0 0.0
      %7426 = vmatpush1.msra.mxu0 0.0
      %7427 = vmatprep.subr.mxu0 0.0
      %7428 = vmatpush1.msra.mxu0 0.0
      %7429 = vmatprep.subr.mxu0 0.0
      %7430 = vmatpush1.msra.mxu0 0.0
      %7431 = vmatprep.subr.mxu0 0.0
      %7432 = vmatpush1.msra.mxu0 0.0
      %7433 = vmatprep.subr.mxu0 0.0
      %7434 = vmatpush1.msra.mxu0 0.0
      %7435 = vmatprep.subr.mxu0 0.0
      %7436 = vmatpush1.msra.mxu0 0.0
      %7437 = vmatprep.subr.mxu0 0.0
      %7438 = vmatpush1.msra.mxu0 0.0
      %7439 = vmatprep.subr.mxu0 0.0
      %7440 = vmatpush1.msra.mxu0 0.0
      %7441 = vmatprep.subr.mxu0 0.0
      %7442 = vmatpush1.msra.mxu0 0.0
      %7443 = vmatprep.subr.mxu0 0.0
      %7444 = vmatpush1.msra.mxu0 0.0
      %7445 = vmatprep.subr.mxu0 0.0
      %7446 = vmatpush1.msra.mxu0 0.0
      %7447 = vmatprep.subr.mxu0 0.0
      %7448 = vmatpush1.msra.mxu0 0.0
      %7449 = vmatprep.subr.mxu0 0.0
      %7450 = vmatpush1.msra.mxu0 0.0
      %7451 = vmatprep.subr.mxu0 0.0
      %7452 = vmatpush1.msra.mxu0 0.0
      %7453 = vmatprep.subr.mxu0 0.0
      %7454 = vmatpush1.msra.mxu0 0.0
      %7455 = vmatprep.subr.mxu0 0.0
      %7456 = vmatpush1.msra.mxu0 0.0
      %7457 = vmatprep.subr.mxu0 0.0
      %7458 = vmatpush1.msra.mxu0 0.0
      %7459 = vmatprep.subr.mxu0 0.0
      %7460 = vmatpush1.msra.mxu0 0.0
      %7461 = vmatprep.subr.mxu0 0.0
      %7462 = vmatpush1.msra.mxu0 0.0
      %7463 = vmatprep.subr.mxu0 0.0
      %7464 = vmatpush1.msra.mxu0 0.0
      %7465 = vmatprep.subr.mxu0 0.0
      %7466 = vmatpush1.msra.mxu0 0.0
      %7467 = vmatprep.subr.mxu0 0.0
      %7468 = vmatpush1.msra.mxu0 0.0
      %7469 = vmatprep.subr.mxu0 0.0
      %7470 = vmatpush1.msra.mxu0 0.0
      %7471 = vmatprep.subr.mxu0 0.0
      %7472 = vmatpush1.msra.mxu0 0.0
      %7473 = vmatprep.subr.mxu0 0.0
      %7474 = vmatpush1.msra.mxu0 0.0
      %7475 = vmatprep.subr.mxu0 0.0
      %7476 = vmatpush1.msra.mxu0 0.0
      %7477 = vmatprep.mubr.f32.mxu0 0.0
      %7478 = vmatmul.mubr.f32.gmra.mrb[0].mxu0 %v7127
      %v7479 = vpop.f32.mrb[0].mxu0
      %v7480 = vadd.f32 0.0, %v7479
      %v7481 = vpop.f32.mrb[0].mxu0
      %v7482 = vadd.f32 0.0, %v7481
      %7483 = vdwg.mxu0
      %7484 = vmatprep.subr.mxu0 %v5123
      %7485 = vmatpush1.msra.mxu0 %v5122
      %7486 = vmatprep.subr.mxu0 %v5140
      %7487 = vmatpush1.msra.mxu0 %v5139
      %7488 = vmatprep.subr.mxu0 %v5157
      %7489 = vmatpush1.msra.mxu0 %v5156
      %7490 = vmatprep.subr.mxu0 %v5174
      %7491 = vmatpush1.msra.mxu0 %v5173
      %7492 = vmatprep.subr.mxu0 %v5191
      %7493 = vmatpush1.msra.mxu0 %v5190
      %7494 = vmatprep.subr.mxu0 0.0
      %7495 = vmatpush1.msra.mxu0 0.0
      %7496 = vmatprep.subr.mxu0 0.0
      %7497 = vmatpush1.msra.mxu0 0.0
      %7498 = vmatprep.subr.mxu0 0.0
      %7499 = vmatpush1.msra.mxu0 0.0
      %7500 = vmatprep.subr.mxu0 0.0
      %7501 = vmatpush1.msra.mxu0 0.0
      %7502 = vmatprep.subr.mxu0 0.0
      %7503 = vmatpush1.msra.mxu0 0.0
      %7504 = vmatprep.subr.mxu0 0.0
      %7505 = vmatpush1.msra.mxu0 0.0
      %7506 = vmatprep.subr.mxu0 0.0
      %7507 = vmatpush1.msra.mxu0 0.0
      %7508 = vmatprep.subr.mxu0 0.0
      %7509 = vmatpush1.msra.mxu0 0.0
      %7510 = vmatprep.subr.mxu0 0.0
      %7511 = vmatpush1.msra.mxu0 0.0
      %7512 = vmatprep.subr.mxu0 0.0
      %7513 = vmatpush1.msra.mxu0 0.0
      %7514 = vmatprep.subr.mxu0 0.0
      %7515 = vmatpush1.msra.mxu0 0.0
      %7516 = vmatprep.subr.mxu0 0.0
      %7517 = vmatpush1.msra.mxu0 0.0
      %7518 = vmatprep.subr.mxu0 0.0
      %7519 = vmatpush1.msra.mxu0 0.0
      %7520 = vmatprep.subr.mxu0 0.0
      %7521 = vmatpush1.msra.mxu0 0.0
      %7522 = vmatprep.subr.mxu0 0.0
      %7523 = vmatpush1.msra.mxu0 0.0
      %7524 = vmatprep.subr.mxu0 0.0
      %7525 = vmatpush1.msra.mxu0 0.0
      %7526 = vmatprep.subr.mxu0 0.0
      %7527 = vmatpush1.msra.mxu0 0.0
      %7528 = vmatprep.subr.mxu0 0.0
      %7529 = vmatpush1.msra.mxu0 0.0
      %7530 = vmatprep.subr.mxu0 0.0
      %7531 = vmatpush1.msra.mxu0 0.0
      %7532 = vmatprep.subr.mxu0 0.0
      %7533 = vmatpush1.msra.mxu0 0.0
      %7534 = vmatprep.subr.mxu0 0.0
      %7535 = vmatpush1.msra.mxu0 0.0
      %7536 = vmatprep.subr.mxu0 0.0
      %7537 = vmatpush1.msra.mxu0 0.0
      %7538 = vmatprep.subr.mxu0 0.0
      %7539 = vmatpush1.msra.mxu0 0.0
      %7540 = vmatprep.subr.mxu0 0.0
      %7541 = vmatpush1.msra.mxu0 0.0
      %7542 = vmatprep.subr.mxu0 0.0
      %7543 = vmatpush1.msra.mxu0 0.0
      %7544 = vmatprep.subr.mxu0 0.0
      %7545 = vmatpush1.msra.mxu0 0.0
      %7546 = vmatprep.subr.mxu0 0.0
      %7547 = vmatpush1.msra.mxu0 0.0
      %7548 = vmatprep.mubr.f32.mxu0 0.0
      %7549 = vmatmul.mubr.f32.gmra.mrb[0].mxu0 %v7127
      %v7550 = vpop.f32.mrb[0].mxu0
      %v7551 = vadd.f32 0.0, %v7550
      %v7552 = vpop.f32.mrb[0].mxu0
      %v7553 = vadd.f32 0.0, %v7552
      %7554 = vdwg.mxu0
      %7555 = vmatprep.subr.mxu0 %v5125
      %7556 = vmatpush1.msra.mxu0 %v5124
      %7557 = vmatprep.subr.mxu0 %v5142
      %7558 = vmatpush1.msra.mxu0 %v5141
      %7559 = vmatprep.subr.mxu0 %v5159
      %7560 = vmatpush1.msra.mxu0 %v5158
      %7561 = vmatprep.subr.mxu0 %v5176
      %7562 = vmatpush1.msra.mxu0 %v5175
      %7563 = vmatprep.subr.mxu0 %v5193
      %7564 = vmatpush1.msra.mxu0 %v5192
      %7565 = vmatprep.subr.mxu0 0.0
      %7566 = vmatpush1.msra.mxu0 0.0
      %7567 = vmatprep.subr.mxu0 0.0
      %7568 = vmatpush1.msra.mxu0 0.0
      %7569 = vmatprep.subr.mxu0 0.0
      %7570 = vmatpush1.msra.mxu0 0.0
      %7571 = vmatprep.subr.mxu0 0.0
      %7572 = vmatpush1.msra.mxu0 0.0
      %7573 = vmatprep.subr.mxu0 0.0
      %7574 = vmatpush1.msra.mxu0 0.0
      %7575 = vmatprep.subr.mxu0 0.0
      %7576 = vmatpush1.msra.mxu0 0.0
      %7577 = vmatprep.subr.mxu0 0.0
      %7578 = vmatpush1.msra.mxu0 0.0
      %7579 = vmatprep.subr.mxu0 0.0
      %7580 = vmatpush1.msra.mxu0 0.0
      %7581 = vmatprep.subr.mxu0 0.0
      %7582 = vmatpush1.msra.mxu0 0.0
      %7583 = vmatprep.subr.mxu0 0.0
      %7584 = vmatpush1.msra.mxu0 0.0
      %7585 = vmatprep.subr.mxu0 0.0
      %7586 = vmatpush1.msra.mxu0 0.0
      %7587 = vmatprep.subr.mxu0 0.0
      %7588 = vmatpush1.msra.mxu0 0.0
      %7589 = vmatprep.subr.mxu0 0.0
      %7590 = vmatpush1.msra.mxu0 0.0
      %7591 = vmatprep.subr.mxu0 0.0
      %7592 = vmatpush1.msra.mxu0 0.0
      %7593 = vmatprep.subr.mxu0 0.0
      %7594 = vmatpush1.msra.mxu0 0.0
      %7595 = vmatprep.subr.mxu0 0.0
      %7596 = vmatpush1.msra.mxu0 0.0
      %7597 = vmatprep.subr.mxu0 0.0
      %7598 = vmatpush1.msra.mxu0 0.0
      %7599 = vmatprep.subr.mxu0 0.0
      %7600 = vmatpush1.msra.mxu0 0.0
      %7601 = vmatprep.subr.mxu0 0.0
      %7602 = vmatpush1.msra.mxu0 0.0
      %7603 = vmatprep.subr.mxu0 0.0
      %7604 = vmatpush1.msra.mxu0 0.0
      %7605 = vmatprep.subr.mxu0 0.0
      %7606 = vmatpush1.msra.mxu0 0.0
      %7607 = vmatprep.subr.mxu0 0.0
      %7608 = vmatpush1.msra.mxu0 0.0
      %7609 = vmatprep.subr.mxu0 0.0
      %7610 = vmatpush1.msra.mxu0 0.0
      %7611 = vmatprep.subr.mxu0 0.0
      %7612 = vmatpush1.msra.mxu0 0.0
      %7613 = vmatprep.subr.mxu0 0.0
      %7614 = vmatpush1.msra.mxu0 0.0
      %7615 = vmatprep.subr.mxu0 0.0
      %7616 = vmatpush1.msra.mxu0 0.0
      %7617 = vmatprep.subr.mxu0 0.0
      %7618 = vmatpush1.msra.mxu0 0.0
      %7619 = vmatprep.mubr.f32.mxu0 0.0
      %7620 = vmatmul.mubr.f32.gmra.mrb[0].mxu0 %v7127
      %v7621 = vpop.f32.mrb[0].mxu0
      %v7622 = vadd.f32 0.0, %v7621
      %v7623 = vpop.f32.mrb[0].mxu0
      %v7624 = vadd.f32 0.0, %v7623
      %7625 = vdwg.mxu0
      %7626 = vmatprep.subr.mxu0 %v5127
      %7627 = vmatpush1.msra.mxu0 %v5126
      %7628 = vmatprep.subr.mxu0 %v5144
      %7629 = vmatpush1.msra.mxu0 %v5143
      %7630 = vmatprep.subr.mxu0 %v5161
      %7631 = vmatpush1.msra.mxu0 %v5160
      %7632 = vmatprep.subr.mxu0 %v5178
      %7633 = vmatpush1.msra.mxu0 %v5177
      %7634 = vmatprep.subr.mxu0 %v5195
      %7635 = vmatpush1.msra.mxu0 %v5194
      %7636 = vmatprep.subr.mxu0 0.0
      %7637 = vmatpush1.msra.mxu0 0.0
      %7638 = vmatprep.subr.mxu0 0.0
      %7639 = vmatpush1.msra.mxu0 0.0
      %7640 = vmatprep.subr.mxu0 0.0
      %7641 = vmatpush1.msra.mxu0 0.0
      %7642 = vmatprep.subr.mxu0 0.0
      %7643 = vmatpush1.msra.mxu0 0.0
      %7644 = vmatprep.subr.mxu0 0.0
      %7645 = vmatpush1.msra.mxu0 0.0
      %7646 = vmatprep.subr.mxu0 0.0
      %7647 = vmatpush1.msra.mxu0 0.0
      %7648 = vmatprep.subr.mxu0 0.0
      %7649 = vmatpush1.msra.mxu0 0.0
      %7650 = vmatprep.subr.mxu0 0.0
      %7651 = vmatpush1.msra.mxu0 0.0
      %7652 = vmatprep.subr.mxu0 0.0
      %7653 = vmatpush1.msra.mxu0 0.0
      %7654 = vmatprep.subr.mxu0 0.0
      %7655 = vmatpush1.msra.mxu0 0.0
      %7656 = vmatprep.subr.mxu0 0.0
      %7657 = vmatpush1.msra.mxu0 0.0
      %7658 = vmatprep.subr.mxu0 0.0
      %7659 = vmatpush1.msra.mxu0 0.0
      %7660 = vmatprep.subr.mxu0 0.0
      %7661 = vmatpush1.msra.mxu0 0.0
      %7662 = vmatprep.subr.mxu0 0.0
      %7663 = vmatpush1.msra.mxu0 0.0
      %7664 = vmatprep.subr.mxu0 0.0
      %7665 = vmatpush1.msra.mxu0 0.0
      %7666 = vmatprep.subr.mxu0 0.0
      %7667 = vmatpush1.msra.mxu0 0.0
      %7668 = vmatprep.subr.mxu0 0.0
      %7669 = vmatpush1.msra.mxu0 0.0
      %7670 = vmatprep.subr.mxu0 0.0
      %7671 = vmatpush1.msra.mxu0 0.0
      %7672 = vmatprep.subr.mxu0 0.0
      %7673 = vmatpush1.msra.mxu0 0.0
      %7674 = vmatprep.subr.mxu0 0.0
      %7675 = vmatpush1.msra.mxu0 0.0
      %7676 = vmatprep.subr.mxu0 0.0
      %7677 = vmatpush1.msra.mxu0 0.0
      %7678 = vmatprep.subr.mxu0 0.0
      %7679 = vmatpush1.msra.mxu0 0.0
      %7680 = vmatprep.subr.mxu0 0.0
      %7681 = vmatpush1.msra.mxu0 0.0
      %7682 = vmatprep.subr.mxu0 0.0
      %7683 = vmatpush1.msra.mxu0 0.0
      %7684 = vmatprep.subr.mxu0 0.0
      %7685 = vmatpush1.msra.mxu0 0.0
      %7686 = vmatprep.subr.mxu0 0.0
      %7687 = vmatpush1.msra.mxu0 0.0
      %7688 = vmatprep.subr.mxu0 0.0
      %7689 = vmatpush1.msra.mxu0 0.0
      %7690 = vmatprep.mubr.f32.mxu0 0.0
      %7691 = vmatmul.mubr.f32.gmra.mrb[0].mxu0 %v7127
      %v7692 = vpop.f32.mrb[0].mxu0
      %v7693 = vadd.f32 0.0, %v7692
      %v7694 = vpop.f32.mrb[0].mxu0
      %v7695 = vadd.f32 0.0, %v7694
      %7696 = vdwg.mxu0
      %v7697 = vadd.f32 %v7109, %v7196
      %v7698 = vadd.f32 %v7110, %v7198
      %v7699 = vadd.f32 %v7111, %v7267
      %v7700 = vadd.f32 %v7112, %v7269
      %v7701 = vadd.f32 %v7113, %v7338
      %v7702 = vadd.f32 %v7114, %v7340
      %v7703 = vadd.f32 %v7115, %v7409
      %v7704 = vadd.f32 %v7116, %v7411
      %v7705 = vadd.f32 %v7117, %v7480
      %v7706 = vadd.f32 %v7118, %v7482
      %v7707 = vadd.f32 %v7119, %v7551
      %v7708 = vadd.f32 %v7120, %v7553
      %v7709 = vadd.f32 %v7121, %v7622
      %v7710 = vadd.f32 %v7122, %v7624
      %v7711 = vadd.f32 %v7123, %v7693
      %v7712 = vadd.f32 %v7124, %v7695
      %v7713 = vld [vmem:[#allocation3 + $0x10] sm:$0xff]
      %v7714 = vld [vmem:[#allocation3 + $0x18] sm:$0xff]
      %v7715 = vld [vmem:[#allocation3 + $0x20] sm:$0xff]
      %v7716 = vld [vmem:[#allocation3 + $0x28] sm:$0xff]
      %v7717 = vld [vmem:[#allocation3 + $0x30] sm:$0xff]
      %v7718 = vld [vmem:[#allocation3 + $0x38] sm:$0xff]
      %v7719 = vld [vmem:[#allocation3 + $0x40] sm:$0xff]
      %v7720 = vld [vmem:[#allocation3 + $0x48] sm:$0xff]
      %v7721 = vld [vmem:[#allocation3 + $0x50] sm:$0xff]
      %v7722 = vld [vmem:[#allocation3 + $0x58] sm:$0xff]
      %v7723 = vld [vmem:[#allocation3 + $0x60] sm:$0xff]
      %v7724 = vld [vmem:[#allocation3 + $0x68] sm:$0xff]
      %v7725 = vld [vmem:[#allocation3 + $0x70] sm:$0xff]
      %v7726 = vld [vmem:[#allocation3 + $0x78] sm:$0xff]
      %v7727 = vld [vmem:[#allocation3 + $0x80] sm:$0xff]
      %v7728 = vld [vmem:[#allocation3 + $0x88] sm:$0xff]
      %v7729 = vld [vmem:[#allocation3 + $0x90] sm:$0xff]
      %v7730 = vld [vmem:[#allocation3 + $0xb0] sm:$0xff]
      %v7731 = vld [vmem:[#allocation3 + $0xb8] sm:$0xff]
      %v7732 = vld [vmem:[#allocation3 + $0xc0] sm:$0xff]
      %v7733 = vld [vmem:[#allocation3 + $0xc8] sm:$0xff]
      %v7734 = vld [vmem:[#allocation3 + $0xd0] sm:$0xff]
      %v7735 = vld [vmem:[#allocation3 + $0xd8] sm:$0xff]
      %v7736 = vld [vmem:[#allocation3 + $0xe0] sm:$0xff]
      %v7737 = vld [vmem:[#allocation3 + $0xe8] sm:$0xff]
      %v7738 = vld [vmem:[#allocation3 + $0xf0] sm:$0xff]
      %v7739 = vld [vmem:[#allocation3 + $0xf8] sm:$0xff]
      %v7740 = vld [vmem:[#allocation3 + $0x100] sm:$0xff]
      %v7741 = vld [vmem:[#allocation3 + $0x108] sm:$0xff]
      %v7742 = vld [vmem:[#allocation3 + $0x110] sm:$0xff]
      %v7743 = vld [vmem:[#allocation3 + $0x118] sm:$0xff]
      %v7744 = vld [vmem:[#allocation3 + $0x120] sm:$0xff]
      %v7745 = vld [vmem:[#allocation3 + $0x128] sm:$0xff]
      %v7746 = vld [vmem:[#allocation3 + $0x130] sm:$0xff]
      %v7747 = vld [vmem:[#allocation3 + $0x150] sm:$0xff]
      %v7748 = vld [vmem:[#allocation3 + $0x158] sm:$0xff]
      %v7749 = vld [vmem:[#allocation3 + $0x160] sm:$0xff]
      %v7750 = vld [vmem:[#allocation3 + $0x168] sm:$0xff]
      %v7751 = vld [vmem:[#allocation3 + $0x170] sm:$0xff]
      %v7752 = vld [vmem:[#allocation3 + $0x178] sm:$0xff]
      %v7753 = vld [vmem:[#allocation3 + $0x180] sm:$0xff]
      %v7754 = vld [vmem:[#allocation3 + $0x188] sm:$0xff]
      %v7755 = vld [vmem:[#allocation3 + $0x190] sm:$0xff]
      %v7756 = vld [vmem:[#allocation3 + $0x198] sm:$0xff]
      %v7757 = vld [vmem:[#allocation3 + $0x1a0] sm:$0xff]
      %v7758 = vld [vmem:[#allocation3 + $0x1a8] sm:$0xff]
      %v7759 = vld [vmem:[#allocation3 + $0x1b0] sm:$0xff]
      %v7760 = vld [vmem:[#allocation3 + $0x1b8] sm:$0xff]
      %v7761 = vld [vmem:[#allocation3 + $0x1c0] sm:$0xff]
      %v7762 = vld [vmem:[#allocation3 + $0x1c8] sm:$0xff]
      %v7763 = vld [vmem:[#allocation3 + $0x1d0] sm:$0xff]
      %v7764 = vld [vmem:[#allocation3 + $0x1f0] sm:$0xff]
      %v7765 = vld [vmem:[#allocation3 + $0x1f8] sm:$0xff]
      %v7766 = vld [vmem:[#allocation3 + $0x200] sm:$0xff]
      %v7767 = vld [vmem:[#allocation3 + $0x208] sm:$0xff]
      %v7768 = vld [vmem:[#allocation3 + $0x210] sm:$0xff]
      %v7769 = vld [vmem:[#allocation3 + $0x218] sm:$0xff]
      %v7770 = vld [vmem:[#allocation3 + $0x220] sm:$0xff]
      %v7771 = vld [vmem:[#allocation3 + $0x228] sm:$0xff]
      %v7772 = vld [vmem:[#allocation3 + $0x230] sm:$0xff]
      %v7773 = vld [vmem:[#allocation3 + $0x238] sm:$0xff]
      %v7774 = vld [vmem:[#allocation3 + $0x240] sm:$0xff]
      %v7775 = vld [vmem:[#allocation3 + $0x248] sm:$0xff]
      %v7776 = vld [vmem:[#allocation3 + $0x250] sm:$0xff]
      %v7777 = vld [vmem:[#allocation3 + $0x258] sm:$0xff]
      %v7778 = vld [vmem:[#allocation3 + $0x260] sm:$0xff]
      %v7779 = vld [vmem:[#allocation3 + $0x268] sm:$0xff]
      %v7780 = vld [vmem:[#allocation3 + $0x270] sm:$0xff]
      %v7781 = vld [vmem:[#allocation3 + $0x290] sm:$0xff]
      %v7782 = vld [vmem:[#allocation3 + $0x298] sm:$0xff]
      %v7783 = vld [vmem:[#allocation3 + $0x2a0] sm:$0xff]
      %v7784 = vld [vmem:[#allocation3 + $0x2a8] sm:$0xff]
      %v7785 = vld [vmem:[#allocation3 + $0x2b0] sm:$0xff]
      %v7786 = vld [vmem:[#allocation3 + $0x2b8] sm:$0xff]
      %v7787 = vld [vmem:[#allocation3 + $0x2c0] sm:$0xff]
      %v7788 = vld [vmem:[#allocation3 + $0x2c8] sm:$0xff]
      %v7789 = vld [vmem:[#allocation3 + $0x2d0] sm:$0xff]
      %v7790 = vld [vmem:[#allocation3 + $0x2d8] sm:$0xff]
      %v7791 = vld [vmem:[#allocation3 + $0x2e0] sm:$0xff]
      %v7792 = vld [vmem:[#allocation3 + $0x2e8] sm:$0xff]
      %v7793 = vld [vmem:[#allocation3 + $0x2f0] sm:$0xff]
      %v7794 = vld [vmem:[#allocation3 + $0x2f8] sm:$0xff]
      %v7795 = vld [vmem:[#allocation3 + $0x300] sm:$0xff]
      %v7796 = vld [vmem:[#allocation3 + $0x308] sm:$0xff]
      %v7797 = vld [vmem:[#allocation3 + $0x310] sm:$0xff]
      %7798 = vrot.lane.b32.xlu0 %v6201, 56
      %v7799 = vpop.permute.xlu0 %7798
      %7885 = vrot.lane.b32.xlu0 %v7713, 127
      %v7886 = vpop.permute.xlu0 %7885
      %7887 = vrot.lane.b32.xlu0 %v7714, 127
      %v7888 = vpop.permute.xlu0 %7887
      %7889 = vrot.lane.b32.xlu0 %v7715, 127
      %v7890 = vpop.permute.xlu0 %7889
      %7891 = vrot.lane.b32.xlu0 %v7716, 127
      %v7892 = vpop.permute.xlu0 %7891
      %7893 = vrot.lane.b32.xlu0 %v7717, 127
      %v7894 = vpop.permute.xlu0 %7893
      %7895 = vrot.lane.b32.xlu0 %v7718, 127
      %v7896 = vpop.permute.xlu0 %7895
      %7897 = vrot.lane.b32.xlu0 %v7719, 127
      %v7898 = vpop.permute.xlu0 %7897
      %7899 = vrot.lane.b32.xlu0 %v7720, 127
      %v7900 = vpop.permute.xlu0 %7899
      %7901 = vrot.lane.b32.xlu0 %v7721, 127
      %v7902 = vpop.permute.xlu0 %7901
      %7903 = vrot.lane.b32.xlu0 %v7722, 127
      %v7904 = vpop.permute.xlu0 %7903
      %7905 = vrot.lane.b32.xlu0 %v7723, 127
      %v7906 = vpop.permute.xlu0 %7905
      %7907 = vrot.lane.b32.xlu0 %v7724, 127
      %v7908 = vpop.permute.xlu0 %7907
      %7909 = vrot.lane.b32.xlu0 %v7725, 127
      %v7910 = vpop.permute.xlu0 %7909
      %7911 = vrot.lane.b32.xlu0 %v7726, 127
      %v7912 = vpop.permute.xlu0 %7911
      %7913 = vrot.lane.b32.xlu0 %v7727, 127
      %v7914 = vpop.permute.xlu0 %7913
      %7915 = vrot.lane.b32.xlu0 %v7728, 127
      %v7916 = vpop.permute.xlu0 %7915
      %7917 = vrot.lane.b32.xlu0 %v7729, 127
      %v7918 = vpop.permute.xlu0 %7917
      %7919 = vrot.lane.b32.xlu0 %v7730, 127
      %v7920 = vpop.permute.xlu0 %7919
      %7921 = vrot.lane.b32.xlu0 %v7731, 127
      %v7922 = vpop.permute.xlu0 %7921
      %7923 = vrot.lane.b32.xlu0 %v7732, 127
      %v7924 = vpop.permute.xlu0 %7923
      %7925 = vrot.lane.b32.xlu0 %v7733, 127
      %v7926 = vpop.permute.xlu0 %7925
      %7927 = vrot.lane.b32.xlu0 %v7734, 127
      %v7928 = vpop.permute.xlu0 %7927
      %7929 = vrot.lane.b32.xlu0 %v7735, 127
      %v7930 = vpop.permute.xlu0 %7929
      %7931 = vrot.lane.b32.xlu0 %v7736, 127
      %v7932 = vpop.permute.xlu0 %7931
      %7933 = vrot.lane.b32.xlu0 %v7737, 127
      %v7934 = vpop.permute.xlu0 %7933
      %7935 = vrot.lane.b32.xlu0 %v7738, 127
      %v7936 = vpop.permute.xlu0 %7935
      %7937 = vrot.lane.b32.xlu0 %v7739, 127
      %v7938 = vpop.permute.xlu0 %7937
      %7939 = vrot.lane.b32.xlu0 %v7740, 127
      %v7940 = vpop.permute.xlu0 %7939
      %7941 = vrot.lane.b32.xlu0 %v7741, 127
      %v7942 = vpop.permute.xlu0 %7941
      %7943 = vrot.lane.b32.xlu0 %v7742, 127
      %v7944 = vpop.permute.xlu0 %7943
      %7945 = vrot.lane.b32.xlu0 %v7743, 127
      %v7946 = vpop.permute.xlu0 %7945
      %7947 = vrot.lane.b32.xlu0 %v7744, 127
      %v7948 = vpop.permute.xlu0 %7947
      %7949 = vrot.lane.b32.xlu0 %v7745, 127
      %v7950 = vpop.permute.xlu0 %7949
      %7951 = vrot.lane.b32.xlu0 %v7746, 127
      %v7952 = vpop.permute.xlu0 %7951
      %7953 = vrot.lane.b32.xlu0 %v7747, 127
      %v7954 = vpop.permute.xlu0 %7953
      %7955 = vrot.lane.b32.xlu0 %v7748, 127
      %v7956 = vpop.permute.xlu0 %7955
      %7957 = vrot.lane.b32.xlu0 %v7749, 127
      %v7958 = vpop.permute.xlu0 %7957
      %7959 = vrot.lane.b32.xlu0 %v7750, 127
      %v7960 = vpop.permute.xlu0 %7959
      %7961 = vrot.lane.b32.xlu0 %v7751, 127
      %v7962 = vpop.permute.xlu0 %7961
      %7963 = vrot.lane.b32.xlu0 %v7752, 127
      %v7964 = vpop.permute.xlu0 %7963
      %7965 = vrot.lane.b32.xlu0 %v7753, 127
      %v7966 = vpop.permute.xlu0 %7965
      %7967 = vrot.lane.b32.xlu0 %v7754, 127
      %v7968 = vpop.permute.xlu0 %7967
      %7969 = vrot.lane.b32.xlu0 %v7755, 127
      %v7970 = vpop.permute.xlu0 %7969
      %7971 = vrot.lane.b32.xlu0 %v7756, 127
      %v7972 = vpop.permute.xlu0 %7971
      %7973 = vrot.lane.b32.xlu0 %v7757, 127
      %v7974 = vpop.permute.xlu0 %7973
      %7975 = vrot.lane.b32.xlu0 %v7758, 127
      %v7976 = vpop.permute.xlu0 %7975
      %7977 = vrot.lane.b32.xlu0 %v7759, 127
      %v7978 = vpop.permute.xlu0 %7977
      %7979 = vrot.lane.b32.xlu0 %v7760, 127
      %v7980 = vpop.permute.xlu0 %7979
      %7981 = vrot.lane.b32.xlu0 %v7761, 127
      %v7982 = vpop.permute.xlu0 %7981
      %7983 = vrot.lane.b32.xlu0 %v7762, 127
      %v7984 = vpop.permute.xlu0 %7983
      %7985 = vrot.lane.b32.xlu0 %v7763, 127
      %v7986 = vpop.permute.xlu0 %7985
      %7987 = vrot.lane.b32.xlu0 %v7764, 127
      %v7988 = vpop.permute.xlu0 %7987
      %7989 = vrot.lane.b32.xlu0 %v7765, 127
      %v7990 = vpop.permute.xlu0 %7989
      %7991 = vrot.lane.b32.xlu0 %v7766, 127
      %v7992 = vpop.permute.xlu0 %7991
      %7993 = vrot.lane.b32.xlu0 %v7767, 127
      %v7994 = vpop.permute.xlu0 %7993
      %7995 = vrot.lane.b32.xlu0 %v7768, 127
      %v7996 = vpop.permute.xlu0 %7995
      %7997 = vrot.lane.b32.xlu0 %v7769, 127
      %v7998 = vpop.permute.xlu0 %7997
      %7999 = vrot.lane.b32.xlu0 %v7770, 127
      %v8000 = vpop.permute.xlu0 %7999
      %8001 = vrot.lane.b32.xlu0 %v7771, 127
      %v8002 = vpop.permute.xlu0 %8001
      %8003 = vrot.lane.b32.xlu0 %v7772, 127
      %v8004 = vpop.permute.xlu0 %8003
      %8005 = vrot.lane.b32.xlu0 %v7773, 127
      %v8006 = vpop.permute.xlu0 %8005
      %8007 = vrot.lane.b32.xlu0 %v7774, 127
      %v8008 = vpop.permute.xlu0 %8007
      %8009 = vrot.lane.b32.xlu0 %v7775, 127
      %v8010 = vpop.permute.xlu0 %8009
      %8011 = vrot.lane.b32.xlu0 %v7776, 127
      %v8012 = vpop.permute.xlu0 %8011
      %8013 = vrot.lane.b32.xlu0 %v7777, 127
      %v8014 = vpop.permute.xlu0 %8013
      %8015 = vrot.lane.b32.xlu0 %v7778, 127
      %v8016 = vpop.permute.xlu0 %8015
      %8017 = vrot.lane.b32.xlu0 %v7779, 127
      %v8018 = vpop.permute.xlu0 %8017
      %8019 = vrot.lane.b32.xlu0 %v7780, 127
      %v8020 = vpop.permute.xlu0 %8019
      %8021 = vrot.lane.b32.xlu0 %v7781, 127
      %v8022 = vpop.permute.xlu0 %8021
      %8023 = vrot.lane.b32.xlu0 %v7782, 127
      %v8024 = vpop.permute.xlu0 %8023
      %8025 = vrot.lane.b32.xlu0 %v7783, 127
      %v8026 = vpop.permute.xlu0 %8025
      %8027 = vrot.lane.b32.xlu0 %v7784, 127
      %v8028 = vpop.permute.xlu0 %8027
      %8029 = vrot.lane.b32.xlu0 %v7785, 127
      %v8030 = vpop.permute.xlu0 %8029
      %8031 = vrot.lane.b32.xlu0 %v7786, 127
      %v8032 = vpop.permute.xlu0 %8031
      %8033 = vrot.lane.b32.xlu0 %v7787, 127
      %v8034 = vpop.permute.xlu0 %8033
      %8035 = vrot.lane.b32.xlu0 %v7788, 127
      %v8036 = vpop.permute.xlu0 %8035
      %8037 = vrot.lane.b32.xlu0 %v7789, 127
      %v8038 = vpop.permute.xlu0 %8037
      %8039 = vrot.lane.b32.xlu0 %v7790, 127
      %v8040 = vpop.permute.xlu0 %8039
      %8041 = vrot.lane.b32.xlu0 %v7791, 127
      %v8042 = vpop.permute.xlu0 %8041
      %8043 = vrot.lane.b32.xlu0 %v7792, 127
      %v8044 = vpop.permute.xlu0 %8043
      %8045 = vrot.lane.b32.xlu0 %v7793, 127
      %v8046 = vpop.permute.xlu0 %8045
      %8047 = vrot.lane.b32.xlu0 %v7794, 127
      %v8048 = vpop.permute.xlu0 %8047
      %8049 = vrot.lane.b32.xlu0 %v7795, 127
      %v8050 = vpop.permute.xlu0 %8049
      %8051 = vrot.lane.b32.xlu0 %v7796, 127
      %v8052 = vpop.permute.xlu0 %8051
      %8053 = vrot.lane.b32.xlu0 %v7797, 127
      %v8054 = vpop.permute.xlu0 %8053
      %v8055 = vsel %vm5453, %v7886, %v7888
      %v8056 = vsel %vm5453, %v7888, %v7890
      %v8057 = vsel %vm5453, %v7890, %v7892
      %v8058 = vsel %vm5453, %v7892, %v7894
      %v8059 = vsel %vm5453, %v7894, %v7896
      %v8060 = vsel %vm5453, %v7896, %v7898
      %v8061 = vsel %vm5453, %v7898, %v7900
      %v8062 = vsel %vm5453, %v7900, %v7902
      %v8063 = vsel %vm5453, %v7902, %v7904
      %v8064 = vsel %vm5453, %v7904, %v7906
      %v8065 = vsel %vm5453, %v7906, %v7908
      %v8066 = vsel %vm5453, %v7908, %v7910
      %v8067 = vsel %vm5453, %v7910, %v7912
      %v8068 = vsel %vm5453, %v7912, %v7914
      %v8069 = vsel %vm5453, %v7914, %v7916
      %v8070 = vsel %vm5453, %v7916, %v7918
      %v8071 = vsel %vm5453, %v7920, %v7922
      %v8072 = vsel %vm5453, %v7922, %v7924
      %v8073 = vsel %vm5453, %v7924, %v7926
      %v8074 = vsel %vm5453, %v7926, %v7928
      %v8075 = vsel %vm5453, %v7928, %v7930
      %v8076 = vsel %vm5453, %v7930, %v7932
      %v8077 = vsel %vm5453, %v7932, %v7934
      %v8078 = vsel %vm5453, %v7934, %v7936
      %v8079 = vsel %vm5453, %v7936, %v7938
      %v8080 = vsel %vm5453, %v7938, %v7940
      %v8081 = vsel %vm5453, %v7940, %v7942
      %v8082 = vsel %vm5453, %v7942, %v7944
      %v8083 = vsel %vm5453, %v7944, %v7946
      %v8084 = vsel %vm5453, %v7946, %v7948
      %v8085 = vsel %vm5453, %v7948, %v7950
      %v8086 = vsel %vm5453, %v7950, %v7952
      %v8087 = vsel %vm5453, %v7954, %v7956
      %v8088 = vsel %vm5453, %v7956, %v7958
      %v8089 = vsel %vm5453, %v7958, %v7960
      %v8090 = vsel %vm5453, %v7960, %v7962
      %v8091 = vsel %vm5453, %v7962, %v7964
      %v8092 = vsel %vm5453, %v7964, %v7966
      %v8093 = vsel %vm5453, %v7966, %v7968
      %v8094 = vsel %vm5453, %v7968, %v7970
      %v8095 = vsel %vm5453, %v7970, %v7972
      %v8096 = vsel %vm5453, %v7972, %v7974
      %v8097 = vsel %vm5453, %v7974, %v7976
      %v8098 = vsel %vm5453, %v7976, %v7978
      %v8099 = vsel %vm5453, %v7978, %v7980
      %v8100 = vsel %vm5453, %v7980, %v7982
      %v8101 = vsel %vm5453, %v7982, %v7984
      %v8102 = vsel %vm5453, %v7984, %v7986
      %v8103 = vsel %vm5453, %v7988, %v7990
      %v8104 = vsel %vm5453, %v7990, %v7992
      %v8105 = vsel %vm5453, %v7992, %v7994
      %v8106 = vsel %vm5453, %v7994, %v7996
      %v8107 = vsel %vm5453, %v7996, %v7998
      %v8108 = vsel %vm5453, %v7998, %v8000
      %v8109 = vsel %vm5453, %v8000, %v8002
      %v8110 = vsel %vm5453, %v8002, %v8004
      %v8111 = vsel %vm5453, %v8004, %v8006
      %v8112 = vsel %vm5453, %v8006, %v8008
      %v8113 = vsel %vm5453, %v8008, %v8010
      %v8114 = vsel %vm5453, %v8010, %v8012
      %v8115 = vsel %vm5453, %v8012, %v8014
      %v8116 = vsel %vm5453, %v8014, %v8016
      %v8117 = vsel %vm5453, %v8016, %v8018
      %v8118 = vsel %vm5453, %v8018, %v8020
      %v8119 = vsel %vm5453, %v8022, %v8024
      %v8120 = vsel %vm5453, %v8024, %v8026
      %v8121 = vsel %vm5453, %v8026, %v8028
      %v8122 = vsel %vm5453, %v8028, %v8030
      %v8123 = vsel %vm5453, %v8030, %v8032
      %v8124 = vsel %vm5453, %v8032, %v8034
      %v8125 = vsel %vm5453, %v8034, %v8036
      %v8126 = vsel %vm5453, %v8036, %v8038
      %v8127 = vsel %vm5453, %v8038, %v8040
      %v8128 = vsel %vm5453, %v8040, %v8042
      %v8129 = vsel %vm5453, %v8042, %v8044
      %v8130 = vsel %vm5453, %v8044, %v8046
      %v8131 = vsel %vm5453, %v8046, %v8048
      %v8132 = vsel %vm5453, %v8048, %v8050
      %v8133 = vsel %vm5453, %v8050, %v8052
      %v8134 = vsel %vm5453, %v8052, %v8054
      %v8215 = vsel %vm3554, %v7799, 0
      %8217 = vmatprep.subr.mxu0 %v8056
      %8218 = vmatpush1.msra.mxu0 %v8055
      %8219 = vmatprep.subr.mxu0 %v8072
      %8220 = vmatpush1.msra.mxu0 %v8071
      %8221 = vmatprep.subr.mxu0 %v8088
      %8222 = vmatpush1.msra.mxu0 %v8087
      %8223 = vmatprep.subr.mxu0 %v8104
      %8224 = vmatpush1.msra.mxu0 %v8103
      %8225 = vmatprep.subr.mxu0 %v8120
      %8226 = vmatpush1.msra.mxu0 %v8119
      %8227 = vmatprep.subr.mxu0 0.0
      %8228 = vmatpush1.msra.mxu0 0.0
      %8229 = vmatprep.subr.mxu0 0.0
      %8230 = vmatpush1.msra.mxu0 0.0
      %8231 = vmatprep.subr.mxu0 0.0
      %8232 = vmatpush1.msra.mxu0 0.0
      %8233 = vmatprep.subr.mxu0 0.0
      %8234 = vmatpush1.msra.mxu0 0.0
      %8235 = vmatprep.subr.mxu0 0.0
      %8236 = vmatpush1.msra.mxu0 0.0
      %8237 = vmatprep.subr.mxu0 0.0
      %8238 = vmatpush1.msra.mxu0 0.0
      %8239 = vmatprep.subr.mxu0 0.0
      %8240 = vmatpush1.msra.mxu0 0.0
      %8241 = vmatprep.subr.mxu0 0.0
      %8242 = vmatpush1.msra.mxu0 0.0
      %8243 = vmatprep.subr.mxu0 0.0
      %8244 = vmatpush1.msra.mxu0 0.0
      %8245 = vmatprep.subr.mxu0 0.0
      %8246 = vmatpush1.msra.mxu0 0.0
      %8247 = vmatprep.subr.mxu0 0.0
      %8248 = vmatpush1.msra.mxu0 0.0
      %8249 = vmatprep.subr.mxu0 0.0
      %8250 = vmatpush1.msra.mxu0 0.0
      %8251 = vmatprep.subr.mxu0 0.0
      %8252 = vmatpush1.msra.mxu0 0.0
      %8253 = vmatprep.subr.mxu0 0.0
      %8254 = vmatpush1.msra.mxu0 0.0
      %8255 = vmatprep.subr.mxu0 0.0
      %8256 = vmatpush1.msra.mxu0 0.0
      %8257 = vmatprep.subr.mxu0 0.0
      %8258 = vmatpush1.msra.mxu0 0.0
      %8259 = vmatprep.subr.mxu0 0.0
      %8260 = vmatpush1.msra.mxu0 0.0
      %8261 = vmatprep.subr.mxu0 0.0
      %8262 = vmatpush1.msra.mxu0 0.0
      %8263 = vmatprep.subr.mxu0 0.0
      %8264 = vmatpush1.msra.mxu0 0.0
      %8265 = vmatprep.subr.mxu0 0.0
      %8266 = vmatpush1.msra.mxu0 0.0
      %8267 = vmatprep.subr.mxu0 0.0
      %8268 = vmatpush1.msra.mxu0 0.0
      %8269 = vmatprep.subr.mxu0 0.0
      %8270 = vmatpush1.msra.mxu0 0.0
      %8271 = vmatprep.subr.mxu0 0.0
      %8272 = vmatpush1.msra.mxu0 0.0
      %8273 = vmatprep.subr.mxu0 0.0
      %8274 = vmatpush1.msra.mxu0 0.0
      %8275 = vmatprep.subr.mxu0 0.0
      %8276 = vmatpush1.msra.mxu0 0.0
      %8277 = vmatprep.subr.mxu0 0.0
      %8278 = vmatpush1.msra.mxu0 0.0
      %8279 = vmatprep.subr.mxu0 0.0
      %8280 = vmatpush1.msra.mxu0 0.0
      %8281 = vmatprep.mubr.f32.mxu0 0.0
      %8282 = vmatmul.mubr.f32.gmra.mrb[0].mxu0 %v8215
      %v8283 = vpop.f32.mrb[0].mxu0
      %v8284 = vadd.f32 0.0, %v8283
      %v8285 = vpop.f32.mrb[0].mxu0
      %v8286 = vadd.f32 0.0, %v8285
      %8287 = vdwg.mxu0
      %8288 = vmatprep.subr.mxu0 %v8058
      %8289 = vmatpush1.msra.mxu0 %v8057
      %8290 = vmatprep.subr.mxu0 %v8074
      %8291 = vmatpush1.msra.mxu0 %v8073
      %8292 = vmatprep.subr.mxu0 %v8090
      %8293 = vmatpush1.msra.mxu0 %v8089
      %8294 = vmatprep.subr.mxu0 %v8106
      %8295 = vmatpush1.msra.mxu0 %v8105
      %8296 = vmatprep.subr.mxu0 %v8122
      %8297 = vmatpush1.msra.mxu0 %v8121
      %8298 = vmatprep.subr.mxu0 0.0
      %8299 = vmatpush1.msra.mxu0 0.0
      %8300 = vmatprep.subr.mxu0 0.0
      %8301 = vmatpush1.msra.mxu0 0.0
      %8302 = vmatprep.subr.mxu0 0.0
      %8303 = vmatpush1.msra.mxu0 0.0
      %8304 = vmatprep.subr.mxu0 0.0
      %8305 = vmatpush1.msra.mxu0 0.0
      %8306 = vmatprep.subr.mxu0 0.0
      %8307 = vmatpush1.msra.mxu0 0.0
      %8308 = vmatprep.subr.mxu0 0.0
      %8309 = vmatpush1.msra.mxu0 0.0
      %8310 = vmatprep.subr.mxu0 0.0
      %8311 = vmatpush1.msra.mxu0 0.0
      %8312 = vmatprep.subr.mxu0 0.0
      %8313 = vmatpush1.msra.mxu0 0.0
      %8314 = vmatprep.subr.mxu0 0.0
      %8315 = vmatpush1.msra.mxu0 0.0
      %8316 = vmatprep.subr.mxu0 0.0
      %8317 = vmatpush1.msra.mxu0 0.0
      %8318 = vmatprep.subr.mxu0 0.0
      %8319 = vmatpush1.msra.mxu0 0.0
      %8320 = vmatprep.subr.mxu0 0.0
      %8321 = vmatpush1.msra.mxu0 0.0
      %8322 = vmatprep.subr.mxu0 0.0
      %8323 = vmatpush1.msra.mxu0 0.0
      %8324 = vmatprep.subr.mxu0 0.0
      %8325 = vmatpush1.msra.mxu0 0.0
      %8326 = vmatprep.subr.mxu0 0.0
      %8327 = vmatpush1.msra.mxu0 0.0
      %8328 = vmatprep.subr.mxu0 0.0
      %8329 = vmatpush1.msra.mxu0 0.0
      %8330 = vmatprep.subr.mxu0 0.0
      %8331 = vmatpush1.msra.mxu0 0.0
      %8332 = vmatprep.subr.mxu0 0.0
      %8333 = vmatpush1.msra.mxu0 0.0
      %8334 = vmatprep.subr.mxu0 0.0
      %8335 = vmatpush1.msra.mxu0 0.0
      %8336 = vmatprep.subr.mxu0 0.0
      %8337 = vmatpush1.msra.mxu0 0.0
      %8338 = vmatprep.subr.mxu0 0.0
      %8339 = vmatpush1.msra.mxu0 0.0
      %8340 = vmatprep.subr.mxu0 0.0
      %8341 = vmatpush1.msra.mxu0 0.0
      %8342 = vmatprep.subr.mxu0 0.0
      %8343 = vmatpush1.msra.mxu0 0.0
      %8344 = vmatprep.subr.mxu0 0.0
      %8345 = vmatpush1.msra.mxu0 0.0
      %8346 = vmatprep.subr.mxu0 0.0
      %8347 = vmatpush1.msra.mxu0 0.0
      %8348 = vmatprep.subr.mxu0 0.0
      %8349 = vmatpush1.msra.mxu0 0.0
      %8350 = vmatprep.subr.mxu0 0.0
      %8351 = vmatpush1.msra.mxu0 0.0
      %8352 = vmatprep.mubr.f32.mxu0 0.0
      %8353 = vmatmul.mubr.f32.gmra.mrb[0].mxu0 %v8215
      %v8354 = vpop.f32.mrb[0].mxu0
      %v8355 = vadd.f32 0.0, %v8354
      %v8356 = vpop.f32.mrb[0].mxu0
      %v8357 = vadd.f32 0.0, %v8356
      %8358 = vdwg.mxu0
      %8359 = vmatprep.subr.mxu0 %v8060
      %8360 = vmatpush1.msra.mxu0 %v8059
      %8361 = vmatprep.subr.mxu0 %v8076
      %8362 = vmatpush1.msra.mxu0 %v8075
      %8363 = vmatprep.subr.mxu0 %v8092
      %8364 = vmatpush1.msra.mxu0 %v8091
      %8365 = vmatprep.subr.mxu0 %v8108
      %8366 = vmatpush1.msra.mxu0 %v8107
      %8367 = vmatprep.subr.mxu0 %v8124
      %8368 = vmatpush1.msra.mxu0 %v8123
      %8369 = vmatprep.subr.mxu0 0.0
      %8370 = vmatpush1.msra.mxu0 0.0
      %8371 = vmatprep.subr.mxu0 0.0
      %8372 = vmatpush1.msra.mxu0 0.0
      %8373 = vmatprep.subr.mxu0 0.0
      %8374 = vmatpush1.msra.mxu0 0.0
      %8375 = vmatprep.subr.mxu0 0.0
      %8376 = vmatpush1.msra.mxu0 0.0
      %8377 = vmatprep.subr.mxu0 0.0
      %8378 = vmatpush1.msra.mxu0 0.0
      %8379 = vmatprep.subr.mxu0 0.0
      %8380 = vmatpush1.msra.mxu0 0.0
      %8381 = vmatprep.subr.mxu0 0.0
      %8382 = vmatpush1.msra.mxu0 0.0
      %8383 = vmatprep.subr.mxu0 0.0
      %8384 = vmatpush1.msra.mxu0 0.0
      %8385 = vmatprep.subr.mxu0 0.0
      %8386 = vmatpush1.msra.mxu0 0.0
      %8387 = vmatprep.subr.mxu0 0.0
      %8388 = vmatpush1.msra.mxu0 0.0
      %8389 = vmatprep.subr.mxu0 0.0
      %8390 = vmatpush1.msra.mxu0 0.0
      %8391 = vmatprep.subr.mxu0 0.0
      %8392 = vmatpush1.msra.mxu0 0.0
      %8393 = vmatprep.subr.mxu0 0.0
      %8394 = vmatpush1.msra.mxu0 0.0
      %8395 = vmatprep.subr.mxu0 0.0
      %8396 = vmatpush1.msra.mxu0 0.0
      %8397 = vmatprep.subr.mxu0 0.0
      %8398 = vmatpush1.msra.mxu0 0.0
      %8399 = vmatprep.subr.mxu0 0.0
      %8400 = vmatpush1.msra.mxu0 0.0
      %8401 = vmatprep.subr.mxu0 0.0
      %8402 = vmatpush1.msra.mxu0 0.0
      %8403 = vmatprep.subr.mxu0 0.0
      %8404 = vmatpush1.msra.mxu0 0.0
      %8405 = vmatprep.subr.mxu0 0.0
      %8406 = vmatpush1.msra.mxu0 0.0
      %8407 = vmatprep.subr.mxu0 0.0
      %8408 = vmatpush1.msra.mxu0 0.0
      %8409 = vmatprep.subr.mxu0 0.0
      %8410 = vmatpush1.msra.mxu0 0.0
      %8411 = vmatprep.subr.mxu0 0.0
      %8412 = vmatpush1.msra.mxu0 0.0
      %8413 = vmatprep.subr.mxu0 0.0
      %8414 = vmatpush1.msra.mxu0 0.0
      %8415 = vmatprep.subr.mxu0 0.0
      %8416 = vmatpush1.msra.mxu0 0.0
      %8417 = vmatprep.subr.mxu0 0.0
      %8418 = vmatpush1.msra.mxu0 0.0
      %8419 = vmatprep.subr.mxu0 0.0
      %8420 = vmatpush1.msra.mxu0 0.0
      %8421 = vmatprep.subr.mxu0 0.0
      %8422 = vmatpush1.msra.mxu0 0.0
      %8423 = vmatprep.mubr.f32.mxu0 0.0
      %8424 = vmatmul.mubr.f32.gmra.mrb[0].mxu0 %v8215
      %v8425 = vpop.f32.mrb[0].mxu0
      %v8426 = vadd.f32 0.0, %v8425
      %v8427 = vpop.f32.mrb[0].mxu0
      %v8428 = vadd.f32 0.0, %v8427
      %8429 = vdwg.mxu0
      %8430 = vmatprep.subr.mxu0 %v8062
      %8431 = vmatpush1.msra.mxu0 %v8061
      %8432 = vmatprep.subr.mxu0 %v8078
      %8433 = vmatpush1.msra.mxu0 %v8077
      %8434 = vmatprep.subr.mxu0 %v8094
      %8435 = vmatpush1.msra.mxu0 %v8093
      %8436 = vmatprep.subr.mxu0 %v8110
      %8437 = vmatpush1.msra.mxu0 %v8109
      %8438 = vmatprep.subr.mxu0 %v8126
      %8439 = vmatpush1.msra.mxu0 %v8125
      %8440 = vmatprep.subr.mxu0 0.0
      %8441 = vmatpush1.msra.mxu0 0.0
      %8442 = vmatprep.subr.mxu0 0.0
      %8443 = vmatpush1.msra.mxu0 0.0
      %8444 = vmatprep.subr.mxu0 0.0
      %8445 = vmatpush1.msra.mxu0 0.0
      %8446 = vmatprep.subr.mxu0 0.0
      %8447 = vmatpush1.msra.mxu0 0.0
      %8448 = vmatprep.subr.mxu0 0.0
      %8449 = vmatpush1.msra.mxu0 0.0
      %8450 = vmatprep.subr.mxu0 0.0
      %8451 = vmatpush1.msra.mxu0 0.0
      %8452 = vmatprep.subr.mxu0 0.0
      %8453 = vmatpush1.msra.mxu0 0.0
      %8454 = vmatprep.subr.mxu0 0.0
      %8455 = vmatpush1.msra.mxu0 0.0
      %8456 = vmatprep.subr.mxu0 0.0
      %8457 = vmatpush1.msra.mxu0 0.0
      %8458 = vmatprep.subr.mxu0 0.0
      %8459 = vmatpush1.msra.mxu0 0.0
      %8460 = vmatprep.subr.mxu0 0.0
      %8461 = vmatpush1.msra.mxu0 0.0
      %8462 = vmatprep.subr.mxu0 0.0
      %8463 = vmatpush1.msra.mxu0 0.0
      %8464 = vmatprep.subr.mxu0 0.0
      %8465 = vmatpush1.msra.mxu0 0.0
      %8466 = vmatprep.subr.mxu0 0.0
      %8467 = vmatpush1.msra.mxu0 0.0
      %8468 = vmatprep.subr.mxu0 0.0
      %8469 = vmatpush1.msra.mxu0 0.0
      %8470 = vmatprep.subr.mxu0 0.0
      %8471 = vmatpush1.msra.mxu0 0.0
      %8472 = vmatprep.subr.mxu0 0.0
      %8473 = vmatpush1.msra.mxu0 0.0
      %8474 = vmatprep.subr.mxu0 0.0
      %8475 = vmatpush1.msra.mxu0 0.0
      %8476 = vmatprep.subr.mxu0 0.0
      %8477 = vmatpush1.msra.mxu0 0.0
      %8478 = vmatprep.subr.mxu0 0.0
      %8479 = vmatpush1.msra.mxu0 0.0
      %8480 = vmatprep.subr.mxu0 0.0
      %8481 = vmatpush1.msra.mxu0 0.0
      %8482 = vmatprep.subr.mxu0 0.0
      %8483 = vmatpush1.msra.mxu0 0.0
      %8484 = vmatprep.subr.mxu0 0.0
      %8485 = vmatpush1.msra.mxu0 0.0
      %8486 = vmatprep.subr.mxu0 0.0
      %8487 = vmatpush1.msra.mxu0 0.0
      %8488 = vmatprep.subr.mxu0 0.0
      %8489 = vmatpush1.msra.mxu0 0.0
      %8490 = vmatprep.subr.mxu0 0.0
      %8491 = vmatpush1.msra.mxu0 0.0
      %8492 = vmatprep.subr.mxu0 0.0
      %8493 = vmatpush1.msra.mxu0 0.0
      %8494 = vmatprep.mubr.f32.mxu0 0.0
      %8495 = vmatmul.mubr.f32.gmra.mrb[0].mxu0 %v8215
      %v8496 = vpop.f32.mrb[0].mxu0
      %v8497 = vadd.f32 0.0, %v8496
      %v8498 = vpop.f32.mrb[0].mxu0
      %v8499 = vadd.f32 0.0, %v8498
      %8500 = vdwg.mxu0
      %8501 = vmatprep.subr.mxu0 %v8064
      %8502 = vmatpush1.msra.mxu0 %v8063
      %8503 = vmatprep.subr.mxu0 %v8080
      %8504 = vmatpush1.msra.mxu0 %v8079
      %8505 = vmatprep.subr.mxu0 %v8096
      %8506 = vmatpush1.msra.mxu0 %v8095
      %8507 = vmatprep.subr.mxu0 %v8112
      %8508 = vmatpush1.msra.mxu0 %v8111
      %8509 = vmatprep.subr.mxu0 %v8128
      %8510 = vmatpush1.msra.mxu0 %v8127
      %8511 = vmatprep.subr.mxu0 0.0
      %8512 = vmatpush1.msra.mxu0 0.0
      %8513 = vmatprep.subr.mxu0 0.0
      %8514 = vmatpush1.msra.mxu0 0.0
      %8515 = vmatprep.subr.mxu0 0.0
      %8516 = vmatpush1.msra.mxu0 0.0
      %8517 = vmatprep.subr.mxu0 0.0
      %8518 = vmatpush1.msra.mxu0 0.0
      %8519 = vmatprep.subr.mxu0 0.0
      %8520 = vmatpush1.msra.mxu0 0.0
      %8521 = vmatprep.subr.mxu0 0.0
      %8522 = vmatpush1.msra.mxu0 0.0
      %8523 = vmatprep.subr.mxu0 0.0
      %8524 = vmatpush1.msra.mxu0 0.0
      %8525 = vmatprep.subr.mxu0 0.0
      %8526 = vmatpush1.msra.mxu0 0.0
      %8527 = vmatprep.subr.mxu0 0.0
      %8528 = vmatpush1.msra.mxu0 0.0
      %8529 = vmatprep.subr.mxu0 0.0
      %8530 = vmatpush1.msra.mxu0 0.0
      %8531 = vmatprep.subr.mxu0 0.0
      %8532 = vmatpush1.msra.mxu0 0.0
      %8533 = vmatprep.subr.mxu0 0.0
      %8534 = vmatpush1.msra.mxu0 0.0
      %8535 = vmatprep.subr.mxu0 0.0
      %8536 = vmatpush1.msra.mxu0 0.0
      %8537 = vmatprep.subr.mxu0 0.0
      %8538 = vmatpush1.msra.mxu0 0.0
      %8539 = vmatprep.subr.mxu0 0.0
      %8540 = vmatpush1.msra.mxu0 0.0
      %8541 = vmatprep.subr.mxu0 0.0
      %8542 = vmatpush1.msra.mxu0 0.0
      %8543 = vmatprep.subr.mxu0 0.0
      %8544 = vmatpush1.msra.mxu0 0.0
      %8545 = vmatprep.subr.mxu0 0.0
      %8546 = vmatpush1.msra.mxu0 0.0
      %8547 = vmatprep.subr.mxu0 0.0
      %8548 = vmatpush1.msra.mxu0 0.0
      %8549 = vmatprep.subr.mxu0 0.0
      %8550 = vmatpush1.msra.mxu0 0.0
      %8551 = vmatprep.subr.mxu0 0.0
      %8552 = vmatpush1.msra.mxu0 0.0
      %8553 = vmatprep.subr.mxu0 0.0
      %8554 = vmatpush1.msra.mxu0 0.0
      %8555 = vmatprep.subr.mxu0 0.0
      %8556 = vmatpush1.msra.mxu0 0.0
      %8557 = vmatprep.subr.mxu0 0.0
      %8558 = vmatpush1.msra.mxu0 0.0
      %8559 = vmatprep.subr.mxu0 0.0
      %8560 = vmatpush1.msra.mxu0 0.0
      %8561 = vmatprep.subr.mxu0 0.0
      %8562 = vmatpush1.msra.mxu0 0.0
      %8563 = vmatprep.subr.mxu0 0.0
      %8564 = vmatpush1.msra.mxu0 0.0
      %8565 = vmatprep.mubr.f32.mxu0 0.0
      %8566 = vmatmul.mubr.f32.gmra.mrb[0].mxu0 %v8215
      %v8567 = vpop.f32.mrb[0].mxu0
      %v8568 = vadd.f32 0.0, %v8567
      %v8569 = vpop.f32.mrb[0].mxu0
      %v8570 = vadd.f32 0.0, %v8569
      %8571 = vdwg.mxu0
      %8572 = vmatprep.subr.mxu0 %v8066
      %8573 = vmatpush1.msra.mxu0 %v8065
      %8574 = vmatprep.subr.mxu0 %v8082
      %8575 = vmatpush1.msra.mxu0 %v8081
      %8576 = vmatprep.subr.mxu0 %v8098
      %8577 = vmatpush1.msra.mxu0 %v8097
      %8578 = vmatprep.subr.mxu0 %v8114
      %8579 = vmatpush1.msra.mxu0 %v8113
      %8580 = vmatprep.subr.mxu0 %v8130
      %8581 = vmatpush1.msra.mxu0 %v8129
      %8582 = vmatprep.subr.mxu0 0.0
      %8583 = vmatpush1.msra.mxu0 0.0
      %8584 = vmatprep.subr.mxu0 0.0
      %8585 = vmatpush1.msra.mxu0 0.0
      %8586 = vmatprep.subr.mxu0 0.0
      %8587 = vmatpush1.msra.mxu0 0.0
      %8588 = vmatprep.subr.mxu0 0.0
      %8589 = vmatpush1.msra.mxu0 0.0
      %8590 = vmatprep.subr.mxu0 0.0
      %8591 = vmatpush1.msra.mxu0 0.0
      %8592 = vmatprep.subr.mxu0 0.0
      %8593 = vmatpush1.msra.mxu0 0.0
      %8594 = vmatprep.subr.mxu0 0.0
      %8595 = vmatpush1.msra.mxu0 0.0
      %8596 = vmatprep.subr.mxu0 0.0
      %8597 = vmatpush1.msra.mxu0 0.0
      %8598 = vmatprep.subr.mxu0 0.0
      %8599 = vmatpush1.msra.mxu0 0.0
      %8600 = vmatprep.subr.mxu0 0.0
      %8601 = vmatpush1.msra.mxu0 0.0
      %8602 = vmatprep.subr.mxu0 0.0
      %8603 = vmatpush1.msra.mxu0 0.0
      %8604 = vmatprep.subr.mxu0 0.0
      %8605 = vmatpush1.msra.mxu0 0.0
      %8606 = vmatprep.subr.mxu0 0.0
      %8607 = vmatpush1.msra.mxu0 0.0
      %8608 = vmatprep.subr.mxu0 0.0
      %8609 = vmatpush1.msra.mxu0 0.0
      %8610 = vmatprep.subr.mxu0 0.0
      %8611 = vmatpush1.msra.mxu0 0.0
      %8612 = vmatprep.subr.mxu0 0.0
      %8613 = vmatpush1.msra.mxu0 0.0
      %8614 = vmatprep.subr.mxu0 0.0
      %8615 = vmatpush1.msra.mxu0 0.0
      %8616 = vmatprep.subr.mxu0 0.0
      %8617 = vmatpush1.msra.mxu0 0.0
      %8618 = vmatprep.subr.mxu0 0.0
      %8619 = vmatpush1.msra.mxu0 0.0
      %8620 = vmatprep.subr.mxu0 0.0
      %8621 = vmatpush1.msra.mxu0 0.0
      %8622 = vmatprep.subr.mxu0 0.0
      %8623 = vmatpush1.msra.mxu0 0.0
      %8624 = vmatprep.subr.mxu0 0.0
      %8625 = vmatpush1.msra.mxu0 0.0
      %8626 = vmatprep.subr.mxu0 0.0
      %8627 = vmatpush1.msra.mxu0 0.0
      %8628 = vmatprep.subr.mxu0 0.0
      %8629 = vmatpush1.msra.mxu0 0.0
      %8630 = vmatprep.subr.mxu0 0.0
      %8631 = vmatpush1.msra.mxu0 0.0
      %8632 = vmatprep.subr.mxu0 0.0
      %8633 = vmatpush1.msra.mxu0 0.0
      %8634 = vmatprep.subr.mxu0 0.0
      %8635 = vmatpush1.msra.mxu0 0.0
      %8636 = vmatprep.mubr.f32.mxu0 0.0
      %8637 = vmatmul.mubr.f32.gmra.mrb[0].mxu0 %v8215
      %v8638 = vpop.f32.mrb[0].mxu0
      %v8639 = vadd.f32 0.0, %v8638
      %v8640 = vpop.f32.mrb[0].mxu0
      %v8641 = vadd.f32 0.0, %v8640
      %8642 = vdwg.mxu0
      %8643 = vmatprep.subr.mxu0 %v8068
      %8644 = vmatpush1.msra.mxu0 %v8067
      %8645 = vmatprep.subr.mxu0 %v8084
      %8646 = vmatpush1.msra.mxu0 %v8083
      %8647 = vmatprep.subr.mxu0 %v8100
      %8648 = vmatpush1.msra.mxu0 %v8099
      %8649 = vmatprep.subr.mxu0 %v8116
      %8650 = vmatpush1.msra.mxu0 %v8115
      %8651 = vmatprep.subr.mxu0 %v8132
      %8652 = vmatpush1.msra.mxu0 %v8131
      %8653 = vmatprep.subr.mxu0 0.0
      %8654 = vmatpush1.msra.mxu0 0.0
      %8655 = vmatprep.subr.mxu0 0.0
      %8656 = vmatpush1.msra.mxu0 0.0
      %8657 = vmatprep.subr.mxu0 0.0
      %8658 = vmatpush1.msra.mxu0 0.0
      %8659 = vmatprep.subr.mxu0 0.0
      %8660 = vmatpush1.msra.mxu0 0.0
      %8661 = vmatprep.subr.mxu0 0.0
      %8662 = vmatpush1.msra.mxu0 0.0
      %8663 = vmatprep.subr.mxu0 0.0
      %8664 = vmatpush1.msra.mxu0 0.0
      %8665 = vmatprep.subr.mxu0 0.0
      %8666 = vmatpush1.msra.mxu0 0.0
      %8667 = vmatprep.subr.mxu0 0.0
      %8668 = vmatpush1.msra.mxu0 0.0
      %8669 = vmatprep.subr.mxu0 0.0
      %8670 = vmatpush1.msra.mxu0 0.0
      %8671 = vmatprep.subr.mxu0 0.0
      %8672 = vmatpush1.msra.mxu0 0.0
      %8673 = vmatprep.subr.mxu0 0.0
      %8674 = vmatpush1.msra.mxu0 0.0
      %8675 = vmatprep.subr.mxu0 0.0
      %8676 = vmatpush1.msra.mxu0 0.0
      %8677 = vmatprep.subr.mxu0 0.0
      %8678 = vmatpush1.msra.mxu0 0.0
      %8679 = vmatprep.subr.mxu0 0.0
      %8680 = vmatpush1.msra.mxu0 0.0
      %8681 = vmatprep.subr.mxu0 0.0
      %8682 = vmatpush1.msra.mxu0 0.0
      %8683 = vmatprep.subr.mxu0 0.0
      %8684 = vmatpush1.msra.mxu0 0.0
      %8685 = vmatprep.subr.mxu0 0.0
      %8686 = vmatpush1.msra.mxu0 0.0
      %8687 = vmatprep.subr.mxu0 0.0
      %8688 = vmatpush1.msra.mxu0 0.0
      %8689 = vmatprep.subr.mxu0 0.0
      %8690 = vmatpush1.msra.mxu0 0.0
      %8691 = vmatprep.subr.mxu0 0.0
      %8692 = vmatpush1.msra.mxu0 0.0
      %8693 = vmatprep.subr.mxu0 0.0
      %8694 = vmatpush1.msra.mxu0 0.0
      %8695 = vmatprep.subr.mxu0 0.0
      %8696 = vmatpush1.msra.mxu0 0.0
      %8697 = vmatprep.subr.mxu0 0.0
      %8698 = vmatpush1.msra.mxu0 0.0
      %8699 = vmatprep.subr.mxu0 0.0
      %8700 = vmatpush1.msra.mxu0 0.0
      %8701 = vmatprep.subr.mxu0 0.0
      %8702 = vmatpush1.msra.mxu0 0.0
      %8703 = vmatprep.subr.mxu0 0.0
      %8704 = vmatpush1.msra.mxu0 0.0
      %8705 = vmatprep.subr.mxu0 0.0
      %8706 = vmatpush1.msra.mxu0 0.0
      %8707 = vmatprep.mubr.f32.mxu0 0.0
      %8708 = vmatmul.mubr.f32.gmra.mrb[0].mxu0 %v8215
      %v8709 = vpop.f32.mrb[0].mxu0
      %v8710 = vadd.f32 0.0, %v8709
      %v8711 = vpop.f32.mrb[0].mxu0
      %v8712 = vadd.f32 0.0, %v8711
      %8713 = vdwg.mxu0
      %8714 = vmatprep.subr.mxu0 %v8070
      %8715 = vmatpush1.msra.mxu0 %v8069
      %8716 = vmatprep.subr.mxu0 %v8086
      %8717 = vmatpush1.msra.mxu0 %v8085
      %8718 = vmatprep.subr.mxu0 %v8102
      %8719 = vmatpush1.msra.mxu0 %v8101
      %8720 = vmatprep.subr.mxu0 %v8118
      %8721 = vmatpush1.msra.mxu0 %v8117
      %8722 = vmatprep.subr.mxu0 %v8134
      %8723 = vmatpush1.msra.mxu0 %v8133
      %8724 = vmatprep.subr.mxu0 0.0
      %8725 = vmatpush1.msra.mxu0 0.0
      %8726 = vmatprep.subr.mxu0 0.0
      %8727 = vmatpush1.msra.mxu0 0.0
      %8728 = vmatprep.subr.mxu0 0.0
      %8729 = vmatpush1.msra.mxu0 0.0
      %8730 = vmatprep.subr.mxu0 0.0
      %8731 = vmatpush1.msra.mxu0 0.0
      %8732 = vmatprep.subr.mxu0 0.0
      %8733 = vmatpush1.msra.mxu0 0.0
      %8734 = vmatprep.subr.mxu0 0.0
      %8735 = vmatpush1.msra.mxu0 0.0
      %8736 = vmatprep.subr.mxu0 0.0
      %8737 = vmatpush1.msra.mxu0 0.0
      %8738 = vmatprep.subr.mxu0 0.0
      %8739 = vmatpush1.msra.mxu0 0.0
      %8740 = vmatprep.subr.mxu0 0.0
      %8741 = vmatpush1.msra.mxu0 0.0
      %8742 = vmatprep.subr.mxu0 0.0
      %8743 = vmatpush1.msra.mxu0 0.0
      %8744 = vmatprep.subr.mxu0 0.0
      %8745 = vmatpush1.msra.mxu0 0.0
      %8746 = vmatprep.subr.mxu0 0.0
      %8747 = vmatpush1.msra.mxu0 0.0
      %8748 = vmatprep.subr.mxu0 0.0
      %8749 = vmatpush1.msra.mxu0 0.0
      %8750 = vmatprep.subr.mxu0 0.0
      %8751 = vmatpush1.msra.mxu0 0.0
      %8752 = vmatprep.subr.mxu0 0.0
      %8753 = vmatpush1.msra.mxu0 0.0
      %8754 = vmatprep.subr.mxu0 0.0
      %8755 = vmatpush1.msra.mxu0 0.0
      %8756 = vmatprep.subr.mxu0 0.0
      %8757 = vmatpush1.msra.mxu0 0.0
      %8758 = vmatprep.subr.mxu0 0.0
      %8759 = vmatpush1.msra.mxu0 0.0
      %8760 = vmatprep.subr.mxu0 0.0
      %8761 = vmatpush1.msra.mxu0 0.0
      %8762 = vmatprep.subr.mxu0 0.0
      %8763 = vmatpush1.msra.mxu0 0.0
      %8764 = vmatprep.subr.mxu0 0.0
      %8765 = vmatpush1.msra.mxu0 0.0
      %8766 = vmatprep.subr.mxu0 0.0
      %8767 = vmatpush1.msra.mxu0 0.0
      %8768 = vmatprep.subr.mxu0 0.0
      %8769 = vmatpush1.msra.mxu0 0.0
      %8770 = vmatprep.subr.mxu0 0.0
      %8771 = vmatpush1.msra.mxu0 0.0
      %8772 = vmatprep.subr.mxu0 0.0
      %8773 = vmatpush1.msra.mxu0 0.0
      %8774 = vmatprep.subr.mxu0 0.0
      %8775 = vmatpush1.msra.mxu0 0.0
      %8776 = vmatprep.subr.mxu0 0.0
      %8777 = vmatpush1.msra.mxu0 0.0
      %8778 = vmatprep.mubr.f32.mxu0 0.0
      %8779 = vmatmul.mubr.f32.gmra.mrb[0].mxu0 %v8215
      %v8780 = vpop.f32.mrb[0].mxu0
      %v8781 = vadd.f32 0.0, %v8780
      %v8782 = vpop.f32.mrb[0].mxu0
      %v8783 = vadd.f32 0.0, %v8782
      %8784 = vdwg.mxu0
      %v8785 = vadd.f32 %v7697, %v8284
      %v8786 = vadd.f32 %v7698, %v8286
      %v8787 = vadd.f32 %v7699, %v8355
      %v8788 = vadd.f32 %v7700, %v8357
      %v8789 = vadd.f32 %v7701, %v8426
      %v8790 = vadd.f32 %v7702, %v8428
      %v8791 = vadd.f32 %v7703, %v8497
      %v8792 = vadd.f32 %v7704, %v8499
      %v8793 = vadd.f32 %v7705, %v8568
      %v8794 = vadd.f32 %v7706, %v8570
      %v8795 = vadd.f32 %v7707, %v8639
      %v8796 = vadd.f32 %v7708, %v8641
      %v8797 = vadd.f32 %v7709, %v8710
      %v8798 = vadd.f32 %v7710, %v8712
      %v8799 = vadd.f32 %v7711, %v8781
      %v8800 = vadd.f32 %v7712, %v8783
      %v8801 = vld [vmem:[%s1 + $0x80] sm:$0xff]
      %v8802 = vld [vmem:[%s1 + $0x88] sm:$0xff]
      %8805 = vrot.lane.b32.xlu0 %v8801, 16
      %v8806 = vpop.permute.xlu0 %8805
      %8807 = vrot.lane.b32.xlu0 %v8802, 16
      %v8808 = vpop.permute.xlu0 %8807
      %vm8809 = vcmask 130048
      %v8810 = vsel %vm8809, %v8806, %v8808
      %8811 = vrot.lane.b32.xlu0 %v7713, 1
      %v8812 = vpop.permute.xlu0 %8811
      %8813 = vrot.lane.b32.xlu0 %v7714, 1
      %v8814 = vpop.permute.xlu0 %8813
      %8815 = vrot.lane.b32.xlu0 %v7715, 1
      %v8816 = vpop.permute.xlu0 %8815
      %8817 = vrot.lane.b32.xlu0 %v7716, 1
      %v8818 = vpop.permute.xlu0 %8817
      %8819 = vrot.lane.b32.xlu0 %v7717, 1
      %v8820 = vpop.permute.xlu0 %8819
      %8821 = vrot.lane.b32.xlu0 %v7718, 1
      %v8822 = vpop.permute.xlu0 %8821
      %8823 = vrot.lane.b32.xlu0 %v7719, 1
      %v8824 = vpop.permute.xlu0 %8823
      %8825 = vrot.lane.b32.xlu0 %v7720, 1
      %v8826 = vpop.permute.xlu0 %8825
      %8827 = vrot.lane.b32.xlu0 %v7721, 1
      %v8828 = vpop.permute.xlu0 %8827
      %8829 = vrot.lane.b32.xlu0 %v7722, 1
      %v8830 = vpop.permute.xlu0 %8829
      %8831 = vrot.lane.b32.xlu0 %v7723, 1
      %v8832 = vpop.permute.xlu0 %8831
      %8833 = vrot.lane.b32.xlu0 %v7724, 1
      %v8834 = vpop.permute.xlu0 %8833
      %8835 = vrot.lane.b32.xlu0 %v7725, 1
      %v8836 = vpop.permute.xlu0 %8835
      %8837 = vrot.lane.b32.xlu0 %v7726, 1
      %v8838 = vpop.permute.xlu0 %8837
      %8839 = vrot.lane.b32.xlu0 %v7727, 1
      %v8840 = vpop.permute.xlu0 %8839
      %8841 = vrot.lane.b32.xlu0 %v7728, 1
      %v8842 = vpop.permute.xlu0 %8841
      %8843 = vrot.lane.b32.xlu0 %v7729, 1
      %v8844 = vpop.permute.xlu0 %8843
      %8845 = vrot.lane.b32.xlu0 %v7730, 1
      %v8846 = vpop.permute.xlu0 %8845
      %8847 = vrot.lane.b32.xlu0 %v7731, 1
      %v8848 = vpop.permute.xlu0 %8847
      %8849 = vrot.lane.b32.xlu0 %v7732, 1
      %v8850 = vpop.permute.xlu0 %8849
      %8851 = vrot.lane.b32.xlu0 %v7733, 1
      %v8852 = vpop.permute.xlu0 %8851
      %8853 = vrot.lane.b32.xlu0 %v7734, 1
      %v8854 = vpop.permute.xlu0 %8853
      %8855 = vrot.lane.b32.xlu0 %v7735, 1
      %v8856 = vpop.permute.xlu0 %8855
      %8857 = vrot.lane.b32.xlu0 %v7736, 1
      %v8858 = vpop.permute.xlu0 %8857
      %8859 = vrot.lane.b32.xlu0 %v7737, 1
      %v8860 = vpop.permute.xlu0 %8859
      %8861 = vrot.lane.b32.xlu0 %v7738, 1
      %v8862 = vpop.permute.xlu0 %8861
      %8863 = vrot.lane.b32.xlu0 %v7739, 1
      %v8864 = vpop.permute.xlu0 %8863
      %8865 = vrot.lane.b32.xlu0 %v7740, 1
      %v8866 = vpop.permute.xlu0 %8865
      %8867 = vrot.lane.b32.xlu0 %v7741, 1
      %v8868 = vpop.permute.xlu0 %8867
      %8869 = vrot.lane.b32.xlu0 %v7742, 1
      %v8870 = vpop.permute.xlu0 %8869
      %8871 = vrot.lane.b32.xlu0 %v7743, 1
      %v8872 = vpop.permute.xlu0 %8871
      %8873 = vrot.lane.b32.xlu0 %v7744, 1
      %v8874 = vpop.permute.xlu0 %8873
      %8875 = vrot.lane.b32.xlu0 %v7745, 1
      %v8876 = vpop.permute.xlu0 %8875
      %8877 = vrot.lane.b32.xlu0 %v7746, 1
      %v8878 = vpop.permute.xlu0 %8877
      %8879 = vrot.lane.b32.xlu0 %v7747, 1
      %v8880 = vpop.permute.xlu0 %8879
      %8881 = vrot.lane.b32.xlu0 %v7748, 1
      %v8882 = vpop.permute.xlu0 %8881
      %8883 = vrot.lane.b32.xlu0 %v7749, 1
      %v8884 = vpop.permute.xlu0 %8883
      %8885 = vrot.lane.b32.xlu0 %v7750, 1
      %v8886 = vpop.permute.xlu0 %8885
      %8887 = vrot.lane.b32.xlu0 %v7751, 1
      %v8888 = vpop.permute.xlu0 %8887
      %8889 = vrot.lane.b32.xlu0 %v7752, 1
      %v8890 = vpop.permute.xlu0 %8889
      %8891 = vrot.lane.b32.xlu0 %v7753, 1
      %v8892 = vpop.permute.xlu0 %8891
      %8893 = vrot.lane.b32.xlu0 %v7754, 1
      %v8894 = vpop.permute.xlu0 %8893
      %8895 = vrot.lane.b32.xlu0 %v7755, 1
      %v8896 = vpop.permute.xlu0 %8895
      %8897 = vrot.lane.b32.xlu0 %v7756, 1
      %v8898 = vpop.permute.xlu0 %8897
      %8899 = vrot.lane.b32.xlu0 %v7757, 1
      %v8900 = vpop.permute.xlu0 %8899
      %8901 = vrot.lane.b32.xlu0 %v7758, 1
      %v8902 = vpop.permute.xlu0 %8901
      %8903 = vrot.lane.b32.xlu0 %v7759, 1
      %v8904 = vpop.permute.xlu0 %8903
      %8905 = vrot.lane.b32.xlu0 %v7760, 1
      %v8906 = vpop.permute.xlu0 %8905
      %8907 = vrot.lane.b32.xlu0 %v7761, 1
      %v8908 = vpop.permute.xlu0 %8907
      %8909 = vrot.lane.b32.xlu0 %v7762, 1
      %v8910 = vpop.permute.xlu0 %8909
      %8911 = vrot.lane.b32.xlu0 %v7763, 1
      %v8912 = vpop.permute.xlu0 %8911
      %8913 = vrot.lane.b32.xlu0 %v7764, 1
      %v8914 = vpop.permute.xlu0 %8913
      %8915 = vrot.lane.b32.xlu0 %v7765, 1
      %v8916 = vpop.permute.xlu0 %8915
      %8917 = vrot.lane.b32.xlu0 %v7766, 1
      %v8918 = vpop.permute.xlu0 %8917
      %8919 = vrot.lane.b32.xlu0 %v7767, 1
      %v8920 = vpop.permute.xlu0 %8919
      %8921 = vrot.lane.b32.xlu0 %v7768, 1
      %v8922 = vpop.permute.xlu0 %8921
      %8923 = vrot.lane.b32.xlu0 %v7769, 1
      %v8924 = vpop.permute.xlu0 %8923
      %8925 = vrot.lane.b32.xlu0 %v7770, 1
      %v8926 = vpop.permute.xlu0 %8925
      %8927 = vrot.lane.b32.xlu0 %v7771, 1
      %v8928 = vpop.permute.xlu0 %8927
      %8929 = vrot.lane.b32.xlu0 %v7772, 1
      %v8930 = vpop.permute.xlu0 %8929
      %8931 = vrot.lane.b32.xlu0 %v7773, 1
      %v8932 = vpop.permute.xlu0 %8931
      %8933 = vrot.lane.b32.xlu0 %v7774, 1
      %v8934 = vpop.permute.xlu0 %8933
      %8935 = vrot.lane.b32.xlu0 %v7775, 1
      %v8936 = vpop.permute.xlu0 %8935
      %8937 = vrot.lane.b32.xlu0 %v7776, 1
      %v8938 = vpop.permute.xlu0 %8937
      %8939 = vrot.lane.b32.xlu0 %v7777, 1
      %v8940 = vpop.permute.xlu0 %8939
      %8941 = vrot.lane.b32.xlu0 %v7778, 1
      %v8942 = vpop.permute.xlu0 %8941
      %8943 = vrot.lane.b32.xlu0 %v7779, 1
      %v8944 = vpop.permute.xlu0 %8943
      %8945 = vrot.lane.b32.xlu0 %v7780, 1
      %v8946 = vpop.permute.xlu0 %8945
      %8947 = vrot.lane.b32.xlu0 %v7781, 1
      %v8948 = vpop.permute.xlu0 %8947
      %8949 = vrot.lane.b32.xlu0 %v7782, 1
      %v8950 = vpop.permute.xlu0 %8949
      %8951 = vrot.lane.b32.xlu0 %v7783, 1
      %v8952 = vpop.permute.xlu0 %8951
      %8953 = vrot.lane.b32.xlu0 %v7784, 1
      %v8954 = vpop.permute.xlu0 %8953
      %8955 = vrot.lane.b32.xlu0 %v7785, 1
      %v8956 = vpop.permute.xlu0 %8955
      %8957 = vrot.lane.b32.xlu0 %v7786, 1
      %v8958 = vpop.permute.xlu0 %8957
      %8959 = vrot.lane.b32.xlu0 %v7787, 1
      %v8960 = vpop.permute.xlu0 %8959
      %8961 = vrot.lane.b32.xlu0 %v7788, 1
      %v8962 = vpop.permute.xlu0 %8961
      %8963 = vrot.lane.b32.xlu0 %v7789, 1
      %v8964 = vpop.permute.xlu0 %8963
      %8965 = vrot.lane.b32.xlu0 %v7790, 1
      %v8966 = vpop.permute.xlu0 %8965
      %8967 = vrot.lane.b32.xlu0 %v7791, 1
      %v8968 = vpop.permute.xlu0 %8967
      %8969 = vrot.lane.b32.xlu0 %v7792, 1
      %v8970 = vpop.permute.xlu0 %8969
      %8971 = vrot.lane.b32.xlu0 %v7793, 1
      %v8972 = vpop.permute.xlu0 %8971
      %8973 = vrot.lane.b32.xlu0 %v7794, 1
      %v8974 = vpop.permute.xlu0 %8973
      %8975 = vrot.lane.b32.xlu0 %v7795, 1
      %v8976 = vpop.permute.xlu0 %8975
      %8977 = vrot.lane.b32.xlu0 %v7796, 1
      %v8978 = vpop.permute.xlu0 %8977
      %8979 = vrot.lane.b32.xlu0 %v7797, 1
      %v8980 = vpop.permute.xlu0 %8979
      %v8981 = vsel %vm4380, %v8812, %v8814
      %v8982 = vsel %vm4380, %v8814, %v8816
      %v8983 = vsel %vm4380, %v8816, %v8818
      %v8984 = vsel %vm4380, %v8818, %v8820
      %v8985 = vsel %vm4380, %v8820, %v8822
      %v8986 = vsel %vm4380, %v8822, %v8824
      %v8987 = vsel %vm4380, %v8824, %v8826
      %v8988 = vsel %vm4380, %v8826, %v8828
      %v8989 = vsel %vm4380, %v8828, %v8830
      %v8990 = vsel %vm4380, %v8830, %v8832
      %v8991 = vsel %vm4380, %v8832, %v8834
      %v8992 = vsel %vm4380, %v8834, %v8836
      %v8993 = vsel %vm4380, %v8836, %v8838
      %v8994 = vsel %vm4380, %v8838, %v8840
      %v8995 = vsel %vm4380, %v8840, %v8842
      %v8996 = vsel %vm4380, %v8842, %v8844
      %v8997 = vsel %vm4380, %v8846, %v8848
      %v8998 = vsel %vm4380, %v8848, %v8850
      %v8999 = vsel %vm4380, %v8850, %v8852
      %v9000 = vsel %vm4380, %v8852, %v8854
      %v9001 = vsel %vm4380, %v8854, %v8856
      %v9002 = vsel %vm4380, %v8856, %v8858
      %v9003 = vsel %vm4380, %v8858, %v8860
      %v9004 = vsel %vm4380, %v8860, %v8862
      %v9005 = vsel %vm4380, %v8862, %v8864
      %v9006 = vsel %vm4380, %v8864, %v8866
      %v9007 = vsel %vm4380, %v8866, %v8868
      %v9008 = vsel %vm4380, %v8868, %v8870
      %v9009 = vsel %vm4380, %v8870, %v8872
      %v9010 = vsel %vm4380, %v8872, %v8874
      %v9011 = vsel %vm4380, %v8874, %v8876
      %v9012 = vsel %vm4380, %v8876, %v8878
      %v9013 = vsel %vm4380, %v8880, %v8882
      %v9014 = vsel %vm4380, %v8882, %v8884
      %v9015 = vsel %vm4380, %v8884, %v8886
      %v9016 = vsel %vm4380, %v8886, %v8888
      %v9017 = vsel %vm4380, %v8888, %v8890
      %v9018 = vsel %vm4380, %v8890, %v8892
      %v9019 = vsel %vm4380, %v8892, %v8894
      %v9020 = vsel %vm4380, %v8894, %v8896
      %v9021 = vsel %vm4380, %v8896, %v8898
      %v9022 = vsel %vm4380, %v8898, %v8900
      %v9023 = vsel %vm4380, %v8900, %v8902
      %v9024 = vsel %vm4380, %v8902, %v8904
      %v9025 = vsel %vm4380, %v8904, %v8906
      %v9026 = vsel %vm4380, %v8906, %v8908
      %v9027 = vsel %vm4380, %v8908, %v8910
      %v9028 = vsel %vm4380, %v8910, %v8912
      %v9029 = vsel %vm4380, %v8914, %v8916
      %v9030 = vsel %vm4380, %v8916, %v8918
      %v9031 = vsel %vm4380, %v8918, %v8920
      %v9032 = vsel %vm4380, %v8920, %v8922
      %v9033 = vsel %vm4380, %v8922, %v8924
      %v9034 = vsel %vm4380, %v8924, %v8926
      %v9035 = vsel %vm4380, %v8926, %v8928
      %v9036 = vsel %vm4380, %v8928, %v8930
      %v9037 = vsel %vm4380, %v8930, %v8932
      %v9038 = vsel %vm4380, %v8932, %v8934
      %v9039 = vsel %vm4380, %v8934, %v8936
      %v9040 = vsel %vm4380, %v8936, %v8938
      %v9041 = vsel %vm4380, %v8938, %v8940
      %v9042 = vsel %vm4380, %v8940, %v8942
      %v9043 = vsel %vm4380, %v8942, %v8944
      %v9044 = vsel %vm4380, %v8944, %v8946
      %v9045 = vsel %vm4380, %v8948, %v8950
      %v9046 = vsel %vm4380, %v8950, %v8952
      %v9047 = vsel %vm4380, %v8952, %v8954
      %v9048 = vsel %vm4380, %v8954, %v8956
      %v9049 = vsel %vm4380, %v8956, %v8958
      %v9050 = vsel %vm4380, %v8958, %v8960
      %v9051 = vsel %vm4380, %v8960, %v8962
      %v9052 = vsel %vm4380, %v8962, %v8964
      %v9053 = vsel %vm4380, %v8964, %v8966
      %v9054 = vsel %vm4380, %v8966, %v8968
      %v9055 = vsel %vm4380, %v8968, %v8970
      %v9056 = vsel %vm4380, %v8970, %v8972
      %v9057 = vsel %vm4380, %v8972, %v8974
      %v9058 = vsel %vm4380, %v8974, %v8976
      %v9059 = vsel %vm4380, %v8976, %v8978
      %v9060 = vsel %vm4380, %v8978, %v8980
      %v9141 = vsel %vm3554, %v8810, 0
      %9143 = vmatprep.subr.mxu0 %v8982
      %9144 = vmatpush1.msra.mxu0 %v8981
      %9145 = vmatprep.subr.mxu0 %v8998
      %9146 = vmatpush1.msra.mxu0 %v8997
      %9147 = vmatprep.subr.mxu0 %v9014
      %9148 = vmatpush1.msra.mxu0 %v9013
      %9149 = vmatprep.subr.mxu0 %v9030
      %9150 = vmatpush1.msra.mxu0 %v9029
      %9151 = vmatprep.subr.mxu0 %v9046
      %9152 = vmatpush1.msra.mxu0 %v9045
      %9153 = vmatprep.subr.mxu0 0.0
      %9154 = vmatpush1.msra.mxu0 0.0
      %9155 = vmatprep.subr.mxu0 0.0
      %9156 = vmatpush1.msra.mxu0 0.0
      %9157 = vmatprep.subr.mxu0 0.0
      %9158 = vmatpush1.msra.mxu0 0.0
      %9159 = vmatprep.subr.mxu0 0.0
      %9160 = vmatpush1.msra.mxu0 0.0
      %9161 = vmatprep.subr.mxu0 0.0
      %9162 = vmatpush1.msra.mxu0 0.0
      %9163 = vmatprep.subr.mxu0 0.0
      %9164 = vmatpush1.msra.mxu0 0.0
      %9165 = vmatprep.subr.mxu0 0.0
      %9166 = vmatpush1.msra.mxu0 0.0
      %9167 = vmatprep.subr.mxu0 0.0
      %9168 = vmatpush1.msra.mxu0 0.0
      %9169 = vmatprep.subr.mxu0 0.0
      %9170 = vmatpush1.msra.mxu0 0.0
      %9171 = vmatprep.subr.mxu0 0.0
      %9172 = vmatpush1.msra.mxu0 0.0
      %9173 = vmatprep.subr.mxu0 0.0
      %9174 = vmatpush1.msra.mxu0 0.0
      %9175 = vmatprep.subr.mxu0 0.0
      %9176 = vmatpush1.msra.mxu0 0.0
      %9177 = vmatprep.subr.mxu0 0.0
      %9178 = vmatpush1.msra.mxu0 0.0
      %9179 = vmatprep.subr.mxu0 0.0
      %9180 = vmatpush1.msra.mxu0 0.0
      %9181 = vmatprep.subr.mxu0 0.0
      %9182 = vmatpush1.msra.mxu0 0.0
      %9183 = vmatprep.subr.mxu0 0.0
      %9184 = vmatpush1.msra.mxu0 0.0
      %9185 = vmatprep.subr.mxu0 0.0
      %9186 = vmatpush1.msra.mxu0 0.0
      %9187 = vmatprep.subr.mxu0 0.0
      %9188 = vmatpush1.msra.mxu0 0.0
      %9189 = vmatprep.subr.mxu0 0.0
      %9190 = vmatpush1.msra.mxu0 0.0
      %9191 = vmatprep.subr.mxu0 0.0
      %9192 = vmatpush1.msra.mxu0 0.0
      %9193 = vmatprep.subr.mxu0 0.0
      %9194 = vmatpush1.msra.mxu0 0.0
      %9195 = vmatprep.subr.mxu0 0.0
      %9196 = vmatpush1.msra.mxu0 0.0
      %9197 = vmatprep.subr.mxu0 0.0
      %9198 = vmatpush1.msra.mxu0 0.0
      %9199 = vmatprep.subr.mxu0 0.0
      %9200 = vmatpush1.msra.mxu0 0.0
      %9201 = vmatprep.subr.mxu0 0.0
      %9202 = vmatpush1.msra.mxu0 0.0
      %9203 = vmatprep.subr.mxu0 0.0
      %9204 = vmatpush1.msra.mxu0 0.0
      %9205 = vmatprep.subr.mxu0 0.0
      %9206 = vmatpush1.msra.mxu0 0.0
      %9207 = vmatprep.mubr.f32.mxu0 0.0
      %9208 = vmatmul.mubr.f32.gmra.mrb[0].mxu0 %v9141
      %v9209 = vpop.f32.mrb[0].mxu0
      %v9210 = vadd.f32 0.0, %v9209
      %v9211 = vpop.f32.mrb[0].mxu0
      %v9212 = vadd.f32 0.0, %v9211
      %9213 = vdwg.mxu0
      %9214 = vmatprep.subr.mxu0 %v8984
      %9215 = vmatpush1.msra.mxu0 %v8983
      %9216 = vmatprep.subr.mxu0 %v9000
      %9217 = vmatpush1.msra.mxu0 %v8999
      %9218 = vmatprep.subr.mxu0 %v9016
      %9219 = vmatpush1.msra.mxu0 %v9015
      %9220 = vmatprep.subr.mxu0 %v9032
      %9221 = vmatpush1.msra.mxu0 %v9031
      %9222 = vmatprep.subr.mxu0 %v9048
      %9223 = vmatpush1.msra.mxu0 %v9047
      %9224 = vmatprep.subr.mxu0 0.0
      %9225 = vmatpush1.msra.mxu0 0.0
      %9226 = vmatprep.subr.mxu0 0.0
      %9227 = vmatpush1.msra.mxu0 0.0
      %9228 = vmatprep.subr.mxu0 0.0
      %9229 = vmatpush1.msra.mxu0 0.0
      %9230 = vmatprep.subr.mxu0 0.0
      %9231 = vmatpush1.msra.mxu0 0.0
      %9232 = vmatprep.subr.mxu0 0.0
      %9233 = vmatpush1.msra.mxu0 0.0
      %9234 = vmatprep.subr.mxu0 0.0
      %9235 = vmatpush1.msra.mxu0 0.0
      %9236 = vmatprep.subr.mxu0 0.0
      %9237 = vmatpush1.msra.mxu0 0.0
      %9238 = vmatprep.subr.mxu0 0.0
      %9239 = vmatpush1.msra.mxu0 0.0
      %9240 = vmatprep.subr.mxu0 0.0
      %9241 = vmatpush1.msra.mxu0 0.0
      %9242 = vmatprep.subr.mxu0 0.0
      %9243 = vmatpush1.msra.mxu0 0.0
      %9244 = vmatprep.subr.mxu0 0.0
      %9245 = vmatpush1.msra.mxu0 0.0
      %9246 = vmatprep.subr.mxu0 0.0
      %9247 = vmatpush1.msra.mxu0 0.0
      %9248 = vmatprep.subr.mxu0 0.0
      %9249 = vmatpush1.msra.mxu0 0.0
      %9250 = vmatprep.subr.mxu0 0.0
      %9251 = vmatpush1.msra.mxu0 0.0
      %9252 = vmatprep.subr.mxu0 0.0
      %9253 = vmatpush1.msra.mxu0 0.0
      %9254 = vmatprep.subr.mxu0 0.0
      %9255 = vmatpush1.msra.mxu0 0.0
      %9256 = vmatprep.subr.mxu0 0.0
      %9257 = vmatpush1.msra.mxu0 0.0
      %9258 = vmatprep.subr.mxu0 0.0
      %9259 = vmatpush1.msra.mxu0 0.0
      %9260 = vmatprep.subr.mxu0 0.0
      %9261 = vmatpush1.msra.mxu0 0.0
      %9262 = vmatprep.subr.mxu0 0.0
      %9263 = vmatpush1.msra.mxu0 0.0
      %9264 = vmatprep.subr.mxu0 0.0
      %9265 = vmatpush1.msra.mxu0 0.0
      %9266 = vmatprep.subr.mxu0 0.0
      %9267 = vmatpush1.msra.mxu0 0.0
      %9268 = vmatprep.subr.mxu0 0.0
      %9269 = vmatpush1.msra.mxu0 0.0
      %9270 = vmatprep.subr.mxu0 0.0
      %9271 = vmatpush1.msra.mxu0 0.0
      %9272 = vmatprep.subr.mxu0 0.0
      %9273 = vmatpush1.msra.mxu0 0.0
      %9274 = vmatprep.subr.mxu0 0.0
      %9275 = vmatpush1.msra.mxu0 0.0
      %9276 = vmatprep.subr.mxu0 0.0
      %9277 = vmatpush1.msra.mxu0 0.0
      %9278 = vmatprep.mubr.f32.mxu0 0.0
      %9279 = vmatmul.mubr.f32.gmra.mrb[0].mxu0 %v9141
      %v9280 = vpop.f32.mrb[0].mxu0
      %v9281 = vadd.f32 0.0, %v9280
      %v9282 = vpop.f32.mrb[0].mxu0
      %v9283 = vadd.f32 0.0, %v9282
      %9284 = vdwg.mxu0
      %9285 = vmatprep.subr.mxu0 %v8986
      %9286 = vmatpush1.msra.mxu0 %v8985
      %9287 = vmatprep.subr.mxu0 %v9002
      %9288 = vmatpush1.msra.mxu0 %v9001
      %9289 = vmatprep.subr.mxu0 %v9018
      %9290 = vmatpush1.msra.mxu0 %v9017
      %9291 = vmatprep.subr.mxu0 %v9034
      %9292 = vmatpush1.msra.mxu0 %v9033
      %9293 = vmatprep.subr.mxu0 %v9050
      %9294 = vmatpush1.msra.mxu0 %v9049
      %9295 = vmatprep.subr.mxu0 0.0
      %9296 = vmatpush1.msra.mxu0 0.0
      %9297 = vmatprep.subr.mxu0 0.0
      %9298 = vmatpush1.msra.mxu0 0.0
      %9299 = vmatprep.subr.mxu0 0.0
      %9300 = vmatpush1.msra.mxu0 0.0
      %9301 = vmatprep.subr.mxu0 0.0
      %9302 = vmatpush1.msra.mxu0 0.0
      %9303 = vmatprep.subr.mxu0 0.0
      %9304 = vmatpush1.msra.mxu0 0.0
      %9305 = vmatprep.subr.mxu0 0.0
      %9306 = vmatpush1.msra.mxu0 0.0
      %9307 = vmatprep.subr.mxu0 0.0
      %9308 = vmatpush1.msra.mxu0 0.0
      %9309 = vmatprep.subr.mxu0 0.0
      %9310 = vmatpush1.msra.mxu0 0.0
      %9311 = vmatprep.subr.mxu0 0.0
      %9312 = vmatpush1.msra.mxu0 0.0
      %9313 = vmatprep.subr.mxu0 0.0
      %9314 = vmatpush1.msra.mxu0 0.0
      %9315 = vmatprep.subr.mxu0 0.0
      %9316 = vmatpush1.msra.mxu0 0.0
      %9317 = vmatprep.subr.mxu0 0.0
      %9318 = vmatpush1.msra.mxu0 0.0
      %9319 = vmatprep.subr.mxu0 0.0
      %9320 = vmatpush1.msra.mxu0 0.0
      %9321 = vmatprep.subr.mxu0 0.0
      %9322 = vmatpush1.msra.mxu0 0.0
      %9323 = vmatprep.subr.mxu0 0.0
      %9324 = vmatpush1.msra.mxu0 0.0
      %9325 = vmatprep.subr.mxu0 0.0
      %9326 = vmatpush1.msra.mxu0 0.0
      %9327 = vmatprep.subr.mxu0 0.0
      %9328 = vmatpush1.msra.mxu0 0.0
      %9329 = vmatprep.subr.mxu0 0.0
      %9330 = vmatpush1.msra.mxu0 0.0
      %9331 = vmatprep.subr.mxu0 0.0
      %9332 = vmatpush1.msra.mxu0 0.0
      %9333 = vmatprep.subr.mxu0 0.0
      %9334 = vmatpush1.msra.mxu0 0.0
      %9335 = vmatprep.subr.mxu0 0.0
      %9336 = vmatpush1.msra.mxu0 0.0
      %9337 = vmatprep.subr.mxu0 0.0
      %9338 = vmatpush1.msra.mxu0 0.0
      %9339 = vmatprep.subr.mxu0 0.0
      %9340 = vmatpush1.msra.mxu0 0.0
      %9341 = vmatprep.subr.mxu0 0.0
      %9342 = vmatpush1.msra.mxu0 0.0
      %9343 = vmatprep.subr.mxu0 0.0
      %9344 = vmatpush1.msra.mxu0 0.0
      %9345 = vmatprep.subr.mxu0 0.0
      %9346 = vmatpush1.msra.mxu0 0.0
      %9347 = vmatprep.subr.mxu0 0.0
      %9348 = vmatpush1.msra.mxu0 0.0
      %9349 = vmatprep.mubr.f32.mxu0 0.0
      %9350 = vmatmul.mubr.f32.gmra.mrb[0].mxu0 %v9141
      %v9351 = vpop.f32.mrb[0].mxu0
      %v9352 = vadd.f32 0.0, %v9351
      %v9353 = vpop.f32.mrb[0].mxu0
      %v9354 = vadd.f32 0.0, %v9353
      %9355 = vdwg.mxu0
      %9356 = vmatprep.subr.mxu0 %v8988
      %9357 = vmatpush1.msra.mxu0 %v8987
      %9358 = vmatprep.subr.mxu0 %v9004
      %9359 = vmatpush1.msra.mxu0 %v9003
      %9360 = vmatprep.subr.mxu0 %v9020
      %9361 = vmatpush1.msra.mxu0 %v9019
      %9362 = vmatprep.subr.mxu0 %v9036
      %9363 = vmatpush1.msra.mxu0 %v9035
      %9364 = vmatprep.subr.mxu0 %v9052
      %9365 = vmatpush1.msra.mxu0 %v9051
      %9366 = vmatprep.subr.mxu0 0.0
      %9367 = vmatpush1.msra.mxu0 0.0
      %9368 = vmatprep.subr.mxu0 0.0
      %9369 = vmatpush1.msra.mxu0 0.0
      %9370 = vmatprep.subr.mxu0 0.0
      %9371 = vmatpush1.msra.mxu0 0.0
      %9372 = vmatprep.subr.mxu0 0.0
      %9373 = vmatpush1.msra.mxu0 0.0
      %9374 = vmatprep.subr.mxu0 0.0
      %9375 = vmatpush1.msra.mxu0 0.0
      %9376 = vmatprep.subr.mxu0 0.0
      %9377 = vmatpush1.msra.mxu0 0.0
      %9378 = vmatprep.subr.mxu0 0.0
      %9379 = vmatpush1.msra.mxu0 0.0
      %9380 = vmatprep.subr.mxu0 0.0
      %9381 = vmatpush1.msra.mxu0 0.0
      %9382 = vmatprep.subr.mxu0 0.0
      %9383 = vmatpush1.msra.mxu0 0.0
      %9384 = vmatprep.subr.mxu0 0.0
      %9385 = vmatpush1.msra.mxu0 0.0
      %9386 = vmatprep.subr.mxu0 0.0
      %9387 = vmatpush1.msra.mxu0 0.0
      %9388 = vmatprep.subr.mxu0 0.0
      %9389 = vmatpush1.msra.mxu0 0.0
      %9390 = vmatprep.subr.mxu0 0.0
      %9391 = vmatpush1.msra.mxu0 0.0
      %9392 = vmatprep.subr.mxu0 0.0
      %9393 = vmatpush1.msra.mxu0 0.0
      %9394 = vmatprep.subr.mxu0 0.0
      %9395 = vmatpush1.msra.mxu0 0.0
      %9396 = vmatprep.subr.mxu0 0.0
      %9397 = vmatpush1.msra.mxu0 0.0
      %9398 = vmatprep.subr.mxu0 0.0
      %9399 = vmatpush1.msra.mxu0 0.0
      %9400 = vmatprep.subr.mxu0 0.0
      %9401 = vmatpush1.msra.mxu0 0.0
      %9402 = vmatprep.subr.mxu0 0.0
      %9403 = vmatpush1.msra.mxu0 0.0
      %9404 = vmatprep.subr.mxu0 0.0
      %9405 = vmatpush1.msra.mxu0 0.0
      %9406 = vmatprep.subr.mxu0 0.0
      %9407 = vmatpush1.msra.mxu0 0.0
      %9408 = vmatprep.subr.mxu0 0.0
      %9409 = vmatpush1.msra.mxu0 0.0
      %9410 = vmatprep.subr.mxu0 0.0
      %9411 = vmatpush1.msra.mxu0 0.0
      %9412 = vmatprep.subr.mxu0 0.0
      %9413 = vmatpush1.msra.mxu0 0.0
      %9414 = vmatprep.subr.mxu0 0.0
      %9415 = vmatpush1.msra.mxu0 0.0
      %9416 = vmatprep.subr.mxu0 0.0
      %9417 = vmatpush1.msra.mxu0 0.0
      %9418 = vmatprep.subr.mxu0 0.0
      %9419 = vmatpush1.msra.mxu0 0.0
      %9420 = vmatprep.mubr.f32.mxu0 0.0
      %9421 = vmatmul.mubr.f32.gmra.mrb[0].mxu0 %v9141
      %v9422 = vpop.f32.mrb[0].mxu0
      %v9423 = vadd.f32 0.0, %v9422
      %v9424 = vpop.f32.mrb[0].mxu0
      %v9425 = vadd.f32 0.0, %v9424
      %9426 = vdwg.mxu0
      %9427 = vmatprep.subr.mxu0 %v8990
      %9428 = vmatpush1.msra.mxu0 %v8989
      %9429 = vmatprep.subr.mxu0 %v9006
      %9430 = vmatpush1.msra.mxu0 %v9005
      %9431 = vmatprep.subr.mxu0 %v9022
      %9432 = vmatpush1.msra.mxu0 %v9021
      %9433 = vmatprep.subr.mxu0 %v9038
      %9434 = vmatpush1.msra.mxu0 %v9037
      %9435 = vmatprep.subr.mxu0 %v9054
      %9436 = vmatpush1.msra.mxu0 %v9053
      %9437 = vmatprep.subr.mxu0 0.0
      %9438 = vmatpush1.msra.mxu0 0.0
      %9439 = vmatprep.subr.mxu0 0.0
      %9440 = vmatpush1.msra.mxu0 0.0
      %9441 = vmatprep.subr.mxu0 0.0
      %9442 = vmatpush1.msra.mxu0 0.0
      %9443 = vmatprep.subr.mxu0 0.0
      %9444 = vmatpush1.msra.mxu0 0.0
      %9445 = vmatprep.subr.mxu0 0.0
      %9446 = vmatpush1.msra.mxu0 0.0
      %9447 = vmatprep.subr.mxu0 0.0
      %9448 = vmatpush1.msra.mxu0 0.0
      %9449 = vmatprep.subr.mxu0 0.0
      %9450 = vmatpush1.msra.mxu0 0.0
      %9451 = vmatprep.subr.mxu0 0.0
      %9452 = vmatpush1.msra.mxu0 0.0
      %9453 = vmatprep.subr.mxu0 0.0
      %9454 = vmatpush1.msra.mxu0 0.0
      %9455 = vmatprep.subr.mxu0 0.0
      %9456 = vmatpush1.msra.mxu0 0.0
      %9457 = vmatprep.subr.mxu0 0.0
      %9458 = vmatpush1.msra.mxu0 0.0
      %9459 = vmatprep.subr.mxu0 0.0
      %9460 = vmatpush1.msra.mxu0 0.0
      %9461 = vmatprep.subr.mxu0 0.0
      %9462 = vmatpush1.msra.mxu0 0.0
      %9463 = vmatprep.subr.mxu0 0.0
      %9464 = vmatpush1.msra.mxu0 0.0
      %9465 = vmatprep.subr.mxu0 0.0
      %9466 = vmatpush1.msra.mxu0 0.0
      %9467 = vmatprep.subr.mxu0 0.0
      %9468 = vmatpush1.msra.mxu0 0.0
      %9469 = vmatprep.subr.mxu0 0.0
      %9470 = vmatpush1.msra.mxu0 0.0
      %9471 = vmatprep.subr.mxu0 0.0
      %9472 = vmatpush1.msra.mxu0 0.0
      %9473 = vmatprep.subr.mxu0 0.0
      %9474 = vmatpush1.msra.mxu0 0.0
      %9475 = vmatprep.subr.mxu0 0.0
      %9476 = vmatpush1.msra.mxu0 0.0
      %9477 = vmatprep.subr.mxu0 0.0
      %9478 = vmatpush1.msra.mxu0 0.0
      %9479 = vmatprep.subr.mxu0 0.0
      %9480 = vmatpush1.msra.mxu0 0.0
      %9481 = vmatprep.subr.mxu0 0.0
      %9482 = vmatpush1.msra.mxu0 0.0
      %9483 = vmatprep.subr.mxu0 0.0
      %9484 = vmatpush1.msra.mxu0 0.0
      %9485 = vmatprep.subr.mxu0 0.0
      %9486 = vmatpush1.msra.mxu0 0.0
      %9487 = vmatprep.subr.mxu0 0.0
      %9488 = vmatpush1.msra.mxu0 0.0
      %9489 = vmatprep.subr.mxu0 0.0
      %9490 = vmatpush1.msra.mxu0 0.0
      %9491 = vmatprep.mubr.f32.mxu0 0.0
      %9492 = vmatmul.mubr.f32.gmra.mrb[0].mxu0 %v9141
      %v9493 = vpop.f32.mrb[0].mxu0
      %v9494 = vadd.f32 0.0, %v9493
      %v9495 = vpop.f32.mrb[0].mxu0
      %v9496 = vadd.f32 0.0, %v9495
      %9497 = vdwg.mxu0
      %9498 = vmatprep.subr.mxu0 %v8992
      %9499 = vmatpush1.msra.mxu0 %v8991
      %9500 = vmatprep.subr.mxu0 %v9008
      %9501 = vmatpush1.msra.mxu0 %v9007
      %9502 = vmatprep.subr.mxu0 %v9024
      %9503 = vmatpush1.msra.mxu0 %v9023
      %9504 = vmatprep.subr.mxu0 %v9040
      %9505 = vmatpush1.msra.mxu0 %v9039
      %9506 = vmatprep.subr.mxu0 %v9056
      %9507 = vmatpush1.msra.mxu0 %v9055
      %9508 = vmatprep.subr.mxu0 0.0
      %9509 = vmatpush1.msra.mxu0 0.0
      %9510 = vmatprep.subr.mxu0 0.0
      %9511 = vmatpush1.msra.mxu0 0.0
      %9512 = vmatprep.subr.mxu0 0.0
      %9513 = vmatpush1.msra.mxu0 0.0
      %9514 = vmatprep.subr.mxu0 0.0
      %9515 = vmatpush1.msra.mxu0 0.0
      %9516 = vmatprep.subr.mxu0 0.0
      %9517 = vmatpush1.msra.mxu0 0.0
      %9518 = vmatprep.subr.mxu0 0.0
      %9519 = vmatpush1.msra.mxu0 0.0
      %9520 = vmatprep.subr.mxu0 0.0
      %9521 = vmatpush1.msra.mxu0 0.0
      %9522 = vmatprep.subr.mxu0 0.0
      %9523 = vmatpush1.msra.mxu0 0.0
      %9524 = vmatprep.subr.mxu0 0.0
      %9525 = vmatpush1.msra.mxu0 0.0
      %9526 = vmatprep.subr.mxu0 0.0
      %9527 = vmatpush1.msra.mxu0 0.0
      %9528 = vmatprep.subr.mxu0 0.0
      %9529 = vmatpush1.msra.mxu0 0.0
      %9530 = vmatprep.subr.mxu0 0.0
      %9531 = vmatpush1.msra.mxu0 0.0
      %9532 = vmatprep.subr.mxu0 0.0
      %9533 = vmatpush1.msra.mxu0 0.0
      %9534 = vmatprep.subr.mxu0 0.0
      %9535 = vmatpush1.msra.mxu0 0.0
      %9536 = vmatprep.subr.mxu0 0.0
      %9537 = vmatpush1.msra.mxu0 0.0
      %9538 = vmatprep.subr.mxu0 0.0
      %9539 = vmatpush1.msra.mxu0 0.0
      %9540 = vmatprep.subr.mxu0 0.0
      %9541 = vmatpush1.msra.mxu0 0.0
      %9542 = vmatprep.subr.mxu0 0.0
      %9543 = vmatpush1.msra.mxu0 0.0
      %9544 = vmatprep.subr.mxu0 0.0
      %9545 = vmatpush1.msra.mxu0 0.0
      %9546 = vmatprep.subr.mxu0 0.0
      %9547 = vmatpush1.msra.mxu0 0.0
      %9548 = vmatprep.subr.mxu0 0.0
      %9549 = vmatpush1.msra.mxu0 0.0
      %9550 = vmatprep.subr.mxu0 0.0
      %9551 = vmatpush1.msra.mxu0 0.0
      %9552 = vmatprep.subr.mxu0 0.0
      %9553 = vmatpush1.msra.mxu0 0.0
      %9554 = vmatprep.subr.mxu0 0.0
      %9555 = vmatpush1.msra.mxu0 0.0
      %9556 = vmatprep.subr.mxu0 0.0
      %9557 = vmatpush1.msra.mxu0 0.0
      %9558 = vmatprep.subr.mxu0 0.0
      %9559 = vmatpush1.msra.mxu0 0.0
      %9560 = vmatprep.subr.mxu0 0.0
      %9561 = vmatpush1.msra.mxu0 0.0
      %9562 = vmatprep.mubr.f32.mxu0 0.0
      %9563 = vmatmul.mubr.f32.gmra.mrb[0].mxu0 %v9141
      %v9564 = vpop.f32.mrb[0].mxu0
      %v9565 = vadd.f32 0.0, %v9564
      %v9566 = vpop.f32.mrb[0].mxu0
      %v9567 = vadd.f32 0.0, %v9566
      %9568 = vdwg.mxu0
      %9569 = vmatprep.subr.mxu0 %v8994
      %9570 = vmatpush1.msra.mxu0 %v8993
      %9571 = vmatprep.subr.mxu0 %v9010
      %9572 = vmatpush1.msra.mxu0 %v9009
      %9573 = vmatprep.subr.mxu0 %v9026
      %9574 = vmatpush1.msra.mxu0 %v9025
      %9575 = vmatprep.subr.mxu0 %v9042
      %9576 = vmatpush1.msra.mxu0 %v9041
      %9577 = vmatprep.subr.mxu0 %v9058
      %9578 = vmatpush1.msra.mxu0 %v9057
      %9579 = vmatprep.subr.mxu0 0.0
      %9580 = vmatpush1.msra.mxu0 0.0
      %9581 = vmatprep.subr.mxu0 0.0
      %9582 = vmatpush1.msra.mxu0 0.0
      %9583 = vmatprep.subr.mxu0 0.0
      %9584 = vmatpush1.msra.mxu0 0.0
      %9585 = vmatprep.subr.mxu0 0.0
      %9586 = vmatpush1.msra.mxu0 0.0
      %9587 = vmatprep.subr.mxu0 0.0
      %9588 = vmatpush1.msra.mxu0 0.0
      %9589 = vmatprep.subr.mxu0 0.0
      %9590 = vmatpush1.msra.mxu0 0.0
      %9591 = vmatprep.subr.mxu0 0.0
      %9592 = vmatpush1.msra.mxu0 0.0
      %9593 = vmatprep.subr.mxu0 0.0
      %9594 = vmatpush1.msra.mxu0 0.0
      %9595 = vmatprep.subr.mxu0 0.0
      %9596 = vmatpush1.msra.mxu0 0.0
      %9597 = vmatprep.subr.mxu0 0.0
      %9598 = vmatpush1.msra.mxu0 0.0
      %9599 = vmatprep.subr.mxu0 0.0
      %9600 = vmatpush1.msra.mxu0 0.0
      %9601 = vmatprep.subr.mxu0 0.0
      %9602 = vmatpush1.msra.mxu0 0.0
      %9603 = vmatprep.subr.mxu0 0.0
      %9604 = vmatpush1.msra.mxu0 0.0
      %9605 = vmatprep.subr.mxu0 0.0
      %9606 = vmatpush1.msra.mxu0 0.0
      %9607 = vmatprep.subr.mxu0 0.0
      %9608 = vmatpush1.msra.mxu0 0.0
      %9609 = vmatprep.subr.mxu0 0.0
      %9610 = vmatpush1.msra.mxu0 0.0
      %9611 = vmatprep.subr.mxu0 0.0
      %9612 = vmatpush1.msra.mxu0 0.0
      %9613 = vmatprep.subr.mxu0 0.0
      %9614 = vmatpush1.msra.mxu0 0.0
      %9615 = vmatprep.subr.mxu0 0.0
      %9616 = vmatpush1.msra.mxu0 0.0
      %9617 = vmatprep.subr.mxu0 0.0
      %9618 = vmatpush1.msra.mxu0 0.0
      %9619 = vmatprep.subr.mxu0 0.0
      %9620 = vmatpush1.msra.mxu0 0.0
      %9621 = vmatprep.subr.mxu0 0.0
      %9622 = vmatpush1.msra.mxu0 0.0
      %9623 = vmatprep.subr.mxu0 0.0
      %9624 = vmatpush1.msra.mxu0 0.0
      %9625 = vmatprep.subr.mxu0 0.0
      %9626 = vmatpush1.msra.mxu0 0.0
      %9627 = vmatprep.subr.mxu0 0.0
      %9628 = vmatpush1.msra.mxu0 0.0
      %9629 = vmatprep.subr.mxu0 0.0
      %9630 = vmatpush1.msra.mxu0 0.0
      %9631 = vmatprep.subr.mxu0 0.0
      %9632 = vmatpush1.msra.mxu0 0.0
      %9633 = vmatprep.mubr.f32.mxu0 0.0
      %9634 = vmatmul.mubr.f32.gmra.mrb[0].mxu0 %v9141
      %v9635 = vpop.f32.mrb[0].mxu0
      %v9636 = vadd.f32 0.0, %v9635
      %v9637 = vpop.f32.mrb[0].mxu0
      %v9638 = vadd.f32 0.0, %v9637
      %9639 = vdwg.mxu0
      %9640 = vmatprep.subr.mxu0 %v8996
      %9641 = vmatpush1.msra.mxu0 %v8995
      %9642 = vmatprep.subr.mxu0 %v9012
      %9643 = vmatpush1.msra.mxu0 %v9011
      %9644 = vmatprep.subr.mxu0 %v9028
      %9645 = vmatpush1.msra.mxu0 %v9027
      %9646 = vmatprep.subr.mxu0 %v9044
      %9647 = vmatpush1.msra.mxu0 %v9043
      %9648 = vmatprep.subr.mxu0 %v9060
      %9649 = vmatpush1.msra.mxu0 %v9059
      %9650 = vmatprep.subr.mxu0 0.0
      %9651 = vmatpush1.msra.mxu0 0.0
      %9652 = vmatprep.subr.mxu0 0.0
      %9653 = vmatpush1.msra.mxu0 0.0
      %9654 = vmatprep.subr.mxu0 0.0
      %9655 = vmatpush1.msra.mxu0 0.0
      %9656 = vmatprep.subr.mxu0 0.0
      %9657 = vmatpush1.msra.mxu0 0.0
      %9658 = vmatprep.subr.mxu0 0.0
      %9659 = vmatpush1.msra.mxu0 0.0
      %9660 = vmatprep.subr.mxu0 0.0
      %9661 = vmatpush1.msra.mxu0 0.0
      %9662 = vmatprep.subr.mxu0 0.0
      %9663 = vmatpush1.msra.mxu0 0.0
      %9664 = vmatprep.subr.mxu0 0.0
      %9665 = vmatpush1.msra.mxu0 0.0
      %9666 = vmatprep.subr.mxu0 0.0
      %9667 = vmatpush1.msra.mxu0 0.0
      %9668 = vmatprep.subr.mxu0 0.0
      %9669 = vmatpush1.msra.mxu0 0.0
      %9670 = vmatprep.subr.mxu0 0.0
      %9671 = vmatpush1.msra.mxu0 0.0
      %9672 = vmatprep.subr.mxu0 0.0
      %9673 = vmatpush1.msra.mxu0 0.0
      %9674 = vmatprep.subr.mxu0 0.0
      %9675 = vmatpush1.msra.mxu0 0.0
      %9676 = vmatprep.subr.mxu0 0.0
      %9677 = vmatpush1.msra.mxu0 0.0
      %9678 = vmatprep.subr.mxu0 0.0
      %9679 = vmatpush1.msra.mxu0 0.0
      %9680 = vmatprep.subr.mxu0 0.0
      %9681 = vmatpush1.msra.mxu0 0.0
      %9682 = vmatprep.subr.mxu0 0.0
      %9683 = vmatpush1.msra.mxu0 0.0
      %9684 = vmatprep.subr.mxu0 0.0
      %9685 = vmatpush1.msra.mxu0 0.0
      %9686 = vmatprep.subr.mxu0 0.0
      %9687 = vmatpush1.msra.mxu0 0.0
      %9688 = vmatprep.subr.mxu0 0.0
      %9689 = vmatpush1.msra.mxu0 0.0
      %9690 = vmatprep.subr.mxu0 0.0
      %9691 = vmatpush1.msra.mxu0 0.0
      %9692 = vmatprep.subr.mxu0 0.0
      %9693 = vmatpush1.msra.mxu0 0.0
      %9694 = vmatprep.subr.mxu0 0.0
      %9695 = vmatpush1.msra.mxu0 0.0
      %9696 = vmatprep.subr.mxu0 0.0
      %9697 = vmatpush1.msra.mxu0 0.0
      %9698 = vmatprep.subr.mxu0 0.0
      %9699 = vmatpush1.msra.mxu0 0.0
      %9700 = vmatprep.subr.mxu0 0.0
      %9701 = vmatpush1.msra.mxu0 0.0
      %9702 = vmatprep.subr.mxu0 0.0
      %9703 = vmatpush1.msra.mxu0 0.0
      %9704 = vmatprep.mubr.f32.mxu0 0.0
      %9705 = vmatmul.mubr.f32.gmra.mrb[0].mxu0 %v9141
      %v9706 = vpop.f32.mrb[0].mxu0
      %v9707 = vadd.f32 0.0, %v9706
      %v9708 = vpop.f32.mrb[0].mxu0
      %v9709 = vadd.f32 0.0, %v9708
      %9710 = vdwg.mxu0
      %v9711 = vadd.f32 %v8785, %v9210
      %v9712 = vadd.f32 %v8786, %v9212
      %v9713 = vadd.f32 %v8787, %v9281
      %v9714 = vadd.f32 %v8788, %v9283
      %v9715 = vadd.f32 %v8789, %v9352
      %v9716 = vadd.f32 %v8790, %v9354
      %v9717 = vadd.f32 %v8791, %v9423
      %v9718 = vadd.f32 %v8792, %v9425
      %v9719 = vadd.f32 %v8793, %v9494
      %v9720 = vadd.f32 %v8794, %v9496
      %v9721 = vadd.f32 %v8795, %v9565
      %v9722 = vadd.f32 %v8796, %v9567
      %v9723 = vadd.f32 %v8797, %v9636
      %v9724 = vadd.f32 %v8798, %v9638
      %v9725 = vadd.f32 %v8799, %v9707
      %v9726 = vadd.f32 %v8800, %v9709
      %9727 = vrot.lane.b32.xlu0 %v8802, 104
      %v9728 = vpop.permute.xlu0 %9727
      %v9729 = vsel %vm3554, %v9728, 0
      %9731 = vmatprep.subr.mxu0 %v7715
      %9732 = vmatpush1.msra.mxu0 %v7714
      %9733 = vmatprep.subr.mxu0 %v7732
      %9734 = vmatpush1.msra.mxu0 %v7731
      %9735 = vmatprep.subr.mxu0 %v7749
      %9736 = vmatpush1.msra.mxu0 %v7748
      %9737 = vmatprep.subr.mxu0 %v7766
      %9738 = vmatpush1.msra.mxu0 %v7765
      %9739 = vmatprep.subr.mxu0 %v7783
      %9740 = vmatpush1.msra.mxu0 %v7782
      %9741 = vmatprep.subr.mxu0 0.0
      %9742 = vmatpush1.msra.mxu0 0.0
      %9743 = vmatprep.subr.mxu0 0.0
      %9744 = vmatpush1.msra.mxu0 0.0
      %9745 = vmatprep.subr.mxu0 0.0
      %9746 = vmatpush1.msra.mxu0 0.0
      %9747 = vmatprep.subr.mxu0 0.0
      %9748 = vmatpush1.msra.mxu0 0.0
      %9749 = vmatprep.subr.mxu0 0.0
      %9750 = vmatpush1.msra.mxu0 0.0
      %9751 = vmatprep.subr.mxu0 0.0
      %9752 = vmatpush1.msra.mxu0 0.0
      %9753 = vmatprep.subr.mxu0 0.0
      %9754 = vmatpush1.msra.mxu0 0.0
      %9755 = vmatprep.subr.mxu0 0.0
      %9756 = vmatpush1.msra.mxu0 0.0
      %9757 = vmatprep.subr.mxu0 0.0
      %9758 = vmatpush1.msra.mxu0 0.0
      %9759 = vmatprep.subr.mxu0 0.0
      %9760 = vmatpush1.msra.mxu0 0.0
      %9761 = vmatprep.subr.mxu0 0.0
      %9762 = vmatpush1.msra.mxu0 0.0
      %9763 = vmatprep.subr.mxu0 0.0
      %9764 = vmatpush1.msra.mxu0 0.0
      %9765 = vmatprep.subr.mxu0 0.0
      %9766 = vmatpush1.msra.mxu0 0.0
      %9767 = vmatprep.subr.mxu0 0.0
      %9768 = vmatpush1.msra.mxu0 0.0
      %9769 = vmatprep.subr.mxu0 0.0
      %9770 = vmatpush1.msra.mxu0 0.0
      %9771 = vmatprep.subr.mxu0 0.0
      %9772 = vmatpush1.msra.mxu0 0.0
      %9773 = vmatprep.subr.mxu0 0.0
      %9774 = vmatpush1.msra.mxu0 0.0
      %9775 = vmatprep.subr.mxu0 0.0
      %9776 = vmatpush1.msra.mxu0 0.0
      %9777 = vmatprep.subr.mxu0 0.0
      %9778 = vmatpush1.msra.mxu0 0.0
      %9779 = vmatprep.subr.mxu0 0.0
      %9780 = vmatpush1.msra.mxu0 0.0
      %9781 = vmatprep.subr.mxu0 0.0
      %9782 = vmatpush1.msra.mxu0 0.0
      %9783 = vmatprep.subr.mxu0 0.0
      %9784 = vmatpush1.msra.mxu0 0.0
      %9785 = vmatprep.subr.mxu0 0.0
      %9786 = vmatpush1.msra.mxu0 0.0
      %9787 = vmatprep.subr.mxu0 0.0
      %9788 = vmatpush1.msra.mxu0 0.0
      %9789 = vmatprep.subr.mxu0 0.0
      %9790 = vmatpush1.msra.mxu0 0.0
      %9791 = vmatprep.subr.mxu0 0.0
      %9792 = vmatpush1.msra.mxu0 0.0
      %9793 = vmatprep.subr.mxu0 0.0
      %9794 = vmatpush1.msra.mxu0 0.0
      %9795 = vmatprep.mubr.f32.mxu0 0.0
      %9796 = vmatmul.mubr.f32.gmra.mrb[0].mxu0 %v9729
      %v9797 = vpop.f32.mrb[0].mxu0
      %v9798 = vadd.f32 0.0, %v9797
      %v9799 = vpop.f32.mrb[0].mxu0
      %v9800 = vadd.f32 0.0, %v9799
      %9801 = vdwg.mxu0
      %9802 = vmatprep.subr.mxu0 %v7717
      %9803 = vmatpush1.msra.mxu0 %v7716
      %9804 = vmatprep.subr.mxu0 %v7734
      %9805 = vmatpush1.msra.mxu0 %v7733
      %9806 = vmatprep.subr.mxu0 %v7751
      %9807 = vmatpush1.msra.mxu0 %v7750
      %9808 = vmatprep.subr.mxu0 %v7768
      %9809 = vmatpush1.msra.mxu0 %v7767
      %9810 = vmatprep.subr.mxu0 %v7785
      %9811 = vmatpush1.msra.mxu0 %v7784
      %9812 = vmatprep.subr.mxu0 0.0
      %9813 = vmatpush1.msra.mxu0 0.0
      %9814 = vmatprep.subr.mxu0 0.0
      %9815 = vmatpush1.msra.mxu0 0.0
      %9816 = vmatprep.subr.mxu0 0.0
      %9817 = vmatpush1.msra.mxu0 0.0
      %9818 = vmatprep.subr.mxu0 0.0
      %9819 = vmatpush1.msra.mxu0 0.0
      %9820 = vmatprep.subr.mxu0 0.0
      %9821 = vmatpush1.msra.mxu0 0.0
      %9822 = vmatprep.subr.mxu0 0.0
      %9823 = vmatpush1.msra.mxu0 0.0
      %9824 = vmatprep.subr.mxu0 0.0
      %9825 = vmatpush1.msra.mxu0 0.0
      %9826 = vmatprep.subr.mxu0 0.0
      %9827 = vmatpush1.msra.mxu0 0.0
      %9828 = vmatprep.subr.mxu0 0.0
      %9829 = vmatpush1.msra.mxu0 0.0
      %9830 = vmatprep.subr.mxu0 0.0
      %9831 = vmatpush1.msra.mxu0 0.0
      %9832 = vmatprep.subr.mxu0 0.0
      %9833 = vmatpush1.msra.mxu0 0.0
      %9834 = vmatprep.subr.mxu0 0.0
      %9835 = vmatpush1.msra.mxu0 0.0
      %9836 = vmatprep.subr.mxu0 0.0
      %9837 = vmatpush1.msra.mxu0 0.0
      %9838 = vmatprep.subr.mxu0 0.0
      %9839 = vmatpush1.msra.mxu0 0.0
      %9840 = vmatprep.subr.mxu0 0.0
      %9841 = vmatpush1.msra.mxu0 0.0
      %9842 = vmatprep.subr.mxu0 0.0
      %9843 = vmatpush1.msra.mxu0 0.0
      %9844 = vmatprep.subr.mxu0 0.0
      %9845 = vmatpush1.msra.mxu0 0.0
      %9846 = vmatprep.subr.mxu0 0.0
      %9847 = vmatpush1.msra.mxu0 0.0
      %9848 = vmatprep.subr.mxu0 0.0
      %9849 = vmatpush1.msra.mxu0 0.0
      %9850 = vmatprep.subr.mxu0 0.0
      %9851 = vmatpush1.msra.mxu0 0.0
      %9852 = vmatprep.subr.mxu0 0.0
      %9853 = vmatpush1.msra.mxu0 0.0
      %9854 = vmatprep.subr.mxu0 0.0
      %9855 = vmatpush1.msra.mxu0 0.0
      %9856 = vmatprep.subr.mxu0 0.0
      %9857 = vmatpush1.msra.mxu0 0.0
      %9858 = vmatprep.subr.mxu0 0.0
      %9859 = vmatpush1.msra.mxu0 0.0
      %9860 = vmatprep.subr.mxu0 0.0
      %9861 = vmatpush1.msra.mxu0 0.0
      %9862 = vmatprep.subr.mxu0 0.0
      %9863 = vmatpush1.msra.mxu0 0.0
      %9864 = vmatprep.subr.mxu0 0.0
      %9865 = vmatpush1.msra.mxu0 0.0
      %9866 = vmatprep.mubr.f32.mxu0 0.0
      %9867 = vmatmul.mubr.f32.gmra.mrb[0].mxu0 %v9729
      %v9868 = vpop.f32.mrb[0].mxu0
      %v9869 = vadd.f32 0.0, %v9868
      %v9870 = vpop.f32.mrb[0].mxu0
      %v9871 = vadd.f32 0.0, %v9870
      %9872 = vdwg.mxu0
      %9873 = vmatprep.subr.mxu0 %v7719
      %9874 = vmatpush1.msra.mxu0 %v7718
      %9875 = vmatprep.subr.mxu0 %v7736
      %9876 = vmatpush1.msra.mxu0 %v7735
      %9877 = vmatprep.subr.mxu0 %v7753
      %9878 = vmatpush1.msra.mxu0 %v7752
      %9879 = vmatprep.subr.mxu0 %v7770
      %9880 = vmatpush1.msra.mxu0 %v7769
      %9881 = vmatprep.subr.mxu0 %v7787
      %9882 = vmatpush1.msra.mxu0 %v7786
      %9883 = vmatprep.subr.mxu0 0.0
      %9884 = vmatpush1.msra.mxu0 0.0
      %9885 = vmatprep.subr.mxu0 0.0
      %9886 = vmatpush1.msra.mxu0 0.0
      %9887 = vmatprep.subr.mxu0 0.0
      %9888 = vmatpush1.msra.mxu0 0.0
      %9889 = vmatprep.subr.mxu0 0.0
      %9890 = vmatpush1.msra.mxu0 0.0
      %9891 = vmatprep.subr.mxu0 0.0
      %9892 = vmatpush1.msra.mxu0 0.0
      %9893 = vmatprep.subr.mxu0 0.0
      %9894 = vmatpush1.msra.mxu0 0.0
      %9895 = vmatprep.subr.mxu0 0.0
      %9896 = vmatpush1.msra.mxu0 0.0
      %9897 = vmatprep.subr.mxu0 0.0
      %9898 = vmatpush1.msra.mxu0 0.0
      %9899 = vmatprep.subr.mxu0 0.0
      %9900 = vmatpush1.msra.mxu0 0.0
      %9901 = vmatprep.subr.mxu0 0.0
      %9902 = vmatpush1.msra.mxu0 0.0
      %9903 = vmatprep.subr.mxu0 0.0
      %9904 = vmatpush1.msra.mxu0 0.0
      %9905 = vmatprep.subr.mxu0 0.0
      %9906 = vmatpush1.msra.mxu0 0.0
      %9907 = vmatprep.subr.mxu0 0.0
      %9908 = vmatpush1.msra.mxu0 0.0
      %9909 = vmatprep.subr.mxu0 0.0
      %9910 = vmatpush1.msra.mxu0 0.0
      %9911 = vmatprep.subr.mxu0 0.0
      %9912 = vmatpush1.msra.mxu0 0.0
      %9913 = vmatprep.subr.mxu0 0.0
      %9914 = vmatpush1.msra.mxu0 0.0
      %9915 = vmatprep.subr.mxu0 0.0
      %9916 = vmatpush1.msra.mxu0 0.0
      %9917 = vmatprep.subr.mxu0 0.0
      %9918 = vmatpush1.msra.mxu0 0.0
      %9919 = vmatprep.subr.mxu0 0.0
      %9920 = vmatpush1.msra.mxu0 0.0
      %9921 = vmatprep.subr.mxu0 0.0
      %9922 = vmatpush1.msra.mxu0 0.0
      %9923 = vmatprep.subr.mxu0 0.0
      %9924 = vmatpush1.msra.mxu0 0.0
      %9925 = vmatprep.subr.mxu0 0.0
      %9926 = vmatpush1.msra.mxu0 0.0
      %9927 = vmatprep.subr.mxu0 0.0
      %9928 = vmatpush1.msra.mxu0 0.0
      %9929 = vmatprep.subr.mxu0 0.0
      %9930 = vmatpush1.msra.mxu0 0.0
      %9931 = vmatprep.subr.mxu0 0.0
      %9932 = vmatpush1.msra.mxu0 0.0
      %9933 = vmatprep.subr.mxu0 0.0
      %9934 = vmatpush1.msra.mxu0 0.0
      %9935 = vmatprep.subr.mxu0 0.0
      %9936 = vmatpush1.msra.mxu0 0.0
      %9937 = vmatprep.mubr.f32.mxu0 0.0
      %9938 = vmatmul.mubr.f32.gmra.mrb[0].mxu0 %v9729
      %v9939 = vpop.f32.mrb[0].mxu0
      %v9940 = vadd.f32 0.0, %v9939
      %v9941 = vpop.f32.mrb[0].mxu0
      %v9942 = vadd.f32 0.0, %v9941
      %9943 = vdwg.mxu0
      %9944 = vmatprep.subr.mxu0 %v7721
      %9945 = vmatpush1.msra.mxu0 %v7720
      %9946 = vmatprep.subr.mxu0 %v7738
      %9947 = vmatpush1.msra.mxu0 %v7737
      %9948 = vmatprep.subr.mxu0 %v7755
      %9949 = vmatpush1.msra.mxu0 %v7754
      %9950 = vmatprep.subr.mxu0 %v7772
      %9951 = vmatpush1.msra.mxu0 %v7771
      %9952 = vmatprep.subr.mxu0 %v7789
      %9953 = vmatpush1.msra.mxu0 %v7788
      %9954 = vmatprep.subr.mxu0 0.0
      %9955 = vmatpush1.msra.mxu0 0.0
      %9956 = vmatprep.subr.mxu0 0.0
      %9957 = vmatpush1.msra.mxu0 0.0
      %9958 = vmatprep.subr.mxu0 0.0
      %9959 = vmatpush1.msra.mxu0 0.0
      %9960 = vmatprep.subr.mxu0 0.0
      %9961 = vmatpush1.msra.mxu0 0.0
      %9962 = vmatprep.subr.mxu0 0.0
      %9963 = vmatpush1.msra.mxu0 0.0
      %9964 = vmatprep.subr.mxu0 0.0
      %9965 = vmatpush1.msra.mxu0 0.0
      %9966 = vmatprep.subr.mxu0 0.0
      %9967 = vmatpush1.msra.mxu0 0.0
      %9968 = vmatprep.subr.mxu0 0.0
      %9969 = vmatpush1.msra.mxu0 0.0
      %9970 = vmatprep.subr.mxu0 0.0
      %9971 = vmatpush1.msra.mxu0 0.0
      %9972 = vmatprep.subr.mxu0 0.0
      %9973 = vmatpush1.msra.mxu0 0.0
      %9974 = vmatprep.subr.mxu0 0.0
      %9975 = vmatpush1.msra.mxu0 0.0
      %9976 = vmatprep.subr.mxu0 0.0
      %9977 = vmatpush1.msra.mxu0 0.0
      %9978 = vmatprep.subr.mxu0 0.0
      %9979 = vmatpush1.msra.mxu0 0.0
      %9980 = vmatprep.subr.mxu0 0.0
      %9981 = vmatpush1.msra.mxu0 0.0
      %9982 = vmatprep.subr.mxu0 0.0
      %9983 = vmatpush1.msra.mxu0 0.0
      %9984 = vmatprep.subr.mxu0 0.0
      %9985 = vmatpush1.msra.mxu0 0.0
      %9986 = vmatprep.subr.mxu0 0.0
      %9987 = vmatpush1.msra.mxu0 0.0
      %9988 = vmatprep.subr.mxu0 0.0
      %9989 = vmatpush1.msra.mxu0 0.0
      %9990 = vmatprep.subr.mxu0 0.0
      %9991 = vmatpush1.msra.mxu0 0.0
      %9992 = vmatprep.subr.mxu0 0.0
      %9993 = vmatpush1.msra.mxu0 0.0
      %9994 = vmatprep.subr.mxu0 0.0
      %9995 = vmatpush1.msra.mxu0 0.0
      %9996 = vmatprep.subr.mxu0 0.0
      %9997 = vmatpush1.msra.mxu0 0.0
      %9998 = vmatprep.subr.mxu0 0.0
      %9999 = vmatpush1.msra.mxu0 0.0
      %10000 = vmatprep.subr.mxu0 0.0
      %10001 = vmatpush1.msra.mxu0 0.0
      %10002 = vmatprep.subr.mxu0 0.0
      %10003 = vmatpush1.msra.mxu0 0.0
      %10004 = vmatprep.subr.mxu0 0.0
      %10005 = vmatpush1.msra.mxu0 0.0
      %10006 = vmatprep.subr.mxu0 0.0
      %10007 = vmatpush1.msra.mxu0 0.0
      %10008 = vmatprep.mubr.f32.mxu0 0.0
      %10009 = vmatmul.mubr.f32.gmra.mrb[0].mxu0 %v9729
      %v10010 = vpop.f32.mrb[0].mxu0
      %v10011 = vadd.f32 0.0, %v10010
      %v10012 = vpop.f32.mrb[0].mxu0
      %v10013 = vadd.f32 0.0, %v10012
      %10014 = vdwg.mxu0
      %10015 = vmatprep.subr.mxu0 %v7723
      %10016 = vmatpush1.msra.mxu0 %v7722
      %10017 = vmatprep.subr.mxu0 %v7740
      %10018 = vmatpush1.msra.mxu0 %v7739
      %10019 = vmatprep.subr.mxu0 %v7757
      %10020 = vmatpush1.msra.mxu0 %v7756
      %10021 = vmatprep.subr.mxu0 %v7774
      %10022 = vmatpush1.msra.mxu0 %v7773
      %10023 = vmatprep.subr.mxu0 %v7791
      %10024 = vmatpush1.msra.mxu0 %v7790
      %10025 = vmatprep.subr.mxu0 0.0
      %10026 = vmatpush1.msra.mxu0 0.0
      %10027 = vmatprep.subr.mxu0 0.0
      %10028 = vmatpush1.msra.mxu0 0.0
      %10029 = vmatprep.subr.mxu0 0.0
      %10030 = vmatpush1.msra.mxu0 0.0
      %10031 = vmatprep.subr.mxu0 0.0
      %10032 = vmatpush1.msra.mxu0 0.0
      %10033 = vmatprep.subr.mxu0 0.0
      %10034 = vmatpush1.msra.mxu0 0.0
      %10035 = vmatprep.subr.mxu0 0.0
      %10036 = vmatpush1.msra.mxu0 0.0
      %10037 = vmatprep.subr.mxu0 0.0
      %10038 = vmatpush1.msra.mxu0 0.0
      %10039 = vmatprep.subr.mxu0 0.0
      %10040 = vmatpush1.msra.mxu0 0.0
      %10041 = vmatprep.subr.mxu0 0.0
      %10042 = vmatpush1.msra.mxu0 0.0
      %10043 = vmatprep.subr.mxu0 0.0
      %10044 = vmatpush1.msra.mxu0 0.0
      %10045 = vmatprep.subr.mxu0 0.0
      %10046 = vmatpush1.msra.mxu0 0.0
      %10047 = vmatprep.subr.mxu0 0.0
      %10048 = vmatpush1.msra.mxu0 0.0
      %10049 = vmatprep.subr.mxu0 0.0
      %10050 = vmatpush1.msra.mxu0 0.0
      %10051 = vmatprep.subr.mxu0 0.0
      %10052 = vmatpush1.msra.mxu0 0.0
      %10053 = vmatprep.subr.mxu0 0.0
      %10054 = vmatpush1.msra.mxu0 0.0
      %10055 = vmatprep.subr.mxu0 0.0
      %10056 = vmatpush1.msra.mxu0 0.0
      %10057 = vmatprep.subr.mxu0 0.0
      %10058 = vmatpush1.msra.mxu0 0.0
      %10059 = vmatprep.subr.mxu0 0.0
      %10060 = vmatpush1.msra.mxu0 0.0
      %10061 = vmatprep.subr.mxu0 0.0
      %10062 = vmatpush1.msra.mxu0 0.0
      %10063 = vmatprep.subr.mxu0 0.0
      %10064 = vmatpush1.msra.mxu0 0.0
      %10065 = vmatprep.subr.mxu0 0.0
      %10066 = vmatpush1.msra.mxu0 0.0
      %10067 = vmatprep.subr.mxu0 0.0
      %10068 = vmatpush1.msra.mxu0 0.0
      %10069 = vmatprep.subr.mxu0 0.0
      %10070 = vmatpush1.msra.mxu0 0.0
      %10071 = vmatprep.subr.mxu0 0.0
      %10072 = vmatpush1.msra.mxu0 0.0
      %10073 = vmatprep.subr.mxu0 0.0
      %10074 = vmatpush1.msra.mxu0 0.0
      %10075 = vmatprep.subr.mxu0 0.0
      %10076 = vmatpush1.msra.mxu0 0.0
      %10077 = vmatprep.subr.mxu0 0.0
      %10078 = vmatpush1.msra.mxu0 0.0
      %10079 = vmatprep.mubr.f32.mxu0 0.0
      %10080 = vmatmul.mubr.f32.gmra.mrb[0].mxu0 %v9729
      %v10081 = vpop.f32.mrb[0].mxu0
      %v10082 = vadd.f32 0.0, %v10081
      %v10083 = vpop.f32.mrb[0].mxu0
      %v10084 = vadd.f32 0.0, %v10083
      %10085 = vdwg.mxu0
      %10086 = vmatprep.subr.mxu0 %v7725
      %10087 = vmatpush1.msra.mxu0 %v7724
      %10088 = vmatprep.subr.mxu0 %v7742
      %10089 = vmatpush1.msra.mxu0 %v7741
      %10090 = vmatprep.subr.mxu0 %v7759
      %10091 = vmatpush1.msra.mxu0 %v7758
      %10092 = vmatprep.subr.mxu0 %v7776
      %10093 = vmatpush1.msra.mxu0 %v7775
      %10094 = vmatprep.subr.mxu0 %v7793
      %10095 = vmatpush1.msra.mxu0 %v7792
      %10096 = vmatprep.subr.mxu0 0.0
      %10097 = vmatpush1.msra.mxu0 0.0
      %10098 = vmatprep.subr.mxu0 0.0
      %10099 = vmatpush1.msra.mxu0 0.0
      %10100 = vmatprep.subr.mxu0 0.0
      %10101 = vmatpush1.msra.mxu0 0.0
      %10102 = vmatprep.subr.mxu0 0.0
      %10103 = vmatpush1.msra.mxu0 0.0
      %10104 = vmatprep.subr.mxu0 0.0
      %10105 = vmatpush1.msra.mxu0 0.0
      %10106 = vmatprep.subr.mxu0 0.0
      %10107 = vmatpush1.msra.mxu0 0.0
      %10108 = vmatprep.subr.mxu0 0.0
      %10109 = vmatpush1.msra.mxu0 0.0
      %10110 = vmatprep.subr.mxu0 0.0
      %10111 = vmatpush1.msra.mxu0 0.0
      %10112 = vmatprep.subr.mxu0 0.0
      %10113 = vmatpush1.msra.mxu0 0.0
      %10114 = vmatprep.subr.mxu0 0.0
      %10115 = vmatpush1.msra.mxu0 0.0
      %10116 = vmatprep.subr.mxu0 0.0
      %10117 = vmatpush1.msra.mxu0 0.0
      %10118 = vmatprep.subr.mxu0 0.0
      %10119 = vmatpush1.msra.mxu0 0.0
      %10120 = vmatprep.subr.mxu0 0.0
      %10121 = vmatpush1.msra.mxu0 0.0
      %10122 = vmatprep.subr.mxu0 0.0
      %10123 = vmatpush1.msra.mxu0 0.0
      %10124 = vmatprep.subr.mxu0 0.0
      %10125 = vmatpush1.msra.mxu0 0.0
      %10126 = vmatprep.subr.mxu0 0.0
      %10127 = vmatpush1.msra.mxu0 0.0
      %10128 = vmatprep.subr.mxu0 0.0
      %10129 = vmatpush1.msra.mxu0 0.0
      %10130 = vmatprep.subr.mxu0 0.0
      %10131 = vmatpush1.msra.mxu0 0.0
      %10132 = vmatprep.subr.mxu0 0.0
      %10133 = vmatpush1.msra.mxu0 0.0
      %10134 = vmatprep.subr.mxu0 0.0
      %10135 = vmatpush1.msra.mxu0 0.0
      %10136 = vmatprep.subr.mxu0 0.0
      %10137 = vmatpush1.msra.mxu0 0.0
      %10138 = vmatprep.subr.mxu0 0.0
      %10139 = vmatpush1.msra.mxu0 0.0
      %10140 = vmatprep.subr.mxu0 0.0
      %10141 = vmatpush1.msra.mxu0 0.0
      %10142 = vmatprep.subr.mxu0 0.0
      %10143 = vmatpush1.msra.mxu0 0.0
      %10144 = vmatprep.subr.mxu0 0.0
      %10145 = vmatpush1.msra.mxu0 0.0
      %10146 = vmatprep.subr.mxu0 0.0
      %10147 = vmatpush1.msra.mxu0 0.0
      %10148 = vmatprep.subr.mxu0 0.0
      %10149 = vmatpush1.msra.mxu0 0.0
      %10150 = vmatprep.mubr.f32.mxu0 0.0
      %10151 = vmatmul.mubr.f32.gmra.mrb[0].mxu0 %v9729
      %v10152 = vpop.f32.mrb[0].mxu0
      %v10153 = vadd.f32 0.0, %v10152
      %v10154 = vpop.f32.mrb[0].mxu0
      %v10155 = vadd.f32 0.0, %v10154
      %10156 = vdwg.mxu0
      %10157 = vmatprep.subr.mxu0 %v7727
      %10158 = vmatpush1.msra.mxu0 %v7726
      %10159 = vmatprep.subr.mxu0 %v7744
      %10160 = vmatpush1.msra.mxu0 %v7743
      %10161 = vmatprep.subr.mxu0 %v7761
      %10162 = vmatpush1.msra.mxu0 %v7760
      %10163 = vmatprep.subr.mxu0 %v7778
      %10164 = vmatpush1.msra.mxu0 %v7777
      %10165 = vmatprep.subr.mxu0 %v7795
      %10166 = vmatpush1.msra.mxu0 %v7794
      %10167 = vmatprep.subr.mxu0 0.0
      %10168 = vmatpush1.msra.mxu0 0.0
      %10169 = vmatprep.subr.mxu0 0.0
      %10170 = vmatpush1.msra.mxu0 0.0
      %10171 = vmatprep.subr.mxu0 0.0
      %10172 = vmatpush1.msra.mxu0 0.0
      %10173 = vmatprep.subr.mxu0 0.0
      %10174 = vmatpush1.msra.mxu0 0.0
      %10175 = vmatprep.subr.mxu0 0.0
      %10176 = vmatpush1.msra.mxu0 0.0
      %10177 = vmatprep.subr.mxu0 0.0
      %10178 = vmatpush1.msra.mxu0 0.0
      %10179 = vmatprep.subr.mxu0 0.0
      %10180 = vmatpush1.msra.mxu0 0.0
      %10181 = vmatprep.subr.mxu0 0.0
      %10182 = vmatpush1.msra.mxu0 0.0
      %10183 = vmatprep.subr.mxu0 0.0
      %10184 = vmatpush1.msra.mxu0 0.0
      %10185 = vmatprep.subr.mxu0 0.0
      %10186 = vmatpush1.msra.mxu0 0.0
      %10187 = vmatprep.subr.mxu0 0.0
      %10188 = vmatpush1.msra.mxu0 0.0
      %10189 = vmatprep.subr.mxu0 0.0
      %10190 = vmatpush1.msra.mxu0 0.0
      %10191 = vmatprep.subr.mxu0 0.0
      %10192 = vmatpush1.msra.mxu0 0.0
      %10193 = vmatprep.subr.mxu0 0.0
      %10194 = vmatpush1.msra.mxu0 0.0
      %10195 = vmatprep.subr.mxu0 0.0
      %10196 = vmatpush1.msra.mxu0 0.0
      %10197 = vmatprep.subr.mxu0 0.0
      %10198 = vmatpush1.msra.mxu0 0.0
      %10199 = vmatprep.subr.mxu0 0.0
      %10200 = vmatpush1.msra.mxu0 0.0
      %10201 = vmatprep.subr.mxu0 0.0
      %10202 = vmatpush1.msra.mxu0 0.0
      %10203 = vmatprep.subr.mxu0 0.0
      %10204 = vmatpush1.msra.mxu0 0.0
      %10205 = vmatprep.subr.mxu0 0.0
      %10206 = vmatpush1.msra.mxu0 0.0
      %10207 = vmatprep.subr.mxu0 0.0
      %10208 = vmatpush1.msra.mxu0 0.0
      %10209 = vmatprep.subr.mxu0 0.0
      %10210 = vmatpush1.msra.mxu0 0.0
      %10211 = vmatprep.subr.mxu0 0.0
      %10212 = vmatpush1.msra.mxu0 0.0
      %10213 = vmatprep.subr.mxu0 0.0
      %10214 = vmatpush1.msra.mxu0 0.0
      %10215 = vmatprep.subr.mxu0 0.0
      %10216 = vmatpush1.msra.mxu0 0.0
      %10217 = vmatprep.subr.mxu0 0.0
      %10218 = vmatpush1.msra.mxu0 0.0
      %10219 = vmatprep.subr.mxu0 0.0
      %10220 = vmatpush1.msra.mxu0 0.0
      %10221 = vmatprep.mubr.f32.mxu0 0.0
      %10222 = vmatmul.mubr.f32.gmra.mrb[0].mxu0 %v9729
      %v10223 = vpop.f32.mrb[0].mxu0
      %v10224 = vadd.f32 0.0, %v10223
      %v10225 = vpop.f32.mrb[0].mxu0
      %v10226 = vadd.f32 0.0, %v10225
      %10227 = vdwg.mxu0
      %10228 = vmatprep.subr.mxu0 %v7729
      %10229 = vmatpush1.msra.mxu0 %v7728
      %10230 = vmatprep.subr.mxu0 %v7746
      %10231 = vmatpush1.msra.mxu0 %v7745
      %10232 = vmatprep.subr.mxu0 %v7763
      %10233 = vmatpush1.msra.mxu0 %v7762
      %10234 = vmatprep.subr.mxu0 %v7780
      %10235 = vmatpush1.msra.mxu0 %v7779
      %10236 = vmatprep.subr.mxu0 %v7797
      %10237 = vmatpush1.msra.mxu0 %v7796
      %10238 = vmatprep.subr.mxu0 0.0
      %10239 = vmatpush1.msra.mxu0 0.0
      %10240 = vmatprep.subr.mxu0 0.0
      %10241 = vmatpush1.msra.mxu0 0.0
      %10242 = vmatprep.subr.mxu0 0.0
      %10243 = vmatpush1.msra.mxu0 0.0
      %10244 = vmatprep.subr.mxu0 0.0
      %10245 = vmatpush1.msra.mxu0 0.0
      %10246 = vmatprep.subr.mxu0 0.0
      %10247 = vmatpush1.msra.mxu0 0.0
      %10248 = vmatprep.subr.mxu0 0.0
      %10249 = vmatpush1.msra.mxu0 0.0
      %10250 = vmatprep.subr.mxu0 0.0
      %10251 = vmatpush1.msra.mxu0 0.0
      %10252 = vmatprep.subr.mxu0 0.0
      %10253 = vmatpush1.msra.mxu0 0.0
      %10254 = vmatprep.subr.mxu0 0.0
      %10255 = vmatpush1.msra.mxu0 0.0
      %10256 = vmatprep.subr.mxu0 0.0
      %10257 = vmatpush1.msra.mxu0 0.0
      %10258 = vmatprep.subr.mxu0 0.0
      %10259 = vmatpush1.msra.mxu0 0.0
      %10260 = vmatprep.subr.mxu0 0.0
      %10261 = vmatpush1.msra.mxu0 0.0
      %10262 = vmatprep.subr.mxu0 0.0
      %10263 = vmatpush1.msra.mxu0 0.0
      %10264 = vmatprep.subr.mxu0 0.0
      %10265 = vmatpush1.msra.mxu0 0.0
      %10266 = vmatprep.subr.mxu0 0.0
      %10267 = vmatpush1.msra.mxu0 0.0
      %10268 = vmatprep.subr.mxu0 0.0
      %10269 = vmatpush1.msra.mxu0 0.0
      %10270 = vmatprep.subr.mxu0 0.0
      %10271 = vmatpush1.msra.mxu0 0.0
      %10272 = vmatprep.subr.mxu0 0.0
      %10273 = vmatpush1.msra.mxu0 0.0
      %10274 = vmatprep.subr.mxu0 0.0
      %10275 = vmatpush1.msra.mxu0 0.0
      %10276 = vmatprep.subr.mxu0 0.0
      %10277 = vmatpush1.msra.mxu0 0.0
      %10278 = vmatprep.subr.mxu0 0.0
      %10279 = vmatpush1.msra.mxu0 0.0
      %10280 = vmatprep.subr.mxu0 0.0
      %10281 = vmatpush1.msra.mxu0 0.0
      %10282 = vmatprep.subr.mxu0 0.0
      %10283 = vmatpush1.msra.mxu0 0.0
      %10284 = vmatprep.subr.mxu0 0.0
      %10285 = vmatpush1.msra.mxu0 0.0
      %10286 = vmatprep.subr.mxu0 0.0
      %10287 = vmatpush1.msra.mxu0 0.0
      %10288 = vmatprep.subr.mxu0 0.0
      %10289 = vmatpush1.msra.mxu0 0.0
      %10290 = vmatprep.subr.mxu0 0.0
      %10291 = vmatpush1.msra.mxu0 0.0
      %10292 = vmatprep.mubr.f32.mxu0 0.0
      %10293 = vmatmul.mubr.f32.gmra.mrb[0].mxu0 %v9729
      %v10294 = vpop.f32.mrb[0].mxu0
      %v10295 = vadd.f32 0.0, %v10294
      %v10296 = vpop.f32.mrb[0].mxu0
      %v10297 = vadd.f32 0.0, %v10296
      %10298 = vdwg.mxu0
      %v10299 = vadd.f32 %v9711, %v9798
      %v10300 = vadd.f32 %v9712, %v9800
      %v10301 = vadd.f32 %v9713, %v9869
      %v10302 = vadd.f32 %v9714, %v9871
      %v10303 = vadd.f32 %v9715, %v9940
      %v10304 = vadd.f32 %v9716, %v9942
      %v10305 = vadd.f32 %v9717, %v10011
      %v10306 = vadd.f32 %v9718, %v10013
      %v10307 = vadd.f32 %v9719, %v10082
      %v10308 = vadd.f32 %v9720, %v10084
      %v10309 = vadd.f32 %v9721, %v10153
      %v10310 = vadd.f32 %v9722, %v10155
      %v10311 = vadd.f32 %v9723, %v10224
      %v10312 = vadd.f32 %v9724, %v10226
      %v10313 = vadd.f32 %v9725, %v10295
      %v10314 = vadd.f32 %v9726, %v10297
      %v10315 = vld [vmem:[#allocation3 + $0x18] sm:$0xff]
      %v10316 = vld [vmem:[#allocation3 + $0x20] sm:$0xff]
      %v10317 = vld [vmem:[#allocation3 + $0x28] sm:$0xff]
      %v10318 = vld [vmem:[#allocation3 + $0x30] sm:$0xff]
      %v10319 = vld [vmem:[#allocation3 + $0x38] sm:$0xff]
      %v10320 = vld [vmem:[#allocation3 + $0x40] sm:$0xff]
      %v10321 = vld [vmem:[#allocation3 + $0x48] sm:$0xff]
      %v10322 = vld [vmem:[#allocation3 + $0x50] sm:$0xff]
      %v10323 = vld [vmem:[#allocation3 + $0x58] sm:$0xff]
      %v10324 = vld [vmem:[#allocation3 + $0x60] sm:$0xff]
      %v10325 = vld [vmem:[#allocation3 + $0x68] sm:$0xff]
      %v10326 = vld [vmem:[#allocation3 + $0x70] sm:$0xff]
      %v10327 = vld [vmem:[#allocation3 + $0x78] sm:$0xff]
      %v10328 = vld [vmem:[#allocation3 + $0x80] sm:$0xff]
      %v10329 = vld [vmem:[#allocation3 + $0x88] sm:$0xff]
      %v10330 = vld [vmem:[#allocation3 + $0x90] sm:$0xff]
      %v10331 = vld [vmem:[#allocation3 + $0x98] sm:$0xff]
      %v10332 = vld [vmem:[#allocation3 + $0xb8] sm:$0xff]
      %v10333 = vld [vmem:[#allocation3 + $0xc0] sm:$0xff]
      %v10334 = vld [vmem:[#allocation3 + $0xc8] sm:$0xff]
      %v10335 = vld [vmem:[#allocation3 + $0xd0] sm:$0xff]
      %v10336 = vld [vmem:[#allocation3 + $0xd8] sm:$0xff]
      %v10337 = vld [vmem:[#allocation3 + $0xe0] sm:$0xff]
      %v10338 = vld [vmem:[#allocation3 + $0xe8] sm:$0xff]
      %v10339 = vld [vmem:[#allocation3 + $0xf0] sm:$0xff]
      %v10340 = vld [vmem:[#allocation3 + $0xf8] sm:$0xff]
      %v10341 = vld [vmem:[#allocation3 + $0x100] sm:$0xff]
      %v10342 = vld [vmem:[#allocation3 + $0x108] sm:$0xff]
      %v10343 = vld [vmem:[#allocation3 + $0x110] sm:$0xff]
      %v10344 = vld [vmem:[#allocation3 + $0x118] sm:$0xff]
      %v10345 = vld [vmem:[#allocation3 + $0x120] sm:$0xff]
      %v10346 = vld [vmem:[#allocation3 + $0x128] sm:$0xff]
      %v10347 = vld [vmem:[#allocation3 + $0x130] sm:$0xff]
      %v10348 = vld [vmem:[#allocation3 + $0x138] sm:$0xff]
      %v10349 = vld [vmem:[#allocation3 + $0x158] sm:$0xff]
      %v10350 = vld [vmem:[#allocation3 + $0x160] sm:$0xff]
      %v10351 = vld [vmem:[#allocation3 + $0x168] sm:$0xff]
      %v10352 = vld [vmem:[#allocation3 + $0x170] sm:$0xff]
      %v10353 = vld [vmem:[#allocation3 + $0x178] sm:$0xff]
      %v10354 = vld [vmem:[#allocation3 + $0x180] sm:$0xff]
      %v10355 = vld [vmem:[#allocation3 + $0x188] sm:$0xff]
      %v10356 = vld [vmem:[#allocation3 + $0x190] sm:$0xff]
      %v10357 = vld [vmem:[#allocation3 + $0x198] sm:$0xff]
      %v10358 = vld [vmem:[#allocation3 + $0x1a0] sm:$0xff]
      %v10359 = vld [vmem:[#allocation3 + $0x1a8] sm:$0xff]
      %v10360 = vld [vmem:[#allocation3 + $0x1b0] sm:$0xff]
      %v10361 = vld [vmem:[#allocation3 + $0x1b8] sm:$0xff]
      %v10362 = vld [vmem:[#allocation3 + $0x1c0] sm:$0xff]
      %v10363 = vld [vmem:[#allocation3 + $0x1c8] sm:$0xff]
      %v10364 = vld [vmem:[#allocation3 + $0x1d0] sm:$0xff]
      %v10365 = vld [vmem:[#allocation3 + $0x1d8] sm:$0xff]
      %v10366 = vld [vmem:[#allocation3 + $0x1f8] sm:$0xff]
      %v10367 = vld [vmem:[#allocation3 + $0x200] sm:$0xff]
      %v10368 = vld [vmem:[#allocation3 + $0x208] sm:$0xff]
      %v10369 = vld [vmem:[#allocation3 + $0x210] sm:$0xff]
      %v10370 = vld [vmem:[#allocation3 + $0x218] sm:$0xff]
      %v10371 = vld [vmem:[#allocation3 + $0x220] sm:$0xff]
      %v10372 = vld [vmem:[#allocation3 + $0x228] sm:$0xff]
      %v10373 = vld [vmem:[#allocation3 + $0x230] sm:$0xff]
      %v10374 = vld [vmem:[#allocation3 + $0x238] sm:$0xff]
      %v10375 = vld [vmem:[#allocation3 + $0x240] sm:$0xff]
      %v10376 = vld [vmem:[#allocation3 + $0x248] sm:$0xff]
      %v10377 = vld [vmem:[#allocation3 + $0x250] sm:$0xff]
      %v10378 = vld [vmem:[#allocation3 + $0x258] sm:$0xff]
      %v10379 = vld [vmem:[#allocation3 + $0x260] sm:$0xff]
      %v10380 = vld [vmem:[#allocation3 + $0x268] sm:$0xff]
      %v10381 = vld [vmem:[#allocation3 + $0x270] sm:$0xff]
      %v10382 = vld [vmem:[#allocation3 + $0x278] sm:$0xff]
      %v10383 = vld [vmem:[#allocation3 + $0x298] sm:$0xff]
      %v10384 = vld [vmem:[#allocation3 + $0x2a0] sm:$0xff]
      %v10385 = vld [vmem:[#allocation3 + $0x2a8] sm:$0xff]
      %v10386 = vld [vmem:[#allocation3 + $0x2b0] sm:$0xff]
      %v10387 = vld [vmem:[#allocation3 + $0x2b8] sm:$0xff]
      %v10388 = vld [vmem:[#allocation3 + $0x2c0] sm:$0xff]
      %v10389 = vld [vmem:[#allocation3 + $0x2c8] sm:$0xff]
      %v10390 = vld [vmem:[#allocation3 + $0x2d0] sm:$0xff]
      %v10391 = vld [vmem:[#allocation3 + $0x2d8] sm:$0xff]
      %v10392 = vld [vmem:[#allocation3 + $0x2e0] sm:$0xff]
      %v10393 = vld [vmem:[#allocation3 + $0x2e8] sm:$0xff]
      %v10394 = vld [vmem:[#allocation3 + $0x2f0] sm:$0xff]
      %v10395 = vld [vmem:[#allocation3 + $0x2f8] sm:$0xff]
      %v10396 = vld [vmem:[#allocation3 + $0x300] sm:$0xff]
      %v10397 = vld [vmem:[#allocation3 + $0x308] sm:$0xff]
      %v10398 = vld [vmem:[#allocation3 + $0x310] sm:$0xff]
      %v10399 = vld [vmem:[#allocation3 + $0x318] sm:$0xff]
      %10400 = vrot.lane.b32.xlu0 %v8802, 64
      %v10401 = vpop.permute.xlu0 %10400
      %10487 = vrot.lane.b32.xlu0 %v10315, 127
      %v10488 = vpop.permute.xlu0 %10487
      %10489 = vrot.lane.b32.xlu0 %v10316, 127
      %v10490 = vpop.permute.xlu0 %10489
      %10491 = vrot.lane.b32.xlu0 %v10317, 127
      %v10492 = vpop.permute.xlu0 %10491
      %10493 = vrot.lane.b32.xlu0 %v10318, 127
      %v10494 = vpop.permute.xlu0 %10493
      %10495 = vrot.lane.b32.xlu0 %v10319, 127
      %v10496 = vpop.permute.xlu0 %10495
      %10497 = vrot.lane.b32.xlu0 %v10320, 127
      %v10498 = vpop.permute.xlu0 %10497
      %10499 = vrot.lane.b32.xlu0 %v10321, 127
      %v10500 = vpop.permute.xlu0 %10499
      %10501 = vrot.lane.b32.xlu0 %v10322, 127
      %v10502 = vpop.permute.xlu0 %10501
      %10503 = vrot.lane.b32.xlu0 %v10323, 127
      %v10504 = vpop.permute.xlu0 %10503
      %10505 = vrot.lane.b32.xlu0 %v10324, 127
      %v10506 = vpop.permute.xlu0 %10505
      %10507 = vrot.lane.b32.xlu0 %v10325, 127
      %v10508 = vpop.permute.xlu0 %10507
      %10509 = vrot.lane.b32.xlu0 %v10326, 127
      %v10510 = vpop.permute.xlu0 %10509
      %10511 = vrot.lane.b32.xlu0 %v10327, 127
      %v10512 = vpop.permute.xlu0 %10511
      %10513 = vrot.lane.b32.xlu0 %v10328, 127
      %v10514 = vpop.permute.xlu0 %10513
      %10515 = vrot.lane.b32.xlu0 %v10329, 127
      %v10516 = vpop.permute.xlu0 %10515
      %10517 = vrot.lane.b32.xlu0 %v10330, 127
      %v10518 = vpop.permute.xlu0 %10517
      %10519 = vrot.lane.b32.xlu0 %v10331, 127
      %v10520 = vpop.permute.xlu0 %10519
      %10521 = vrot.lane.b32.xlu0 %v10332, 127
      %v10522 = vpop.permute.xlu0 %10521
      %10523 = vrot.lane.b32.xlu0 %v10333, 127
      %v10524 = vpop.permute.xlu0 %10523
      %10525 = vrot.lane.b32.xlu0 %v10334, 127
      %v10526 = vpop.permute.xlu0 %10525
      %10527 = vrot.lane.b32.xlu0 %v10335, 127
      %v10528 = vpop.permute.xlu0 %10527
      %10529 = vrot.lane.b32.xlu0 %v10336, 127
      %v10530 = vpop.permute.xlu0 %10529
      %10531 = vrot.lane.b32.xlu0 %v10337, 127
      %v10532 = vpop.permute.xlu0 %10531
      %10533 = vrot.lane.b32.xlu0 %v10338, 127
      %v10534 = vpop.permute.xlu0 %10533
      %10535 = vrot.lane.b32.xlu0 %v10339, 127
      %v10536 = vpop.permute.xlu0 %10535
      %10537 = vrot.lane.b32.xlu0 %v10340, 127
      %v10538 = vpop.permute.xlu0 %10537
      %10539 = vrot.lane.b32.xlu0 %v10341, 127
      %v10540 = vpop.permute.xlu0 %10539
      %10541 = vrot.lane.b32.xlu0 %v10342, 127
      %v10542 = vpop.permute.xlu0 %10541
      %10543 = vrot.lane.b32.xlu0 %v10343, 127
      %v10544 = vpop.permute.xlu0 %10543
      %10545 = vrot.lane.b32.xlu0 %v10344, 127
      %v10546 = vpop.permute.xlu0 %10545
      %10547 = vrot.lane.b32.xlu0 %v10345, 127
      %v10548 = vpop.permute.xlu0 %10547
      %10549 = vrot.lane.b32.xlu0 %v10346, 127
      %v10550 = vpop.permute.xlu0 %10549
      %10551 = vrot.lane.b32.xlu0 %v10347, 127
      %v10552 = vpop.permute.xlu0 %10551
      %10553 = vrot.lane.b32.xlu0 %v10348, 127
      %v10554 = vpop.permute.xlu0 %10553
      %10555 = vrot.lane.b32.xlu0 %v10349, 127
      %v10556 = vpop.permute.xlu0 %10555
      %10557 = vrot.lane.b32.xlu0 %v10350, 127
      %v10558 = vpop.permute.xlu0 %10557
      %10559 = vrot.lane.b32.xlu0 %v10351, 127
      %v10560 = vpop.permute.xlu0 %10559
      %10561 = vrot.lane.b32.xlu0 %v10352, 127
      %v10562 = vpop.permute.xlu0 %10561
      %10563 = vrot.lane.b32.xlu0 %v10353, 127
      %v10564 = vpop.permute.xlu0 %10563
      %10565 = vrot.lane.b32.xlu0 %v10354, 127
      %v10566 = vpop.permute.xlu0 %10565
      %10567 = vrot.lane.b32.xlu0 %v10355, 127
      %v10568 = vpop.permute.xlu0 %10567
      %10569 = vrot.lane.b32.xlu0 %v10356, 127
      %v10570 = vpop.permute.xlu0 %10569
      %10571 = vrot.lane.b32.xlu0 %v10357, 127
      %v10572 = vpop.permute.xlu0 %10571
      %10573 = vrot.lane.b32.xlu0 %v10358, 127
      %v10574 = vpop.permute.xlu0 %10573
      %10575 = vrot.lane.b32.xlu0 %v10359, 127
      %v10576 = vpop.permute.xlu0 %10575
      %10577 = vrot.lane.b32.xlu0 %v10360, 127
      %v10578 = vpop.permute.xlu0 %10577
      %10579 = vrot.lane.b32.xlu0 %v10361, 127
      %v10580 = vpop.permute.xlu0 %10579
      %10581 = vrot.lane.b32.xlu0 %v10362, 127
      %v10582 = vpop.permute.xlu0 %10581
      %10583 = vrot.lane.b32.xlu0 %v10363, 127
      %v10584 = vpop.permute.xlu0 %10583
      %10585 = vrot.lane.b32.xlu0 %v10364, 127
      %v10586 = vpop.permute.xlu0 %10585
      %10587 = vrot.lane.b32.xlu0 %v10365, 127
      %v10588 = vpop.permute.xlu0 %10587
      %10589 = vrot.lane.b32.xlu0 %v10366, 127
      %v10590 = vpop.permute.xlu0 %10589
      %10591 = vrot.lane.b32.xlu0 %v10367, 127
      %v10592 = vpop.permute.xlu0 %10591
      %10593 = vrot.lane.b32.xlu0 %v10368, 127
      %v10594 = vpop.permute.xlu0 %10593
      %10595 = vrot.lane.b32.xlu0 %v10369, 127
      %v10596 = vpop.permute.xlu0 %10595
      %10597 = vrot.lane.b32.xlu0 %v10370, 127
      %v10598 = vpop.permute.xlu0 %10597
      %10599 = vrot.lane.b32.xlu0 %v10371, 127
      %v10600 = vpop.permute.xlu0 %10599
      %10601 = vrot.lane.b32.xlu0 %v10372, 127
      %v10602 = vpop.permute.xlu0 %10601
      %10603 = vrot.lane.b32.xlu0 %v10373, 127
      %v10604 = vpop.permute.xlu0 %10603
      %10605 = vrot.lane.b32.xlu0 %v10374, 127
      %v10606 = vpop.permute.xlu0 %10605
      %10607 = vrot.lane.b32.xlu0 %v10375, 127
      %v10608 = vpop.permute.xlu0 %10607
      %10609 = vrot.lane.b32.xlu0 %v10376, 127
      %v10610 = vpop.permute.xlu0 %10609
      %10611 = vrot.lane.b32.xlu0 %v10377, 127
      %v10612 = vpop.permute.xlu0 %10611
      %10613 = vrot.lane.b32.xlu0 %v10378, 127
      %v10614 = vpop.permute.xlu0 %10613
      %10615 = vrot.lane.b32.xlu0 %v10379, 127
      %v10616 = vpop.permute.xlu0 %10615
      %10617 = vrot.lane.b32.xlu0 %v10380, 127
      %v10618 = vpop.permute.xlu0 %10617
      %10619 = vrot.lane.b32.xlu0 %v10381, 127
      %v10620 = vpop.permute.xlu0 %10619
      %10621 = vrot.lane.b32.xlu0 %v10382, 127
      %v10622 = vpop.permute.xlu0 %10621
      %10623 = vrot.lane.b32.xlu0 %v10383, 127
      %v10624 = vpop.permute.xlu0 %10623
      %10625 = vrot.lane.b32.xlu0 %v10384, 127
      %v10626 = vpop.permute.xlu0 %10625
      %10627 = vrot.lane.b32.xlu0 %v10385, 127
      %v10628 = vpop.permute.xlu0 %10627
      %10629 = vrot.lane.b32.xlu0 %v10386, 127
      %v10630 = vpop.permute.xlu0 %10629
      %10631 = vrot.lane.b32.xlu0 %v10387, 127
      %v10632 = vpop.permute.xlu0 %10631
      %10633 = vrot.lane.b32.xlu0 %v10388, 127
      %v10634 = vpop.permute.xlu0 %10633
      %10635 = vrot.lane.b32.xlu0 %v10389, 127
      %v10636 = vpop.permute.xlu0 %10635
      %10637 = vrot.lane.b32.xlu0 %v10390, 127
      %v10638 = vpop.permute.xlu0 %10637
      %10639 = vrot.lane.b32.xlu0 %v10391, 127
      %v10640 = vpop.permute.xlu0 %10639
      %10641 = vrot.lane.b32.xlu0 %v10392, 127
      %v10642 = vpop.permute.xlu0 %10641
      %10643 = vrot.lane.b32.xlu0 %v10393, 127
      %v10644 = vpop.permute.xlu0 %10643
      %10645 = vrot.lane.b32.xlu0 %v10394, 127
      %v10646 = vpop.permute.xlu0 %10645
      %10647 = vrot.lane.b32.xlu0 %v10395, 127
      %v10648 = vpop.permute.xlu0 %10647
      %10649 = vrot.lane.b32.xlu0 %v10396, 127
      %v10650 = vpop.permute.xlu0 %10649
      %10651 = vrot.lane.b32.xlu0 %v10397, 127
      %v10652 = vpop.permute.xlu0 %10651
      %10653 = vrot.lane.b32.xlu0 %v10398, 127
      %v10654 = vpop.permute.xlu0 %10653
      %10655 = vrot.lane.b32.xlu0 %v10399, 127
      %v10656 = vpop.permute.xlu0 %10655
      %v10657 = vsel %vm5453, %v10488, %v10490
      %v10658 = vsel %vm5453, %v10490, %v10492
      %v10659 = vsel %vm5453, %v10492, %v10494
      %v10660 = vsel %vm5453, %v10494, %v10496
      %v10661 = vsel %vm5453, %v10496, %v10498
      %v10662 = vsel %vm5453, %v10498, %v10500
      %v10663 = vsel %vm5453, %v10500, %v10502
      %v10664 = vsel %vm5453, %v10502, %v10504
      %v10665 = vsel %vm5453, %v10504, %v10506
      %v10666 = vsel %vm5453, %v10506, %v10508
      %v10667 = vsel %vm5453, %v10508, %v10510
      %v10668 = vsel %vm5453, %v10510, %v10512
      %v10669 = vsel %vm5453, %v10512, %v10514
      %v10670 = vsel %vm5453, %v10514, %v10516
      %v10671 = vsel %vm5453, %v10516, %v10518
      %v10672 = vsel %vm5453, %v10518, %v10520
      %v10673 = vsel %vm5453, %v10522, %v10524
      %v10674 = vsel %vm5453, %v10524, %v10526
      %v10675 = vsel %vm5453, %v10526, %v10528
      %v10676 = vsel %vm5453, %v10528, %v10530
      %v10677 = vsel %vm5453, %v10530, %v10532
      %v10678 = vsel %vm5453, %v10532, %v10534
      %v10679 = vsel %vm5453, %v10534, %v10536
      %v10680 = vsel %vm5453, %v10536, %v10538
      %v10681 = vsel %vm5453, %v10538, %v10540
      %v10682 = vsel %vm5453, %v10540, %v10542
      %v10683 = vsel %vm5453, %v10542, %v10544
      %v10684 = vsel %vm5453, %v10544, %v10546
      %v10685 = vsel %vm5453, %v10546, %v10548
      %v10686 = vsel %vm5453, %v10548, %v10550
      %v10687 = vsel %vm5453, %v10550, %v10552
      %v10688 = vsel %vm5453, %v10552, %v10554
      %v10689 = vsel %vm5453, %v10556, %v10558
      %v10690 = vsel %vm5453, %v10558, %v10560
      %v10691 = vsel %vm5453, %v10560, %v10562
      %v10692 = vsel %vm5453, %v10562, %v10564
      %v10693 = vsel %vm5453, %v10564, %v10566
      %v10694 = vsel %vm5453, %v10566, %v10568
      %v10695 = vsel %vm5453, %v10568, %v10570
      %v10696 = vsel %vm5453, %v10570, %v10572
      %v10697 = vsel %vm5453, %v10572, %v10574
      %v10698 = vsel %vm5453, %v10574, %v10576
      %v10699 = vsel %vm5453, %v10576, %v10578
      %v10700 = vsel %vm5453, %v10578, %v10580
      %v10701 = vsel %vm5453, %v10580, %v10582
      %v10702 = vsel %vm5453, %v10582, %v10584
      %v10703 = vsel %vm5453, %v10584, %v10586
      %v10704 = vsel %vm5453, %v10586, %v10588
      %v10705 = vsel %vm5453, %v10590, %v10592
      %v10706 = vsel %vm5453, %v10592, %v10594
      %v10707 = vsel %vm5453, %v10594, %v10596
      %v10708 = vsel %vm5453, %v10596, %v10598
      %v10709 = vsel %vm5453, %v10598, %v10600
      %v10710 = vsel %vm5453, %v10600, %v10602
      %v10711 = vsel %vm5453, %v10602, %v10604
      %v10712 = vsel %vm5453, %v10604, %v10606
      %v10713 = vsel %vm5453, %v10606, %v10608
      %v10714 = vsel %vm5453, %v10608, %v10610
      %v10715 = vsel %vm5453, %v10610, %v10612
      %v10716 = vsel %vm5453, %v10612, %v10614
      %v10717 = vsel %vm5453, %v10614, %v10616
      %v10718 = vsel %vm5453, %v10616, %v10618
      %v10719 = vsel %vm5453, %v10618, %v10620
      %v10720 = vsel %vm5453, %v10620, %v10622
      %v10721 = vsel %vm5453, %v10624, %v10626
      %v10722 = vsel %vm5453, %v10626, %v10628
      %v10723 = vsel %vm5453, %v10628, %v10630
      %v10724 = vsel %vm5453, %v10630, %v10632
      %v10725 = vsel %vm5453, %v10632, %v10634
      %v10726 = vsel %vm5453, %v10634, %v10636
      %v10727 = vsel %vm5453, %v10636, %v10638
      %v10728 = vsel %vm5453, %v10638, %v10640
      %v10729 = vsel %vm5453, %v10640, %v10642
      %v10730 = vsel %vm5453, %v10642, %v10644
      %v10731 = vsel %vm5453, %v10644, %v10646
      %v10732 = vsel %vm5453, %v10646, %v10648
      %v10733 = vsel %vm5453, %v10648, %v10650
      %v10734 = vsel %vm5453, %v10650, %v10652
      %v10735 = vsel %vm5453, %v10652, %v10654
      %v10736 = vsel %vm5453, %v10654, %v10656
      %v10817 = vsel %vm3554, %v10401, 0
      %10819 = vmatprep.subr.mxu0 %v10658
      %10820 = vmatpush1.msra.mxu0 %v10657
      %10821 = vmatprep.subr.mxu0 %v10674
      %10822 = vmatpush1.msra.mxu0 %v10673
      %10823 = vmatprep.subr.mxu0 %v10690
      %10824 = vmatpush1.msra.mxu0 %v10689
      %10825 = vmatprep.subr.mxu0 %v10706
      %10826 = vmatpush1.msra.mxu0 %v10705
      %10827 = vmatprep.subr.mxu0 %v10722
      %10828 = vmatpush1.msra.mxu0 %v10721
      %10829 = vmatprep.subr.mxu0 0.0
      %10830 = vmatpush1.msra.mxu0 0.0
      %10831 = vmatprep.subr.mxu0 0.0
      %10832 = vmatpush1.msra.mxu0 0.0
      %10833 = vmatprep.subr.mxu0 0.0
      %10834 = vmatpush1.msra.mxu0 0.0
      %10835 = vmatprep.subr.mxu0 0.0
      %10836 = vmatpush1.msra.mxu0 0.0
      %10837 = vmatprep.subr.mxu0 0.0
      %10838 = vmatpush1.msra.mxu0 0.0
      %10839 = vmatprep.subr.mxu0 0.0
      %10840 = vmatpush1.msra.mxu0 0.0
      %10841 = vmatprep.subr.mxu0 0.0
      %10842 = vmatpush1.msra.mxu0 0.0
      %10843 = vmatprep.subr.mxu0 0.0
      %10844 = vmatpush1.msra.mxu0 0.0
      %10845 = vmatprep.subr.mxu0 0.0
      %10846 = vmatpush1.msra.mxu0 0.0
      %10847 = vmatprep.subr.mxu0 0.0
      %10848 = vmatpush1.msra.mxu0 0.0
      %10849 = vmatprep.subr.mxu0 0.0
      %10850 = vmatpush1.msra.mxu0 0.0
      %10851 = vmatprep.subr.mxu0 0.0
      %10852 = vmatpush1.msra.mxu0 0.0
      %10853 = vmatprep.subr.mxu0 0.0
      %10854 = vmatpush1.msra.mxu0 0.0
      %10855 = vmatprep.subr.mxu0 0.0
      %10856 = vmatpush1.msra.mxu0 0.0
      %10857 = vmatprep.subr.mxu0 0.0
      %10858 = vmatpush1.msra.mxu0 0.0
      %10859 = vmatprep.subr.mxu0 0.0
      %10860 = vmatpush1.msra.mxu0 0.0
      %10861 = vmatprep.subr.mxu0 0.0
      %10862 = vmatpush1.msra.mxu0 0.0
      %10863 = vmatprep.subr.mxu0 0.0
      %10864 = vmatpush1.msra.mxu0 0.0
      %10865 = vmatprep.subr.mxu0 0.0
      %10866 = vmatpush1.msra.mxu0 0.0
      %10867 = vmatprep.subr.mxu0 0.0
      %10868 = vmatpush1.msra.mxu0 0.0
      %10869 = vmatprep.subr.mxu0 0.0
      %10870 = vmatpush1.msra.mxu0 0.0
      %10871 = vmatprep.subr.mxu0 0.0
      %10872 = vmatpush1.msra.mxu0 0.0
      %10873 = vmatprep.subr.mxu0 0.0
      %10874 = vmatpush1.msra.mxu0 0.0
      %10875 = vmatprep.subr.mxu0 0.0
      %10876 = vmatpush1.msra.mxu0 0.0
      %10877 = vmatprep.subr.mxu0 0.0
      %10878 = vmatpush1.msra.mxu0 0.0
      %10879 = vmatprep.subr.mxu0 0.0
      %10880 = vmatpush1.msra.mxu0 0.0
      %10881 = vmatprep.subr.mxu0 0.0
      %10882 = vmatpush1.msra.mxu0 0.0
      %10883 = vmatprep.mubr.f32.mxu0 0.0
      %10884 = vmatmul.mubr.f32.gmra.mrb[0].mxu0 %v10817
      %v10885 = vpop.f32.mrb[0].mxu0
      %v10886 = vadd.f32 0.0, %v10885
      %v10887 = vpop.f32.mrb[0].mxu0
      %v10888 = vadd.f32 0.0, %v10887
      %10889 = vdwg.mxu0
      %10890 = vmatprep.subr.mxu0 %v10660
      %10891 = vmatpush1.msra.mxu0 %v10659
      %10892 = vmatprep.subr.mxu0 %v10676
      %10893 = vmatpush1.msra.mxu0 %v10675
      %10894 = vmatprep.subr.mxu0 %v10692
      %10895 = vmatpush1.msra.mxu0 %v10691
      %10896 = vmatprep.subr.mxu0 %v10708
      %10897 = vmatpush1.msra.mxu0 %v10707
      %10898 = vmatprep.subr.mxu0 %v10724
      %10899 = vmatpush1.msra.mxu0 %v10723
      %10900 = vmatprep.subr.mxu0 0.0
      %10901 = vmatpush1.msra.mxu0 0.0
      %10902 = vmatprep.subr.mxu0 0.0
      %10903 = vmatpush1.msra.mxu0 0.0
      %10904 = vmatprep.subr.mxu0 0.0
      %10905 = vmatpush1.msra.mxu0 0.0
      %10906 = vmatprep.subr.mxu0 0.0
      %10907 = vmatpush1.msra.mxu0 0.0
      %10908 = vmatprep.subr.mxu0 0.0
      %10909 = vmatpush1.msra.mxu0 0.0
      %10910 = vmatprep.subr.mxu0 0.0
      %10911 = vmatpush1.msra.mxu0 0.0
      %10912 = vmatprep.subr.mxu0 0.0
      %10913 = vmatpush1.msra.mxu0 0.0
      %10914 = vmatprep.subr.mxu0 0.0
      %10915 = vmatpush1.msra.mxu0 0.0
      %10916 = vmatprep.subr.mxu0 0.0
      %10917 = vmatpush1.msra.mxu0 0.0
      %10918 = vmatprep.subr.mxu0 0.0
      %10919 = vmatpush1.msra.mxu0 0.0
      %10920 = vmatprep.subr.mxu0 0.0
      %10921 = vmatpush1.msra.mxu0 0.0
      %10922 = vmatprep.subr.mxu0 0.0
      %10923 = vmatpush1.msra.mxu0 0.0
      %10924 = vmatprep.subr.mxu0 0.0
      %10925 = vmatpush1.msra.mxu0 0.0
      %10926 = vmatprep.subr.mxu0 0.0
      %10927 = vmatpush1.msra.mxu0 0.0
      %10928 = vmatprep.subr.mxu0 0.0
      %10929 = vmatpush1.msra.mxu0 0.0
      %10930 = vmatprep.subr.mxu0 0.0
      %10931 = vmatpush1.msra.mxu0 0.0
      %10932 = vmatprep.subr.mxu0 0.0
      %10933 = vmatpush1.msra.mxu0 0.0
      %10934 = vmatprep.subr.mxu0 0.0
      %10935 = vmatpush1.msra.mxu0 0.0
      %10936 = vmatprep.subr.mxu0 0.0
      %10937 = vmatpush1.msra.mxu0 0.0
      %10938 = vmatprep.subr.mxu0 0.0
      %10939 = vmatpush1.msra.mxu0 0.0
      %10940 = vmatprep.subr.mxu0 0.0
      %10941 = vmatpush1.msra.mxu0 0.0
      %10942 = vmatprep.subr.mxu0 0.0
      %10943 = vmatpush1.msra.mxu0 0.0
      %10944 = vmatprep.subr.mxu0 0.0
      %10945 = vmatpush1.msra.mxu0 0.0
      %10946 = vmatprep.subr.mxu0 0.0
      %10947 = vmatpush1.msra.mxu0 0.0
      %10948 = vmatprep.subr.mxu0 0.0
      %10949 = vmatpush1.msra.mxu0 0.0
      %10950 = vmatprep.subr.mxu0 0.0
      %10951 = vmatpush1.msra.mxu0 0.0
      %10952 = vmatprep.subr.mxu0 0.0
      %10953 = vmatpush1.msra.mxu0 0.0
      %10954 = vmatprep.mubr.f32.mxu0 0.0
      %10955 = vmatmul.mubr.f32.gmra.mrb[0].mxu0 %v10817
      %v10956 = vpop.f32.mrb[0].mxu0
      %v10957 = vadd.f32 0.0, %v10956
      %v10958 = vpop.f32.mrb[0].mxu0
      %v10959 = vadd.f32 0.0, %v10958
      %10960 = vdwg.mxu0
      %10961 = vmatprep.subr.mxu0 %v10662
      %10962 = vmatpush1.msra.mxu0 %v10661
      %10963 = vmatprep.subr.mxu0 %v10678
      %10964 = vmatpush1.msra.mxu0 %v10677
      %10965 = vmatprep.subr.mxu0 %v10694
      %10966 = vmatpush1.msra.mxu0 %v10693
      %10967 = vmatprep.subr.mxu0 %v10710
      %10968 = vmatpush1.msra.mxu0 %v10709
      %10969 = vmatprep.subr.mxu0 %v10726
      %10970 = vmatpush1.msra.mxu0 %v10725
      %10971 = vmatprep.subr.mxu0 0.0
      %10972 = vmatpush1.msra.mxu0 0.0
      %10973 = vmatprep.subr.mxu0 0.0
      %10974 = vmatpush1.msra.mxu0 0.0
      %10975 = vmatprep.subr.mxu0 0.0
      %10976 = vmatpush1.msra.mxu0 0.0
      %10977 = vmatprep.subr.mxu0 0.0
      %10978 = vmatpush1.msra.mxu0 0.0
      %10979 = vmatprep.subr.mxu0 0.0
      %10980 = vmatpush1.msra.mxu0 0.0
      %10981 = vmatprep.subr.mxu0 0.0
      %10982 = vmatpush1.msra.mxu0 0.0
      %10983 = vmatprep.subr.mxu0 0.0
      %10984 = vmatpush1.msra.mxu0 0.0
      %10985 = vmatprep.subr.mxu0 0.0
      %10986 = vmatpush1.msra.mxu0 0.0
      %10987 = vmatprep.subr.mxu0 0.0
      %10988 = vmatpush1.msra.mxu0 0.0
      %10989 = vmatprep.subr.mxu0 0.0
      %10990 = vmatpush1.msra.mxu0 0.0
      %10991 = vmatprep.subr.mxu0 0.0
      %10992 = vmatpush1.msra.mxu0 0.0
      %10993 = vmatprep.subr.mxu0 0.0
      %10994 = vmatpush1.msra.mxu0 0.0
      %10995 = vmatprep.subr.mxu0 0.0
      %10996 = vmatpush1.msra.mxu0 0.0
      %10997 = vmatprep.subr.mxu0 0.0
      %10998 = vmatpush1.msra.mxu0 0.0
      %10999 = vmatprep.subr.mxu0 0.0
      %11000 = vmatpush1.msra.mxu0 0.0
      %11001 = vmatprep.subr.mxu0 0.0
      %11002 = vmatpush1.msra.mxu0 0.0
      %11003 = vmatprep.subr.mxu0 0.0
      %11004 = vmatpush1.msra.mxu0 0.0
      %11005 = vmatprep.subr.mxu0 0.0
      %11006 = vmatpush1.msra.mxu0 0.0
      %11007 = vmatprep.subr.mxu0 0.0
      %11008 = vmatpush1.msra.mxu0 0.0
      %11009 = vmatprep.subr.mxu0 0.0
      %11010 = vmatpush1.msra.mxu0 0.0
      %11011 = vmatprep.subr.mxu0 0.0
      %11012 = vmatpush1.msra.mxu0 0.0
      %11013 = vmatprep.subr.mxu0 0.0
      %11014 = vmatpush1.msra.mxu0 0.0
      %11015 = vmatprep.subr.mxu0 0.0
      %11016 = vmatpush1.msra.mxu0 0.0
      %11017 = vmatprep.subr.mxu0 0.0
      %11018 = vmatpush1.msra.mxu0 0.0
      %11019 = vmatprep.subr.mxu0 0.0
      %11020 = vmatpush1.msra.mxu0 0.0
      %11021 = vmatprep.subr.mxu0 0.0
      %11022 = vmatpush1.msra.mxu0 0.0
      %11023 = vmatprep.subr.mxu0 0.0
      %11024 = vmatpush1.msra.mxu0 0.0
      %11025 = vmatprep.mubr.f32.mxu0 0.0
      %11026 = vmatmul.mubr.f32.gmra.mrb[0].mxu0 %v10817
      %v11027 = vpop.f32.mrb[0].mxu0
      %v11028 = vadd.f32 0.0, %v11027
      %v11029 = vpop.f32.mrb[0].mxu0
      %v11030 = vadd.f32 0.0, %v11029
      %11031 = vdwg.mxu0
      %11032 = vmatprep.subr.mxu0 %v10664
      %11033 = vmatpush1.msra.mxu0 %v10663
      %11034 = vmatprep.subr.mxu0 %v10680
      %11035 = vmatpush1.msra.mxu0 %v10679
      %11036 = vmatprep.subr.mxu0 %v10696
      %11037 = vmatpush1.msra.mxu0 %v10695
      %11038 = vmatprep.subr.mxu0 %v10712
      %11039 = vmatpush1.msra.mxu0 %v10711
      %11040 = vmatprep.subr.mxu0 %v10728
      %11041 = vmatpush1.msra.mxu0 %v10727
      %11042 = vmatprep.subr.mxu0 0.0
      %11043 = vmatpush1.msra.mxu0 0.0
      %11044 = vmatprep.subr.mxu0 0.0
      %11045 = vmatpush1.msra.mxu0 0.0
      %11046 = vmatprep.subr.mxu0 0.0
      %11047 = vmatpush1.msra.mxu0 0.0
      %11048 = vmatprep.subr.mxu0 0.0
      %11049 = vmatpush1.msra.mxu0 0.0
      %11050 = vmatprep.subr.mxu0 0.0
      %11051 = vmatpush1.msra.mxu0 0.0
      %11052 = vmatprep.subr.mxu0 0.0
      %11053 = vmatpush1.msra.mxu0 0.0
      %11054 = vmatprep.subr.mxu0 0.0
      %11055 = vmatpush1.msra.mxu0 0.0
      %11056 = vmatprep.subr.mxu0 0.0
      %11057 = vmatpush1.msra.mxu0 0.0
      %11058 = vmatprep.subr.mxu0 0.0
      %11059 = vmatpush1.msra.mxu0 0.0
      %11060 = vmatprep.subr.mxu0 0.0
      %11061 = vmatpush1.msra.mxu0 0.0
      %11062 = vmatprep.subr.mxu0 0.0
      %11063 = vmatpush1.msra.mxu0 0.0
      %11064 = vmatprep.subr.mxu0 0.0
      %11065 = vmatpush1.msra.mxu0 0.0
      %11066 = vmatprep.subr.mxu0 0.0
      %11067 = vmatpush1.msra.mxu0 0.0
      %11068 = vmatprep.subr.mxu0 0.0
      %11069 = vmatpush1.msra.mxu0 0.0
      %11070 = vmatprep.subr.mxu0 0.0
      %11071 = vmatpush1.msra.mxu0 0.0
      %11072 = vmatprep.subr.mxu0 0.0
      %11073 = vmatpush1.msra.mxu0 0.0
      %11074 = vmatprep.subr.mxu0 0.0
      %11075 = vmatpush1.msra.mxu0 0.0
      %11076 = vmatprep.subr.mxu0 0.0
      %11077 = vmatpush1.msra.mxu0 0.0
      %11078 = vmatprep.subr.mxu0 0.0
      %11079 = vmatpush1.msra.mxu0 0.0
      %11080 = vmatprep.subr.mxu0 0.0
      %11081 = vmatpush1.msra.mxu0 0.0
      %11082 = vmatprep.subr.mxu0 0.0
      %11083 = vmatpush1.msra.mxu0 0.0
      %11084 = vmatprep.subr.mxu0 0.0
      %11085 = vmatpush1.msra.mxu0 0.0
      %11086 = vmatprep.subr.mxu0 0.0
      %11087 = vmatpush1.msra.mxu0 0.0
      %11088 = vmatprep.subr.mxu0 0.0
      %11089 = vmatpush1.msra.mxu0 0.0
      %11090 = vmatprep.subr.mxu0 0.0
      %11091 = vmatpush1.msra.mxu0 0.0
      %11092 = vmatprep.subr.mxu0 0.0
      %11093 = vmatpush1.msra.mxu0 0.0
      %11094 = vmatprep.subr.mxu0 0.0
      %11095 = vmatpush1.msra.mxu0 0.0
      %11096 = vmatprep.mubr.f32.mxu0 0.0
      %11097 = vmatmul.mubr.f32.gmra.mrb[0].mxu0 %v10817
      %v11098 = vpop.f32.mrb[0].mxu0
      %v11099 = vadd.f32 0.0, %v11098
      %v11100 = vpop.f32.mrb[0].mxu0
      %v11101 = vadd.f32 0.0, %v11100
      %11102 = vdwg.mxu0
      %11103 = vmatprep.subr.mxu0 %v10666
      %11104 = vmatpush1.msra.mxu0 %v10665
      %11105 = vmatprep.subr.mxu0 %v10682
      %11106 = vmatpush1.msra.mxu0 %v10681
      %11107 = vmatprep.subr.mxu0 %v10698
      %11108 = vmatpush1.msra.mxu0 %v10697
      %11109 = vmatprep.subr.mxu0 %v10714
      %11110 = vmatpush1.msra.mxu0 %v10713
      %11111 = vmatprep.subr.mxu0 %v10730
      %11112 = vmatpush1.msra.mxu0 %v10729
      %11113 = vmatprep.subr.mxu0 0.0
      %11114 = vmatpush1.msra.mxu0 0.0
      %11115 = vmatprep.subr.mxu0 0.0
      %11116 = vmatpush1.msra.mxu0 0.0
      %11117 = vmatprep.subr.mxu0 0.0
      %11118 = vmatpush1.msra.mxu0 0.0
      %11119 = vmatprep.subr.mxu0 0.0
      %11120 = vmatpush1.msra.mxu0 0.0
      %11121 = vmatprep.subr.mxu0 0.0
      %11122 = vmatpush1.msra.mxu0 0.0
      %11123 = vmatprep.subr.mxu0 0.0
      %11124 = vmatpush1.msra.mxu0 0.0
      %11125 = vmatprep.subr.mxu0 0.0
      %11126 = vmatpush1.msra.mxu0 0.0
      %11127 = vmatprep.subr.mxu0 0.0
      %11128 = vmatpush1.msra.mxu0 0.0
      %11129 = vmatprep.subr.mxu0 0.0
      %11130 = vmatpush1.msra.mxu0 0.0
      %11131 = vmatprep.subr.mxu0 0.0
      %11132 = vmatpush1.msra.mxu0 0.0
      %11133 = vmatprep.subr.mxu0 0.0
      %11134 = vmatpush1.msra.mxu0 0.0
      %11135 = vmatprep.subr.mxu0 0.0
      %11136 = vmatpush1.msra.mxu0 0.0
      %11137 = vmatprep.subr.mxu0 0.0
      %11138 = vmatpush1.msra.mxu0 0.0
      %11139 = vmatprep.subr.mxu0 0.0
      %11140 = vmatpush1.msra.mxu0 0.0
      %11141 = vmatprep.subr.mxu0 0.0
      %11142 = vmatpush1.msra.mxu0 0.0
      %11143 = vmatprep.subr.mxu0 0.0
      %11144 = vmatpush1.msra.mxu0 0.0
      %11145 = vmatprep.subr.mxu0 0.0
      %11146 = vmatpush1.msra.mxu0 0.0
      %11147 = vmatprep.subr.mxu0 0.0
      %11148 = vmatpush1.msra.mxu0 0.0
      %11149 = vmatprep.subr.mxu0 0.0
      %11150 = vmatpush1.msra.mxu0 0.0
      %11151 = vmatprep.subr.mxu0 0.0
      %11152 = vmatpush1.msra.mxu0 0.0
      %11153 = vmatprep.subr.mxu0 0.0
      %11154 = vmatpush1.msra.mxu0 0.0
      %11155 = vmatprep.subr.mxu0 0.0
      %11156 = vmatpush1.msra.mxu0 0.0
      %11157 = vmatprep.subr.mxu0 0.0
      %11158 = vmatpush1.msra.mxu0 0.0
      %11159 = vmatprep.subr.mxu0 0.0
      %11160 = vmatpush1.msra.mxu0 0.0
      %11161 = vmatprep.subr.mxu0 0.0
      %11162 = vmatpush1.msra.mxu0 0.0
      %11163 = vmatprep.subr.mxu0 0.0
      %11164 = vmatpush1.msra.mxu0 0.0
      %11165 = vmatprep.subr.mxu0 0.0
      %11166 = vmatpush1.msra.mxu0 0.0
      %11167 = vmatprep.mubr.f32.mxu0 0.0
      %11168 = vmatmul.mubr.f32.gmra.mrb[0].mxu0 %v10817
      %v11169 = vpop.f32.mrb[0].mxu0
      %v11170 = vadd.f32 0.0, %v11169
      %v11171 = vpop.f32.mrb[0].mxu0
      %v11172 = vadd.f32 0.0, %v11171
      %11173 = vdwg.mxu0
      %11174 = vmatprep.subr.mxu0 %v10668
      %11175 = vmatpush1.msra.mxu0 %v10667
      %11176 = vmatprep.subr.mxu0 %v10684
      %11177 = vmatpush1.msra.mxu0 %v10683
      %11178 = vmatprep.subr.mxu0 %v10700
      %11179 = vmatpush1.msra.mxu0 %v10699
      %11180 = vmatprep.subr.mxu0 %v10716
      %11181 = vmatpush1.msra.mxu0 %v10715
      %11182 = vmatprep.subr.mxu0 %v10732
      %11183 = vmatpush1.msra.mxu0 %v10731
      %11184 = vmatprep.subr.mxu0 0.0
      %11185 = vmatpush1.msra.mxu0 0.0
      %11186 = vmatprep.subr.mxu0 0.0
      %11187 = vmatpush1.msra.mxu0 0.0
      %11188 = vmatprep.subr.mxu0 0.0
      %11189 = vmatpush1.msra.mxu0 0.0
      %11190 = vmatprep.subr.mxu0 0.0
      %11191 = vmatpush1.msra.mxu0 0.0
      %11192 = vmatprep.subr.mxu0 0.0
      %11193 = vmatpush1.msra.mxu0 0.0
      %11194 = vmatprep.subr.mxu0 0.0
      %11195 = vmatpush1.msra.mxu0 0.0
      %11196 = vmatprep.subr.mxu0 0.0
      %11197 = vmatpush1.msra.mxu0 0.0
      %11198 = vmatprep.subr.mxu0 0.0
      %11199 = vmatpush1.msra.mxu0 0.0
      %11200 = vmatprep.subr.mxu0 0.0
      %11201 = vmatpush1.msra.mxu0 0.0
      %11202 = vmatprep.subr.mxu0 0.0
      %11203 = vmatpush1.msra.mxu0 0.0
      %11204 = vmatprep.subr.mxu0 0.0
      %11205 = vmatpush1.msra.mxu0 0.0
      %11206 = vmatprep.subr.mxu0 0.0
      %11207 = vmatpush1.msra.mxu0 0.0
      %11208 = vmatprep.subr.mxu0 0.0
      %11209 = vmatpush1.msra.mxu0 0.0
      %11210 = vmatprep.subr.mxu0 0.0
      %11211 = vmatpush1.msra.mxu0 0.0
      %11212 = vmatprep.subr.mxu0 0.0
      %11213 = vmatpush1.msra.mxu0 0.0
      %11214 = vmatprep.subr.mxu0 0.0
      %11215 = vmatpush1.msra.mxu0 0.0
      %11216 = vmatprep.subr.mxu0 0.0
      %11217 = vmatpush1.msra.mxu0 0.0
      %11218 = vmatprep.subr.mxu0 0.0
      %11219 = vmatpush1.msra.mxu0 0.0
      %11220 = vmatprep.subr.mxu0 0.0
      %11221 = vmatpush1.msra.mxu0 0.0
      %11222 = vmatprep.subr.mxu0 0.0
      %11223 = vmatpush1.msra.mxu0 0.0
      %11224 = vmatprep.subr.mxu0 0.0
      %11225 = vmatpush1.msra.mxu0 0.0
      %11226 = vmatprep.subr.mxu0 0.0
      %11227 = vmatpush1.msra.mxu0 0.0
      %11228 = vmatprep.subr.mxu0 0.0
      %11229 = vmatpush1.msra.mxu0 0.0
      %11230 = vmatprep.subr.mxu0 0.0
      %11231 = vmatpush1.msra.mxu0 0.0
      %11232 = vmatprep.subr.mxu0 0.0
      %11233 = vmatpush1.msra.mxu0 0.0
      %11234 = vmatprep.subr.mxu0 0.0
      %11235 = vmatpush1.msra.mxu0 0.0
      %11236 = vmatprep.subr.mxu0 0.0
      %11237 = vmatpush1.msra.mxu0 0.0
      %11238 = vmatprep.mubr.f32.mxu0 0.0
      %11239 = vmatmul.mubr.f32.gmra.mrb[0].mxu0 %v10817
      %v11240 = vpop.f32.mrb[0].mxu0
      %v11241 = vadd.f32 0.0, %v11240
      %v11242 = vpop.f32.mrb[0].mxu0
      %v11243 = vadd.f32 0.0, %v11242
      %11244 = vdwg.mxu0
      %11245 = vmatprep.subr.mxu0 %v10670
      %11246 = vmatpush1.msra.mxu0 %v10669
      %11247 = vmatprep.subr.mxu0 %v10686
      %11248 = vmatpush1.msra.mxu0 %v10685
      %11249 = vmatprep.subr.mxu0 %v10702
      %11250 = vmatpush1.msra.mxu0 %v10701
      %11251 = vmatprep.subr.mxu0 %v10718
      %11252 = vmatpush1.msra.mxu0 %v10717
      %11253 = vmatprep.subr.mxu0 %v10734
      %11254 = vmatpush1.msra.mxu0 %v10733
      %11255 = vmatprep.subr.mxu0 0.0
      %11256 = vmatpush1.msra.mxu0 0.0
      %11257 = vmatprep.subr.mxu0 0.0
      %11258 = vmatpush1.msra.mxu0 0.0
      %11259 = vmatprep.subr.mxu0 0.0
      %11260 = vmatpush1.msra.mxu0 0.0
      %11261 = vmatprep.subr.mxu0 0.0
      %11262 = vmatpush1.msra.mxu0 0.0
      %11263 = vmatprep.subr.mxu0 0.0
      %11264 = vmatpush1.msra.mxu0 0.0
      %11265 = vmatprep.subr.mxu0 0.0
      %11266 = vmatpush1.msra.mxu0 0.0
      %11267 = vmatprep.subr.mxu0 0.0
      %11268 = vmatpush1.msra.mxu0 0.0
      %11269 = vmatprep.subr.mxu0 0.0
      %11270 = vmatpush1.msra.mxu0 0.0
      %11271 = vmatprep.subr.mxu0 0.0
      %11272 = vmatpush1.msra.mxu0 0.0
      %11273 = vmatprep.subr.mxu0 0.0
      %11274 = vmatpush1.msra.mxu0 0.0
      %11275 = vmatprep.subr.mxu0 0.0
      %11276 = vmatpush1.msra.mxu0 0.0
      %11277 = vmatprep.subr.mxu0 0.0
      %11278 = vmatpush1.msra.mxu0 0.0
      %11279 = vmatprep.subr.mxu0 0.0
      %11280 = vmatpush1.msra.mxu0 0.0
      %11281 = vmatprep.subr.mxu0 0.0
      %11282 = vmatpush1.msra.mxu0 0.0
      %11283 = vmatprep.subr.mxu0 0.0
      %11284 = vmatpush1.msra.mxu0 0.0
      %11285 = vmatprep.subr.mxu0 0.0
      %11286 = vmatpush1.msra.mxu0 0.0
      %11287 = vmatprep.subr.mxu0 0.0
      %11288 = vmatpush1.msra.mxu0 0.0
      %11289 = vmatprep.subr.mxu0 0.0
      %11290 = vmatpush1.msra.mxu0 0.0
      %11291 = vmatprep.subr.mxu0 0.0
      %11292 = vmatpush1.msra.mxu0 0.0
      %11293 = vmatprep.subr.mxu0 0.0
      %11294 = vmatpush1.msra.mxu0 0.0
      %11295 = vmatprep.subr.mxu0 0.0
      %11296 = vmatpush1.msra.mxu0 0.0
      %11297 = vmatprep.subr.mxu0 0.0
      %11298 = vmatpush1.msra.mxu0 0.0
      %11299 = vmatprep.subr.mxu0 0.0
      %11300 = vmatpush1.msra.mxu0 0.0
      %11301 = vmatprep.subr.mxu0 0.0
      %11302 = vmatpush1.msra.mxu0 0.0
      %11303 = vmatprep.subr.mxu0 0.0
      %11304 = vmatpush1.msra.mxu0 0.0
      %11305 = vmatprep.subr.mxu0 0.0
      %11306 = vmatpush1.msra.mxu0 0.0
      %11307 = vmatprep.subr.mxu0 0.0
      %11308 = vmatpush1.msra.mxu0 0.0
      %11309 = vmatprep.mubr.f32.mxu0 0.0
      %11310 = vmatmul.mubr.f32.gmra.mrb[0].mxu0 %v10817
      %v11311 = vpop.f32.mrb[0].mxu0
      %v11312 = vadd.f32 0.0, %v11311
      %v11313 = vpop.f32.mrb[0].mxu0
      %v11314 = vadd.f32 0.0, %v11313
      %11315 = vdwg.mxu0
      %11316 = vmatprep.subr.mxu0 %v10672
      %11317 = vmatpush1.msra.mxu0 %v10671
      %11318 = vmatprep.subr.mxu0 %v10688
      %11319 = vmatpush1.msra.mxu0 %v10687
      %11320 = vmatprep.subr.mxu0 %v10704
      %11321 = vmatpush1.msra.mxu0 %v10703
      %11322 = vmatprep.subr.mxu0 %v10720
      %11323 = vmatpush1.msra.mxu0 %v10719
      %11324 = vmatprep.subr.mxu0 %v10736
      %11325 = vmatpush1.msra.mxu0 %v10735
      %11326 = vmatprep.subr.mxu0 0.0
      %11327 = vmatpush1.msra.mxu0 0.0
      %11328 = vmatprep.subr.mxu0 0.0
      %11329 = vmatpush1.msra.mxu0 0.0
      %11330 = vmatprep.subr.mxu0 0.0
      %11331 = vmatpush1.msra.mxu0 0.0
      %11332 = vmatprep.subr.mxu0 0.0
      %11333 = vmatpush1.msra.mxu0 0.0
      %11334 = vmatprep.subr.mxu0 0.0
      %11335 = vmatpush1.msra.mxu0 0.0
      %11336 = vmatprep.subr.mxu0 0.0
      %11337 = vmatpush1.msra.mxu0 0.0
      %11338 = vmatprep.subr.mxu0 0.0
      %11339 = vmatpush1.msra.mxu0 0.0
      %11340 = vmatprep.subr.mxu0 0.0
      %11341 = vmatpush1.msra.mxu0 0.0
      %11342 = vmatprep.subr.mxu0 0.0
      %11343 = vmatpush1.msra.mxu0 0.0
      %11344 = vmatprep.subr.mxu0 0.0
      %11345 = vmatpush1.msra.mxu0 0.0
      %11346 = vmatprep.subr.mxu0 0.0
      %11347 = vmatpush1.msra.mxu0 0.0
      %11348 = vmatprep.subr.mxu0 0.0
      %11349 = vmatpush1.msra.mxu0 0.0
      %11350 = vmatprep.subr.mxu0 0.0
      %11351 = vmatpush1.msra.mxu0 0.0
      %11352 = vmatprep.subr.mxu0 0.0
      %11353 = vmatpush1.msra.mxu0 0.0
      %11354 = vmatprep.subr.mxu0 0.0
      %11355 = vmatpush1.msra.mxu0 0.0
      %11356 = vmatprep.subr.mxu0 0.0
      %11357 = vmatpush1.msra.mxu0 0.0
      %11358 = vmatprep.subr.mxu0 0.0
      %11359 = vmatpush1.msra.mxu0 0.0
      %11360 = vmatprep.subr.mxu0 0.0
      %11361 = vmatpush1.msra.mxu0 0.0
      %11362 = vmatprep.subr.mxu0 0.0
      %11363 = vmatpush1.msra.mxu0 0.0
      %11364 = vmatprep.subr.mxu0 0.0
      %11365 = vmatpush1.msra.mxu0 0.0
      %11366 = vmatprep.subr.mxu0 0.0
      %11367 = vmatpush1.msra.mxu0 0.0
      %11368 = vmatprep.subr.mxu0 0.0
      %11369 = vmatpush1.msra.mxu0 0.0
      %11370 = vmatprep.subr.mxu0 0.0
      %11371 = vmatpush1.msra.mxu0 0.0
      %11372 = vmatprep.subr.mxu0 0.0
      %11373 = vmatpush1.msra.mxu0 0.0
      %11374 = vmatprep.subr.mxu0 0.0
      %11375 = vmatpush1.msra.mxu0 0.0
      %11376 = vmatprep.subr.mxu0 0.0
      %11377 = vmatpush1.msra.mxu0 0.0
      %11378 = vmatprep.subr.mxu0 0.0
      %11379 = vmatpush1.msra.mxu0 0.0
      %11380 = vmatprep.mubr.f32.mxu0 0.0
      %11381 = vmatmul.mubr.f32.gmra.mrb[0].mxu0 %v10817
      %v11382 = vpop.f32.mrb[0].mxu0
      %v11383 = vadd.f32 0.0, %v11382
      %v11384 = vpop.f32.mrb[0].mxu0
      %v11385 = vadd.f32 0.0, %v11384
      %11386 = vdwg.mxu0
      %v11387 = vadd.f32 %v10299, %v10886
      %v11388 = vadd.f32 %v10300, %v10888
      %v11389 = vadd.f32 %v10301, %v10957
      %v11390 = vadd.f32 %v10302, %v10959
      %v11391 = vadd.f32 %v10303, %v11028
      %v11392 = vadd.f32 %v10304, %v11030
      %v11393 = vadd.f32 %v10305, %v11099
      %v11394 = vadd.f32 %v10306, %v11101
      %v11395 = vadd.f32 %v10307, %v11170
      %v11396 = vadd.f32 %v10308, %v11172
      %v11397 = vadd.f32 %v10309, %v11241
      %v11398 = vadd.f32 %v10310, %v11243
      %v11399 = vadd.f32 %v10311, %v11312
      %v11400 = vadd.f32 %v10312, %v11314
      %v11401 = vadd.f32 %v10313, %v11383
      %v11402 = vadd.f32 %v10314, %v11385
      %v11403 = vld [vmem:[%s2 + $0x28] sm:$0xff]
      %11405 = vset.pattern.permute.xlu0 0
      %11406 = vperm.xlu0 %11405, %v11403
      %v11407 = vpop.permute.xlu0 %11406
      %v11409 = vadd.f32 %v11387, %v11407
      %v11410 = vadd.f32 %v11388, %v11407
      %v11411 = vadd.f32 %v11389, %v11407
      %v11412 = vadd.f32 %v11390, %v11407
      %v11413 = vadd.f32 %v11391, %v11407
      %v11414 = vadd.f32 %v11392, %v11407
      %v11415 = vadd.f32 %v11393, %v11407
      %v11416 = vadd.f32 %v11394, %v11407
      %v11417 = vadd.f32 %v11395, %v11407
      %v11418 = vadd.f32 %v11396, %v11407
      %v11419 = vadd.f32 %v11397, %v11407
      %v11420 = vadd.f32 %v11398, %v11407
      %v11421 = vadd.f32 %v11399, %v11407
      %v11422 = vadd.f32 %v11400, %v11407
      %v11423 = vadd.f32 %v11401, %v11407
      %v11424 = vadd.f32 %v11402, %v11407
      %v11425 = vmax.f32 %v11409, 0.0
      %v11426 = vmax.f32 %v11410, 0.0
      %v11427 = vmax.f32 %v11411, 0.0
      %v11428 = vmax.f32 %v11412, 0.0
      %v11429 = vmax.f32 %v11413, 0.0
      %v11430 = vmax.f32 %v11414, 0.0
      %v11431 = vmax.f32 %v11415, 0.0
      %v11432 = vmax.f32 %v11416, 0.0
      %v11433 = vmax.f32 %v11417, 0.0
      %v11434 = vmax.f32 %v11418, 0.0
      %v11435 = vmax.f32 %v11419, 0.0
      %v11436 = vmax.f32 %v11420, 0.0
      %v11437 = vmax.f32 %v11421, 0.0
      %v11438 = vmax.f32 %v11422, 0.0
      %v11439 = vmax.f32 %v11423, 0.0
      %v11440 = vmax.f32 %v11424, 0.0
      %11441 = vst [vmem:[%s197] sm:$0xff] %v11425
      %11442 = vst [vmem:[%s197 + $0x8] sm:$0xff] %v11426
      %11443 = vst [vmem:[%s197 + $0x10] sm:$0xff] %v11427
      %11444 = vst [vmem:[%s197 + $0x18] sm:$0xff] %v11428
      %11445 = vst [vmem:[%s197 + $0x20] sm:$0xff] %v11429
      %11446 = vst [vmem:[%s197 + $0x28] sm:$0xff] %v11430
      %11447 = vst [vmem:[%s197 + $0x30] sm:$0xff] %v11431
      %11448 = vst [vmem:[%s197 + $0x38] sm:$0xff] %v11432
      %11449 = vst [vmem:[%s197 + $0x40] sm:$0xff] %v11433
      %11450 = vst [vmem:[%s197 + $0x48] sm:$0xff] %v11434
      %11451 = vst [vmem:[%s197 + $0x50] sm:$0xff] %v11435
      %11452 = vst [vmem:[%s197 + $0x58] sm:$0xff] %v11436
      %11453 = vst [vmem:[%s197 + $0x60] sm:$0xff] %v11437
      %11454 = vst [vmem:[%s197 + $0x68] sm:$0xff] %v11438
      %11455 = vst [vmem:[%s197 + $0x70] sm:$0xff] %v11439
      %11456 = vst [vmem:[%s197 + $0x78] sm:$0xff] %v11440
      %p11457 = scmp.lt.s32.totalorder %s15, 1
      %s11458 = scalar_select %p11457, %s15, 1
      %s11459 = smul.addr %s11458, 16
      %s11460 = smul.addr %s11459, 8
      %s11461 = scalar_lea.vmem %s4, %s11460
      // Predicated region
      $region37: #{_lambda_.1} parent=35 // pred_check
        %p11462 = pneg %p122
      $region38: #{_lambda_.1} parent=35 // pred_check_branch
        %11464 = sbr.rel (%p11462) target = $region40
      $region39: #{_lambda_.1} parent=35 // pred_region
        _
      $region40: #{_lambda_.1} parent=35 // pred_fallthru
        _
    $region36: #{_lambda_.1} parent=5 // pred_fallthru
      _
    %p11465 = scmp.le.s32.totalorder 2, %s10
    // Predicated region
    $region41: #{_lambda_.1} parent=5 // pred_check
      %p11466 = pneg %p11465
    $region42: #{_lambda_.1} parent=5 // pred_check_branch
      %11468 = sbr.rel (%p11466) target = $region44
    $region43: #{_lambda_.1} parent=5 // pred_region
      %s11469 = ssub.s32 %s10, 2
      // Predicated region
      $region45: #{_lambda_.1} parent=43 // pred_check
        %p11470 = pneg %p128
      $region46: #{_lambda_.1} parent=43 // pred_check_branch
        %11472 = sbr.rel (%p11470) target = $region48
      $region47: #{_lambda_.1} parent=43 // pred_region
        %p11473 = scmp.lt.s32.totalorder %s16, 1
        %s11474 = scalar_select %p11473, %s16, 1
        %s11475 = smul.addr %s11474, 16
        %s11476 = smul.addr %s11475, 8
        %s11477 = scalar_lea.vmem %s4, %s11476
      $region48: #{_lambda_.1} parent=43 // pred_fallthru
        _
    $region44: #{_lambda_.1} parent=5 // pred_fallthru
      _
  $region6: #{_lambda_.1} parent=0 // loop_footer
    %s14 = sadd.s32 1, %s10
  $region7: #{_lambda_.1} parent=0 // loop_footer_branch
    %9 = sbr.rel target = $region3
  $region8: #{_lambda_.1} parent=0 // loop_exit
    _

</llo_original>
